<compile_context>
chip_gen: v6e
topology: v6e:2x2x1
jax: 0.10.0
libtpu: 0.0.40
codegen_flags: <defaults>
</compile_context>

<pallas_src>
import jax
import jax.numpy as jnp
from jax import lax
from jax.experimental import pallas as pl
from jax.experimental.pallas import tpu as pltpu

BN_EPS = 1e-5
MAX_TILE_M = 512                  # fits v7x's 32 MiB scoped VMEM w/ 2x buffering
VMEM_LIMIT_BYTES = 32 * 1024 * 1024


def _round_up(x, m):
    return ((x + m - 1) // m) * m


# ----------------------------------------------------------------------------
# Pallas kernel A: tiled matmul (+bias) and per-tile BN partial statistics
# ----------------------------------------------------------------------------
def _matmul_kernel_factory(with_bias, with_stats):
    def kernel(*refs):
        i = 0
        x_ref = refs[i]; i += 1
        w_ref = refs[i]; i += 1
        b_ref = None
        if with_bias:
            b_ref = refs[i]; i += 1
        y_ref = refs[i]; i += 1
        y = jnp.dot(x_ref[...], w_ref[...], preferred_element_type=jnp.float32)
        if with_bias:
            y = y + b_ref[...]
        y_ref[...] = y
        if with_stats:
            s_ref = refs[i]
            ssum = jnp.sum(y, axis=0, keepdims=True)        # (1, N)
            ssq = jnp.sum(y * y, axis=0, keepdims=True)      # (1, N)
            s_ref[...] = jnp.concatenate([ssum, ssq], axis=0)[None]  # (1, 2, N)
    return kernel


def _pallas_matmul(patches, wmat, bias, *, with_stats):
    """patches: (Mpad, K) bf16, wmat: (K, N) bf16, bias: (1, N) f32 or None.
    Returns (y (Mpad, N) f32, partial_stats (num_tiles, 2, N) f32 or None)."""
    Mpad, K = patches.shape
    N = wmat.shape[1]
    tm = min(MAX_TILE_M, Mpad)
    num_tiles = Mpad // tm

    in_specs = [
        pl.BlockSpec((tm, K), lambda i: (i, 0)),     # streamed patch tiles
        pl.BlockSpec((K, N), lambda i: (0, 0)),      # weight resident in VMEM
    ]
    inputs = [patches, wmat]
    if bias is not None:
        in_specs.append(pl.BlockSpec((1, N), lambda i: (0, 0)))
        inputs.append(bias)

    out_shape = [jax.ShapeDtypeStruct((Mpad, N), jnp.float32)]
    out_specs = [pl.BlockSpec((tm, N), lambda i: (i, 0))]
    if with_stats:
        out_shape.append(jax.ShapeDtypeStruct((num_tiles, 2, N), jnp.float32))
        out_specs.append(pl.BlockSpec((1, 2, N), lambda i: (i, 0, 0)))

    outs = pl.pallas_call(
        _matmul_kernel_factory(bias is not None, with_stats),
        out_shape=out_shape,
        grid=(num_tiles,),
        in_specs=in_specs,
        out_specs=out_specs,
        compiler_params=pltpu.CompilerParams(
            dimension_semantics=("parallel",),
            vmem_limit_bytes=VMEM_LIMIT_BYTES,
        ),
    )(*inputs)
    if with_stats:
        return outs[0], outs[1]
    return outs[0], None


# ----------------------------------------------------------------------------
# Pallas kernel B: BN-apply epilogue (y*scale + shift [+ residual] [ReLU])
# ----------------------------------------------------------------------------
def _affine_kernel_factory(has_residual, relu):
    def kernel(*refs):
        if has_residual:
            y_ref, ab_ref, r_ref, o_ref = refs
        else:
            y_ref, ab_ref, o_ref = refs
        y = y_ref[...] * ab_ref[0:1, :] + ab_ref[1:2, :]
        if has_residual:
            y = y + r_ref[...]
        if relu:
            y = jnp.maximum(y, 0.0)
        o_ref[...] = y
    return kernel


def _pallas_affine(y, scale_shift, residual, *, relu):
    Mpad, N = y.shape
    tm = min(MAX_TILE_M, Mpad)
    num_tiles = Mpad // tm
    in_specs = [
        pl.BlockSpec((tm, N), lambda i: (i, 0)),
        pl.BlockSpec((2, N), lambda i: (0, 0)),      # packed scale/shift, resident
    ]
    inputs = [y, scale_shift]
    if residual is not None:
        in_specs.append(pl.BlockSpec((tm, N), lambda i: (i, 0)))
        inputs.append(residual)
    return pl.pallas_call(
        _affine_kernel_factory(residual is not None, relu),
        out_shape=jax.ShapeDtypeStruct((Mpad, N), jnp.float32),
        grid=(num_tiles,),
        in_specs=in_specs,
        out_specs=pl.BlockSpec((tm, N), lambda i: (i, 0)),
        compiler_params=pltpu.CompilerParams(
            dimension_semantics=("parallel",),
            vmem_limit_bytes=VMEM_LIMIT_BYTES,
        ),
    )(*inputs)


# ----------------------------------------------------------------------------
# Fused conv/linear layer: matmul -> (exact tiled BN) -> residual -> ReLU
# ----------------------------------------------------------------------------
def fused_conv_layer(patches, wmat, *, bias=None, gamma=None, beta=None,
                     bn, relu, residual=None, m_real):
    M, K = patches.shape
    N = wmat.shape[1]
    tm = min(MAX_TILE_M, _round_up(M, 8))
    Mpad = _round_up(M, tm)

    p_bf = patches.astype(jnp.bfloat16)
    w_bf = wmat.astype(jnp.bfloat16)
    if Mpad != M:
        p_bf = jnp.pad(p_bf, ((0, Mpad - M), (0, 0)))

    if bn:
        # Conv bias is intentionally dropped here: training-mode BN mean
        # subtraction cancels it exactly. Padded zero rows contribute 0 to the
        # partial sums, so statistics over m_real rows stay exact.
        y, partial = _pallas_matmul(p_bf, w_bf, None, with_stats=True)
        total = jnp.sum(partial, axis=0)                      # (2, N) f32
        mean = total[0] / m_real
        var = jnp.maximum(total[1] / m_real - mean * mean, 0.0)
        scale = gamma * lax.rsqrt(var + BN_EPS)
        shift = beta - mean * scale
        ss = jnp.stack([scale, shift], axis=0).astype(jnp.float32)
        res = None
        if residual is not None:
            res = residual.astype(jnp.float32)
            if Mpad != M:
                res = jnp.pad(res, ((0, Mpad - M), (0, 0)))
        y = _pallas_affine(y, ss, res, relu=relu)
    else:
        bias2d = bias.reshape(1, N).astype(jnp.float32)
        y, _ = _pallas_matmul(p_bf, w_bf, bias2d, with_stats=False)
        if relu:
            y = jnp.maximum(y, 0.0)   # not used by this model for bn=False

    if Mpad != M:
        y = y[:M]
    return y


# ----------------------------------------------------------------------------
# JAX glue: channels-last im2col + weight reordering
# ----------------------------------------------------------------------------
def im2col_nhwc(x, kh, kw, stride, dilation, padding):
    B, H, W, C = x.shape
    sh, sw = stride
    dh, dw = dilation
    ph, pw = padding
    xp = jnp.pad(x, ((0, 0), (ph, ph), (pw, pw), (0, 0)))
    Hp, Wp = H + 2 * ph, W + 2 * pw
    Ho = (Hp - dh * (kh - 1) - 1) // sh + 1
    Wo = (Wp - dw * (kw - 1) - 1) // sw + 1
    taps = []
    for i in range(kh):
        r0 = i * dh
        for j in range(kw):
            c0 = j * dw
            taps.append(xp[:, r0:r0 + sh * (Ho - 1) + 1:sh,
                              c0:c0 + sw * (Wo - 1) + 1:sw, :])
    p = jnp.stack(taps, axis=3)                      # (B, Ho, Wo, kh*kw, C)
    p = p.reshape(B * Ho * Wo, kh * kw * C)          # column order = (tap, ch)
    return p, Ho, Wo


def weight_to_mat(w):
    # torch (C_out, C_in, kh, kw) -> (kh*kw*C_in, C_out), matching im2col_nhwc
    c_out, c_in, kh, kw = w.shape
    return w.transpose(2, 3, 1, 0).reshape(kh * kw * c_in, c_out)


def conv_block(x_nhwc, w, b, gamma, beta, stride, dilation, padding,
               *, bn, relu, residual_nhwc=None):
    B = x_nhwc.shape[0]
    kh, kw = w.shape[2], w.shape[3]
    p, Ho, Wo = im2col_nhwc(x_nhwc, kh, kw, stride, dilation, padding)
    wmat = weight_to_mat(w)
    m_real = B * Ho * Wo
    res = None
    if residual_nhwc is not None:
        res = residual_nhwc.reshape(m_real, -1)
    y = fused_conv_layer(p, wmat, bias=(None if bn else b), gamma=gamma,
                         beta=beta, bn=bn, relu=relu, residual=res,
                         m_real=m_real)
    return y.reshape(B, Ho, Wo, -1)


def parallel_conv_block(x_nhwc, branch_params, branch_cfg):
    """Fuse N parallel conv-BN-ReLU branches (same output spatial shape) into a
    single Pallas matmul: patch matrices concatenated along K, block-diagonal
    weight, so the channel concat is free and the output is lane-denser."""
    B = x_nhwc.shape[0]
    patch_list, wmats, gammas, betas = [], [], [], []
    Ho = Wo = None
    for (w, _b, g, be), (stride, dil, pad) in zip(branch_params, branch_cfg):
        kh, kw = w.shape[2], w.shape[3]
        p, ho, wo = im2col_nhwc(x_nhwc, kh, kw, stride, dil, pad)
        assert Ho is None or (Ho, Wo) == (ho, wo)
        Ho, Wo = ho, wo
        patch_list.append(p)
        wmats.append(weight_to_mat(w))
        gammas.append(g)
        betas.append(be)
    patches = jnp.concatenate(patch_list, axis=1)
    Ktot = patches.shape[1]
    Ntot = sum(wm.shape[1] for wm in wmats)
    wfull = jnp.zeros((Ktot, Ntot), jnp.float32)
    ko = no = 0
    for wm in wmats:
        k, n = wm.shape
        wfull = wfull.at[ko:ko + k, no:no + n].set(wm)
        ko += k
        no += n
    gamma = jnp.concatenate(gammas)
    beta = jnp.concatenate(betas)
    m_real = B * Ho * Wo
    y = fused_conv_layer(patches, wfull, gamma=gamma, beta=beta,
                         bn=True, relu=True, m_real=m_real)
    return y.reshape(B, Ho, Wo, Ntot)


# ----------------------------------------------------------------------------
# Parameter init (deterministic, PyTorch-style uniform bounds)
# ----------------------------------------------------------------------------
def _init_conv(key, c_out, c_in, kh, kw):
    k1, k2 = jax.random.split(key)
    bound = 1.0 / float(c_in * kh * kw) ** 0.5
    w = jax.random.uniform(k1, (c_out, c_in, kh, kw), jnp.float32, -bound, bound)
    b = jax.random.uniform(k2, (c_out,), jnp.float32, -bound, bound)
    return w, b


def init_params(key, in_channel, T, output_size):
    keys = jax.random.split(key, 16)
    params = {}

    temporal = []
    for i in range(5):
        w, b = _init_conv(keys[i], 10, 1, 1, 33)
        temporal.append((w, b, jnp.ones((10,), jnp.float32),
                         jnp.zeros((10,), jnp.float32)))
    params["temporal"] = temporal

    spatial = []
    for i, kh in enumerate([in_channel, in_channel // 2,
                            in_channel // 4, in_channel // 8]):
        w, b = _init_conv(keys[5 + i], 50, 50, kh, 1)
        spatial.append((w, b, jnp.ones((50,), jnp.float32),
                        jnp.zeros((50,), jnp.float32)))
    params["spatial"] = spatial

    w1, b1 = _init_conv(keys[9], 200, 200, 3, 3)
    w2, b2 = _init_conv(keys[10], 200, 200, 3, 3)
    params["residual"] = dict(
        w1=w1, b1=b1, g1=jnp.ones((200,), jnp.float32), be1=jnp.zeros((200,), jnp.float32),
        w2=w2, b2=b2, g2=jnp.ones((200,), jnp.float32), be2=jnp.zeros((200,), jnp.float32),
    )

    wc, bc = _init_conv(keys[11], 50, 200, 3, 5)
    W1 = (T + 2 * 16 - 32 - 1) // 2 + 1               # temporal output width
    H2 = (in_channel + 14 - in_channel) // 2 + 1       # spatial output height (= 8)
    flat = 50 * (H2 - 2) * (W1 - 4)
    kl1, kl2 = jax.random.split(keys[12])
    bound = 1.0 / float(flat) ** 0.5
    wl = jax.random.uniform(kl1, (output_size, flat), jnp.float32, -bound, bound)
    bl = jax.random.uniform(kl2, (output_size,), jnp.float32, -bound, bound)
    params["output"] = dict(wc=wc, bc=bc, wl=wl, bl=bl)
    return params


# ----------------------------------------------------------------------------
# Forward pass (mirrors EEGChannelNetEncoder.forward), channels-last inside
# ----------------------------------------------------------------------------
def eeg_channelnet_encoder(params, x_nchw):
    x = x_nchw.transpose(0, 2, 3, 1)                 # NCHW -> NHWC once

    # temporal_block: 5 dilated (1,33) conv-BN-ReLU branches, fused
    t_cfg = [((1, 2), (1, d), (0, p))
             for d, p in zip((1, 2, 4, 8, 16), (16, 32, 64, 128, 256))]
    x = parallel_conv_block(x, params["temporal"], t_cfg)     # (B, E, W1, 50)

    # spatial_block: 4 spatial conv-BN-ReLU branches, fused
    s_cfg = [((2, 1), (1, 1), (p, 0)) for p in (7, 3, 1, 0)]
    x = parallel_conv_block(x, params["spatial"], s_cfg)      # (B, 8, W1, 200)

    # reduced_residual_block: conv-BN-ReLU -> conv-BN (+skip) -> ReLU
    rp = params["residual"]
    h = conv_block(x, rp["w1"], None, rp["g1"], rp["be1"],
                   (1, 1), (1, 1), (1, 1), bn=True, relu=True)
    x = conv_block(h, rp["w2"], None, rp["g2"], rp["be2"],
                   (1, 1), (1, 1), (1, 1), bn=True, relu=True,
                   residual_nhwc=x)

    # output_block: Conv2d(200->50, (3,5)) -> Flatten (NCHW order) -> Linear
    op = params["output"]
    x = conv_block(x, op["wc"], op["bc"], None, None,
                   (1, 1), (1, 1), (0, 0), bn=False, relu=False)
    B, Hc, Wc, Cc = x.shape
    x = x.transpose(0, 3, 1, 2).reshape(B, Cc * Hc * Wc)      # torch Flatten
    y = fused_conv_layer(x, op["wl"].T, bias=op["bl"],
                         bn=False, relu=False, m_real=B)
    return y


if __name__ == "__main__":
    B, in_channel, T, output_size = 2, 1, 16, 32     # (BS, 1, electrodes, samples)
    electrodes = 16
    key = jax.random.PRNGKey(0)
    kp, kx = jax.random.split(key)
    params = init_params(kp, electrodes, T, output_size)
    x = jax.random.normal(kx, (B, 1, electrodes, T), dtype=jnp.float32)

    fwd = jax.jit(eeg_channelnet_encoder)
    out = fwd(params, x)
    jax.block_until_ready(out)
    assert out.shape == (B, output_size) and out.dtype == jnp.float32
    assert bool(jnp.all(jnp.isfinite(out)))
    print("KERNEL_OK")
</pallas_src>

<mosaic_0001>
module attributes {stable_mosaic.version = 11 : i64} {
  func.func @kernel(%arg0: i32, %arg1: memref<256x165xbf16, #tpu.memory_space<vmem>>, %arg2: memref<165x50xbf16, #tpu.memory_space<vmem>>, %arg3: memref<256x50xf32, #tpu.memory_space<vmem>>, %arg4: memref<1x2x50xf32, #tpu.memory_space<vmem>>) attributes {dimension_semantics = [#tpu.dimension_semantics<parallel>], iteration_bounds = array<i64: 1>, scalar_prefetch = 0 : i64, scratch_operands = 0 : i64, tpu.core_type = #tpu.core_type<tc>, window_params = [{transform_indices = @transform_0, window_bounds = array<i64: 256, 165>}, {pipeline_mode = #tpu.pipeline_mode<synchronous>, transform_indices = @transform_1, window_bounds = array<i64: 165, 50>}, {transform_indices = @transform_2, window_bounds = array<i64: 256, 50>}, {transform_indices = @transform_3, window_bounds = array<i64: 1, 2, 50>}]} {
    %c0 = arith.constant 0 : index
    %c0_0 = arith.constant 0 : index
    %0 = vector.load %arg1[%c0, %c0_0] : memref<256x165xbf16, #tpu.memory_space<vmem>>, vector<256x165xbf16>
    %c0_1 = arith.constant 0 : index
    %c0_2 = arith.constant 0 : index
    %1 = vector.load %arg2[%c0_1, %c0_2] : memref<165x50xbf16, #tpu.memory_space<vmem>>, vector<165x50xbf16>
    %cst = arith.constant dense<0.000000e+00> : vector<256x50xf32>
    %2 = tpu.matmul %0, %1, %cst {dimension_numbers = #tpu.dot_dimension_numbers<[1], [0], [0], [1], [0, 0, 1, 1], [], []>} : vector<256x165xbf16>, vector<165x50xbf16>, vector<256x50xf32> -> vector<256x50xf32>
    %c0_3 = arith.constant 0 : index
    %c0_4 = arith.constant 0 : index
    %3 = vector.load %arg3[%c0_3, %c0_4] : memref<256x50xf32, #tpu.memory_space<vmem>>, vector<256x50xf32>
    tpu.vector_store %arg3[%c0_3, %c0_4], %2 {strides = array<i32>} : memref<256x50xf32, #tpu.memory_space<vmem>>, vector<256x50xf32>,
    %cst_5 = arith.constant dense<0.000000e+00> : vector<50xf32>
    %4 = vector.multi_reduction <add>, %2, %cst_5 [0] : vector<256x50xf32> to vector<50xf32>
    %5 = vector.shape_cast %4 : vector<50xf32> to vector<1x50xf32>
    %6 = arith.mulf %2, %2 : vector<256x50xf32>
    %cst_6 = arith.constant dense<0.000000e+00> : vector<50xf32>
    %7 = vector.multi_reduction <add>, %6, %cst_6 [0] : vector<256x50xf32> to vector<50xf32>
    %8 = vector.shape_cast %7 : vector<50xf32> to vector<1x50xf32>
    %9 = tpu.concatenate %5, %8 in 0 : vector<1x50xf32>, vector<1x50xf32> -> vector<2x50xf32>
    %10 = vector.shape_cast %9 : vector<2x50xf32> to vector<1x2x50xf32>
    %c0_7 = arith.constant 0 : index
    %c0_8 = arith.constant 0 : index
    %c0_9 = arith.constant 0 : index
    %11 = vector.load %arg4[%c0_7, %c0_8, %c0_9] : memref<1x2x50xf32, #tpu.memory_space<vmem>>, vector<1x2x50xf32>
    tpu.vector_store %arg4[%c0_7, %c0_8, %c0_9], %10 {strides = array<i32>} : memref<1x2x50xf32, #tpu.memory_space<vmem>>, vector<1x2x50xf32>,
    return
  }
  func.func @transform_0(%arg0: i32) -> (i32, i32) {
    %c0_i32 = arith.constant 0 : i32
    %c0_i32_0 = arith.constant 0 : i32
    return %arg0, %c0_i32 : i32, i32
  }
  func.func @transform_1(%arg0: i32) -> (i32, i32) {
    %c0_i32 = arith.constant 0 : i32
    %c0_i32_0 = arith.constant 0 : i32
    %c0_i32_1 = arith.constant 0 : i32
    return %c0_i32, %c0_i32_0 : i32, i32
  }
  func.func @transform_2(%arg0: i32) -> (i32, i32) {
    %c0_i32 = arith.constant 0 : i32
    %c0_i32_0 = arith.constant 0 : i32
    return %arg0, %c0_i32 : i32, i32
  }
  func.func @transform_3(%arg0: i32) -> (i32, i32, i32) {
    %c0_i32 = arith.constant 0 : i32
    %c0_i32_0 = arith.constant 0 : i32
    %c0_i32_1 = arith.constant 0 : i32
    return %arg0, %c0_i32, %c0_i32_0 : i32, i32, i32
  }
}

module attributes {stable_mosaic.version = 11 : i64} {
  func.func @kernel(%arg0: i32, %arg1: memref<256x50xf32, #tpu.memory_space<vmem>>, %arg2: memref<2x50xf32, #tpu.memory_space<vmem>>, %arg3: memref<256x50xf32, #tpu.memory_space<vmem>>) attributes {dimension_semantics = [#tpu.dimension_semantics<parallel>], iteration_bounds = array<i64: 1>, scalar_prefetch = 0 : i64, scratch_operands = 0 : i64, tpu.core_type = #tpu.core_type<tc>, window_params = [{transform_indices = @transform_0, window_bounds = array<i64: 256, 50>}, {pipeline_mode = #tpu.pipeline_mode<synchronous>, transform_indices = @transform_1, window_bounds = array<i64: 2, 50>}, {transform_indices = @transform_2, window_bounds = array<i64: 256, 50>}]} {
    %c0 = arith.constant 0 : index
    %c0_0 = arith.constant 0 : index
    %0 = vector.load %arg1[%c0, %c0_0] : memref<256x50xf32, #tpu.memory_space<vmem>>, vector<256x50xf32>
    %c0_1 = arith.constant 0 : index
    %c0_2 = arith.constant 0 : index
    %1 = vector.load %arg2[%c0_1, %c0_2] : memref<2x50xf32, #tpu.memory_space<vmem>>, vector<1x50xf32>
    %2 = vector.broadcast %1 : vector<1x50xf32> to vector<256x50xf32>
    %3 = arith.mulf %0, %2 : vector<256x50xf32>
    %c1 = arith.constant 1 : index
    %c0_3 = arith.constant 0 : index
    %4 = vector.load %arg2[%c1, %c0_3] : memref<2x50xf32, #tpu.memory_space<vmem>>, vector<1x50xf32>
    %5 = vector.broadcast %4 : vector<1x50xf32> to vector<256x50xf32>
    %6 = arith.addf %3, %5 : vector<256x50xf32>
    %cst = arith.constant 0.000000e+00 : f32
    %7 = vector.broadcast %cst : f32 to vector<256x50xf32>
    %8 = arith.maximumf %6, %7 : vector<256x50xf32>
    %c0_4 = arith.constant 0 : index
    %c0_5 = arith.constant 0 : index
    %9 = vector.load %arg3[%c0_4, %c0_5] : memref<256x50xf32, #tpu.memory_space<vmem>>, vector<256x50xf32>
    tpu.vector_store %arg3[%c0_4, %c0_5], %8 {strides = array<i32>} : memref<256x50xf32, #tpu.memory_space<vmem>>, vector<256x50xf32>,
    return
  }
  func.func @transform_0(%arg0: i32) -> (i32, i32) {
    %c0_i32 = arith.constant 0 : i32
    %c0_i32_0 = arith.constant 0 : i32
    return %arg0, %c0_i32 : i32, i32
  }
  func.func @transform_1(%arg0: i32) -> (i32, i32) {
    %c0_i32 = arith.constant 0 : i32
    %c0_i32_0 = arith.constant 0 : i32
    %c0_i32_1 = arith.constant 0 : i32
    return %c0_i32, %c0_i32_0 : i32, i32
  }
  func.func @transform_2(%arg0: i32) -> (i32, i32) {
    %c0_i32 = arith.constant 0 : i32
    %c0_i32_0 = arith.constant 0 : i32
    return %arg0, %c0_i32 : i32, i32
  }
}

module attributes {stable_mosaic.version = 11 : i64} {
  func.func @kernel(%arg0: i32, %arg1: memref<128x1500xbf16, #tpu.memory_space<vmem>>, %arg2: memref<1500x200xbf16, #tpu.memory_space<vmem>>, %arg3: memref<128x200xf32, #tpu.memory_space<vmem>>, %arg4: memref<1x2x200xf32, #tpu.memory_space<vmem>>) attributes {dimension_semantics = [#tpu.dimension_semantics<parallel>], iteration_bounds = array<i64: 1>, scalar_prefetch = 0 : i64, scratch_operands = 0 : i64, tpu.core_type = #tpu.core_type<tc>, window_params = [{transform_indices = @transform_0, window_bounds = array<i64: 128, 1500>}, {pipeline_mode = #tpu.pipeline_mode<synchronous>, transform_indices = @transform_1, window_bounds = array<i64: 1500, 200>}, {transform_indices = @transform_2, window_bounds = array<i64: 128, 200>}, {transform_indices = @transform_3, window_bounds = array<i64: 1, 2, 200>}]} {
    %c0 = arith.constant 0 : index
    %c0_0 = arith.constant 0 : index
    %0 = vector.load %arg1[%c0, %c0_0] : memref<128x1500xbf16, #tpu.memory_space<vmem>>, vector<128x1500xbf16>
    %c0_1 = arith.constant 0 : index
    %c0_2 = arith.constant 0 : index
    %1 = vector.load %arg2[%c0_1, %c0_2] : memref<1500x200xbf16, #tpu.memory_space<vmem>>, vector<1500x200xbf16>
    %cst = arith.constant dense<0.000000e+00> : vector<128x200xf32>
    %2 = tpu.matmul %0, %1, %cst {dimension_numbers = #tpu.dot_dimension_numbers<[1], [0], [0], [1], [0, 0, 1, 1], [], []>} : vector<128x1500xbf16>, vector<1500x200xbf16>, vector<128x200xf32> -> vector<128x200xf32>
    %c0_3 = arith.constant 0 : index
    %c0_4 = arith.constant 0 : index
    %3 = vector.load %arg3[%c0_3, %c0_4] : memref<128x200xf32, #tpu.memory_space<vmem>>, vector<128x200xf32>
    tpu.vector_store %arg3[%c0_3, %c0_4], %2 {strides = array<i32>} : memref<128x200xf32, #tpu.memory_space<vmem>>, vector<128x200xf32>,
    %cst_5 = arith.constant dense<0.000000e+00> : vector<200xf32>
    %4 = vector.multi_reduction <add>, %2, %cst_5 [0] : vector<128x200xf32> to vector<200xf32>
    %5 = vector.shape_cast %4 : vector<200xf32> to vector<1x200xf32>
    %6 = arith.mulf %2, %2 : vector<128x200xf32>
    %cst_6 = arith.constant dense<0.000000e+00> : vector<200xf32>
    %7 = vector.multi_reduction <add>, %6, %cst_6 [0] : vector<128x200xf32> to vector<200xf32>
    %8 = vector.shape_cast %7 : vector<200xf32> to vector<1x200xf32>
    %9 = tpu.concatenate %5, %8 in 0 : vector<1x200xf32>, vector<1x200xf32> -> vector<2x200xf32>
    %10 = vector.shape_cast %9 : vector<2x200xf32> to vector<1x2x200xf32>
    %c0_7 = arith.constant 0 : index
    %c0_8 = arith.constant 0 : index
    %c0_9 = arith.constant 0 : index
    %11 = vector.load %arg4[%c0_7, %c0_8, %c0_9] : memref<1x2x200xf32, #tpu.memory_space<vmem>>, vector<1x2x200xf32>
    tpu.vector_store %arg4[%c0_7, %c0_8, %c0_9], %10 {strides = array<i32>} : memref<1x2x200xf32, #tpu.memory_space<vmem>>, vector<1x2x200xf32>,
    return
  }
  func.func @transform_0(%arg0: i32) -> (i32, i32) {
    %c0_i32 = arith.constant 0 : i32
    %c0_i32_0 = arith.constant 0 : i32
    return %arg0, %c0_i32 : i32, i32
  }
  func.func @transform_1(%arg0: i32) -> (i32, i32) {
    %c0_i32 = arith.constant 0 : i32
    %c0_i32_0 = arith.constant 0 : i32
    %c0_i32_1 = arith.constant 0 : i32
    return %c0_i32, %c0_i32_0 : i32, i32
  }
  func.func @transform_2(%arg0: i32) -> (i32, i32) {
    %c0_i32 = arith.constant 0 : i32
    %c0_i32_0 = arith.constant 0 : i32
    return %arg0, %c0_i32 : i32, i32
  }
  func.func @transform_3(%arg0: i32) -> (i32, i32, i32) {
    %c0_i32 = arith.constant 0 : i32
    %c0_i32_0 = arith.constant 0 : i32
    %c0_i32_1 = arith.constant 0 : i32
    return %arg0, %c0_i32, %c0_i32_0 : i32, i32, i32
  }
}

module attributes {stable_mosaic.version = 11 : i64} {
  func.func @kernel(%arg0: i32, %arg1: memref<128x200xf32, #tpu.memory_space<vmem>>, %arg2: memref<2x200xf32, #tpu.memory_space<vmem>>, %arg3: memref<128x200xf32, #tpu.memory_space<vmem>>) attributes {dimension_semantics = [#tpu.dimension_semantics<parallel>], iteration_bounds = array<i64: 1>, scalar_prefetch = 0 : i64, scratch_operands = 0 : i64, tpu.core_type = #tpu.core_type<tc>, window_params = [{transform_indices = @transform_0, window_bounds = array<i64: 128, 200>}, {pipeline_mode = #tpu.pipeline_mode<synchronous>, transform_indices = @transform_1, window_bounds = array<i64: 2, 200>}, {transform_indices = @transform_2, window_bounds = array<i64: 128, 200>}]} {
    %c0 = arith.constant 0 : index
    %c0_0 = arith.constant 0 : index
    %0 = vector.load %arg1[%c0, %c0_0] : memref<128x200xf32, #tpu.memory_space<vmem>>, vector<128x200xf32>
    %c0_1 = arith.constant 0 : index
    %c0_2 = arith.constant 0 : index
    %1 = vector.load %arg2[%c0_1, %c0_2] : memref<2x200xf32, #tpu.memory_space<vmem>>, vector<1x200xf32>
    %2 = vector.broadcast %1 : vector<1x200xf32> to vector<128x200xf32>
    %3 = arith.mulf %0, %2 : vector<128x200xf32>
    %c1 = arith.constant 1 : index
    %c0_3 = arith.constant 0 : index
    %4 = vector.load %arg2[%c1, %c0_3] : memref<2x200xf32, #tpu.memory_space<vmem>>, vector<1x200xf32>
    %5 = vector.broadcast %4 : vector<1x200xf32> to vector<128x200xf32>
    %6 = arith.addf %3, %5 : vector<128x200xf32>
    %cst = arith.constant 0.000000e+00 : f32
    %7 = vector.broadcast %cst : f32 to vector<128x200xf32>
    %8 = arith.maximumf %6, %7 : vector<128x200xf32>
    %c0_4 = arith.constant 0 : index
    %c0_5 = arith.constant 0 : index
    %9 = vector.load %arg3[%c0_4, %c0_5] : memref<128x200xf32, #tpu.memory_space<vmem>>, vector<128x200xf32>
    tpu.vector_store %arg3[%c0_4, %c0_5], %8 {strides = array<i32>} : memref<128x200xf32, #tpu.memory_space<vmem>>, vector<128x200xf32>,
    return
  }
  func.func @transform_0(%arg0: i32) -> (i32, i32) {
    %c0_i32 = arith.constant 0 : i32
    %c0_i32_0 = arith.constant 0 : i32
    return %arg0, %c0_i32 : i32, i32
  }
  func.func @transform_1(%arg0: i32) -> (i32, i32) {
    %c0_i32 = arith.constant 0 : i32
    %c0_i32_0 = arith.constant 0 : i32
    %c0_i32_1 = arith.constant 0 : i32
    return %c0_i32, %c0_i32_0 : i32, i32
  }
  func.func @transform_2(%arg0: i32) -> (i32, i32) {
    %c0_i32 = arith.constant 0 : i32
    %c0_i32_0 = arith.constant 0 : i32
    return %arg0, %c0_i32 : i32, i32
  }
}

module attributes {stable_mosaic.version = 11 : i64} {
  func.func @kernel(%arg0: i32, %arg1: memref<128x1800xbf16, #tpu.memory_space<vmem>>, %arg2: memref<1800x200xbf16, #tpu.memory_space<vmem>>, %arg3: memref<128x200xf32, #tpu.memory_space<vmem>>, %arg4: memref<1x2x200xf32, #tpu.memory_space<vmem>>) attributes {dimension_semantics = [#tpu.dimension_semantics<parallel>], iteration_bounds = array<i64: 1>, scalar_prefetch = 0 : i64, scratch_operands = 0 : i64, tpu.core_type = #tpu.core_type<tc>, window_params = [{transform_indices = @transform_0, window_bounds = array<i64: 128, 1800>}, {pipeline_mode = #tpu.pipeline_mode<synchronous>, transform_indices = @transform_1, window_bounds = array<i64: 1800, 200>}, {transform_indices = @transform_2, window_bounds = array<i64: 128, 200>}, {transform_indices = @transform_3, window_bounds = array<i64: 1, 2, 200>}]} {
    %c0 = arith.constant 0 : index
    %c0_0 = arith.constant 0 : index
    %0 = vector.load %arg1[%c0, %c0_0] : memref<128x1800xbf16, #tpu.memory_space<vmem>>, vector<128x1800xbf16>
    %c0_1 = arith.constant 0 : index
    %c0_2 = arith.constant 0 : index
    %1 = vector.load %arg2[%c0_1, %c0_2] : memref<1800x200xbf16, #tpu.memory_space<vmem>>, vector<1800x200xbf16>
    %cst = arith.constant dense<0.000000e+00> : vector<128x200xf32>
    %2 = tpu.matmul %0, %1, %cst {dimension_numbers = #tpu.dot_dimension_numbers<[1], [0], [0], [1], [0, 0, 1, 1], [], []>} : vector<128x1800xbf16>, vector<1800x200xbf16>, vector<128x200xf32> -> vector<128x200xf32>
    %c0_3 = arith.constant 0 : index
    %c0_4 = arith.constant 0 : index
    %3 = vector.load %arg3[%c0_3, %c0_4] : memref<128x200xf32, #tpu.memory_space<vmem>>, vector<128x200xf32>
    tpu.vector_store %arg3[%c0_3, %c0_4], %2 {strides = array<i32>} : memref<128x200xf32, #tpu.memory_space<vmem>>, vector<128x200xf32>,
    %cst_5 = arith.constant dense<0.000000e+00> : vector<200xf32>
    %4 = vector.multi_reduction <add>, %2, %cst_5 [0] : vector<128x200xf32> to vector<200xf32>
    %5 = vector.shape_cast %4 : vector<200xf32> to vector<1x200xf32>
    %6 = arith.mulf %2, %2 : vector<128x200xf32>
    %cst_6 = arith.constant dense<0.000000e+00> : vector<200xf32>
    %7 = vector.multi_reduction <add>, %6, %cst_6 [0] : vector<128x200xf32> to vector<200xf32>
    %8 = vector.shape_cast %7 : vector<200xf32> to vector<1x200xf32>
    %9 = tpu.concatenate %5, %8 in 0 : vector<1x200xf32>, vector<1x200xf32> -> vector<2x200xf32>
    %10 = vector.shape_cast %9 : vector<2x200xf32> to vector<1x2x200xf32>
    %c0_7 = arith.constant 0 : index
    %c0_8 = arith.constant 0 : index
    %c0_9 = arith.constant 0 : index
    %11 = vector.load %arg4[%c0_7, %c0_8, %c0_9] : memref<1x2x200xf32, #tpu.memory_space<vmem>>, vector<1x2x200xf32>
    tpu.vector_store %arg4[%c0_7, %c0_8, %c0_9], %10 {strides = array<i32>} : memref<1x2x200xf32, #tpu.memory_space<vmem>>, vector<1x2x200xf32>,
    return
  }
  func.func @transform_0(%arg0: i32) -> (i32, i32) {
    %c0_i32 = arith.constant 0 : i32
    %c0_i32_0 = arith.constant 0 : i32
    return %arg0, %c0_i32 : i32, i32
  }
  func.func @transform_1(%arg0: i32) -> (i32, i32) {
    %c0_i32 = arith.constant 0 : i32
    %c0_i32_0 = arith.constant 0 : i32
    %c0_i32_1 = arith.constant 0 : i32
    return %c0_i32, %c0_i32_0 : i32, i32
  }
  func.func @transform_2(%arg0: i32) -> (i32, i32) {
    %c0_i32 = arith.constant 0 : i32
    %c0_i32_0 = arith.constant 0 : i32
    return %arg0, %c0_i32 : i32, i32
  }
  func.func @transform_3(%arg0: i32) -> (i32, i32, i32) {
    %c0_i32 = arith.constant 0 : i32
    %c0_i32_0 = arith.constant 0 : i32
    %c0_i32_1 = arith.constant 0 : i32
    return %arg0, %c0_i32, %c0_i32_0 : i32, i32, i32
  }
}

module attributes {stable_mosaic.version = 11 : i64} {
  func.func @kernel(%arg0: i32, %arg1: memref<128x200xf32, #tpu.memory_space<vmem>>, %arg2: memref<2x200xf32, #tpu.memory_space<vmem>>, %arg3: memref<128x200xf32, #tpu.memory_space<vmem>>, %arg4: memref<128x200xf32, #tpu.memory_space<vmem>>) attributes {dimension_semantics = [#tpu.dimension_semantics<parallel>], iteration_bounds = array<i64: 1>, scalar_prefetch = 0 : i64, scratch_operands = 0 : i64, tpu.core_type = #tpu.core_type<tc>, window_params = [{transform_indices = @transform_0, window_bounds = array<i64: 128, 200>}, {pipeline_mode = #tpu.pipeline_mode<synchronous>, transform_indices = @transform_1, window_bounds = array<i64: 2, 200>}, {transform_indices = @transform_2, window_bounds = array<i64: 128, 200>}, {transform_indices = @transform_3, window_bounds = array<i64: 128, 200>}]} {
    %c0 = arith.constant 0 : index
    %c0_0 = arith.constant 0 : index
    %0 = vector.load %arg1[%c0, %c0_0] : memref<128x200xf32, #tpu.memory_space<vmem>>, vector<128x200xf32>
    %c0_1 = arith.constant 0 : index
    %c0_2 = arith.constant 0 : index
    %1 = vector.load %arg2[%c0_1, %c0_2] : memref<2x200xf32, #tpu.memory_space<vmem>>, vector<1x200xf32>
    %2 = vector.broadcast %1 : vector<1x200xf32> to vector<128x200xf32>
    %3 = arith.mulf %0, %2 : vector<128x200xf32>
    %c1 = arith.constant 1 : index
    %c0_3 = arith.constant 0 : index
    %4 = vector.load %arg2[%c1, %c0_3] : memref<2x200xf32, #tpu.memory_space<vmem>>, vector<1x200xf32>
    %5 = vector.broadcast %4 : vector<1x200xf32> to vector<128x200xf32>
    %6 = arith.addf %3, %5 : vector<128x200xf32>
    %c0_4 = arith.constant 0 : index
    %c0_5 = arith.constant 0 : index
    %7 = vector.load %arg3[%c0_4, %c0_5] : memref<128x200xf32, #tpu.memory_space<vmem>>, vector<128x200xf32>
    %8 = arith.addf %6, %7 : vector<128x200xf32>
    %cst = arith.constant 0.000000e+00 : f32
    %9 = vector.broadcast %cst : f32 to vector<128x200xf32>
    %10 = arith.maximumf %8, %9 : vector<128x200xf32>
    %c0_6 = arith.constant 0 : index
    %c0_7 = arith.constant 0 : index
    %11 = vector.load %arg4[%c0_6, %c0_7] : memref<128x200xf32, #tpu.memory_space<vmem>>, vector<128x200xf32>
    tpu.vector_store %arg4[%c0_6, %c0_7], %10 {strides = array<i32>} : memref<128x200xf32, #tpu.memory_space<vmem>>, vector<128x200xf32>,
    return
  }
  func.func @transform_0(%arg0: i32) -> (i32, i32) {
    %c0_i32 = arith.constant 0 : i32
    %c0_i32_0 = arith.constant 0 : i32
    return %arg0, %c0_i32 : i32, i32
  }
  func.func @transform_1(%arg0: i32) -> (i32, i32) {
    %c0_i32 = arith.constant 0 : i32
    %c0_i32_0 = arith.constant 0 : i32
    %c0_i32_1 = arith.constant 0 : i32
    return %c0_i32, %c0_i32_0 : i32, i32
  }
  func.func @transform_2(%arg0: i32) -> (i32, i32) {
    %c0_i32 = arith.constant 0 : i32
    %c0_i32_0 = arith.constant 0 : i32
    return %arg0, %c0_i32 : i32, i32
  }
  func.func @transform_3(%arg0: i32) -> (i32, i32) {
    %c0_i32 = arith.constant 0 : i32
    %c0_i32_0 = arith.constant 0 : i32
    return %arg0, %c0_i32 : i32, i32
  }
}

module attributes {stable_mosaic.version = 11 : i64} {
  func.func @kernel(%arg0: i32, %arg1: memref<48x3000xbf16, #tpu.memory_space<vmem>>, %arg2: memref<3000x50xbf16, #tpu.memory_space<vmem>>, %arg3: memref<1x50xf32, #tpu.memory_space<vmem>>, %arg4: memref<48x50xf32, #tpu.memory_space<vmem>>) attributes {dimension_semantics = [#tpu.dimension_semantics<parallel>], iteration_bounds = array<i64: 1>, scalar_prefetch = 0 : i64, scratch_operands = 0 : i64, tpu.core_type = #tpu.core_type<tc>, window_params = [{transform_indices = @transform_0, window_bounds = array<i64: 48, 3000>}, {pipeline_mode = #tpu.pipeline_mode<synchronous>, transform_indices = @transform_1, window_bounds = array<i64: 3000, 50>}, {pipeline_mode = #tpu.pipeline_mode<synchronous>, transform_indices = @transform_2, window_bounds = array<i64: 1, 50>}, {transform_indices = @transform_3, window_bounds = array<i64: 48, 50>}]} {
    %c0 = arith.constant 0 : index
    %c0_0 = arith.constant 0 : index
    %0 = vector.load %arg1[%c0, %c0_0] : memref<48x3000xbf16, #tpu.memory_space<vmem>>, vector<48x3000xbf16>
    %c0_1 = arith.constant 0 : index
    %c0_2 = arith.constant 0 : index
    %1 = vector.load %arg2[%c0_1, %c0_2] : memref<3000x50xbf16, #tpu.memory_space<vmem>>, vector<3000x50xbf16>
    %cst = arith.constant dense<0.000000e+00> : vector<48x50xf32>
    %2 = tpu.matmul %0, %1, %cst {dimension_numbers = #tpu.dot_dimension_numbers<[1], [0], [0], [1], [0, 0, 1, 1], [], []>} : vector<48x3000xbf16>, vector<3000x50xbf16>, vector<48x50xf32> -> vector<48x50xf32>
    %c0_3 = arith.constant 0 : index
    %c0_4 = arith.constant 0 : index
    %3 = vector.load %arg3[%c0_3, %c0_4] : memref<1x50xf32, #tpu.memory_space<vmem>>, vector<1x50xf32>
    %4 = vector.broadcast %3 : vector<1x50xf32> to vector<48x50xf32>
    %5 = arith.addf %2, %4 : vector<48x50xf32>
    %c0_5 = arith.constant 0 : index
    %c0_6 = arith.constant 0 : index
    %6 = vector.load %arg4[%c0_5, %c0_6] : memref<48x50xf32, #tpu.memory_space<vmem>>, vector<48x50xf32>
    tpu.vector_store %arg4[%c0_5, %c0_6], %5 {strides = array<i32>} : memref<48x50xf32, #tpu.memory_space<vmem>>, vector<48x50xf32>,
    return
  }
  func.func @transform_0(%arg0: i32) -> (i32, i32) {
    %c0_i32 = arith.constant 0 : i32
    %c0_i32_0 = arith.constant 0 : i32
    return %arg0, %c0_i32 : i32, i32
  }
  func.func @transform_1(%arg0: i32) -> (i32, i32) {
    %c0_i32 = arith.constant 0 : i32
    %c0_i32_0 = arith.constant 0 : i32
    %c0_i32_1 = arith.constant 0 : i32
    return %c0_i32, %c0_i32_0 : i32, i32
  }
  func.func @transform_2(%arg0: i32) -> (i32, i32) {
    %c0_i32 = arith.constant 0 : i32
    %c0_i32_0 = arith.constant 0 : i32
    %c0_i32_1 = arith.constant 0 : i32
    return %c0_i32, %c0_i32_0 : i32, i32
  }
  func.func @transform_3(%arg0: i32) -> (i32, i32) {
    %c0_i32 = arith.constant 0 : i32
    %c0_i32_0 = arith.constant 0 : i32
    return %arg0, %c0_i32 : i32, i32
  }
}

module attributes {stable_mosaic.version = 11 : i64} {
  func.func @kernel(%arg0: i32, %arg1: memref<8x1200xbf16, #tpu.memory_space<vmem>>, %arg2: memref<1200x32xbf16, #tpu.memory_space<vmem>>, %arg3: memref<1x32xf32, #tpu.memory_space<vmem>>, %arg4: memref<8x32xf32, #tpu.memory_space<vmem>>) attributes {dimension_semantics = [#tpu.dimension_semantics<parallel>], iteration_bounds = array<i64: 1>, scalar_prefetch = 0 : i64, scratch_operands = 0 : i64, tpu.core_type = #tpu.core_type<tc>, window_params = [{transform_indices = @transform_0, window_bounds = array<i64: 8, 1200>}, {pipeline_mode = #tpu.pipeline_mode<synchronous>, transform_indices = @transform_1, window_bounds = array<i64: 1200, 32>}, {pipeline_mode = #tpu.pipeline_mode<synchronous>, transform_indices = @transform_2, window_bounds = array<i64: 1, 32>}, {transform_indices = @transform_3, window_bounds = array<i64: 8, 32>}]} {
    %c0 = arith.constant 0 : index
    %c0_0 = arith.constant 0 : index
    %0 = vector.load %arg1[%c0, %c0_0] : memref<8x1200xbf16, #tpu.memory_space<vmem>>, vector<8x1200xbf16>
    %c0_1 = arith.constant 0 : index
    %c0_2 = arith.constant 0 : index
    %1 = vector.load %arg2[%c0_1, %c0_2] : memref<1200x32xbf16, #tpu.memory_space<vmem>>, vector<1200x32xbf16>
    %cst = arith.constant dense<0.000000e+00> : vector<8x32xf32>
    %2 = tpu.matmul %0, %1, %cst {dimension_numbers = #tpu.dot_dimension_numbers<[1], [0], [0], [1], [0, 0, 1, 1], [], []>} : vector<8x1200xbf16>, vector<1200x32xbf16>, vector<8x32xf32> -> vector<8x32xf32>
    %c0_3 = arith.constant 0 : index
    %c0_4 = arith.constant 0 : index
    %3 = vector.load %arg3[%c0_3, %c0_4] : memref<1x32xf32, #tpu.memory_space<vmem>>, vector<1x32xf32>
    %4 = vector.broadcast %3 : vector<1x32xf32> to vector<8x32xf32>
    %5 = arith.addf %2, %4 : vector<8x32xf32>
    %c0_5 = arith.constant 0 : index
    %c0_6 = arith.constant 0 : index
    %6 = vector.load %arg4[%c0_5, %c0_6] : memref<8x32xf32, #tpu.memory_space<vmem>>, vector<8x32xf32>
    tpu.vector_store %arg4[%c0_5, %c0_6], %5 {strides = array<i32>} : memref<8x32xf32, #tpu.memory_space<vmem>>, vector<8x32xf32>,
    return
  }
  func.func @transform_0(%arg0: i32) -> (i32, i32) {
    %c0_i32 = arith.constant 0 : i32
    %c0_i32_0 = arith.constant 0 : i32
    return %arg0, %c0_i32 : i32, i32
  }
  func.func @transform_1(%arg0: i32) -> (i32, i32) {
    %c0_i32 = arith.constant 0 : i32
    %c0_i32_0 = arith.constant 0 : i32
    %c0_i32_1 = arith.constant 0 : i32
    return %c0_i32, %c0_i32_0 : i32, i32
  }
  func.func @transform_2(%arg0: i32) -> (i32, i32) {
    %c0_i32 = arith.constant 0 : i32
    %c0_i32_0 = arith.constant 0 : i32
    %c0_i32_1 = arith.constant 0 : i32
    return %c0_i32, %c0_i32_0 : i32, i32
  }
  func.func @transform_3(%arg0: i32) -> (i32, i32) {
    %c0_i32 = arith.constant 0 : i32
    %c0_i32_0 = arith.constant 0 : i32
    return %arg0, %c0_i32 : i32, i32
  }
}

</mosaic_0001>

<llo_original>
// kernel: eeg_channelnet_encoder.11
$region0: #{eeg_channelnet_encoder.11}
  #allocation0 [shape = 'u32[]', space=smem, size = 0x4, offset = 0x4, fixed_abs, tag = 'smem constant byte address 0x4 - core index']
  #allocation1 [shape = 'u32[144,128]{1,0:T(1,128)}', space=vmem, size = 0x12000, scoped, tag = 'internal scratch']
  %s0 = inlined_call_operand.vmem [shape: f32[256,50], index: 0, kind: input, shape index: {}]
  %s1 = inlined_call_operand.vmem [shape: f32[2,50], index: 1, kind: input, shape index: {}]
  %s2 = inlined_call_operand.vmem [shape: f32[256,50], index: 2, kind: output, shape index: {}]
  %s3 = sld [smem:[#allocation0]]
  $region18: #{eeg_channelnet_encoder.11} parent=0
    _
  %s5 = ssub.s32 1, %s3
  %s6 = scalar_select 0, %s5, %s3
  // Predicated region
  $region2: #{eeg_channelnet_encoder.11} parent=0 // pred_check
    _
  $region3: #{eeg_channelnet_encoder.11} parent=0 // pred_check_branch
    %8 = sbr.rel (0) target = $region5
  $region4: #{eeg_channelnet_encoder.11} parent=0 // pred_region
    _
  $region5: #{eeg_channelnet_encoder.11} parent=0 // pred_fallthru
    _
  // Predicated region
  $region6: #{eeg_channelnet_encoder.11} parent=0 // pred_check
    _
  $region7: #{eeg_channelnet_encoder.11} parent=0 // pred_check_branch
    %10 = sbr.rel (0) target = $region9
  $region8: #{eeg_channelnet_encoder.11} parent=0 // pred_region
    _
  $region9: #{eeg_channelnet_encoder.11} parent=0 // pred_fallthru
    _
  %v11 = vld [vmem:[%s0] sm:$0xff]
  %v12 = vld [vmem:[%s0 + $0x8] sm:$0xff]
  %v13 = vld [vmem:[%s0 + $0x10] sm:$0xff]
  %v14 = vld [vmem:[%s0 + $0x18] sm:$0xff]
  %v15 = vld [vmem:[%s0 + $0x20] sm:$0xff]
  %v16 = vld [vmem:[%s0 + $0x28] sm:$0xff]
  %v17 = vld [vmem:[%s0 + $0x30] sm:$0xff]
  %v18 = vld [vmem:[%s0 + $0x38] sm:$0xff]
  %v19 = vld [vmem:[%s0 + $0x40] sm:$0xff]
  %v20 = vld [vmem:[%s0 + $0x48] sm:$0xff]
  %v21 = vld [vmem:[%s0 + $0x50] sm:$0xff]
  %v22 = vld [vmem:[%s0 + $0x58] sm:$0xff]
  %v23 = vld [vmem:[%s0 + $0x60] sm:$0xff]
  %v24 = vld [vmem:[%s0 + $0x68] sm:$0xff]
  %v25 = vld [vmem:[%s0 + $0x70] sm:$0xff]
  %v26 = vld [vmem:[%s0 + $0x78] sm:$0xff]
  %v27 = vld [vmem:[%s0 + $0x80] sm:$0xff]
  %v28 = vld [vmem:[%s0 + $0x88] sm:$0xff]
  %v29 = vld [vmem:[%s0 + $0x90] sm:$0xff]
  %v30 = vld [vmem:[%s0 + $0x98] sm:$0xff]
  %v31 = vld [vmem:[%s0 + $0xa0] sm:$0xff]
  %v32 = vld [vmem:[%s0 + $0xa8] sm:$0xff]
  %v33 = vld [vmem:[%s0 + $0xb0] sm:$0xff]
  %v34 = vld [vmem:[%s0 + $0xb8] sm:$0xff]
  %v35 = vld [vmem:[%s0 + $0xc0] sm:$0xff]
  %v36 = vld [vmem:[%s0 + $0xc8] sm:$0xff]
  %v37 = vld [vmem:[%s0 + $0xd0] sm:$0xff]
  %v38 = vld [vmem:[%s0 + $0xd8] sm:$0xff]
  %v39 = vld [vmem:[%s0 + $0xe0] sm:$0xff]
  %v40 = vld [vmem:[%s0 + $0xe8] sm:$0xff]
  %v41 = vld [vmem:[%s0 + $0xf0] sm:$0xff]
  %v42 = vld [vmem:[%s0 + $0xf8] sm:$0xff]
  %v43 = vld [vmem:[%s1] sm:$0x1]
  %v44 = vlaneseq
  %v45 = vshrl.u32 %v44, 7
  %v46 = vsub.s32 0, %v45
  %v47 = vrot.slane %v43, %v46
  %v48 = vmul.f32 %v11, %v47
  %v49 = vmul.f32 %v12, %v47
  %v50 = vmul.f32 %v13, %v47
  %v51 = vmul.f32 %v14, %v47
  %v52 = vmul.f32 %v15, %v47
  %v53 = vmul.f32 %v16, %v47
  %v54 = vmul.f32 %v17, %v47
  %v55 = vmul.f32 %v18, %v47
  %v56 = vmul.f32 %v19, %v47
  %v57 = vmul.f32 %v20, %v47
  %v58 = vmul.f32 %v21, %v47
  %v59 = vmul.f32 %v22, %v47
  %v60 = vmul.f32 %v23, %v47
  %v61 = vmul.f32 %v24, %v47
  %v62 = vmul.f32 %v25, %v47
  %v63 = vmul.f32 %v26, %v47
  %v64 = vmul.f32 %v27, %v47
  %v65 = vmul.f32 %v28, %v47
  %v66 = vmul.f32 %v29, %v47
  %v67 = vmul.f32 %v30, %v47
  %v68 = vmul.f32 %v31, %v47
  %v69 = vmul.f32 %v32, %v47
  %v70 = vmul.f32 %v33, %v47
  %v71 = vmul.f32 %v34, %v47
  %v72 = vmul.f32 %v35, %v47
  %v73 = vmul.f32 %v36, %v47
  %v74 = vmul.f32 %v37, %v47
  %v75 = vmul.f32 %v38, %v47
  %v76 = vmul.f32 %v39, %v47
  %v77 = vmul.f32 %v40, %v47
  %v78 = vmul.f32 %v41, %v47
  %v79 = vmul.f32 %v42, %v47
  %v80 = vld [vmem:[%s1 + $0x1] sm:$0x1]
  %v81 = vlaneseq
  %v82 = vshrl.u32 %v81, 7
  %v83 = vsub.s32 0, %v82
  %v84 = vrot.slane %v80, %v83
  %v85 = vadd.f32 %v48, %v84
  %v86 = vadd.f32 %v49, %v84
  %v87 = vadd.f32 %v50, %v84
  %v88 = vadd.f32 %v51, %v84
  %v89 = vadd.f32 %v52, %v84
  %v90 = vadd.f32 %v53, %v84
  %v91 = vadd.f32 %v54, %v84
  %v92 = vadd.f32 %v55, %v84
  %v93 = vadd.f32 %v56, %v84
  %v94 = vadd.f32 %v57, %v84
  %v95 = vadd.f32 %v58, %v84
  %v96 = vadd.f32 %v59, %v84
  %v97 = vadd.f32 %v60, %v84
  %v98 = vadd.f32 %v61, %v84
  %v99 = vadd.f32 %v62, %v84
  %v100 = vadd.f32 %v63, %v84
  %v101 = vadd.f32 %v64, %v84
  %v102 = vadd.f32 %v65, %v84
  %v103 = vadd.f32 %v66, %v84
  %v104 = vadd.f32 %v67, %v84
  %v105 = vadd.f32 %v68, %v84
  %v106 = vadd.f32 %v69, %v84
  %v107 = vadd.f32 %v70, %v84
  %v108 = vadd.f32 %v71, %v84
  %v109 = vadd.f32 %v72, %v84
  %v110 = vadd.f32 %v73, %v84
  %v111 = vadd.f32 %v74, %v84
  %v112 = vadd.f32 %v75, %v84
  %v113 = vadd.f32 %v76, %v84
  %v114 = vadd.f32 %v77, %v84
  %v115 = vadd.f32 %v78, %v84
  %v116 = vadd.f32 %v79, %v84
  %v117 = vmax.f32 %v85, 0.0
  %v118 = vmax.f32 %v86, 0.0
  %v119 = vmax.f32 %v87, 0.0
  %v120 = vmax.f32 %v88, 0.0
  %v121 = vmax.f32 %v89, 0.0
  %v122 = vmax.f32 %v90, 0.0
  %v123 = vmax.f32 %v91, 0.0
  %v124 = vmax.f32 %v92, 0.0
  %v125 = vmax.f32 %v93, 0.0
  %v126 = vmax.f32 %v94, 0.0
  %v127 = vmax.f32 %v95, 0.0
  %v128 = vmax.f32 %v96, 0.0
  %v129 = vmax.f32 %v97, 0.0
  %v130 = vmax.f32 %v98, 0.0
  %v131 = vmax.f32 %v99, 0.0
  %v132 = vmax.f32 %v100, 0.0
  %v133 = vmax.f32 %v101, 0.0
  %v134 = vmax.f32 %v102, 0.0
  %v135 = vmax.f32 %v103, 0.0
  %v136 = vmax.f32 %v104, 0.0
  %v137 = vmax.f32 %v105, 0.0
  %v138 = vmax.f32 %v106, 0.0
  %v139 = vmax.f32 %v107, 0.0
  %v140 = vmax.f32 %v108, 0.0
  %v141 = vmax.f32 %v109, 0.0
  %v142 = vmax.f32 %v110, 0.0
  %v143 = vmax.f32 %v111, 0.0
  %v144 = vmax.f32 %v112, 0.0
  %v145 = vmax.f32 %v113, 0.0
  %v146 = vmax.f32 %v114, 0.0
  %v147 = vmax.f32 %v115, 0.0
  %v148 = vmax.f32 %v116, 0.0
  %vm149 = vcmask 408576
  %150 = vst.msk [vmem:[%s2] sm:$0xff] %vm149, %v117
  %151 = vst.msk [vmem:[%s2 + $0x8] sm:$0xff] %vm149, %v118
  %152 = vst.msk [vmem:[%s2 + $0x10] sm:$0xff] %vm149, %v119
  %153 = vst.msk [vmem:[%s2 + $0x18] sm:$0xff] %vm149, %v120
  %154 = vst.msk [vmem:[%s2 + $0x20] sm:$0xff] %vm149, %v121
  %155 = vst.msk [vmem:[%s2 + $0x28] sm:$0xff] %vm149, %v122
  %156 = vst.msk [vmem:[%s2 + $0x30] sm:$0xff] %vm149, %v123
  %157 = vst.msk [vmem:[%s2 + $0x38] sm:$0xff] %vm149, %v124
  %158 = vst.msk [vmem:[%s2 + $0x40] sm:$0xff] %vm149, %v125
  %159 = vst.msk [vmem:[%s2 + $0x48] sm:$0xff] %vm149, %v126
  %160 = vst.msk [vmem:[%s2 + $0x50] sm:$0xff] %vm149, %v127
  %161 = vst.msk [vmem:[%s2 + $0x58] sm:$0xff] %vm149, %v128
  %162 = vst.msk [vmem:[%s2 + $0x60] sm:$0xff] %vm149, %v129
  %163 = vst.msk [vmem:[%s2 + $0x68] sm:$0xff] %vm149, %v130
  %164 = vst.msk [vmem:[%s2 + $0x70] sm:$0xff] %vm149, %v131
  %165 = vst.msk [vmem:[%s2 + $0x78] sm:$0xff] %vm149, %v132
  %166 = vst.msk [vmem:[%s2 + $0x80] sm:$0xff] %vm149, %v133
  %167 = vst.msk [vmem:[%s2 + $0x88] sm:$0xff] %vm149, %v134
  %168 = vst.msk [vmem:[%s2 + $0x90] sm:$0xff] %vm149, %v135
  %169 = vst.msk [vmem:[%s2 + $0x98] sm:$0xff] %vm149, %v136
  %170 = vst.msk [vmem:[%s2 + $0xa0] sm:$0xff] %vm149, %v137
  %171 = vst.msk [vmem:[%s2 + $0xa8] sm:$0xff] %vm149, %v138
  %172 = vst.msk [vmem:[%s2 + $0xb0] sm:$0xff] %vm149, %v139
  %173 = vst.msk [vmem:[%s2 + $0xb8] sm:$0xff] %vm149, %v140
  %174 = vst.msk [vmem:[%s2 + $0xc0] sm:$0xff] %vm149, %v141
  %175 = vst.msk [vmem:[%s2 + $0xc8] sm:$0xff] %vm149, %v142
  %176 = vst.msk [vmem:[%s2 + $0xd0] sm:$0xff] %vm149, %v143
  %177 = vst.msk [vmem:[%s2 + $0xd8] sm:$0xff] %vm149, %v144
  %178 = vst.msk [vmem:[%s2 + $0xe0] sm:$0xff] %vm149, %v145
  %179 = vst.msk [vmem:[%s2 + $0xe8] sm:$0xff] %vm149, %v146
  %180 = vst.msk [vmem:[%s2 + $0xf0] sm:$0xff] %vm149, %v147
  %181 = vst.msk [vmem:[%s2 + $0xf8] sm:$0xff] %vm149, %v148
  // Predicated region
  $region10: #{eeg_channelnet_encoder.11} parent=0 // pred_check
    _
  $region11: #{eeg_channelnet_encoder.11} parent=0 // pred_check_branch
    %183 = sbr.rel (0) target = $region13
  $region12: #{eeg_channelnet_encoder.11} parent=0 // pred_region
    _
  $region13: #{eeg_channelnet_encoder.11} parent=0 // pred_fallthru
    _
  // Predicated region
  $region14: #{eeg_channelnet_encoder.11} parent=0 // pred_check
    _
  $region15: #{eeg_channelnet_encoder.11} parent=0 // pred_check_branch
    %185 = sbr.rel (0) target = $region17
  $region16: #{eeg_channelnet_encoder.11} parent=0 // pred_region
    _
  $region17: #{eeg_channelnet_encoder.11} parent=0 // pred_fallthru
    _

// kernel: eeg_channelnet_encoder.10
$region0: #{eeg_channelnet_encoder.10}
  #allocation0 [shape = 'u32[]', space=smem, size = 0x4, offset = 0x4, fixed_abs, tag = 'smem constant byte address 0x4 - core index']
  #allocation1 [shape = 'u32[144,128]{1,0:T(1,128)}', space=vmem, size = 0x12000, scoped, tag = 'internal scratch']
  %s0 = inlined_call_operand.vmem [shape: bf16[256,165], index: 0, kind: input, shape index: {}]
  %s1 = inlined_call_operand.vmem [shape: bf16[165,50], index: 1, kind: input, shape index: {}]
  %s2 = inlined_call_operand.vmem [shape: f32[256,50], index: 2, kind: output, shape index: {0}]
  %s3 = inlined_call_operand.vmem [shape: f32[1,2,50], index: 3, kind: output, shape index: {1}]
  %4 = xla_tuple %s2, %s3
  %s5 = sld [smem:[#allocation0]]
  $region26: #{eeg_channelnet_encoder.10} parent=0
    _
  %s7 = ssub.s32 1, %s5
  %s8 = scalar_select 0, %s7, %s5
  // Predicated region
  $region2: #{eeg_channelnet_encoder.10} parent=0 // pred_check
    _
  $region3: #{eeg_channelnet_encoder.10} parent=0 // pred_check_branch
    %10 = sbr.rel (0) target = $region5
  $region4: #{eeg_channelnet_encoder.10} parent=0 // pred_region
    _
  $region5: #{eeg_channelnet_encoder.10} parent=0 // pred_fallthru
    _
  // Predicated region
  $region6: #{eeg_channelnet_encoder.10} parent=0 // pred_check
    _
  $region7: #{eeg_channelnet_encoder.10} parent=0 // pred_check_branch
    %12 = sbr.rel (0) target = $region9
  $region8: #{eeg_channelnet_encoder.10} parent=0 // pred_region
    _
  $region9: #{eeg_channelnet_encoder.10} parent=0 // pred_fallthru
    _
  %v14 = vld [vmem:[%s0] sm:$0xff]
  %v15 = vld [vmem:[%s0 + $0x8] sm:$0xff]
  %v16 = vld [vmem:[%s0 + $0x10] sm:$0xff]
  %v17 = vld [vmem:[%s0 + $0x18] sm:$0xff]
  %v18 = vld [vmem:[%s0 + $0x20] sm:$0xff]
  %v19 = vld [vmem:[%s0 + $0x28] sm:$0xff]
  %v20 = vld [vmem:[%s0 + $0x30] sm:$0xff]
  %v21 = vld [vmem:[%s0 + $0x38] sm:$0xff]
  %v22 = vld [vmem:[%s0 + $0x40] sm:$0xff]
  %v23 = vld [vmem:[%s0 + $0x48] sm:$0xff]
  %v24 = vld [vmem:[%s0 + $0x50] sm:$0xff]
  %v25 = vld [vmem:[%s0 + $0x58] sm:$0xff]
  %v26 = vld [vmem:[%s0 + $0x60] sm:$0xff]
  %v27 = vld [vmem:[%s0 + $0x68] sm:$0xff]
  %v28 = vld [vmem:[%s0 + $0x70] sm:$0xff]
  %v29 = vld [vmem:[%s0 + $0x78] sm:$0xff]
  %v30 = vld [vmem:[%s0 + $0x80] sm:$0xff]
  %v31 = vld [vmem:[%s0 + $0x88] sm:$0xff]
  %v32 = vld [vmem:[%s0 + $0x90] sm:$0xff]
  %v33 = vld [vmem:[%s0 + $0x98] sm:$0xff]
  %v34 = vld [vmem:[%s0 + $0xa0] sm:$0xff]
  %v35 = vld [vmem:[%s0 + $0xa8] sm:$0xff]
  %v36 = vld [vmem:[%s0 + $0xb0] sm:$0xff]
  %v37 = vld [vmem:[%s0 + $0xb8] sm:$0xff]
  %v38 = vld [vmem:[%s0 + $0xc0] sm:$0xff]
  %v39 = vld [vmem:[%s0 + $0xc8] sm:$0xff]
  %v40 = vld [vmem:[%s0 + $0xd0] sm:$0xff]
  %v41 = vld [vmem:[%s0 + $0xd8] sm:$0xff]
  %v42 = vld [vmem:[%s0 + $0xe0] sm:$0xff]
  %v43 = vld [vmem:[%s0 + $0xe8] sm:$0xff]
  %v44 = vld [vmem:[%s0 + $0xf0] sm:$0xff]
  %v45 = vld [vmem:[%s0 + $0xf8] sm:$0xff]
  %v46 = vld [vmem:[%s1] sm:$0xf]
  %v47 = vld [vmem:[%s1 + $0x4] sm:$0xf]
  %v48 = vld [vmem:[%s1 + $0x8] sm:$0xf]
  %v49 = vld [vmem:[%s1 + $0xc] sm:$0xf]
  %v50 = vld [vmem:[%s1 + $0x10] sm:$0xf]
  %v51 = vld [vmem:[%s1 + $0x14] sm:$0xf]
  %v52 = vld [vmem:[%s1 + $0x18] sm:$0xf]
  %v53 = vld [vmem:[%s1 + $0x1c] sm:$0xf]
  %v54 = vld [vmem:[%s1 + $0x20] sm:$0xf]
  %v55 = vld [vmem:[%s1 + $0x24] sm:$0xf]
  %v56 = vld [vmem:[%s1 + $0x28] sm:$0xf]
  %v57 = vld [vmem:[%s1 + $0x2c] sm:$0xf]
  %v58 = vld [vmem:[%s1 + $0x30] sm:$0xf]
  %v59 = vld [vmem:[%s1 + $0x34] sm:$0xf]
  %v60 = vld [vmem:[%s1 + $0x38] sm:$0xf]
  %v61 = vld [vmem:[%s1 + $0x3c] sm:$0xf]
  %v62 = vld [vmem:[%s1 + $0x40] sm:$0xf]
  %v63 = vld [vmem:[%s1 + $0x44] sm:$0xf]
  %v64 = vld [vmem:[%s1 + $0x48] sm:$0xf]
  %v65 = vld [vmem:[%s1 + $0x4c] sm:$0xf]
  %v66 = vld [vmem:[%s1 + $0x50] sm:$0x7]
  %v99 = vunpack.c.l.b16 %v14
  %v100 = vunpack.c.h.b16 %v14
  %v101 = vunpack.c.l.b16 %v15
  %v102 = vunpack.c.h.b16 %v15
  %v103 = vunpack.c.l.b16 %v16
  %v104 = vunpack.c.h.b16 %v16
  %v105 = vunpack.c.l.b16 %v17
  %v106 = vunpack.c.h.b16 %v17
  %v107 = vunpack.c.l.b16 %v18
  %v108 = vunpack.c.h.b16 %v18
  %v109 = vunpack.c.l.b16 %v19
  %v110 = vunpack.c.h.b16 %v19
  %v111 = vunpack.c.l.b16 %v20
  %v112 = vunpack.c.h.b16 %v20
  %v113 = vunpack.c.l.b16 %v21
  %v114 = vunpack.c.h.b16 %v21
  %v115 = vunpack.c.l.b16 %v22
  %v116 = vunpack.c.h.b16 %v22
  %v117 = vunpack.c.l.b16 %v23
  %v118 = vunpack.c.h.b16 %v23
  %v119 = vunpack.c.l.b16 %v24
  %v120 = vunpack.c.h.b16 %v24
  %v121 = vunpack.c.l.b16 %v25
  %v122 = vunpack.c.h.b16 %v25
  %v123 = vunpack.c.l.b16 %v26
  %v124 = vunpack.c.h.b16 %v26
  %v125 = vunpack.c.l.b16 %v27
  %v126 = vunpack.c.h.b16 %v27
  %v127 = vunpack.c.l.b16 %v28
  %v128 = vunpack.c.h.b16 %v28
  %v129 = vunpack.c.l.b16 %v29
  %v130 = vunpack.c.h.b16 %v29
  %v131 = vunpack.c.l.b16 %v30
  %v132 = vunpack.c.h.b16 %v30
  %v133 = vunpack.c.l.b16 %v31
  %v134 = vunpack.c.h.b16 %v31
  %v135 = vunpack.c.l.b16 %v32
  %v136 = vunpack.c.h.b16 %v32
  %v137 = vunpack.c.l.b16 %v33
  %v138 = vunpack.c.h.b16 %v33
  %v139 = vunpack.c.l.b16 %v34
  %v140 = vunpack.c.h.b16 %v34
  %v141 = vunpack.c.l.b16 %v35
  %v142 = vunpack.c.h.b16 %v35
  %v143 = vunpack.c.l.b16 %v36
  %v144 = vunpack.c.h.b16 %v36
  %v145 = vunpack.c.l.b16 %v37
  %v146 = vunpack.c.h.b16 %v37
  %v147 = vunpack.c.l.b16 %v38
  %v148 = vunpack.c.h.b16 %v38
  %v149 = vunpack.c.l.b16 %v39
  %v150 = vunpack.c.h.b16 %v39
  %v151 = vunpack.c.l.b16 %v40
  %v152 = vunpack.c.h.b16 %v40
  %v153 = vunpack.c.l.b16 %v41
  %v154 = vunpack.c.h.b16 %v41
  %v155 = vunpack.c.l.b16 %v42
  %v156 = vunpack.c.h.b16 %v42
  %v157 = vunpack.c.l.b16 %v43
  %v158 = vunpack.c.h.b16 %v43
  %v159 = vunpack.c.l.b16 %v44
  %v160 = vunpack.c.h.b16 %v44
  %v161 = vunpack.c.l.b16 %v45
  %v162 = vunpack.c.h.b16 %v45
  %v163 = vpack.c.b16 %v101, %v99
  %v164 = vpack.c.b16 %v102, %v100
  %v165 = vpack.c.b16 %v105, %v103
  %v166 = vpack.c.b16 %v106, %v104
  %v167 = vpack.c.b16 %v109, %v107
  %v168 = vpack.c.b16 %v110, %v108
  %v169 = vpack.c.b16 %v113, %v111
  %v170 = vpack.c.b16 %v114, %v112
  %v171 = vpack.c.b16 %v117, %v115
  %v172 = vpack.c.b16 %v118, %v116
  %v173 = vpack.c.b16 %v121, %v119
  %v174 = vpack.c.b16 %v122, %v120
  %v175 = vpack.c.b16 %v125, %v123
  %v176 = vpack.c.b16 %v126, %v124
  %v177 = vpack.c.b16 %v129, %v127
  %v178 = vpack.c.b16 %v130, %v128
  %v179 = vpack.c.b16 %v133, %v131
  %v180 = vpack.c.b16 %v134, %v132
  %v181 = vpack.c.b16 %v137, %v135
  %v182 = vpack.c.b16 %v138, %v136
  %v183 = vpack.c.b16 %v141, %v139
  %v184 = vpack.c.b16 %v142, %v140
  %v185 = vpack.c.b16 %v145, %v143
  %v186 = vpack.c.b16 %v146, %v144
  %v187 = vpack.c.b16 %v149, %v147
  %v188 = vpack.c.b16 %v150, %v148
  %v189 = vpack.c.b16 %v153, %v151
  %v190 = vpack.c.b16 %v154, %v152
  %v191 = vpack.c.b16 %v157, %v155
  %v192 = vpack.c.b16 %v158, %v156
  %v193 = vpack.c.b16 %v161, %v159
  %v194 = vpack.c.b16 %v162, %v160
  %v232 = vunpack.c.l.b16 %v46
  %v233 = vunpack.c.l.b16 %v47
  %v234 = vunpack.c.l.b16 %v48
  %v235 = vunpack.c.l.b16 %v49
  %v236 = vunpack.c.l.b16 %v50
  %v237 = vunpack.c.l.b16 %v51
  %v238 = vunpack.c.l.b16 %v52
  %v239 = vunpack.c.l.b16 %v53
  %v240 = vunpack.c.l.b16 %v54
  %v241 = vunpack.c.l.b16 %v55
  %v242 = vunpack.c.l.b16 %v56
  %v243 = vunpack.c.l.b16 %v57
  %v244 = vunpack.c.l.b16 %v58
  %v245 = vunpack.c.l.b16 %v59
  %v246 = vunpack.c.l.b16 %v60
  %v247 = vunpack.c.l.b16 %v61
  %v248 = vunpack.c.l.b16 %v62
  %v249 = vunpack.c.l.b16 %v63
  %v250 = vunpack.c.l.b16 %v64
  %v251 = vunpack.c.l.b16 %v65
  %v252 = vunpack.c.l.b16 %v66
  %v253 = vpack.c.b16 %v233, %v232
  %v254 = vpack.c.b16 %v235, %v234
  %v255 = vpack.c.b16 %v237, %v236
  %v256 = vpack.c.b16 %v239, %v238
  %v257 = vpack.c.b16 %v241, %v240
  %v258 = vpack.c.b16 %v243, %v242
  %v259 = vpack.c.b16 %v245, %v244
  %v260 = vpack.c.b16 %v247, %v246
  %v261 = vpack.c.b16 %v249, %v248
  %v262 = vpack.c.b16 %v251, %v250
  %v263 = vpack.c.b16 %v252, %v252
  %vm274 = vcmask 302080
  %v276 = vsel %vm274, %v164, 0
  %v279 = vsel %vm274, %v166, 0
  %v282 = vsel %vm274, %v168, 0
  %v285 = vsel %vm274, %v170, 0
  %v288 = vsel %vm274, %v172, 0
  %v291 = vsel %vm274, %v174, 0
  %v294 = vsel %vm274, %v176, 0
  %v297 = vsel %vm274, %v178, 0
  %v300 = vsel %vm274, %v180, 0
  %v303 = vsel %vm274, %v182, 0
  %v306 = vsel %vm274, %v184, 0
  %v309 = vsel %vm274, %v186, 0
  %v312 = vsel %vm274, %v188, 0
  %v315 = vsel %vm274, %v190, 0
  %v318 = vsel %vm274, %v192, 0
  %v321 = vsel %vm274, %v194, 0
  %vm323 = vcmask 1041408
  %vm324 = vcmask 1042432
  %v325 = vsel %vm323, 4294967295, 65535
  %v326 = vsel %vm324, %v325, 0
  %v328 = vand.u32 %v263, %v326
  %330 = vmatprep.subr.bf16.mxu0 0
  %331 = vmatpush1.bf16.msra.mxu0 %v260
  %332 = vmatprep.subr.bf16.mxu0 0
  %333 = vmatpush1.bf16.msra.mxu0 %v259
  %334 = vmatprep.subr.bf16.mxu0 0
  %335 = vmatpush1.bf16.msra.mxu0 %v258
  %336 = vmatprep.subr.bf16.mxu0 0
  %337 = vmatpush1.bf16.msra.mxu0 %v257
  %338 = vmatprep.subr.bf16.mxu0 0
  %339 = vmatpush1.bf16.msra.mxu0 %v256
  %340 = vmatprep.subr.bf16.mxu0 0
  %341 = vmatpush1.bf16.msra.mxu0 %v255
  %342 = vmatprep.subr.bf16.mxu0 0
  %343 = vmatpush1.bf16.msra.mxu0 %v254
  %344 = vmatprep.subr.bf16.mxu0 0
  %345 = vmatpush1.bf16.msra.mxu0 %v253
  %346 = vmatprep.subr.bf16.mxu0 0
  %347 = vmatpush2.bf16.msra.mxu0 0
  %348 = vmatprep.subr.bf16.mxu0 0
  %349 = vmatpush2.bf16.msra.mxu0 0
  %350 = vmatprep.subr.bf16.mxu0 0
  %351 = vmatpush2.bf16.msra.mxu0 0
  %352 = vmatprep.subr.bf16.mxu0 0
  %353 = vmatpush2.bf16.msra.mxu0 0
  %354 = vmatprep.subr.bf16.mxu0 0
  %355 = vmatpush2.bf16.msra.mxu0 0
  %356 = vmatprep.subr.bf16.mxu0 0
  %357 = vmatpush2.bf16.msra.mxu0 %v328
  %358 = vmatprep.subr.bf16.mxu0 0
  %359 = vmatpush2.bf16.msra.mxu0 %v262
  %360 = vmatprep.subr.bf16.mxu0 0
  %361 = vmatpush2.bf16.msra.mxu0 %v261
  %362 = vmatprep.mubr.bf16.mxu0 %v276
  %363 = vmatmul.mubr.bf16.gmra.mxu0 %v163
  %v364 = vpop.f32.mrf.mxu0
  %v365 = vadd.f32 0.0, %v364
  %v366 = vpop.f32.mrf.mxu0
  %v367 = vpop.f32.mrf.mxu0
  %v368 = vadd.f32 0.0, %v367
  %v369 = vpop.f32.mrf.mxu0
  %370 = vmatprep.mubr.bf16.mxu0 %v279
  %371 = vmatmul.mubr.bf16.gmra.mxu0 %v165
  %v372 = vpop.f32.mrf.mxu0
  %v373 = vadd.f32 0.0, %v372
  %v374 = vpop.f32.mrf.mxu0
  %v375 = vpop.f32.mrf.mxu0
  %v376 = vadd.f32 0.0, %v375
  %v377 = vpop.f32.mrf.mxu0
  %378 = vmatprep.mubr.bf16.mxu0 %v282
  %379 = vmatmul.mubr.bf16.gmra.mxu0 %v167
  %v380 = vpop.f32.mrf.mxu0
  %v381 = vadd.f32 0.0, %v380
  %v382 = vpop.f32.mrf.mxu0
  %v383 = vpop.f32.mrf.mxu0
  %v384 = vadd.f32 0.0, %v383
  %v385 = vpop.f32.mrf.mxu0
  %386 = vmatprep.mubr.bf16.mxu0 %v285
  %387 = vmatmul.mubr.bf16.gmra.mxu0 %v169
  %v388 = vpop.f32.mrf.mxu0
  %v389 = vadd.f32 0.0, %v388
  %v390 = vpop.f32.mrf.mxu0
  %v391 = vpop.f32.mrf.mxu0
  %v392 = vadd.f32 0.0, %v391
  %v393 = vpop.f32.mrf.mxu0
  %394 = vmatprep.mubr.bf16.mxu0 %v288
  %395 = vmatmul.mubr.bf16.gmra.mxu0 %v171
  %v396 = vpop.f32.mrf.mxu0
  %v397 = vadd.f32 0.0, %v396
  %v398 = vpop.f32.mrf.mxu0
  %v399 = vpop.f32.mrf.mxu0
  %v400 = vadd.f32 0.0, %v399
  %v401 = vpop.f32.mrf.mxu0
  %402 = vmatprep.mubr.bf16.mxu0 %v291
  %403 = vmatmul.mubr.bf16.gmra.mxu0 %v173
  %v404 = vpop.f32.mrf.mxu0
  %v405 = vadd.f32 0.0, %v404
  %v406 = vpop.f32.mrf.mxu0
  %v407 = vpop.f32.mrf.mxu0
  %v408 = vadd.f32 0.0, %v407
  %v409 = vpop.f32.mrf.mxu0
  %410 = vmatprep.mubr.bf16.mxu0 %v294
  %411 = vmatmul.mubr.bf16.gmra.mxu0 %v175
  %v412 = vpop.f32.mrf.mxu0
  %v413 = vadd.f32 0.0, %v412
  %v414 = vpop.f32.mrf.mxu0
  %v415 = vpop.f32.mrf.mxu0
  %v416 = vadd.f32 0.0, %v415
  %v417 = vpop.f32.mrf.mxu0
  %418 = vmatprep.mubr.bf16.mxu0 %v297
  %419 = vmatmul.mubr.bf16.gmra.mxu0 %v177
  %v420 = vpop.f32.mrf.mxu0
  %v421 = vadd.f32 0.0, %v420
  %v422 = vpop.f32.mrf.mxu0
  %v423 = vpop.f32.mrf.mxu0
  %v424 = vadd.f32 0.0, %v423
  %v425 = vpop.f32.mrf.mxu0
  %426 = vmatprep.mubr.bf16.mxu0 %v300
  %427 = vmatmul.mubr.bf16.gmra.mxu0 %v179
  %v428 = vpop.f32.mrf.mxu0
  %v429 = vadd.f32 0.0, %v428
  %v430 = vpop.f32.mrf.mxu0
  %v431 = vpop.f32.mrf.mxu0
  %v432 = vadd.f32 0.0, %v431
  %v433 = vpop.f32.mrf.mxu0
  %434 = vmatprep.mubr.bf16.mxu0 %v303
  %435 = vmatmul.mubr.bf16.gmra.mxu0 %v181
  %v436 = vpop.f32.mrf.mxu0
  %v437 = vadd.f32 0.0, %v436
  %v438 = vpop.f32.mrf.mxu0
  %v439 = vpop.f32.mrf.mxu0
  %v440 = vadd.f32 0.0, %v439
  %v441 = vpop.f32.mrf.mxu0
  %442 = vmatprep.mubr.bf16.mxu0 %v306
  %443 = vmatmul.mubr.bf16.gmra.mxu0 %v183
  %v444 = vpop.f32.mrf.mxu0
  %v445 = vadd.f32 0.0, %v444
  %v446 = vpop.f32.mrf.mxu0
  %v447 = vpop.f32.mrf.mxu0
  %v448 = vadd.f32 0.0, %v447
  %v449 = vpop.f32.mrf.mxu0
  %450 = vmatprep.mubr.bf16.mxu0 %v309
  %451 = vmatmul.mubr.bf16.gmra.mxu0 %v185
  %v452 = vpop.f32.mrf.mxu0
  %v453 = vadd.f32 0.0, %v452
  %v454 = vpop.f32.mrf.mxu0
  %v455 = vpop.f32.mrf.mxu0
  %v456 = vadd.f32 0.0, %v455
  %v457 = vpop.f32.mrf.mxu0
  %458 = vmatprep.mubr.bf16.mxu0 %v312
  %459 = vmatmul.mubr.bf16.gmra.mxu0 %v187
  %v460 = vpop.f32.mrf.mxu0
  %v461 = vadd.f32 0.0, %v460
  %v462 = vpop.f32.mrf.mxu0
  %v463 = vpop.f32.mrf.mxu0
  %v464 = vadd.f32 0.0, %v463
  %v465 = vpop.f32.mrf.mxu0
  %466 = vmatprep.mubr.bf16.mxu0 %v315
  %467 = vmatmul.mubr.bf16.gmra.mxu0 %v189
  %v468 = vpop.f32.mrf.mxu0
  %v469 = vadd.f32 0.0, %v468
  %v470 = vpop.f32.mrf.mxu0
  %v471 = vpop.f32.mrf.mxu0
  %v472 = vadd.f32 0.0, %v471
  %v473 = vpop.f32.mrf.mxu0
  %474 = vmatprep.mubr.bf16.mxu0 %v318
  %475 = vmatmul.mubr.bf16.gmra.mxu0 %v191
  %v476 = vpop.f32.mrf.mxu0
  %v477 = vadd.f32 0.0, %v476
  %v478 = vpop.f32.mrf.mxu0
  %v479 = vpop.f32.mrf.mxu0
  %v480 = vadd.f32 0.0, %v479
  %v481 = vpop.f32.mrf.mxu0
  %482 = vmatprep.mubr.bf16.mxu0 %v321
  %483 = vmatmul.mubr.bf16.gmra.mxu0 %v193
  %v484 = vpop.f32.mrf.mxu0
  %v485 = vadd.f32 0.0, %v484
  %v486 = vpop.f32.mrf.mxu0
  %v487 = vpop.f32.mrf.mxu0
  %v488 = vadd.f32 0.0, %v487
  %v489 = vpop.f32.mrf.mxu0
  %490 = vdwg.mxu0
  %vm491 = vcmask 408576
  %492 = vst.msk [vmem:[%s2] sm:$0xff] %vm491, %v365
  %493 = vst.msk [vmem:[%s2 + $0x8] sm:$0xff] %vm491, %v368
  %494 = vst.msk [vmem:[%s2 + $0x10] sm:$0xff] %vm491, %v373
  %495 = vst.msk [vmem:[%s2 + $0x18] sm:$0xff] %vm491, %v376
  %496 = vst.msk [vmem:[%s2 + $0x20] sm:$0xff] %vm491, %v381
  %497 = vst.msk [vmem:[%s2 + $0x28] sm:$0xff] %vm491, %v384
  %498 = vst.msk [vmem:[%s2 + $0x30] sm:$0xff] %vm491, %v389
  %499 = vst.msk [vmem:[%s2 + $0x38] sm:$0xff] %vm491, %v392
  %500 = vst.msk [vmem:[%s2 + $0x40] sm:$0xff] %vm491, %v397
  %501 = vst.msk [vmem:[%s2 + $0x48] sm:$0xff] %vm491, %v400
  %502 = vst.msk [vmem:[%s2 + $0x50] sm:$0xff] %vm491, %v405
  %503 = vst.msk [vmem:[%s2 + $0x58] sm:$0xff] %vm491, %v408
  %504 = vst.msk [vmem:[%s2 + $0x60] sm:$0xff] %vm491, %v413
  %505 = vst.msk [vmem:[%s2 + $0x68] sm:$0xff] %vm491, %v416
  %506 = vst.msk [vmem:[%s2 + $0x70] sm:$0xff] %vm491, %v421
  %507 = vst.msk [vmem:[%s2 + $0x78] sm:$0xff] %vm491, %v424
  %508 = vst.msk [vmem:[%s2 + $0x80] sm:$0xff] %vm491, %v429
  %509 = vst.msk [vmem:[%s2 + $0x88] sm:$0xff] %vm491, %v432
  %510 = vst.msk [vmem:[%s2 + $0x90] sm:$0xff] %vm491, %v437
  %511 = vst.msk [vmem:[%s2 + $0x98] sm:$0xff] %vm491, %v440
  %512 = vst.msk [vmem:[%s2 + $0xa0] sm:$0xff] %vm491, %v445
  %513 = vst.msk [vmem:[%s2 + $0xa8] sm:$0xff] %vm491, %v448
  %514 = vst.msk [vmem:[%s2 + $0xb0] sm:$0xff] %vm491, %v453
  %515 = vst.msk [vmem:[%s2 + $0xb8] sm:$0xff] %vm491, %v456
  %516 = vst.msk [vmem:[%s2 + $0xc0] sm:$0xff] %vm491, %v461
  %517 = vst.msk [vmem:[%s2 + $0xc8] sm:$0xff] %vm491, %v464
  %518 = vst.msk [vmem:[%s2 + $0xd0] sm:$0xff] %vm491, %v469
  %519 = vst.msk [vmem:[%s2 + $0xd8] sm:$0xff] %vm491, %v472
  %520 = vst.msk [vmem:[%s2 + $0xe0] sm:$0xff] %vm491, %v477
  %521 = vst.msk [vmem:[%s2 + $0xe8] sm:$0xff] %vm491, %v480
  %522 = vst.msk [vmem:[%s2 + $0xf0] sm:$0xff] %vm491, %v485
  %523 = vst.msk [vmem:[%s2 + $0xf8] sm:$0xff] %vm491, %v488
  %v524 = vsel %vm491, %v365, 0.0
  %v525 = vsel %vm491, %v368, 0.0
  %v526 = vadd.f32 %v524, %v525
  %v527 = vsel %vm491, %v373, 0.0
  %v528 = vadd.f32 %v526, %v527
  %v529 = vsel %vm491, %v376, 0.0
  %v530 = vadd.f32 %v528, %v529
  %v531 = vsel %vm491, %v381, 0.0
  %v532 = vadd.f32 %v530, %v531
  %v533 = vsel %vm491, %v384, 0.0
  %v534 = vadd.f32 %v532, %v533
  %v535 = vsel %vm491, %v389, 0.0
  %v536 = vadd.f32 %v534, %v535
  %v537 = vsel %vm491, %v392, 0.0
  %v538 = vadd.f32 %v536, %v537
  %v539 = vsel %vm491, %v397, 0.0
  %v540 = vadd.f32 %v538, %v539
  %v541 = vsel %vm491, %v400, 0.0
  %v542 = vadd.f32 %v540, %v541
  %v543 = vsel %vm491, %v405, 0.0
  %v544 = vadd.f32 %v542, %v543
  %v545 = vsel %vm491, %v408, 0.0
  %v546 = vadd.f32 %v544, %v545
  %v547 = vsel %vm491, %v413, 0.0
  %v548 = vadd.f32 %v546, %v547
  %v549 = vsel %vm491, %v416, 0.0
  %v550 = vadd.f32 %v548, %v549
  %v551 = vsel %vm491, %v421, 0.0
  %v552 = vadd.f32 %v550, %v551
  %v553 = vsel %vm491, %v424, 0.0
  %v554 = vadd.f32 %v552, %v553
  %v555 = vsel %vm491, %v429, 0.0
  %v556 = vadd.f32 %v554, %v555
  %v557 = vsel %vm491, %v432, 0.0
  %v558 = vadd.f32 %v556, %v557
  %v559 = vsel %vm491, %v437, 0.0
  %v560 = vadd.f32 %v558, %v559
  %v561 = vsel %vm491, %v440, 0.0
  %v562 = vadd.f32 %v560, %v561
  %v563 = vsel %vm491, %v445, 0.0
  %v564 = vadd.f32 %v562, %v563
  %v565 = vsel %vm491, %v448, 0.0
  %v566 = vadd.f32 %v564, %v565
  %v567 = vsel %vm491, %v453, 0.0
  %v568 = vadd.f32 %v566, %v567
  %v569 = vsel %vm491, %v456, 0.0
  %v570 = vadd.f32 %v568, %v569
  %v571 = vsel %vm491, %v461, 0.0
  %v572 = vadd.f32 %v570, %v571
  %v573 = vsel %vm491, %v464, 0.0
  %v574 = vadd.f32 %v572, %v573
  %v575 = vsel %vm491, %v469, 0.0
  %v576 = vadd.f32 %v574, %v575
  %v577 = vsel %vm491, %v472, 0.0
  %v578 = vadd.f32 %v576, %v577
  %v579 = vsel %vm491, %v477, 0.0
  %v580 = vadd.f32 %v578, %v579
  %v581 = vsel %vm491, %v480, 0.0
  %v582 = vadd.f32 %v580, %v581
  %v583 = vsel %vm491, %v485, 0.0
  %v584 = vadd.f32 %v582, %v583
  %v585 = vsel %vm491, %v488, 0.0
  %v586 = vadd.f32 %v584, %v585
  %v587 = vrot.slane %v586, 4
  %v588 = vadd.f32 %v586, %v587
  %v589 = vrot.slane %v588, 2
  %v590 = vadd.f32 %v588, %v589
  %v591 = vrot.slane %v590, 1
  %v592 = vadd.f32 %v590, %v591
  %v593 = vmul.f32 %v365, %v365
  %v594 = vmul.f32 %v368, %v368
  %v595 = vmul.f32 %v373, %v373
  %v596 = vmul.f32 %v376, %v376
  %v597 = vmul.f32 %v381, %v381
  %v598 = vmul.f32 %v384, %v384
  %v599 = vmul.f32 %v389, %v389
  %v600 = vmul.f32 %v392, %v392
  %v601 = vmul.f32 %v397, %v397
  %v602 = vmul.f32 %v400, %v400
  %v603 = vmul.f32 %v405, %v405
  %v604 = vmul.f32 %v408, %v408
  %v605 = vmul.f32 %v413, %v413
  %v606 = vmul.f32 %v416, %v416
  %v607 = vmul.f32 %v421, %v421
  %v608 = vmul.f32 %v424, %v424
  %v609 = vmul.f32 %v429, %v429
  %v610 = vmul.f32 %v432, %v432
  %v611 = vmul.f32 %v437, %v437
  %v612 = vmul.f32 %v440, %v440
  %v613 = vmul.f32 %v445, %v445
  %v614 = vmul.f32 %v448, %v448
  %v615 = vmul.f32 %v453, %v453
  %v616 = vmul.f32 %v456, %v456
  %v617 = vmul.f32 %v461, %v461
  %v618 = vmul.f32 %v464, %v464
  %v619 = vmul.f32 %v469, %v469
  %v620 = vmul.f32 %v472, %v472
  %v621 = vmul.f32 %v477, %v477
  %v622 = vmul.f32 %v480, %v480
  %v623 = vmul.f32 %v485, %v485
  %v624 = vmul.f32 %v488, %v488
  %v625 = vsel %vm491, %v593, 0.0
  %v626 = vsel %vm491, %v594, 0.0
  %v627 = vadd.f32 %v625, %v626
  %v628 = vsel %vm491, %v595, 0.0
  %v629 = vadd.f32 %v627, %v628
  %v630 = vsel %vm491, %v596, 0.0
  %v631 = vadd.f32 %v629, %v630
  %v632 = vsel %vm491, %v597, 0.0
  %v633 = vadd.f32 %v631, %v632
  %v634 = vsel %vm491, %v598, 0.0
  %v635 = vadd.f32 %v633, %v634
  %v636 = vsel %vm491, %v599, 0.0
  %v637 = vadd.f32 %v635, %v636
  %v638 = vsel %vm491, %v600, 0.0
  %v639 = vadd.f32 %v637, %v638
  %v640 = vsel %vm491, %v601, 0.0
  %v641 = vadd.f32 %v639, %v640
  %v642 = vsel %vm491, %v602, 0.0
  %v643 = vadd.f32 %v641, %v642
  %v644 = vsel %vm491, %v603, 0.0
  %v645 = vadd.f32 %v643, %v644
  %v646 = vsel %vm491, %v604, 0.0
  %v647 = vadd.f32 %v645, %v646
  %v648 = vsel %vm491, %v605, 0.0
  %v649 = vadd.f32 %v647, %v648
  %v650 = vsel %vm491, %v606, 0.0
  %v651 = vadd.f32 %v649, %v650
  %v652 = vsel %vm491, %v607, 0.0
  %v653 = vadd.f32 %v651, %v652
  %v654 = vsel %vm491, %v608, 0.0
  %v655 = vadd.f32 %v653, %v654
  %v656 = vsel %vm491, %v609, 0.0
  %v657 = vadd.f32 %v655, %v656
  %v658 = vsel %vm491, %v610, 0.0
  %v659 = vadd.f32 %v657, %v658
  %v660 = vsel %vm491, %v611, 0.0
  %v661 = vadd.f32 %v659, %v660
  %v662 = vsel %vm491, %v612, 0.0
  %v663 = vadd.f32 %v661, %v662
  %v664 = vsel %vm491, %v613, 0.0
  %v665 = vadd.f32 %v663, %v664
  %v666 = vsel %vm491, %v614, 0.0
  %v667 = vadd.f32 %v665, %v666
  %v668 = vsel %vm491, %v615, 0.0
  %v669 = vadd.f32 %v667, %v668
  %v670 = vsel %vm491, %v616, 0.0
  %v671 = vadd.f32 %v669, %v670
  %v672 = vsel %vm491, %v617, 0.0
  %v673 = vadd.f32 %v671, %v672
  %v674 = vsel %vm491, %v618, 0.0
  %v675 = vadd.f32 %v673, %v674
  %v676 = vsel %vm491, %v619, 0.0
  %v677 = vadd.f32 %v675, %v676
  %v678 = vsel %vm491, %v620, 0.0
  %v679 = vadd.f32 %v677, %v678
  %v680 = vsel %vm491, %v621, 0.0
  %v681 = vadd.f32 %v679, %v680
  %v682 = vsel %vm491, %v622, 0.0
  %v683 = vadd.f32 %v681, %v682
  %v684 = vsel %vm491, %v623, 0.0
  %v685 = vadd.f32 %v683, %v684
  %v686 = vsel %vm491, %v624, 0.0
  %v687 = vadd.f32 %v685, %v686
  %v688 = vrot.slane %v687, 4
  %v689 = vadd.f32 %v687, %v688
  %v690 = vrot.slane %v689, 2
  %v691 = vadd.f32 %v689, %v690
  %v692 = vrot.slane %v691, 1
  %v693 = vadd.f32 %v691, %v692
  %vm694 = vcmask 1040384
  %v695 = vsel %vm694, %v592, %v693
  %vm696 = vcmask 402432
  %697 = vst.msk [vmem:[%s3] sm:$0x3] %vm696, %v695
  // Predicated region
  $region10: #{eeg_channelnet_encoder.10} parent=0 // pred_check
    _
  $region11: #{eeg_channelnet_encoder.10} parent=0 // pred_check_branch
    %699 = sbr.rel (0) target = $region13
  $region12: #{eeg_channelnet_encoder.10} parent=0 // pred_region
    _
  $region13: #{eeg_channelnet_encoder.10} parent=0 // pred_fallthru
    _
  // Predicated region
  $region14: #{eeg_channelnet_encoder.10} parent=0 // pred_check
    _
  $region15: #{eeg_channelnet_encoder.10} parent=0 // pred_check_branch
    %701 = sbr.rel (0) target = $region17
  $region16: #{eeg_channelnet_encoder.10} parent=0 // pred_region
    _
  $region17: #{eeg_channelnet_encoder.10} parent=0 // pred_fallthru
    _
  // Predicated region
  $region18: #{eeg_channelnet_encoder.10} parent=0 // pred_check
    _
  $region19: #{eeg_channelnet_encoder.10} parent=0 // pred_check_branch
    %703 = sbr.rel (0) target = $region21
  $region20: #{eeg_channelnet_encoder.10} parent=0 // pred_region
    _
  $region21: #{eeg_channelnet_encoder.10} parent=0 // pred_fallthru
    _
  // Predicated region
  $region22: #{eeg_channelnet_encoder.10} parent=0 // pred_check
    _
  $region23: #{eeg_channelnet_encoder.10} parent=0 // pred_check_branch
    %705 = sbr.rel (0) target = $region25
  $region24: #{eeg_channelnet_encoder.10} parent=0 // pred_region
    _
  $region25: #{eeg_channelnet_encoder.10} parent=0 // pred_fallthru
    _

// kernel: eeg_channelnet_encoder.13
$region0: #{eeg_channelnet_encoder.13}
  #allocation0 [shape = 'u32[]', space=smem, size = 0x4, offset = 0x4, fixed_abs, tag = 'smem constant byte address 0x4 - core index']
  #allocation1 [shape = 'u32[144,128]{1,0:T(1,128)}', space=vmem, size = 0x12000, scoped, tag = 'internal scratch']
  %s0 = inlined_call_operand.vmem [shape: f32[128,200], index: 0, kind: input, shape index: {}]
  %s1 = inlined_call_operand.vmem [shape: f32[2,200], index: 1, kind: input, shape index: {}]
  %s2 = inlined_call_operand.vmem [shape: f32[128,200], index: 2, kind: output, shape index: {}]
  %s3 = sld [smem:[#allocation0]]
  $region18: #{eeg_channelnet_encoder.13} parent=0
    _
  %s5 = ssub.s32 1, %s3
  %s6 = scalar_select 0, %s5, %s3
  // Predicated region
  $region2: #{eeg_channelnet_encoder.13} parent=0 // pred_check
    _
  $region3: #{eeg_channelnet_encoder.13} parent=0 // pred_check_branch
    %8 = sbr.rel (0) target = $region5
  $region4: #{eeg_channelnet_encoder.13} parent=0 // pred_region
    _
  $region5: #{eeg_channelnet_encoder.13} parent=0 // pred_fallthru
    _
  // Predicated region
  $region6: #{eeg_channelnet_encoder.13} parent=0 // pred_check
    _
  $region7: #{eeg_channelnet_encoder.13} parent=0 // pred_check_branch
    %10 = sbr.rel (0) target = $region9
  $region8: #{eeg_channelnet_encoder.13} parent=0 // pred_region
    _
  $region9: #{eeg_channelnet_encoder.13} parent=0 // pred_fallthru
    _
  %v11 = vld [vmem:[%s0] sm:$0xff]
  %v12 = vld [vmem:[%s0 + $0x8] sm:$0xff]
  %v13 = vld [vmem:[%s0 + $0x10] sm:$0xff]
  %v14 = vld [vmem:[%s0 + $0x18] sm:$0xff]
  %v15 = vld [vmem:[%s0 + $0x20] sm:$0xff]
  %v16 = vld [vmem:[%s0 + $0x28] sm:$0xff]
  %v17 = vld [vmem:[%s0 + $0x30] sm:$0xff]
  %v18 = vld [vmem:[%s0 + $0x38] sm:$0xff]
  %v19 = vld [vmem:[%s0 + $0x40] sm:$0xff]
  %v20 = vld [vmem:[%s0 + $0x48] sm:$0xff]
  %v21 = vld [vmem:[%s0 + $0x50] sm:$0xff]
  %v22 = vld [vmem:[%s0 + $0x58] sm:$0xff]
  %v23 = vld [vmem:[%s0 + $0x60] sm:$0xff]
  %v24 = vld [vmem:[%s0 + $0x68] sm:$0xff]
  %v25 = vld [vmem:[%s0 + $0x70] sm:$0xff]
  %v26 = vld [vmem:[%s0 + $0x78] sm:$0xff]
  %v27 = vld [vmem:[%s0 + $0x80] sm:$0xff]
  %v28 = vld [vmem:[%s0 + $0x88] sm:$0xff]
  %v29 = vld [vmem:[%s0 + $0x90] sm:$0xff]
  %v30 = vld [vmem:[%s0 + $0x98] sm:$0xff]
  %v31 = vld [vmem:[%s0 + $0xa0] sm:$0xff]
  %v32 = vld [vmem:[%s0 + $0xa8] sm:$0xff]
  %v33 = vld [vmem:[%s0 + $0xb0] sm:$0xff]
  %v34 = vld [vmem:[%s0 + $0xb8] sm:$0xff]
  %v35 = vld [vmem:[%s0 + $0xc0] sm:$0xff]
  %v36 = vld [vmem:[%s0 + $0xc8] sm:$0xff]
  %v37 = vld [vmem:[%s0 + $0xd0] sm:$0xff]
  %v38 = vld [vmem:[%s0 + $0xd8] sm:$0xff]
  %v39 = vld [vmem:[%s0 + $0xe0] sm:$0xff]
  %v40 = vld [vmem:[%s0 + $0xe8] sm:$0xff]
  %v41 = vld [vmem:[%s0 + $0xf0] sm:$0xff]
  %v42 = vld [vmem:[%s0 + $0xf8] sm:$0xff]
  %v43 = vld [vmem:[%s1] ss:$2 sm:$0x3]
  %v45 = vlaneseq
  %v46 = vshrl.u32 %v45, 7
  %v47 = vsub.s32 0, %v46
  %v48 = vrot.slane %v43, %v47
  %v49 = vlaneseq
  %v50 = vshrl.u32 %v49, 7
  %v51 = vsub.s32 1, %v50
  %v52 = vrot.slane %v43, %v51
  %v55 = vmul.f32 %v11, %v48
  %v56 = vmul.f32 %v12, %v52
  %v57 = vmul.f32 %v13, %v48
  %v58 = vmul.f32 %v14, %v52
  %v59 = vmul.f32 %v15, %v48
  %v60 = vmul.f32 %v16, %v52
  %v61 = vmul.f32 %v17, %v48
  %v62 = vmul.f32 %v18, %v52
  %v63 = vmul.f32 %v19, %v48
  %v64 = vmul.f32 %v20, %v52
  %v65 = vmul.f32 %v21, %v48
  %v66 = vmul.f32 %v22, %v52
  %v67 = vmul.f32 %v23, %v48
  %v68 = vmul.f32 %v24, %v52
  %v69 = vmul.f32 %v25, %v48
  %v70 = vmul.f32 %v26, %v52
  %v71 = vmul.f32 %v27, %v48
  %v72 = vmul.f32 %v28, %v52
  %v73 = vmul.f32 %v29, %v48
  %v74 = vmul.f32 %v30, %v52
  %v75 = vmul.f32 %v31, %v48
  %v76 = vmul.f32 %v32, %v52
  %v77 = vmul.f32 %v33, %v48
  %v78 = vmul.f32 %v34, %v52
  %v79 = vmul.f32 %v35, %v48
  %v80 = vmul.f32 %v36, %v52
  %v81 = vmul.f32 %v37, %v48
  %v82 = vmul.f32 %v38, %v52
  %v83 = vmul.f32 %v39, %v48
  %v84 = vmul.f32 %v40, %v52
  %v85 = vmul.f32 %v41, %v48
  %v86 = vmul.f32 %v42, %v52
  %s87 = scalar_lea.vmem %s1, 1
  %v88 = vld [vmem:[%s87] ss:$2 sm:$0x3]
  %v90 = vlaneseq
  %v91 = vshrl.u32 %v90, 7
  %v92 = vsub.s32 0, %v91
  %v93 = vrot.slane %v88, %v92
  %v94 = vlaneseq
  %v95 = vshrl.u32 %v94, 7
  %v96 = vsub.s32 1, %v95
  %v97 = vrot.slane %v88, %v96
  %v100 = vadd.f32 %v55, %v93
  %v101 = vadd.f32 %v56, %v97
  %v102 = vadd.f32 %v57, %v93
  %v103 = vadd.f32 %v58, %v97
  %v104 = vadd.f32 %v59, %v93
  %v105 = vadd.f32 %v60, %v97
  %v106 = vadd.f32 %v61, %v93
  %v107 = vadd.f32 %v62, %v97
  %v108 = vadd.f32 %v63, %v93
  %v109 = vadd.f32 %v64, %v97
  %v110 = vadd.f32 %v65, %v93
  %v111 = vadd.f32 %v66, %v97
  %v112 = vadd.f32 %v67, %v93
  %v113 = vadd.f32 %v68, %v97
  %v114 = vadd.f32 %v69, %v93
  %v115 = vadd.f32 %v70, %v97
  %v116 = vadd.f32 %v71, %v93
  %v117 = vadd.f32 %v72, %v97
  %v118 = vadd.f32 %v73, %v93
  %v119 = vadd.f32 %v74, %v97
  %v120 = vadd.f32 %v75, %v93
  %v121 = vadd.f32 %v76, %v97
  %v122 = vadd.f32 %v77, %v93
  %v123 = vadd.f32 %v78, %v97
  %v124 = vadd.f32 %v79, %v93
  %v125 = vadd.f32 %v80, %v97
  %v126 = vadd.f32 %v81, %v93
  %v127 = vadd.f32 %v82, %v97
  %v128 = vadd.f32 %v83, %v93
  %v129 = vadd.f32 %v84, %v97
  %v130 = vadd.f32 %v85, %v93
  %v131 = vadd.f32 %v86, %v97
  %v132 = vmax.f32 %v100, 0.0
  %v133 = vmax.f32 %v101, 0.0
  %v134 = vmax.f32 %v102, 0.0
  %v135 = vmax.f32 %v103, 0.0
  %v136 = vmax.f32 %v104, 0.0
  %v137 = vmax.f32 %v105, 0.0
  %v138 = vmax.f32 %v106, 0.0
  %v139 = vmax.f32 %v107, 0.0
  %v140 = vmax.f32 %v108, 0.0
  %v141 = vmax.f32 %v109, 0.0
  %v142 = vmax.f32 %v110, 0.0
  %v143 = vmax.f32 %v111, 0.0
  %v144 = vmax.f32 %v112, 0.0
  %v145 = vmax.f32 %v113, 0.0
  %v146 = vmax.f32 %v114, 0.0
  %v147 = vmax.f32 %v115, 0.0
  %v148 = vmax.f32 %v116, 0.0
  %v149 = vmax.f32 %v117, 0.0
  %v150 = vmax.f32 %v118, 0.0
  %v151 = vmax.f32 %v119, 0.0
  %v152 = vmax.f32 %v120, 0.0
  %v153 = vmax.f32 %v121, 0.0
  %v154 = vmax.f32 %v122, 0.0
  %v155 = vmax.f32 %v123, 0.0
  %v156 = vmax.f32 %v124, 0.0
  %v157 = vmax.f32 %v125, 0.0
  %v158 = vmax.f32 %v126, 0.0
  %v159 = vmax.f32 %v127, 0.0
  %v160 = vmax.f32 %v128, 0.0
  %v161 = vmax.f32 %v129, 0.0
  %v162 = vmax.f32 %v130, 0.0
  %v163 = vmax.f32 %v131, 0.0
  %164 = vst [vmem:[%s2] sm:$0xff] %v132
  %vm165 = vcmask 588800
  %166 = vst.msk [vmem:[%s2 + $0x8] sm:$0xff] %vm165, %v133
  %167 = vst [vmem:[%s2 + $0x10] sm:$0xff] %v134
  %168 = vst.msk [vmem:[%s2 + $0x18] sm:$0xff] %vm165, %v135
  %169 = vst [vmem:[%s2 + $0x20] sm:$0xff] %v136
  %170 = vst.msk [vmem:[%s2 + $0x28] sm:$0xff] %vm165, %v137
  %171 = vst [vmem:[%s2 + $0x30] sm:$0xff] %v138
  %172 = vst.msk [vmem:[%s2 + $0x38] sm:$0xff] %vm165, %v139
  %173 = vst [vmem:[%s2 + $0x40] sm:$0xff] %v140
  %174 = vst.msk [vmem:[%s2 + $0x48] sm:$0xff] %vm165, %v141
  %175 = vst [vmem:[%s2 + $0x50] sm:$0xff] %v142
  %176 = vst.msk [vmem:[%s2 + $0x58] sm:$0xff] %vm165, %v143
  %177 = vst [vmem:[%s2 + $0x60] sm:$0xff] %v144
  %178 = vst.msk [vmem:[%s2 + $0x68] sm:$0xff] %vm165, %v145
  %179 = vst [vmem:[%s2 + $0x70] sm:$0xff] %v146
  %180 = vst.msk [vmem:[%s2 + $0x78] sm:$0xff] %vm165, %v147
  %181 = vst [vmem:[%s2 + $0x80] sm:$0xff] %v148
  %182 = vst.msk [vmem:[%s2 + $0x88] sm:$0xff] %vm165, %v149
  %183 = vst [vmem:[%s2 + $0x90] sm:$0xff] %v150
  %184 = vst.msk [vmem:[%s2 + $0x98] sm:$0xff] %vm165, %v151
  %185 = vst [vmem:[%s2 + $0xa0] sm:$0xff] %v152
  %186 = vst.msk [vmem:[%s2 + $0xa8] sm:$0xff] %vm165, %v153
  %187 = vst [vmem:[%s2 + $0xb0] sm:$0xff] %v154
  %188 = vst.msk [vmem:[%s2 + $0xb8] sm:$0xff] %vm165, %v155
  %189 = vst [vmem:[%s2 + $0xc0] sm:$0xff] %v156
  %190 = vst.msk [vmem:[%s2 + $0xc8] sm:$0xff] %vm165, %v157
  %191 = vst [vmem:[%s2 + $0xd0] sm:$0xff] %v158
  %192 = vst.msk [vmem:[%s2 + $0xd8] sm:$0xff] %vm165, %v159
  %193 = vst [vmem:[%s2 + $0xe0] sm:$0xff] %v160
  %194 = vst.msk [vmem:[%s2 + $0xe8] sm:$0xff] %vm165, %v161
  %195 = vst [vmem:[%s2 + $0xf0] sm:$0xff] %v162
  %196 = vst.msk [vmem:[%s2 + $0xf8] sm:$0xff] %vm165, %v163
  // Predicated region
  $region10: #{eeg_channelnet_encoder.13} parent=0 // pred_check
    _
  $region11: #{eeg_channelnet_encoder.13} parent=0 // pred_check_branch
    %198 = sbr.rel (0) target = $region13
  $region12: #{eeg_channelnet_encoder.13} parent=0 // pred_region
    _
  $region13: #{eeg_channelnet_encoder.13} parent=0 // pred_fallthru
    _
  // Predicated region
  $region14: #{eeg_channelnet_encoder.13} parent=0 // pred_check
    _
  $region15: #{eeg_channelnet_encoder.13} parent=0 // pred_check_branch
    %200 = sbr.rel (0) target = $region17
  $region16: #{eeg_channelnet_encoder.13} parent=0 // pred_region
    _
  $region17: #{eeg_channelnet_encoder.13} parent=0 // pred_fallthru
    _

// kernel: eeg_channelnet_encoder.12
$region0: #{eeg_channelnet_encoder.12}
  #allocation0 [shape = 'u32[]', space=smem, size = 0x4, offset = 0x4, fixed_abs, tag = 'smem constant byte address 0x4 - core index']
  #allocation1 [shape = 'u32[144,128]{1,0:T(1,128)}', space=vmem, size = 0x12000, scoped, tag = 'internal scratch']
  %s0 = inlined_call_operand.vmem [shape: bf16[128,1500], index: 0, kind: input, shape index: {}]
  %s1 = inlined_call_operand.vmem [shape: bf16[1500,200], index: 1, kind: input, shape index: {}]
  %s2 = inlined_call_operand.vmem [shape: f32[128,200], index: 2, kind: output, shape index: {0}]
  %s3 = inlined_call_operand.vmem [shape: f32[1,2,200], index: 3, kind: output, shape index: {1}]
  %4 = xla_tuple %s2, %s3
  %s5 = sld [smem:[#allocation0]]
  $region26: #{eeg_channelnet_encoder.12} parent=0
    _
  %s7 = ssub.s32 1, %s5
  %s8 = scalar_select 0, %s7, %s5
  // Predicated region
  $region2: #{eeg_channelnet_encoder.12} parent=0 // pred_check
    _
  $region3: #{eeg_channelnet_encoder.12} parent=0 // pred_check_branch
    %10 = sbr.rel (0) target = $region5
  $region4: #{eeg_channelnet_encoder.12} parent=0 // pred_region
    _
  $region5: #{eeg_channelnet_encoder.12} parent=0 // pred_fallthru
    _
  // Predicated region
  $region6: #{eeg_channelnet_encoder.12} parent=0 // pred_check
    _
  $region7: #{eeg_channelnet_encoder.12} parent=0 // pred_check_branch
    %12 = sbr.rel (0) target = $region9
  $region8: #{eeg_channelnet_encoder.12} parent=0 // pred_region
    _
  $region9: #{eeg_channelnet_encoder.12} parent=0 // pred_fallthru
    _
  %v14 = vld [vmem:[%s0] sm:$0xff]
  %v15 = vld [vmem:[%s0 + $0x8] sm:$0xff]
  %v16 = vld [vmem:[%s0 + $0x10] sm:$0xff]
  %v17 = vld [vmem:[%s0 + $0x18] sm:$0xff]
  %v18 = vld [vmem:[%s0 + $0x20] sm:$0xff]
  %v19 = vld [vmem:[%s0 + $0x28] sm:$0xff]
  %v20 = vld [vmem:[%s0 + $0x30] sm:$0xff]
  %v21 = vld [vmem:[%s0 + $0x38] sm:$0xff]
  %v22 = vld [vmem:[%s0 + $0x40] sm:$0xff]
  %v23 = vld [vmem:[%s0 + $0x48] sm:$0xff]
  %v24 = vld [vmem:[%s0 + $0x50] sm:$0xff]
  %v25 = vld [vmem:[%s0 + $0x58] sm:$0xff]
  %v26 = vld [vmem:[%s0 + $0x60] sm:$0xff]
  %v27 = vld [vmem:[%s0 + $0x68] sm:$0xff]
  %v28 = vld [vmem:[%s0 + $0x70] sm:$0xff]
  %v29 = vld [vmem:[%s0 + $0x78] sm:$0xff]
  %v30 = vld [vmem:[%s0 + $0x80] sm:$0xff]
  %v31 = vld [vmem:[%s0 + $0x88] sm:$0xff]
  %v32 = vld [vmem:[%s0 + $0x90] sm:$0xff]
  %v33 = vld [vmem:[%s0 + $0x98] sm:$0xff]
  %v34 = vld [vmem:[%s0 + $0xa0] sm:$0xff]
  %v35 = vld [vmem:[%s0 + $0xa8] sm:$0xff]
  %v36 = vld [vmem:[%s0 + $0xb0] sm:$0xff]
  %v37 = vld [vmem:[%s0 + $0xb8] sm:$0xff]
  %v38 = vld [vmem:[%s0 + $0xc0] sm:$0xff]
  %v39 = vld [vmem:[%s0 + $0xc8] sm:$0xff]
  %v40 = vld [vmem:[%s0 + $0xd0] sm:$0xff]
  %v41 = vld [vmem:[%s0 + $0xd8] sm:$0xff]
  %v42 = vld [vmem:[%s0 + $0xe0] sm:$0xff]
  %v43 = vld [vmem:[%s0 + $0xe8] sm:$0xff]
  %v44 = vld [vmem:[%s0 + $0xf0] sm:$0xff]
  %v45 = vld [vmem:[%s0 + $0xf8] sm:$0xff]
  %v46 = vld [vmem:[%s0 + $0x100] sm:$0xff]
  %v47 = vld [vmem:[%s0 + $0x108] sm:$0xff]
  %v48 = vld [vmem:[%s0 + $0x110] sm:$0xff]
  %v49 = vld [vmem:[%s0 + $0x118] sm:$0xff]
  %v50 = vld [vmem:[%s0 + $0x120] sm:$0xff]
  %v51 = vld [vmem:[%s0 + $0x128] sm:$0xff]
  %v52 = vld [vmem:[%s0 + $0x130] sm:$0xff]
  %v53 = vld [vmem:[%s0 + $0x138] sm:$0xff]
  %v54 = vld [vmem:[%s0 + $0x140] sm:$0xff]
  %v55 = vld [vmem:[%s0 + $0x148] sm:$0xff]
  %v56 = vld [vmem:[%s0 + $0x150] sm:$0xff]
  %v57 = vld [vmem:[%s0 + $0x158] sm:$0xff]
  %v58 = vld [vmem:[%s0 + $0x160] sm:$0xff]
  %v59 = vld [vmem:[%s0 + $0x168] sm:$0xff]
  %v60 = vld [vmem:[%s0 + $0x170] sm:$0xff]
  %v61 = vld [vmem:[%s0 + $0x178] sm:$0xff]
  %v62 = vld [vmem:[%s0 + $0x180] sm:$0xff]
  %v63 = vld [vmem:[%s0 + $0x188] sm:$0xff]
  %v64 = vld [vmem:[%s0 + $0x190] sm:$0xff]
  %v65 = vld [vmem:[%s0 + $0x198] sm:$0xff]
  %v66 = vld [vmem:[%s0 + $0x1a0] sm:$0xff]
  %v67 = vld [vmem:[%s0 + $0x1a8] sm:$0xff]
  %v68 = vld [vmem:[%s0 + $0x1b0] sm:$0xff]
  %v69 = vld [vmem:[%s0 + $0x1b8] sm:$0xff]
  %v70 = vld [vmem:[%s0 + $0x1c0] sm:$0xff]
  %v71 = vld [vmem:[%s0 + $0x1c8] sm:$0xff]
  %v72 = vld [vmem:[%s0 + $0x1d0] sm:$0xff]
  %v73 = vld [vmem:[%s0 + $0x1d8] sm:$0xff]
  %v74 = vld [vmem:[%s0 + $0x1e0] sm:$0xff]
  %v75 = vld [vmem:[%s0 + $0x1e8] sm:$0xff]
  %v76 = vld [vmem:[%s0 + $0x1f0] sm:$0xff]
  %v77 = vld [vmem:[%s0 + $0x1f8] sm:$0xff]
  %v78 = vld [vmem:[%s0 + $0x200] sm:$0xff]
  %v79 = vld [vmem:[%s0 + $0x208] sm:$0xff]
  %v80 = vld [vmem:[%s0 + $0x210] sm:$0xff]
  %v81 = vld [vmem:[%s0 + $0x218] sm:$0xff]
  %v82 = vld [vmem:[%s0 + $0x220] sm:$0xff]
  %v83 = vld [vmem:[%s0 + $0x228] sm:$0xff]
  %v84 = vld [vmem:[%s0 + $0x230] sm:$0xff]
  %v85 = vld [vmem:[%s0 + $0x238] sm:$0xff]
  %v86 = vld [vmem:[%s0 + $0x240] sm:$0xff]
  %v87 = vld [vmem:[%s0 + $0x248] sm:$0xff]
  %v88 = vld [vmem:[%s0 + $0x250] sm:$0xff]
  %v89 = vld [vmem:[%s0 + $0x258] sm:$0xff]
  %v90 = vld [vmem:[%s0 + $0x260] sm:$0xff]
  %v91 = vld [vmem:[%s0 + $0x268] sm:$0xff]
  %v92 = vld [vmem:[%s0 + $0x270] sm:$0xff]
  %v93 = vld [vmem:[%s0 + $0x278] sm:$0xff]
  %v94 = vld [vmem:[%s0 + $0x280] sm:$0xff]
  %v95 = vld [vmem:[%s0 + $0x288] sm:$0xff]
  %v96 = vld [vmem:[%s0 + $0x290] sm:$0xff]
  %v97 = vld [vmem:[%s0 + $0x298] sm:$0xff]
  %v98 = vld [vmem:[%s0 + $0x2a0] sm:$0xff]
  %v99 = vld [vmem:[%s0 + $0x2a8] sm:$0xff]
  %v100 = vld [vmem:[%s0 + $0x2b0] sm:$0xff]
  %v101 = vld [vmem:[%s0 + $0x2b8] sm:$0xff]
  %v102 = vld [vmem:[%s0 + $0x2c0] sm:$0xff]
  %v103 = vld [vmem:[%s0 + $0x2c8] sm:$0xff]
  %v104 = vld [vmem:[%s0 + $0x2d0] sm:$0xff]
  %v105 = vld [vmem:[%s0 + $0x2d8] sm:$0xff]
  %v106 = vld [vmem:[%s0 + $0x2e0] sm:$0xff]
  %v107 = vld [vmem:[%s0 + $0x2e8] sm:$0xff]
  %v108 = vld [vmem:[%s0 + $0x2f0] sm:$0xff]
  %v109 = vld [vmem:[%s0 + $0x2f8] sm:$0xff]
  %v110 = vld [vmem:[%s1] sm:$0xff]
  %v111 = vld [vmem:[%s1 + $0x8] sm:$0xff]
  %v112 = vld [vmem:[%s1 + $0x10] sm:$0xff]
  %v113 = vld [vmem:[%s1 + $0x18] sm:$0xff]
  %v114 = vld [vmem:[%s1 + $0x20] sm:$0xff]
  %v115 = vld [vmem:[%s1 + $0x28] sm:$0xff]
  %v116 = vld [vmem:[%s1 + $0x30] sm:$0xff]
  %v117 = vld [vmem:[%s1 + $0x38] sm:$0xff]
  %v118 = vld [vmem:[%s1 + $0x40] sm:$0xff]
  %v119 = vld [vmem:[%s1 + $0x48] sm:$0xff]
  %v120 = vld [vmem:[%s1 + $0x50] sm:$0xff]
  %v121 = vld [vmem:[%s1 + $0x58] sm:$0xff]
  %v122 = vld [vmem:[%s1 + $0x60] sm:$0xff]
  %v123 = vld [vmem:[%s1 + $0x68] sm:$0xff]
  %v124 = vld [vmem:[%s1 + $0x70] sm:$0xff]
  %v125 = vld [vmem:[%s1 + $0x78] sm:$0xff]
  %v126 = vld [vmem:[%s1 + $0x80] sm:$0xff]
  %v127 = vld [vmem:[%s1 + $0x88] sm:$0xff]
  %v128 = vld [vmem:[%s1 + $0x90] sm:$0xff]
  %v129 = vld [vmem:[%s1 + $0x98] sm:$0xff]
  %v130 = vld [vmem:[%s1 + $0xa0] sm:$0xff]
  %v131 = vld [vmem:[%s1 + $0xa8] sm:$0xff]
  %v132 = vld [vmem:[%s1 + $0xb0] sm:$0xff]
  %v133 = vld [vmem:[%s1 + $0xb8] sm:$0xff]
  %v134 = vld [vmem:[%s1 + $0xc0] sm:$0xff]
  %v135 = vld [vmem:[%s1 + $0xc8] sm:$0xff]
  %v136 = vld [vmem:[%s1 + $0xd0] sm:$0xff]
  %v137 = vld [vmem:[%s1 + $0xd8] sm:$0xff]
  %v138 = vld [vmem:[%s1 + $0xe0] sm:$0xff]
  %v139 = vld [vmem:[%s1 + $0xe8] sm:$0xff]
  %v140 = vld [vmem:[%s1 + $0xf0] sm:$0xff]
  %v141 = vld [vmem:[%s1 + $0xf8] sm:$0xff]
  %v142 = vld [vmem:[%s1 + $0x100] sm:$0xff]
  %v143 = vld [vmem:[%s1 + $0x108] sm:$0xff]
  %v144 = vld [vmem:[%s1 + $0x110] sm:$0xff]
  %v145 = vld [vmem:[%s1 + $0x118] sm:$0xff]
  %v146 = vld [vmem:[%s1 + $0x120] sm:$0xff]
  %v147 = vld [vmem:[%s1 + $0x128] sm:$0xff]
  %v148 = vld [vmem:[%s1 + $0x130] sm:$0xff]
  %v149 = vld [vmem:[%s1 + $0x138] sm:$0xff]
  %v150 = vld [vmem:[%s1 + $0x140] sm:$0xff]
  %v151 = vld [vmem:[%s1 + $0x148] sm:$0xff]
  %v152 = vld [vmem:[%s1 + $0x150] sm:$0xff]
  %v153 = vld [vmem:[%s1 + $0x158] sm:$0xff]
  %v154 = vld [vmem:[%s1 + $0x160] sm:$0xff]
  %v155 = vld [vmem:[%s1 + $0x168] sm:$0xff]
  %v156 = vld [vmem:[%s1 + $0x170] sm:$0xff]
  %v157 = vld [vmem:[%s1 + $0x178] sm:$0xff]
  %v158 = vld [vmem:[%s1 + $0x180] sm:$0xff]
  %v159 = vld [vmem:[%s1 + $0x188] sm:$0xff]
  %v160 = vld [vmem:[%s1 + $0x190] sm:$0xff]
  %v161 = vld [vmem:[%s1 + $0x198] sm:$0xff]
  %v162 = vld [vmem:[%s1 + $0x1a0] sm:$0xff]
  %v163 = vld [vmem:[%s1 + $0x1a8] sm:$0xff]
  %v164 = vld [vmem:[%s1 + $0x1b0] sm:$0xff]
  %v165 = vld [vmem:[%s1 + $0x1b8] sm:$0xff]
  %v166 = vld [vmem:[%s1 + $0x1c0] sm:$0xff]
  %v167 = vld [vmem:[%s1 + $0x1c8] sm:$0xff]
  %v168 = vld [vmem:[%s1 + $0x1d0] sm:$0xff]
  %v169 = vld [vmem:[%s1 + $0x1d8] sm:$0xff]
  %v170 = vld [vmem:[%s1 + $0x1e0] sm:$0xff]
  %v171 = vld [vmem:[%s1 + $0x1e8] sm:$0xff]
  %v172 = vld [vmem:[%s1 + $0x1f0] sm:$0xff]
  %v173 = vld [vmem:[%s1 + $0x1f8] sm:$0xff]
  %v174 = vld [vmem:[%s1 + $0x200] sm:$0xff]
  %v175 = vld [vmem:[%s1 + $0x208] sm:$0xff]
  %v176 = vld [vmem:[%s1 + $0x210] sm:$0xff]
  %v177 = vld [vmem:[%s1 + $0x218] sm:$0xff]
  %v178 = vld [vmem:[%s1 + $0x220] sm:$0xff]
  %v179 = vld [vmem:[%s1 + $0x228] sm:$0xff]
  %v180 = vld [vmem:[%s1 + $0x230] sm:$0xff]
  %v181 = vld [vmem:[%s1 + $0x238] sm:$0xff]
  %v182 = vld [vmem:[%s1 + $0x240] sm:$0xff]
  %v183 = vld [vmem:[%s1 + $0x248] sm:$0xff]
  %v184 = vld [vmem:[%s1 + $0x250] sm:$0xff]
  %v185 = vld [vmem:[%s1 + $0x258] sm:$0xff]
  %v186 = vld [vmem:[%s1 + $0x260] sm:$0xff]
  %v187 = vld [vmem:[%s1 + $0x268] sm:$0xff]
  %v188 = vld [vmem:[%s1 + $0x270] sm:$0xff]
  %v189 = vld [vmem:[%s1 + $0x278] sm:$0xff]
  %v190 = vld [vmem:[%s1 + $0x280] sm:$0xff]
  %v191 = vld [vmem:[%s1 + $0x288] sm:$0xff]
  %v192 = vld [vmem:[%s1 + $0x290] sm:$0xff]
  %v193 = vld [vmem:[%s1 + $0x298] sm:$0xff]
  %v194 = vld [vmem:[%s1 + $0x2a0] sm:$0xff]
  %v195 = vld [vmem:[%s1 + $0x2a8] sm:$0xff]
  %v196 = vld [vmem:[%s1 + $0x2b0] sm:$0xff]
  %v197 = vld [vmem:[%s1 + $0x2b8] sm:$0xff]
  %v198 = vld [vmem:[%s1 + $0x2c0] sm:$0xff]
  %v199 = vld [vmem:[%s1 + $0x2c8] sm:$0xff]
  %v200 = vld [vmem:[%s1 + $0x2d0] sm:$0xff]
  %v201 = vld [vmem:[%s1 + $0x2d8] sm:$0xff]
  %v202 = vld [vmem:[%s1 + $0x2e0] sm:$0xff]
  %v203 = vld [vmem:[%s1 + $0x2e8] sm:$0xff]
  %v204 = vld [vmem:[%s1 + $0x2f0] sm:$0xff]
  %v205 = vld [vmem:[%s1 + $0x2f8] sm:$0xff]
  %v206 = vld [vmem:[%s1 + $0x300] sm:$0xff]
  %v207 = vld [vmem:[%s1 + $0x308] sm:$0xff]
  %v208 = vld [vmem:[%s1 + $0x310] sm:$0xff]
  %v209 = vld [vmem:[%s1 + $0x318] sm:$0xff]
  %v210 = vld [vmem:[%s1 + $0x320] sm:$0xff]
  %v211 = vld [vmem:[%s1 + $0x328] sm:$0xff]
  %v212 = vld [vmem:[%s1 + $0x330] sm:$0xff]
  %v213 = vld [vmem:[%s1 + $0x338] sm:$0xff]
  %v214 = vld [vmem:[%s1 + $0x340] sm:$0xff]
  %v215 = vld [vmem:[%s1 + $0x348] sm:$0xff]
  %v216 = vld [vmem:[%s1 + $0x350] sm:$0xff]
  %v217 = vld [vmem:[%s1 + $0x358] sm:$0xff]
  %v218 = vld [vmem:[%s1 + $0x360] sm:$0xff]
  %v219 = vld [vmem:[%s1 + $0x368] sm:$0xff]
  %v220 = vld [vmem:[%s1 + $0x370] sm:$0xff]
  %v221 = vld [vmem:[%s1 + $0x378] sm:$0xff]
  %v222 = vld [vmem:[%s1 + $0x380] sm:$0xff]
  %v223 = vld [vmem:[%s1 + $0x388] sm:$0xff]
  %v224 = vld [vmem:[%s1 + $0x390] sm:$0xff]
  %v225 = vld [vmem:[%s1 + $0x398] sm:$0xff]
  %v226 = vld [vmem:[%s1 + $0x3a0] sm:$0xff]
  %v227 = vld [vmem:[%s1 + $0x3a8] sm:$0xff]
  %v228 = vld [vmem:[%s1 + $0x3b0] sm:$0xff]
  %v229 = vld [vmem:[%s1 + $0x3b8] sm:$0xff]
  %v230 = vld [vmem:[%s1 + $0x3c0] sm:$0xff]
  %v231 = vld [vmem:[%s1 + $0x3c8] sm:$0xff]
  %v232 = vld [vmem:[%s1 + $0x3d0] sm:$0xff]
  %v233 = vld [vmem:[%s1 + $0x3d8] sm:$0xff]
  %v234 = vld [vmem:[%s1 + $0x3e0] sm:$0xff]
  %v235 = vld [vmem:[%s1 + $0x3e8] sm:$0xff]
  %v236 = vld [vmem:[%s1 + $0x3f0] sm:$0xff]
  %v237 = vld [vmem:[%s1 + $0x3f8] sm:$0xff]
  %v238 = vld [vmem:[%s1 + $0x400] sm:$0xff]
  %v239 = vld [vmem:[%s1 + $0x408] sm:$0xff]
  %v240 = vld [vmem:[%s1 + $0x410] sm:$0xff]
  %v241 = vld [vmem:[%s1 + $0x418] sm:$0xff]
  %v242 = vld [vmem:[%s1 + $0x420] sm:$0xff]
  %v243 = vld [vmem:[%s1 + $0x428] sm:$0xff]
  %v244 = vld [vmem:[%s1 + $0x430] sm:$0xff]
  %v245 = vld [vmem:[%s1 + $0x438] sm:$0xff]
  %v246 = vld [vmem:[%s1 + $0x440] sm:$0xff]
  %v247 = vld [vmem:[%s1 + $0x448] sm:$0xff]
  %v248 = vld [vmem:[%s1 + $0x450] sm:$0xff]
  %v249 = vld [vmem:[%s1 + $0x458] sm:$0xff]
  %v250 = vld [vmem:[%s1 + $0x460] sm:$0xff]
  %v251 = vld [vmem:[%s1 + $0x468] sm:$0xff]
  %v252 = vld [vmem:[%s1 + $0x470] sm:$0xff]
  %v253 = vld [vmem:[%s1 + $0x478] sm:$0xff]
  %v254 = vld [vmem:[%s1 + $0x480] sm:$0xff]
  %v255 = vld [vmem:[%s1 + $0x488] sm:$0xff]
  %v256 = vld [vmem:[%s1 + $0x490] sm:$0xff]
  %v257 = vld [vmem:[%s1 + $0x498] sm:$0xff]
  %v258 = vld [vmem:[%s1 + $0x4a0] sm:$0xff]
  %v259 = vld [vmem:[%s1 + $0x4a8] sm:$0xff]
  %v260 = vld [vmem:[%s1 + $0x4b0] sm:$0xff]
  %v261 = vld [vmem:[%s1 + $0x4b8] sm:$0xff]
  %v262 = vld [vmem:[%s1 + $0x4c0] sm:$0xff]
  %v263 = vld [vmem:[%s1 + $0x4c8] sm:$0xff]
  %v264 = vld [vmem:[%s1 + $0x4d0] sm:$0xff]
  %v265 = vld [vmem:[%s1 + $0x4d8] sm:$0xff]
  %v266 = vld [vmem:[%s1 + $0x4e0] sm:$0xff]
  %v267 = vld [vmem:[%s1 + $0x4e8] sm:$0xff]
  %v268 = vld [vmem:[%s1 + $0x4f0] sm:$0xff]
  %v269 = vld [vmem:[%s1 + $0x4f8] sm:$0xff]
  %v270 = vld [vmem:[%s1 + $0x500] sm:$0xff]
  %v271 = vld [vmem:[%s1 + $0x508] sm:$0xff]
  %v272 = vld [vmem:[%s1 + $0x510] sm:$0xff]
  %v273 = vld [vmem:[%s1 + $0x518] sm:$0xff]
  %v274 = vld [vmem:[%s1 + $0x520] sm:$0xff]
  %v275 = vld [vmem:[%s1 + $0x528] sm:$0xff]
  %v276 = vld [vmem:[%s1 + $0x530] sm:$0xff]
  %v277 = vld [vmem:[%s1 + $0x538] sm:$0xff]
  %v278 = vld [vmem:[%s1 + $0x540] sm:$0xff]
  %v279 = vld [vmem:[%s1 + $0x548] sm:$0xff]
  %v280 = vld [vmem:[%s1 + $0x550] sm:$0xff]
  %v281 = vld [vmem:[%s1 + $0x558] sm:$0xff]
  %v282 = vld [vmem:[%s1 + $0x560] sm:$0xff]
  %v283 = vld [vmem:[%s1 + $0x568] sm:$0xff]
  %v284 = vld [vmem:[%s1 + $0x570] sm:$0xff]
  %v285 = vld [vmem:[%s1 + $0x578] sm:$0xff]
  %v286 = vld [vmem:[%s1 + $0x580] sm:$0xff]
  %v287 = vld [vmem:[%s1 + $0x588] sm:$0xff]
  %v288 = vld [vmem:[%s1 + $0x590] sm:$0xff]
  %v289 = vld [vmem:[%s1 + $0x598] sm:$0xff]
  %v290 = vld [vmem:[%s1 + $0x5a0] sm:$0xff]
  %v291 = vld [vmem:[%s1 + $0x5a8] sm:$0xff]
  %v292 = vld [vmem:[%s1 + $0x5b0] sm:$0xff]
  %v293 = vld [vmem:[%s1 + $0x5b8] sm:$0xff]
  %v294 = vld [vmem:[%s1 + $0x5c0] sm:$0xff]
  %v295 = vld [vmem:[%s1 + $0x5c8] sm:$0xff]
  %v296 = vld [vmem:[%s1 + $0x5d0] sm:$0xff]
  %v297 = vld [vmem:[%s1 + $0x5d8] sm:$0x33]
  %v394 = vunpack.c.l.b16 %v14
  %v395 = vunpack.c.h.b16 %v14
  %v396 = vunpack.c.l.b16 %v15
  %v397 = vunpack.c.h.b16 %v15
  %v398 = vunpack.c.l.b16 %v16
  %v399 = vunpack.c.h.b16 %v16
  %v400 = vunpack.c.l.b16 %v17
  %v401 = vunpack.c.h.b16 %v17
  %v402 = vunpack.c.l.b16 %v18
  %v403 = vunpack.c.h.b16 %v18
  %v404 = vunpack.c.l.b16 %v19
  %v405 = vunpack.c.h.b16 %v19
  %v406 = vunpack.c.l.b16 %v20
  %v407 = vunpack.c.h.b16 %v20
  %v408 = vunpack.c.l.b16 %v21
  %v409 = vunpack.c.h.b16 %v21
  %v410 = vunpack.c.l.b16 %v22
  %v411 = vunpack.c.h.b16 %v22
  %v412 = vunpack.c.l.b16 %v23
  %v413 = vunpack.c.h.b16 %v23
  %v414 = vunpack.c.l.b16 %v24
  %v415 = vunpack.c.h.b16 %v24
  %v416 = vunpack.c.l.b16 %v25
  %v417 = vunpack.c.h.b16 %v25
  %v418 = vunpack.c.l.b16 %v26
  %v419 = vunpack.c.h.b16 %v26
  %v420 = vunpack.c.l.b16 %v27
  %v421 = vunpack.c.h.b16 %v27
  %v422 = vunpack.c.l.b16 %v28
  %v423 = vunpack.c.h.b16 %v28
  %v424 = vunpack.c.l.b16 %v29
  %v425 = vunpack.c.h.b16 %v29
  %v426 = vunpack.c.l.b16 %v30
  %v427 = vunpack.c.h.b16 %v30
  %v428 = vunpack.c.l.b16 %v31
  %v429 = vunpack.c.h.b16 %v31
  %v430 = vunpack.c.l.b16 %v32
  %v431 = vunpack.c.h.b16 %v32
  %v432 = vunpack.c.l.b16 %v33
  %v433 = vunpack.c.h.b16 %v33
  %v434 = vunpack.c.l.b16 %v34
  %v435 = vunpack.c.h.b16 %v34
  %v436 = vunpack.c.l.b16 %v35
  %v437 = vunpack.c.h.b16 %v35
  %v438 = vunpack.c.l.b16 %v36
  %v439 = vunpack.c.h.b16 %v36
  %v440 = vunpack.c.l.b16 %v37
  %v441 = vunpack.c.h.b16 %v37
  %v442 = vunpack.c.l.b16 %v38
  %v443 = vunpack.c.h.b16 %v38
  %v444 = vunpack.c.l.b16 %v39
  %v445 = vunpack.c.h.b16 %v39
  %v446 = vunpack.c.l.b16 %v40
  %v447 = vunpack.c.h.b16 %v40
  %v448 = vunpack.c.l.b16 %v41
  %v449 = vunpack.c.h.b16 %v41
  %v450 = vunpack.c.l.b16 %v42
  %v451 = vunpack.c.h.b16 %v42
  %v452 = vunpack.c.l.b16 %v43
  %v453 = vunpack.c.h.b16 %v43
  %v454 = vunpack.c.l.b16 %v44
  %v455 = vunpack.c.h.b16 %v44
  %v456 = vunpack.c.l.b16 %v45
  %v457 = vunpack.c.h.b16 %v45
  %v458 = vunpack.c.l.b16 %v46
  %v459 = vunpack.c.h.b16 %v46
  %v460 = vunpack.c.l.b16 %v47
  %v461 = vunpack.c.h.b16 %v47
  %v462 = vunpack.c.l.b16 %v48
  %v463 = vunpack.c.h.b16 %v48
  %v464 = vunpack.c.l.b16 %v49
  %v465 = vunpack.c.h.b16 %v49
  %v466 = vunpack.c.l.b16 %v50
  %v467 = vunpack.c.h.b16 %v50
  %v468 = vunpack.c.l.b16 %v51
  %v469 = vunpack.c.h.b16 %v51
  %v470 = vunpack.c.l.b16 %v52
  %v471 = vunpack.c.h.b16 %v52
  %v472 = vunpack.c.l.b16 %v53
  %v473 = vunpack.c.h.b16 %v53
  %v474 = vunpack.c.l.b16 %v54
  %v475 = vunpack.c.h.b16 %v54
  %v476 = vunpack.c.l.b16 %v55
  %v477 = vunpack.c.h.b16 %v55
  %v478 = vunpack.c.l.b16 %v56
  %v479 = vunpack.c.h.b16 %v56
  %v480 = vunpack.c.l.b16 %v57
  %v481 = vunpack.c.h.b16 %v57
  %v482 = vunpack.c.l.b16 %v58
  %v483 = vunpack.c.h.b16 %v58
  %v484 = vunpack.c.l.b16 %v59
  %v485 = vunpack.c.h.b16 %v59
  %v486 = vunpack.c.l.b16 %v60
  %v487 = vunpack.c.h.b16 %v60
  %v488 = vunpack.c.l.b16 %v61
  %v489 = vunpack.c.h.b16 %v61
  %v490 = vunpack.c.l.b16 %v62
  %v491 = vunpack.c.h.b16 %v62
  %v492 = vunpack.c.l.b16 %v63
  %v493 = vunpack.c.h.b16 %v63
  %v494 = vunpack.c.l.b16 %v64
  %v495 = vunpack.c.h.b16 %v64
  %v496 = vunpack.c.l.b16 %v65
  %v497 = vunpack.c.h.b16 %v65
  %v498 = vunpack.c.l.b16 %v66
  %v499 = vunpack.c.h.b16 %v66
  %v500 = vunpack.c.l.b16 %v67
  %v501 = vunpack.c.h.b16 %v67
  %v502 = vunpack.c.l.b16 %v68
  %v503 = vunpack.c.h.b16 %v68
  %v504 = vunpack.c.l.b16 %v69
  %v505 = vunpack.c.h.b16 %v69
  %v506 = vunpack.c.l.b16 %v70
  %v507 = vunpack.c.h.b16 %v70
  %v508 = vunpack.c.l.b16 %v71
  %v509 = vunpack.c.h.b16 %v71
  %v510 = vunpack.c.l.b16 %v72
  %v511 = vunpack.c.h.b16 %v72
  %v512 = vunpack.c.l.b16 %v73
  %v513 = vunpack.c.h.b16 %v73
  %v514 = vunpack.c.l.b16 %v74
  %v515 = vunpack.c.h.b16 %v74
  %v516 = vunpack.c.l.b16 %v75
  %v517 = vunpack.c.h.b16 %v75
  %v518 = vunpack.c.l.b16 %v76
  %v519 = vunpack.c.h.b16 %v76
  %v520 = vunpack.c.l.b16 %v77
  %v521 = vunpack.c.h.b16 %v77
  %v522 = vunpack.c.l.b16 %v78
  %v523 = vunpack.c.h.b16 %v78
  %v524 = vunpack.c.l.b16 %v79
  %v525 = vunpack.c.h.b16 %v79
  %v526 = vunpack.c.l.b16 %v80
  %v527 = vunpack.c.h.b16 %v80
  %v528 = vunpack.c.l.b16 %v81
  %v529 = vunpack.c.h.b16 %v81
  %v530 = vunpack.c.l.b16 %v82
  %v531 = vunpack.c.h.b16 %v82
  %v532 = vunpack.c.l.b16 %v83
  %v533 = vunpack.c.h.b16 %v83
  %v534 = vunpack.c.l.b16 %v84
  %v535 = vunpack.c.h.b16 %v84
  %v536 = vunpack.c.l.b16 %v85
  %v537 = vunpack.c.h.b16 %v85
  %v538 = vunpack.c.l.b16 %v86
  %v539 = vunpack.c.h.b16 %v86
  %v540 = vunpack.c.l.b16 %v87
  %v541 = vunpack.c.h.b16 %v87
  %v542 = vunpack.c.l.b16 %v88
  %v543 = vunpack.c.h.b16 %v88
  %v544 = vunpack.c.l.b16 %v89
  %v545 = vunpack.c.h.b16 %v89
  %v546 = vunpack.c.l.b16 %v90
  %v547 = vunpack.c.h.b16 %v90
  %v548 = vunpack.c.l.b16 %v91
  %v549 = vunpack.c.h.b16 %v91
  %v550 = vunpack.c.l.b16 %v92
  %v551 = vunpack.c.h.b16 %v92
  %v552 = vunpack.c.l.b16 %v93
  %v553 = vunpack.c.h.b16 %v93
  %v554 = vunpack.c.l.b16 %v94
  %v555 = vunpack.c.h.b16 %v94
  %v556 = vunpack.c.l.b16 %v95
  %v557 = vunpack.c.h.b16 %v95
  %v558 = vunpack.c.l.b16 %v96
  %v559 = vunpack.c.h.b16 %v96
  %v560 = vunpack.c.l.b16 %v97
  %v561 = vunpack.c.h.b16 %v97
  %v562 = vunpack.c.l.b16 %v98
  %v563 = vunpack.c.h.b16 %v98
  %v564 = vunpack.c.l.b16 %v99
  %v565 = vunpack.c.h.b16 %v99
  %v566 = vunpack.c.l.b16 %v100
  %v567 = vunpack.c.h.b16 %v100
  %v568 = vunpack.c.l.b16 %v101
  %v569 = vunpack.c.h.b16 %v101
  %v570 = vunpack.c.l.b16 %v102
  %v571 = vunpack.c.h.b16 %v102
  %v572 = vunpack.c.l.b16 %v103
  %v573 = vunpack.c.h.b16 %v103
  %v574 = vunpack.c.l.b16 %v104
  %v575 = vunpack.c.h.b16 %v104
  %v576 = vunpack.c.l.b16 %v105
  %v577 = vunpack.c.h.b16 %v105
  %v578 = vunpack.c.l.b16 %v106
  %v579 = vunpack.c.h.b16 %v106
  %v580 = vunpack.c.l.b16 %v107
  %v581 = vunpack.c.h.b16 %v107
  %v582 = vunpack.c.l.b16 %v108
  %v583 = vunpack.c.h.b16 %v108
  %v584 = vunpack.c.l.b16 %v109
  %v585 = vunpack.c.h.b16 %v109
  %v586 = vpack.c.b16 %v406, %v394
  %v587 = vpack.c.b16 %v407, %v395
  %v588 = vpack.c.b16 %v408, %v396
  %v589 = vpack.c.b16 %v409, %v397
  %v590 = vpack.c.b16 %v410, %v398
  %v591 = vpack.c.b16 %v411, %v399
  %v592 = vpack.c.b16 %v412, %v400
  %v593 = vpack.c.b16 %v413, %v401
  %v594 = vpack.c.b16 %v414, %v402
  %v595 = vpack.c.b16 %v415, %v403
  %v596 = vpack.c.b16 %v416, %v404
  %v597 = vpack.c.b16 %v417, %v405
  %v598 = vpack.c.b16 %v430, %v418
  %v599 = vpack.c.b16 %v431, %v419
  %v600 = vpack.c.b16 %v432, %v420
  %v601 = vpack.c.b16 %v433, %v421
  %v602 = vpack.c.b16 %v434, %v422
  %v603 = vpack.c.b16 %v435, %v423
  %v604 = vpack.c.b16 %v436, %v424
  %v605 = vpack.c.b16 %v437, %v425
  %v606 = vpack.c.b16 %v438, %v426
  %v607 = vpack.c.b16 %v439, %v427
  %v608 = vpack.c.b16 %v440, %v428
  %v609 = vpack.c.b16 %v441, %v429
  %v610 = vpack.c.b16 %v454, %v442
  %v611 = vpack.c.b16 %v455, %v443
  %v612 = vpack.c.b16 %v456, %v444
  %v613 = vpack.c.b16 %v457, %v445
  %v614 = vpack.c.b16 %v458, %v446
  %v615 = vpack.c.b16 %v459, %v447
  %v616 = vpack.c.b16 %v460, %v448
  %v617 = vpack.c.b16 %v461, %v449
  %v618 = vpack.c.b16 %v462, %v450
  %v619 = vpack.c.b16 %v463, %v451
  %v620 = vpack.c.b16 %v464, %v452
  %v621 = vpack.c.b16 %v465, %v453
  %v622 = vpack.c.b16 %v478, %v466
  %v623 = vpack.c.b16 %v479, %v467
  %v624 = vpack.c.b16 %v480, %v468
  %v625 = vpack.c.b16 %v481, %v469
  %v626 = vpack.c.b16 %v482, %v470
  %v627 = vpack.c.b16 %v483, %v471
  %v628 = vpack.c.b16 %v484, %v472
  %v629 = vpack.c.b16 %v485, %v473
  %v630 = vpack.c.b16 %v486, %v474
  %v631 = vpack.c.b16 %v487, %v475
  %v632 = vpack.c.b16 %v488, %v476
  %v633 = vpack.c.b16 %v489, %v477
  %v634 = vpack.c.b16 %v502, %v490
  %v635 = vpack.c.b16 %v503, %v491
  %v636 = vpack.c.b16 %v504, %v492
  %v637 = vpack.c.b16 %v505, %v493
  %v638 = vpack.c.b16 %v506, %v494
  %v639 = vpack.c.b16 %v507, %v495
  %v640 = vpack.c.b16 %v508, %v496
  %v641 = vpack.c.b16 %v509, %v497
  %v642 = vpack.c.b16 %v510, %v498
  %v643 = vpack.c.b16 %v511, %v499
  %v644 = vpack.c.b16 %v512, %v500
  %v645 = vpack.c.b16 %v513, %v501
  %v646 = vpack.c.b16 %v526, %v514
  %v647 = vpack.c.b16 %v527, %v515
  %v648 = vpack.c.b16 %v528, %v516
  %v649 = vpack.c.b16 %v529, %v517
  %v650 = vpack.c.b16 %v530, %v518
  %v651 = vpack.c.b16 %v531, %v519
  %v652 = vpack.c.b16 %v532, %v520
  %v653 = vpack.c.b16 %v533, %v521
  %v654 = vpack.c.b16 %v534, %v522
  %v655 = vpack.c.b16 %v535, %v523
  %v656 = vpack.c.b16 %v536, %v524
  %v657 = vpack.c.b16 %v537, %v525
  %v658 = vpack.c.b16 %v550, %v538
  %v659 = vpack.c.b16 %v551, %v539
  %v660 = vpack.c.b16 %v552, %v540
  %v661 = vpack.c.b16 %v553, %v541
  %v662 = vpack.c.b16 %v554, %v542
  %v663 = vpack.c.b16 %v555, %v543
  %v664 = vpack.c.b16 %v556, %v544
  %v665 = vpack.c.b16 %v557, %v545
  %v666 = vpack.c.b16 %v558, %v546
  %v667 = vpack.c.b16 %v559, %v547
  %v668 = vpack.c.b16 %v560, %v548
  %v669 = vpack.c.b16 %v561, %v549
  %v670 = vpack.c.b16 %v574, %v562
  %v671 = vpack.c.b16 %v575, %v563
  %v672 = vpack.c.b16 %v576, %v564
  %v673 = vpack.c.b16 %v577, %v565
  %v674 = vpack.c.b16 %v578, %v566
  %v675 = vpack.c.b16 %v579, %v567
  %v676 = vpack.c.b16 %v580, %v568
  %v677 = vpack.c.b16 %v581, %v569
  %v678 = vpack.c.b16 %v582, %v570
  %v679 = vpack.c.b16 %v583, %v571
  %v680 = vpack.c.b16 %v584, %v572
  %v681 = vpack.c.b16 %v585, %v573
  %v958 = vunpack.c.l.b16 %v110
  %v959 = vunpack.c.h.b16 %v110
  %v960 = vunpack.c.l.b16 %v111
  %v961 = vunpack.c.h.b16 %v111
  %v962 = vunpack.c.l.b16 %v112
  %v963 = vunpack.c.h.b16 %v112
  %v964 = vunpack.c.l.b16 %v113
  %v965 = vunpack.c.h.b16 %v113
  %v966 = vunpack.c.l.b16 %v114
  %v967 = vunpack.c.h.b16 %v114
  %v968 = vunpack.c.l.b16 %v115
  %v969 = vunpack.c.h.b16 %v115
  %v970 = vunpack.c.l.b16 %v116
  %v971 = vunpack.c.h.b16 %v116
  %v972 = vunpack.c.l.b16 %v117
  %v973 = vunpack.c.h.b16 %v117
  %v974 = vunpack.c.l.b16 %v118
  %v975 = vunpack.c.h.b16 %v118
  %v976 = vunpack.c.l.b16 %v119
  %v977 = vunpack.c.h.b16 %v119
  %v978 = vunpack.c.l.b16 %v120
  %v979 = vunpack.c.h.b16 %v120
  %v980 = vunpack.c.l.b16 %v121
  %v981 = vunpack.c.h.b16 %v121
  %v982 = vunpack.c.l.b16 %v122
  %v983 = vunpack.c.h.b16 %v122
  %v984 = vunpack.c.l.b16 %v123
  %v985 = vunpack.c.h.b16 %v123
  %v986 = vunpack.c.l.b16 %v124
  %v987 = vunpack.c.h.b16 %v124
  %v988 = vunpack.c.l.b16 %v125
  %v989 = vunpack.c.h.b16 %v125
  %v990 = vunpack.c.l.b16 %v126
  %v991 = vunpack.c.h.b16 %v126
  %v992 = vunpack.c.l.b16 %v127
  %v993 = vunpack.c.h.b16 %v127
  %v994 = vunpack.c.l.b16 %v128
  %v995 = vunpack.c.h.b16 %v128
  %v996 = vunpack.c.l.b16 %v129
  %v997 = vunpack.c.h.b16 %v129
  %v998 = vunpack.c.l.b16 %v130
  %v999 = vunpack.c.h.b16 %v130
  %v1000 = vunpack.c.l.b16 %v131
  %v1001 = vunpack.c.h.b16 %v131
  %v1002 = vunpack.c.l.b16 %v132
  %v1003 = vunpack.c.h.b16 %v132
  %v1004 = vunpack.c.l.b16 %v133
  %v1005 = vunpack.c.h.b16 %v133
  %v1006 = vunpack.c.l.b16 %v134
  %v1007 = vunpack.c.h.b16 %v134
  %v1008 = vunpack.c.l.b16 %v135
  %v1009 = vunpack.c.h.b16 %v135
  %v1010 = vunpack.c.l.b16 %v136
  %v1011 = vunpack.c.h.b16 %v136
  %v1012 = vunpack.c.l.b16 %v137
  %v1013 = vunpack.c.h.b16 %v137
  %v1014 = vunpack.c.l.b16 %v138
  %v1015 = vunpack.c.h.b16 %v138
  %v1016 = vunpack.c.l.b16 %v139
  %v1017 = vunpack.c.h.b16 %v139
  %v1018 = vunpack.c.l.b16 %v140
  %v1019 = vunpack.c.h.b16 %v140
  %v1020 = vunpack.c.l.b16 %v141
  %v1021 = vunpack.c.h.b16 %v141
  %v1022 = vunpack.c.l.b16 %v142
  %v1023 = vunpack.c.h.b16 %v142
  %v1024 = vunpack.c.l.b16 %v143
  %v1025 = vunpack.c.h.b16 %v143
  %v1026 = vunpack.c.l.b16 %v144
  %v1027 = vunpack.c.h.b16 %v144
  %v1028 = vunpack.c.l.b16 %v145
  %v1029 = vunpack.c.h.b16 %v145
  %v1030 = vunpack.c.l.b16 %v146
  %v1031 = vunpack.c.h.b16 %v146
  %v1032 = vunpack.c.l.b16 %v147
  %v1033 = vunpack.c.h.b16 %v147
  %v1034 = vunpack.c.l.b16 %v148
  %v1035 = vunpack.c.h.b16 %v148
  %v1036 = vunpack.c.l.b16 %v149
  %v1037 = vunpack.c.h.b16 %v149
  %v1038 = vunpack.c.l.b16 %v150
  %v1039 = vunpack.c.h.b16 %v150
  %v1040 = vunpack.c.l.b16 %v151
  %v1041 = vunpack.c.h.b16 %v151
  %v1042 = vunpack.c.l.b16 %v152
  %v1043 = vunpack.c.h.b16 %v152
  %v1044 = vunpack.c.l.b16 %v153
  %v1045 = vunpack.c.h.b16 %v153
  %v1046 = vunpack.c.l.b16 %v154
  %v1047 = vunpack.c.h.b16 %v154
  %v1048 = vunpack.c.l.b16 %v155
  %v1049 = vunpack.c.h.b16 %v155
  %v1050 = vunpack.c.l.b16 %v156
  %v1051 = vunpack.c.h.b16 %v156
  %v1052 = vunpack.c.l.b16 %v157
  %v1053 = vunpack.c.h.b16 %v157
  %v1054 = vunpack.c.l.b16 %v158
  %v1055 = vunpack.c.h.b16 %v158
  %v1056 = vunpack.c.l.b16 %v159
  %v1057 = vunpack.c.h.b16 %v159
  %v1058 = vunpack.c.l.b16 %v160
  %v1059 = vunpack.c.h.b16 %v160
  %v1060 = vunpack.c.l.b16 %v161
  %v1061 = vunpack.c.h.b16 %v161
  %v1062 = vunpack.c.l.b16 %v162
  %v1063 = vunpack.c.h.b16 %v162
  %v1064 = vunpack.c.l.b16 %v163
  %v1065 = vunpack.c.h.b16 %v163
  %v1066 = vunpack.c.l.b16 %v164
  %v1067 = vunpack.c.h.b16 %v164
  %v1068 = vunpack.c.l.b16 %v165
  %v1069 = vunpack.c.h.b16 %v165
  %v1070 = vunpack.c.l.b16 %v166
  %v1071 = vunpack.c.h.b16 %v166
  %v1072 = vunpack.c.l.b16 %v167
  %v1073 = vunpack.c.h.b16 %v167
  %v1074 = vunpack.c.l.b16 %v168
  %v1075 = vunpack.c.h.b16 %v168
  %v1076 = vunpack.c.l.b16 %v169
  %v1077 = vunpack.c.h.b16 %v169
  %v1078 = vunpack.c.l.b16 %v170
  %v1079 = vunpack.c.h.b16 %v170
  %v1080 = vunpack.c.l.b16 %v171
  %v1081 = vunpack.c.h.b16 %v171
  %v1082 = vunpack.c.l.b16 %v172
  %v1083 = vunpack.c.h.b16 %v172
  %v1084 = vunpack.c.l.b16 %v173
  %v1085 = vunpack.c.h.b16 %v173
  %v1086 = vunpack.c.l.b16 %v174
  %v1087 = vunpack.c.h.b16 %v174
  %v1088 = vunpack.c.l.b16 %v175
  %v1089 = vunpack.c.h.b16 %v175
  %v1090 = vunpack.c.l.b16 %v176
  %v1091 = vunpack.c.h.b16 %v176
  %v1092 = vunpack.c.l.b16 %v177
  %v1093 = vunpack.c.h.b16 %v177
  %v1094 = vunpack.c.l.b16 %v178
  %v1095 = vunpack.c.h.b16 %v178
  %v1096 = vunpack.c.l.b16 %v179
  %v1097 = vunpack.c.h.b16 %v179
  %v1098 = vunpack.c.l.b16 %v180
  %v1099 = vunpack.c.h.b16 %v180
  %v1100 = vunpack.c.l.b16 %v181
  %v1101 = vunpack.c.h.b16 %v181
  %v1102 = vunpack.c.l.b16 %v182
  %v1103 = vunpack.c.h.b16 %v182
  %v1104 = vunpack.c.l.b16 %v183
  %v1105 = vunpack.c.h.b16 %v183
  %v1106 = vunpack.c.l.b16 %v184
  %v1107 = vunpack.c.h.b16 %v184
  %v1108 = vunpack.c.l.b16 %v185
  %v1109 = vunpack.c.h.b16 %v185
  %v1110 = vunpack.c.l.b16 %v186
  %v1111 = vunpack.c.h.b16 %v186
  %v1112 = vunpack.c.l.b16 %v187
  %v1113 = vunpack.c.h.b16 %v187
  %v1114 = vunpack.c.l.b16 %v188
  %v1115 = vunpack.c.h.b16 %v188
  %v1116 = vunpack.c.l.b16 %v189
  %v1117 = vunpack.c.h.b16 %v189
  %v1118 = vunpack.c.l.b16 %v190
  %v1119 = vunpack.c.h.b16 %v190
  %v1120 = vunpack.c.l.b16 %v191
  %v1121 = vunpack.c.h.b16 %v191
  %v1122 = vunpack.c.l.b16 %v192
  %v1123 = vunpack.c.h.b16 %v192
  %v1124 = vunpack.c.l.b16 %v193
  %v1125 = vunpack.c.h.b16 %v193
  %v1126 = vunpack.c.l.b16 %v194
  %v1127 = vunpack.c.h.b16 %v194
  %v1128 = vunpack.c.l.b16 %v195
  %v1129 = vunpack.c.h.b16 %v195
  %v1130 = vunpack.c.l.b16 %v196
  %v1131 = vunpack.c.h.b16 %v196
  %v1132 = vunpack.c.l.b16 %v197
  %v1133 = vunpack.c.h.b16 %v197
  %v1134 = vunpack.c.l.b16 %v198
  %v1135 = vunpack.c.h.b16 %v198
  %v1136 = vunpack.c.l.b16 %v199
  %v1137 = vunpack.c.h.b16 %v199
  %v1138 = vunpack.c.l.b16 %v200
  %v1139 = vunpack.c.h.b16 %v200
  %v1140 = vunpack.c.l.b16 %v201
  %v1141 = vunpack.c.h.b16 %v201
  %v1142 = vunpack.c.l.b16 %v202
  %v1143 = vunpack.c.h.b16 %v202
  %v1144 = vunpack.c.l.b16 %v203
  %v1145 = vunpack.c.h.b16 %v203
  %v1146 = vunpack.c.l.b16 %v204
  %v1147 = vunpack.c.h.b16 %v204
  %v1148 = vunpack.c.l.b16 %v205
  %v1149 = vunpack.c.h.b16 %v205
  %v1150 = vunpack.c.l.b16 %v206
  %v1151 = vunpack.c.h.b16 %v206
  %v1152 = vunpack.c.l.b16 %v207
  %v1153 = vunpack.c.h.b16 %v207
  %v1154 = vunpack.c.l.b16 %v208
  %v1155 = vunpack.c.h.b16 %v208
  %v1156 = vunpack.c.l.b16 %v209
  %v1157 = vunpack.c.h.b16 %v209
  %v1158 = vunpack.c.l.b16 %v210
  %v1159 = vunpack.c.h.b16 %v210
  %v1160 = vunpack.c.l.b16 %v211
  %v1161 = vunpack.c.h.b16 %v211
  %v1162 = vunpack.c.l.b16 %v212
  %v1163 = vunpack.c.h.b16 %v212
  %v1164 = vunpack.c.l.b16 %v213
  %v1165 = vunpack.c.h.b16 %v213
  %v1166 = vunpack.c.l.b16 %v214
  %v1167 = vunpack.c.h.b16 %v214
  %v1168 = vunpack.c.l.b16 %v215
  %v1169 = vunpack.c.h.b16 %v215
  %v1170 = vunpack.c.l.b16 %v216
  %v1171 = vunpack.c.h.b16 %v216
  %v1172 = vunpack.c.l.b16 %v217
  %v1173 = vunpack.c.h.b16 %v217
  %v1174 = vunpack.c.l.b16 %v218
  %v1175 = vunpack.c.h.b16 %v218
  %v1176 = vunpack.c.l.b16 %v219
  %v1177 = vunpack.c.h.b16 %v219
  %v1178 = vunpack.c.l.b16 %v220
  %v1179 = vunpack.c.h.b16 %v220
  %v1180 = vunpack.c.l.b16 %v221
  %v1181 = vunpack.c.h.b16 %v221
  %v1182 = vunpack.c.l.b16 %v222
  %v1183 = vunpack.c.h.b16 %v222
  %v1184 = vunpack.c.l.b16 %v223
  %v1185 = vunpack.c.h.b16 %v223
  %v1186 = vunpack.c.l.b16 %v224
  %v1187 = vunpack.c.h.b16 %v224
  %v1188 = vunpack.c.l.b16 %v225
  %v1189 = vunpack.c.h.b16 %v225
  %v1190 = vunpack.c.l.b16 %v226
  %v1191 = vunpack.c.h.b16 %v226
  %v1192 = vunpack.c.l.b16 %v227
  %v1193 = vunpack.c.h.b16 %v227
  %v1194 = vunpack.c.l.b16 %v228
  %v1195 = vunpack.c.h.b16 %v228
  %v1196 = vunpack.c.l.b16 %v229
  %v1197 = vunpack.c.h.b16 %v229
  %v1198 = vunpack.c.l.b16 %v230
  %v1199 = vunpack.c.h.b16 %v230
  %v1200 = vunpack.c.l.b16 %v231
  %v1201 = vunpack.c.h.b16 %v231
  %v1202 = vunpack.c.l.b16 %v232
  %v1203 = vunpack.c.h.b16 %v232
  %v1204 = vunpack.c.l.b16 %v233
  %v1205 = vunpack.c.h.b16 %v233
  %v1206 = vunpack.c.l.b16 %v234
  %v1207 = vunpack.c.h.b16 %v234
  %v1208 = vunpack.c.l.b16 %v235
  %v1209 = vunpack.c.h.b16 %v235
  %v1210 = vunpack.c.l.b16 %v236
  %v1211 = vunpack.c.h.b16 %v236
  %v1212 = vunpack.c.l.b16 %v237
  %v1213 = vunpack.c.h.b16 %v237
  %v1214 = vunpack.c.l.b16 %v238
  %v1215 = vunpack.c.h.b16 %v238
  %v1216 = vunpack.c.l.b16 %v239
  %v1217 = vunpack.c.h.b16 %v239
  %v1218 = vunpack.c.l.b16 %v240
  %v1219 = vunpack.c.h.b16 %v240
  %v1220 = vunpack.c.l.b16 %v241
  %v1221 = vunpack.c.h.b16 %v241
  %v1222 = vunpack.c.l.b16 %v242
  %v1223 = vunpack.c.h.b16 %v242
  %v1224 = vunpack.c.l.b16 %v243
  %v1225 = vunpack.c.h.b16 %v243
  %v1226 = vunpack.c.l.b16 %v244
  %v1227 = vunpack.c.h.b16 %v244
  %v1228 = vunpack.c.l.b16 %v245
  %v1229 = vunpack.c.h.b16 %v245
  %v1230 = vunpack.c.l.b16 %v246
  %v1231 = vunpack.c.h.b16 %v246
  %v1232 = vunpack.c.l.b16 %v247
  %v1233 = vunpack.c.h.b16 %v247
  %v1234 = vunpack.c.l.b16 %v248
  %v1235 = vunpack.c.h.b16 %v248
  %v1236 = vunpack.c.l.b16 %v249
  %v1237 = vunpack.c.h.b16 %v249
  %v1238 = vunpack.c.l.b16 %v250
  %v1239 = vunpack.c.h.b16 %v250
  %v1240 = vunpack.c.l.b16 %v251
  %v1241 = vunpack.c.h.b16 %v251
  %v1242 = vunpack.c.l.b16 %v252
  %v1243 = vunpack.c.h.b16 %v252
  %v1244 = vunpack.c.l.b16 %v253
  %v1245 = vunpack.c.h.b16 %v253
  %v1246 = vunpack.c.l.b16 %v254
  %v1247 = vunpack.c.h.b16 %v254
  %v1248 = vunpack.c.l.b16 %v255
  %v1249 = vunpack.c.h.b16 %v255
  %v1250 = vunpack.c.l.b16 %v256
  %v1251 = vunpack.c.h.b16 %v256
  %v1252 = vunpack.c.l.b16 %v257
  %v1253 = vunpack.c.h.b16 %v257
  %v1254 = vunpack.c.l.b16 %v258
  %v1255 = vunpack.c.h.b16 %v258
  %v1256 = vunpack.c.l.b16 %v259
  %v1257 = vunpack.c.h.b16 %v259
  %v1258 = vunpack.c.l.b16 %v260
  %v1259 = vunpack.c.h.b16 %v260
  %v1260 = vunpack.c.l.b16 %v261
  %v1261 = vunpack.c.h.b16 %v261
  %v1262 = vunpack.c.l.b16 %v262
  %v1263 = vunpack.c.h.b16 %v262
  %v1264 = vunpack.c.l.b16 %v263
  %v1265 = vunpack.c.h.b16 %v263
  %v1266 = vunpack.c.l.b16 %v264
  %v1267 = vunpack.c.h.b16 %v264
  %v1268 = vunpack.c.l.b16 %v265
  %v1269 = vunpack.c.h.b16 %v265
  %v1270 = vunpack.c.l.b16 %v266
  %v1271 = vunpack.c.h.b16 %v266
  %v1272 = vunpack.c.l.b16 %v267
  %v1273 = vunpack.c.h.b16 %v267
  %v1274 = vunpack.c.l.b16 %v268
  %v1275 = vunpack.c.h.b16 %v268
  %v1276 = vunpack.c.l.b16 %v269
  %v1277 = vunpack.c.h.b16 %v269
  %v1278 = vunpack.c.l.b16 %v270
  %v1279 = vunpack.c.h.b16 %v270
  %v1280 = vunpack.c.l.b16 %v271
  %v1281 = vunpack.c.h.b16 %v271
  %v1282 = vunpack.c.l.b16 %v272
  %v1283 = vunpack.c.h.b16 %v272
  %v1284 = vunpack.c.l.b16 %v273
  %v1285 = vunpack.c.h.b16 %v273
  %v1286 = vunpack.c.l.b16 %v274
  %v1287 = vunpack.c.h.b16 %v274
  %v1288 = vunpack.c.l.b16 %v275
  %v1289 = vunpack.c.h.b16 %v275
  %v1290 = vunpack.c.l.b16 %v276
  %v1291 = vunpack.c.h.b16 %v276
  %v1292 = vunpack.c.l.b16 %v277
  %v1293 = vunpack.c.h.b16 %v277
  %v1294 = vunpack.c.l.b16 %v278
  %v1295 = vunpack.c.h.b16 %v278
  %v1296 = vunpack.c.l.b16 %v279
  %v1297 = vunpack.c.h.b16 %v279
  %v1298 = vunpack.c.l.b16 %v280
  %v1299 = vunpack.c.h.b16 %v280
  %v1300 = vunpack.c.l.b16 %v281
  %v1301 = vunpack.c.h.b16 %v281
  %v1302 = vunpack.c.l.b16 %v282
  %v1303 = vunpack.c.h.b16 %v282
  %v1304 = vunpack.c.l.b16 %v283
  %v1305 = vunpack.c.h.b16 %v283
  %v1306 = vunpack.c.l.b16 %v284
  %v1307 = vunpack.c.h.b16 %v284
  %v1308 = vunpack.c.l.b16 %v285
  %v1309 = vunpack.c.h.b16 %v285
  %v1310 = vunpack.c.l.b16 %v286
  %v1311 = vunpack.c.h.b16 %v286
  %v1312 = vunpack.c.l.b16 %v287
  %v1313 = vunpack.c.h.b16 %v287
  %v1314 = vunpack.c.l.b16 %v288
  %v1315 = vunpack.c.h.b16 %v288
  %v1316 = vunpack.c.l.b16 %v289
  %v1317 = vunpack.c.h.b16 %v289
  %v1318 = vunpack.c.l.b16 %v290
  %v1319 = vunpack.c.h.b16 %v290
  %v1320 = vunpack.c.l.b16 %v291
  %v1321 = vunpack.c.h.b16 %v291
  %v1322 = vunpack.c.l.b16 %v292
  %v1323 = vunpack.c.h.b16 %v292
  %v1324 = vunpack.c.l.b16 %v293
  %v1325 = vunpack.c.h.b16 %v293
  %v1326 = vunpack.c.l.b16 %v294
  %v1327 = vunpack.c.h.b16 %v294
  %v1328 = vunpack.c.l.b16 %v295
  %v1329 = vunpack.c.h.b16 %v295
  %v1330 = vunpack.c.l.b16 %v296
  %v1331 = vunpack.c.h.b16 %v296
  %v1332 = vunpack.c.l.b16 %v297
  %v1333 = vunpack.c.h.b16 %v297
  %v1334 = vpack.c.b16 %v960, %v958
  %v1335 = vpack.c.b16 %v961, %v959
  %v1336 = vpack.c.b16 %v964, %v962
  %v1337 = vpack.c.b16 %v965, %v963
  %v1338 = vpack.c.b16 %v968, %v966
  %v1339 = vpack.c.b16 %v969, %v967
  %v1340 = vpack.c.b16 %v972, %v970
  %v1341 = vpack.c.b16 %v973, %v971
  %v1342 = vpack.c.b16 %v976, %v974
  %v1343 = vpack.c.b16 %v977, %v975
  %v1344 = vpack.c.b16 %v980, %v978
  %v1345 = vpack.c.b16 %v981, %v979
  %v1346 = vpack.c.b16 %v984, %v982
  %v1347 = vpack.c.b16 %v985, %v983
  %v1348 = vpack.c.b16 %v988, %v986
  %v1349 = vpack.c.b16 %v989, %v987
  %v1350 = vpack.c.b16 %v992, %v990
  %v1351 = vpack.c.b16 %v993, %v991
  %v1352 = vpack.c.b16 %v996, %v994
  %v1353 = vpack.c.b16 %v997, %v995
  %v1354 = vpack.c.b16 %v1000, %v998
  %v1355 = vpack.c.b16 %v1001, %v999
  %v1356 = vpack.c.b16 %v1004, %v1002
  %v1357 = vpack.c.b16 %v1005, %v1003
  %v1358 = vpack.c.b16 %v1008, %v1006
  %v1359 = vpack.c.b16 %v1009, %v1007
  %v1360 = vpack.c.b16 %v1012, %v1010
  %v1361 = vpack.c.b16 %v1013, %v1011
  %v1362 = vpack.c.b16 %v1016, %v1014
  %v1363 = vpack.c.b16 %v1017, %v1015
  %v1364 = vpack.c.b16 %v1020, %v1018
  %v1365 = vpack.c.b16 %v1021, %v1019
  %v1366 = vpack.c.b16 %v1024, %v1022
  %v1367 = vpack.c.b16 %v1025, %v1023
  %v1368 = vpack.c.b16 %v1028, %v1026
  %v1369 = vpack.c.b16 %v1029, %v1027
  %v1370 = vpack.c.b16 %v1032, %v1030
  %v1371 = vpack.c.b16 %v1033, %v1031
  %v1372 = vpack.c.b16 %v1036, %v1034
  %v1373 = vpack.c.b16 %v1037, %v1035
  %v1374 = vpack.c.b16 %v1040, %v1038
  %v1375 = vpack.c.b16 %v1041, %v1039
  %v1376 = vpack.c.b16 %v1044, %v1042
  %v1377 = vpack.c.b16 %v1045, %v1043
  %v1378 = vpack.c.b16 %v1048, %v1046
  %v1379 = vpack.c.b16 %v1049, %v1047
  %v1380 = vpack.c.b16 %v1052, %v1050
  %v1381 = vpack.c.b16 %v1053, %v1051
  %v1382 = vpack.c.b16 %v1056, %v1054
  %v1383 = vpack.c.b16 %v1057, %v1055
  %v1384 = vpack.c.b16 %v1060, %v1058
  %v1385 = vpack.c.b16 %v1061, %v1059
  %v1386 = vpack.c.b16 %v1064, %v1062
  %v1387 = vpack.c.b16 %v1065, %v1063
  %v1388 = vpack.c.b16 %v1068, %v1066
  %v1389 = vpack.c.b16 %v1069, %v1067
  %v1390 = vpack.c.b16 %v1072, %v1070
  %v1391 = vpack.c.b16 %v1073, %v1071
  %v1392 = vpack.c.b16 %v1076, %v1074
  %v1393 = vpack.c.b16 %v1077, %v1075
  %v1394 = vpack.c.b16 %v1080, %v1078
  %v1395 = vpack.c.b16 %v1081, %v1079
  %v1396 = vpack.c.b16 %v1084, %v1082
  %v1397 = vpack.c.b16 %v1085, %v1083
  %v1398 = vpack.c.b16 %v1088, %v1086
  %v1399 = vpack.c.b16 %v1089, %v1087
  %v1400 = vpack.c.b16 %v1092, %v1090
  %v1401 = vpack.c.b16 %v1093, %v1091
  %v1402 = vpack.c.b16 %v1096, %v1094
  %v1403 = vpack.c.b16 %v1097, %v1095
  %v1404 = vpack.c.b16 %v1100, %v1098
  %v1405 = vpack.c.b16 %v1101, %v1099
  %v1406 = vpack.c.b16 %v1104, %v1102
  %v1407 = vpack.c.b16 %v1105, %v1103
  %v1408 = vpack.c.b16 %v1108, %v1106
  %v1409 = vpack.c.b16 %v1109, %v1107
  %v1410 = vpack.c.b16 %v1112, %v1110
  %v1411 = vpack.c.b16 %v1113, %v1111
  %v1412 = vpack.c.b16 %v1116, %v1114
  %v1413 = vpack.c.b16 %v1117, %v1115
  %v1414 = vpack.c.b16 %v1120, %v1118
  %v1415 = vpack.c.b16 %v1121, %v1119
  %v1416 = vpack.c.b16 %v1124, %v1122
  %v1417 = vpack.c.b16 %v1125, %v1123
  %v1418 = vpack.c.b16 %v1128, %v1126
  %v1419 = vpack.c.b16 %v1129, %v1127
  %v1420 = vpack.c.b16 %v1132, %v1130
  %v1421 = vpack.c.b16 %v1133, %v1131
  %v1422 = vpack.c.b16 %v1136, %v1134
  %v1423 = vpack.c.b16 %v1137, %v1135
  %v1424 = vpack.c.b16 %v1140, %v1138
  %v1425 = vpack.c.b16 %v1141, %v1139
  %v1426 = vpack.c.b16 %v1144, %v1142
  %v1427 = vpack.c.b16 %v1145, %v1143
  %v1428 = vpack.c.b16 %v1148, %v1146
  %v1429 = vpack.c.b16 %v1149, %v1147
  %v1430 = vpack.c.b16 %v1152, %v1150
  %v1431 = vpack.c.b16 %v1153, %v1151
  %v1432 = vpack.c.b16 %v1156, %v1154
  %v1433 = vpack.c.b16 %v1157, %v1155
  %v1434 = vpack.c.b16 %v1160, %v1158
  %v1435 = vpack.c.b16 %v1161, %v1159
  %v1436 = vpack.c.b16 %v1164, %v1162
  %v1437 = vpack.c.b16 %v1165, %v1163
  %v1438 = vpack.c.b16 %v1168, %v1166
  %v1439 = vpack.c.b16 %v1169, %v1167
  %v1440 = vpack.c.b16 %v1172, %v1170
  %v1441 = vpack.c.b16 %v1173, %v1171
  %v1442 = vpack.c.b16 %v1176, %v1174
  %v1443 = vpack.c.b16 %v1177, %v1175
  %v1444 = vpack.c.b16 %v1180, %v1178
  %v1445 = vpack.c.b16 %v1181, %v1179
  %v1446 = vpack.c.b16 %v1184, %v1182
  %v1447 = vpack.c.b16 %v1185, %v1183
  %v1448 = vpack.c.b16 %v1188, %v1186
  %v1449 = vpack.c.b16 %v1189, %v1187
  %v1450 = vpack.c.b16 %v1192, %v1190
  %v1451 = vpack.c.b16 %v1193, %v1191
  %v1452 = vpack.c.b16 %v1196, %v1194
  %v1453 = vpack.c.b16 %v1197, %v1195
  %v1454 = vpack.c.b16 %v1200, %v1198
  %v1455 = vpack.c.b16 %v1201, %v1199
  %v1456 = vpack.c.b16 %v1204, %v1202
  %v1457 = vpack.c.b16 %v1205, %v1203
  %v1458 = vpack.c.b16 %v1208, %v1206
  %v1459 = vpack.c.b16 %v1209, %v1207
  %v1460 = vpack.c.b16 %v1212, %v1210
  %v1461 = vpack.c.b16 %v1213, %v1211
  %v1462 = vpack.c.b16 %v1216, %v1214
  %v1463 = vpack.c.b16 %v1217, %v1215
  %v1464 = vpack.c.b16 %v1220, %v1218
  %v1465 = vpack.c.b16 %v1221, %v1219
  %v1466 = vpack.c.b16 %v1224, %v1222
  %v1467 = vpack.c.b16 %v1225, %v1223
  %v1468 = vpack.c.b16 %v1228, %v1226
  %v1469 = vpack.c.b16 %v1229, %v1227
  %v1470 = vpack.c.b16 %v1232, %v1230
  %v1471 = vpack.c.b16 %v1233, %v1231
  %v1472 = vpack.c.b16 %v1236, %v1234
  %v1473 = vpack.c.b16 %v1237, %v1235
  %v1474 = vpack.c.b16 %v1240, %v1238
  %v1475 = vpack.c.b16 %v1241, %v1239
  %v1476 = vpack.c.b16 %v1244, %v1242
  %v1477 = vpack.c.b16 %v1245, %v1243
  %v1478 = vpack.c.b16 %v1248, %v1246
  %v1479 = vpack.c.b16 %v1249, %v1247
  %v1480 = vpack.c.b16 %v1252, %v1250
  %v1481 = vpack.c.b16 %v1253, %v1251
  %v1482 = vpack.c.b16 %v1256, %v1254
  %v1483 = vpack.c.b16 %v1257, %v1255
  %v1484 = vpack.c.b16 %v1260, %v1258
  %v1485 = vpack.c.b16 %v1261, %v1259
  %v1486 = vpack.c.b16 %v1264, %v1262
  %v1487 = vpack.c.b16 %v1265, %v1263
  %v1488 = vpack.c.b16 %v1268, %v1266
  %v1489 = vpack.c.b16 %v1269, %v1267
  %v1490 = vpack.c.b16 %v1272, %v1270
  %v1491 = vpack.c.b16 %v1273, %v1271
  %v1492 = vpack.c.b16 %v1276, %v1274
  %v1493 = vpack.c.b16 %v1277, %v1275
  %v1494 = vpack.c.b16 %v1280, %v1278
  %v1495 = vpack.c.b16 %v1281, %v1279
  %v1496 = vpack.c.b16 %v1284, %v1282
  %v1497 = vpack.c.b16 %v1285, %v1283
  %v1498 = vpack.c.b16 %v1288, %v1286
  %v1499 = vpack.c.b16 %v1289, %v1287
  %v1500 = vpack.c.b16 %v1292, %v1290
  %v1501 = vpack.c.b16 %v1293, %v1291
  %v1502 = vpack.c.b16 %v1296, %v1294
  %v1503 = vpack.c.b16 %v1297, %v1295
  %v1504 = vpack.c.b16 %v1300, %v1298
  %v1505 = vpack.c.b16 %v1301, %v1299
  %v1506 = vpack.c.b16 %v1304, %v1302
  %v1507 = vpack.c.b16 %v1305, %v1303
  %v1508 = vpack.c.b16 %v1308, %v1306
  %v1509 = vpack.c.b16 %v1309, %v1307
  %v1510 = vpack.c.b16 %v1312, %v1310
  %v1511 = vpack.c.b16 %v1313, %v1311
  %v1512 = vpack.c.b16 %v1316, %v1314
  %v1513 = vpack.c.b16 %v1317, %v1315
  %v1514 = vpack.c.b16 %v1320, %v1318
  %v1515 = vpack.c.b16 %v1321, %v1319
  %v1516 = vpack.c.b16 %v1324, %v1322
  %v1517 = vpack.c.b16 %v1325, %v1323
  %v1518 = vpack.c.b16 %v1328, %v1326
  %v1519 = vpack.c.b16 %v1329, %v1327
  %v1520 = vpack.c.b16 %v1332, %v1330
  %v1521 = vpack.c.b16 %v1333, %v1331
  %vm1708 = vcmask 752640
  %v1710 = vsel %vm1708, %v597, 0
  %v1713 = vsel %vm1708, %v609, 0
  %v1716 = vsel %vm1708, %v621, 0
  %v1719 = vsel %vm1708, %v633, 0
  %v1722 = vsel %vm1708, %v645, 0
  %v1725 = vsel %vm1708, %v657, 0
  %v1728 = vsel %vm1708, %v669, 0
  %v1731 = vsel %vm1708, %v681, 0
  %vm1733 = vcmask 1045504
  %v1735 = vsel %vm1733, %v1520, 0
  %v1738 = vsel %vm1733, %v1521, 0
  %1740 = vmatprep.subr.bf16.mxu0 %v1349
  %1741 = vmatpush1.bf16.msra.mxu0 %v1348
  %1742 = vmatprep.subr.bf16.mxu0 %v1347
  %1743 = vmatpush1.bf16.msra.mxu0 %v1346
  %1744 = vmatprep.subr.bf16.mxu0 %v1345
  %1745 = vmatpush1.bf16.msra.mxu0 %v1344
  %1746 = vmatprep.subr.bf16.mxu0 %v1343
  %1747 = vmatpush1.bf16.msra.mxu0 %v1342
  %1748 = vmatprep.subr.bf16.mxu0 %v1341
  %1749 = vmatpush1.bf16.msra.mxu0 %v1340
  %1750 = vmatprep.subr.bf16.mxu0 %v1339
  %1751 = vmatpush1.bf16.msra.mxu0 %v1338
  %1752 = vmatprep.subr.bf16.mxu0 %v1337
  %1753 = vmatpush1.bf16.msra.mxu0 %v1336
  %1754 = vmatprep.subr.bf16.mxu0 %v1335
  %1755 = vmatpush1.bf16.msra.mxu0 %v1334
  %1756 = vmatprep.subr.bf16.mxu0 %v1365
  %1757 = vmatpush2.bf16.msra.mxu0 %v1364
  %1758 = vmatprep.subr.bf16.mxu0 %v1363
  %1759 = vmatpush2.bf16.msra.mxu0 %v1362
  %1760 = vmatprep.subr.bf16.mxu0 %v1361
  %1761 = vmatpush2.bf16.msra.mxu0 %v1360
  %1762 = vmatprep.subr.bf16.mxu0 %v1359
  %1763 = vmatpush2.bf16.msra.mxu0 %v1358
  %1764 = vmatprep.subr.bf16.mxu0 %v1357
  %1765 = vmatpush2.bf16.msra.mxu0 %v1356
  %1766 = vmatprep.subr.bf16.mxu0 %v1355
  %1767 = vmatpush2.bf16.msra.mxu0 %v1354
  %1768 = vmatprep.subr.bf16.mxu0 %v1353
  %1769 = vmatpush2.bf16.msra.mxu0 %v1352
  %1770 = vmatprep.subr.bf16.mxu0 %v1351
  %1771 = vmatpush2.bf16.msra.mxu0 %v1350
  %1772 = vmatprep.mubr.bf16.mxu0 %v587
  %1773 = vmatmul.mubr.bf16.gmra.mxu0 %v586
  %v1774 = vpop.f32.mrf.mxu0
  %v1775 = vadd.f32 0.0, %v1774
  %v1776 = vpop.f32.mrf.mxu0
  %v1777 = vadd.f32 0.0, %v1776
  %v1778 = vpop.f32.mrf.mxu0
  %v1779 = vadd.f32 0.0, %v1778
  %v1780 = vpop.f32.mrf.mxu0
  %v1781 = vadd.f32 0.0, %v1780
  %1782 = vmatprep.mubr.bf16.mxu0 %v599
  %1783 = vmatmul.mubr.bf16.gmra.mxu0 %v598
  %v1784 = vpop.f32.mrf.mxu0
  %v1785 = vadd.f32 0.0, %v1784
  %v1786 = vpop.f32.mrf.mxu0
  %v1787 = vadd.f32 0.0, %v1786
  %v1788 = vpop.f32.mrf.mxu0
  %v1789 = vadd.f32 0.0, %v1788
  %v1790 = vpop.f32.mrf.mxu0
  %v1791 = vadd.f32 0.0, %v1790
  %1792 = vmatprep.mubr.bf16.mxu0 %v611
  %1793 = vmatmul.mubr.bf16.gmra.mxu0 %v610
  %v1794 = vpop.f32.mrf.mxu0
  %v1795 = vadd.f32 0.0, %v1794
  %v1796 = vpop.f32.mrf.mxu0
  %v1797 = vadd.f32 0.0, %v1796
  %v1798 = vpop.f32.mrf.mxu0
  %v1799 = vadd.f32 0.0, %v1798
  %v1800 = vpop.f32.mrf.mxu0
  %v1801 = vadd.f32 0.0, %v1800
  %1802 = vmatprep.mubr.bf16.mxu0 %v623
  %1803 = vmatmul.mubr.bf16.gmra.mxu0 %v622
  %v1804 = vpop.f32.mrf.mxu0
  %v1805 = vadd.f32 0.0, %v1804
  %v1806 = vpop.f32.mrf.mxu0
  %v1807 = vadd.f32 0.0, %v1806
  %v1808 = vpop.f32.mrf.mxu0
  %v1809 = vadd.f32 0.0, %v1808
  %v1810 = vpop.f32.mrf.mxu0
  %v1811 = vadd.f32 0.0, %v1810
  %1812 = vmatprep.mubr.bf16.mxu0 %v635
  %1813 = vmatmul.mubr.bf16.gmra.mxu0 %v634
  %v1814 = vpop.f32.mrf.mxu0
  %v1815 = vadd.f32 0.0, %v1814
  %v1816 = vpop.f32.mrf.mxu0
  %v1817 = vadd.f32 0.0, %v1816
  %v1818 = vpop.f32.mrf.mxu0
  %v1819 = vadd.f32 0.0, %v1818
  %v1820 = vpop.f32.mrf.mxu0
  %v1821 = vadd.f32 0.0, %v1820
  %1822 = vmatprep.mubr.bf16.mxu0 %v647
  %1823 = vmatmul.mubr.bf16.gmra.mxu0 %v646
  %v1824 = vpop.f32.mrf.mxu0
  %v1825 = vadd.f32 0.0, %v1824
  %v1826 = vpop.f32.mrf.mxu0
  %v1827 = vadd.f32 0.0, %v1826
  %v1828 = vpop.f32.mrf.mxu0
  %v1829 = vadd.f32 0.0, %v1828
  %v1830 = vpop.f32.mrf.mxu0
  %v1831 = vadd.f32 0.0, %v1830
  %1832 = vmatprep.mubr.bf16.mxu0 %v659
  %1833 = vmatmul.mubr.bf16.gmra.mxu0 %v658
  %v1834 = vpop.f32.mrf.mxu0
  %v1835 = vadd.f32 0.0, %v1834
  %v1836 = vpop.f32.mrf.mxu0
  %v1837 = vadd.f32 0.0, %v1836
  %v1838 = vpop.f32.mrf.mxu0
  %v1839 = vadd.f32 0.0, %v1838
  %v1840 = vpop.f32.mrf.mxu0
  %v1841 = vadd.f32 0.0, %v1840
  %1842 = vmatprep.mubr.bf16.mxu0 %v671
  %1843 = vmatmul.mubr.bf16.gmra.mxu0 %v670
  %v1844 = vpop.f32.mrf.mxu0
  %v1845 = vadd.f32 0.0, %v1844
  %v1846 = vpop.f32.mrf.mxu0
  %v1847 = vadd.f32 0.0, %v1846
  %v1848 = vpop.f32.mrf.mxu0
  %v1849 = vadd.f32 0.0, %v1848
  %v1850 = vpop.f32.mrf.mxu0
  %v1851 = vadd.f32 0.0, %v1850
  %1852 = vdwg.mxu0
  %1853 = vmatprep.subr.bf16.mxu0 %v1381
  %1854 = vmatpush1.bf16.msra.mxu0 %v1380
  %1855 = vmatprep.subr.bf16.mxu0 %v1379
  %1856 = vmatpush1.bf16.msra.mxu0 %v1378
  %1857 = vmatprep.subr.bf16.mxu0 %v1377
  %1858 = vmatpush1.bf16.msra.mxu0 %v1376
  %1859 = vmatprep.subr.bf16.mxu0 %v1375
  %1860 = vmatpush1.bf16.msra.mxu0 %v1374
  %1861 = vmatprep.subr.bf16.mxu0 %v1373
  %1862 = vmatpush1.bf16.msra.mxu0 %v1372
  %1863 = vmatprep.subr.bf16.mxu0 %v1371
  %1864 = vmatpush1.bf16.msra.mxu0 %v1370
  %1865 = vmatprep.subr.bf16.mxu0 %v1369
  %1866 = vmatpush1.bf16.msra.mxu0 %v1368
  %1867 = vmatprep.subr.bf16.mxu0 %v1367
  %1868 = vmatpush1.bf16.msra.mxu0 %v1366
  %1869 = vmatprep.subr.bf16.mxu0 %v1397
  %1870 = vmatpush2.bf16.msra.mxu0 %v1396
  %1871 = vmatprep.subr.bf16.mxu0 %v1395
  %1872 = vmatpush2.bf16.msra.mxu0 %v1394
  %1873 = vmatprep.subr.bf16.mxu0 %v1393
  %1874 = vmatpush2.bf16.msra.mxu0 %v1392
  %1875 = vmatprep.subr.bf16.mxu0 %v1391
  %1876 = vmatpush2.bf16.msra.mxu0 %v1390
  %1877 = vmatprep.subr.bf16.mxu0 %v1389
  %1878 = vmatpush2.bf16.msra.mxu0 %v1388
  %1879 = vmatprep.subr.bf16.mxu0 %v1387
  %1880 = vmatpush2.bf16.msra.mxu0 %v1386
  %1881 = vmatprep.subr.bf16.mxu0 %v1385
  %1882 = vmatpush2.bf16.msra.mxu0 %v1384
  %1883 = vmatprep.subr.bf16.mxu0 %v1383
  %1884 = vmatpush2.bf16.msra.mxu0 %v1382
  %1885 = vmatprep.mubr.bf16.mxu0 %v589
  %1886 = vmatmul.mubr.bf16.gmra.mxu0 %v588
  %v1887 = vpop.f32.mrf.mxu0
  %v1888 = vadd.f32 %v1775, %v1887
  %v1889 = vpop.f32.mrf.mxu0
  %v1890 = vadd.f32 %v1777, %v1889
  %v1891 = vpop.f32.mrf.mxu0
  %v1892 = vadd.f32 %v1779, %v1891
  %v1893 = vpop.f32.mrf.mxu0
  %v1894 = vadd.f32 %v1781, %v1893
  %1895 = vmatprep.mubr.bf16.mxu0 %v601
  %1896 = vmatmul.mubr.bf16.gmra.mxu0 %v600
  %v1897 = vpop.f32.mrf.mxu0
  %v1898 = vadd.f32 %v1785, %v1897
  %v1899 = vpop.f32.mrf.mxu0
  %v1900 = vadd.f32 %v1787, %v1899
  %v1901 = vpop.f32.mrf.mxu0
  %v1902 = vadd.f32 %v1789, %v1901
  %v1903 = vpop.f32.mrf.mxu0
  %v1904 = vadd.f32 %v1791, %v1903
  %1905 = vmatprep.mubr.bf16.mxu0 %v613
  %1906 = vmatmul.mubr.bf16.gmra.mxu0 %v612
  %v1907 = vpop.f32.mrf.mxu0
  %v1908 = vadd.f32 %v1795, %v1907
  %v1909 = vpop.f32.mrf.mxu0
  %v1910 = vadd.f32 %v1797, %v1909
  %v1911 = vpop.f32.mrf.mxu0
  %v1912 = vadd.f32 %v1799, %v1911
  %v1913 = vpop.f32.mrf.mxu0
  %v1914 = vadd.f32 %v1801, %v1913
  %1915 = vmatprep.mubr.bf16.mxu0 %v625
  %1916 = vmatmul.mubr.bf16.gmra.mxu0 %v624
  %v1917 = vpop.f32.mrf.mxu0
  %v1918 = vadd.f32 %v1805, %v1917
  %v1919 = vpop.f32.mrf.mxu0
  %v1920 = vadd.f32 %v1807, %v1919
  %v1921 = vpop.f32.mrf.mxu0
  %v1922 = vadd.f32 %v1809, %v1921
  %v1923 = vpop.f32.mrf.mxu0
  %v1924 = vadd.f32 %v1811, %v1923
  %1925 = vmatprep.mubr.bf16.mxu0 %v637
  %1926 = vmatmul.mubr.bf16.gmra.mxu0 %v636
  %v1927 = vpop.f32.mrf.mxu0
  %v1928 = vadd.f32 %v1815, %v1927
  %v1929 = vpop.f32.mrf.mxu0
  %v1930 = vadd.f32 %v1817, %v1929
  %v1931 = vpop.f32.mrf.mxu0
  %v1932 = vadd.f32 %v1819, %v1931
  %v1933 = vpop.f32.mrf.mxu0
  %v1934 = vadd.f32 %v1821, %v1933
  %1935 = vmatprep.mubr.bf16.mxu0 %v649
  %1936 = vmatmul.mubr.bf16.gmra.mxu0 %v648
  %v1937 = vpop.f32.mrf.mxu0
  %v1938 = vadd.f32 %v1825, %v1937
  %v1939 = vpop.f32.mrf.mxu0
  %v1940 = vadd.f32 %v1827, %v1939
  %v1941 = vpop.f32.mrf.mxu0
  %v1942 = vadd.f32 %v1829, %v1941
  %v1943 = vpop.f32.mrf.mxu0
  %v1944 = vadd.f32 %v1831, %v1943
  %1945 = vmatprep.mubr.bf16.mxu0 %v661
  %1946 = vmatmul.mubr.bf16.gmra.mxu0 %v660
  %v1947 = vpop.f32.mrf.mxu0
  %v1948 = vadd.f32 %v1835, %v1947
  %v1949 = vpop.f32.mrf.mxu0
  %v1950 = vadd.f32 %v1837, %v1949
  %v1951 = vpop.f32.mrf.mxu0
  %v1952 = vadd.f32 %v1839, %v1951
  %v1953 = vpop.f32.mrf.mxu0
  %v1954 = vadd.f32 %v1841, %v1953
  %1955 = vmatprep.mubr.bf16.mxu0 %v673
  %1956 = vmatmul.mubr.bf16.gmra.mxu0 %v672
  %v1957 = vpop.f32.mrf.mxu0
  %v1958 = vadd.f32 %v1845, %v1957
  %v1959 = vpop.f32.mrf.mxu0
  %v1960 = vadd.f32 %v1847, %v1959
  %v1961 = vpop.f32.mrf.mxu0
  %v1962 = vadd.f32 %v1849, %v1961
  %v1963 = vpop.f32.mrf.mxu0
  %v1964 = vadd.f32 %v1851, %v1963
  %1965 = vdwg.mxu0
  %1966 = vmatprep.subr.bf16.mxu0 %v1413
  %1967 = vmatpush1.bf16.msra.mxu0 %v1412
  %1968 = vmatprep.subr.bf16.mxu0 %v1411
  %1969 = vmatpush1.bf16.msra.mxu0 %v1410
  %1970 = vmatprep.subr.bf16.mxu0 %v1409
  %1971 = vmatpush1.bf16.msra.mxu0 %v1408
  %1972 = vmatprep.subr.bf16.mxu0 %v1407
  %1973 = vmatpush1.bf16.msra.mxu0 %v1406
  %1974 = vmatprep.subr.bf16.mxu0 %v1405
  %1975 = vmatpush1.bf16.msra.mxu0 %v1404
  %1976 = vmatprep.subr.bf16.mxu0 %v1403
  %1977 = vmatpush1.bf16.msra.mxu0 %v1402
  %1978 = vmatprep.subr.bf16.mxu0 %v1401
  %1979 = vmatpush1.bf16.msra.mxu0 %v1400
  %1980 = vmatprep.subr.bf16.mxu0 %v1399
  %1981 = vmatpush1.bf16.msra.mxu0 %v1398
  %1982 = vmatprep.subr.bf16.mxu0 %v1429
  %1983 = vmatpush2.bf16.msra.mxu0 %v1428
  %1984 = vmatprep.subr.bf16.mxu0 %v1427
  %1985 = vmatpush2.bf16.msra.mxu0 %v1426
  %1986 = vmatprep.subr.bf16.mxu0 %v1425
  %1987 = vmatpush2.bf16.msra.mxu0 %v1424
  %1988 = vmatprep.subr.bf16.mxu0 %v1423
  %1989 = vmatpush2.bf16.msra.mxu0 %v1422
  %1990 = vmatprep.subr.bf16.mxu0 %v1421
  %1991 = vmatpush2.bf16.msra.mxu0 %v1420
  %1992 = vmatprep.subr.bf16.mxu0 %v1419
  %1993 = vmatpush2.bf16.msra.mxu0 %v1418
  %1994 = vmatprep.subr.bf16.mxu0 %v1417
  %1995 = vmatpush2.bf16.msra.mxu0 %v1416
  %1996 = vmatprep.subr.bf16.mxu0 %v1415
  %1997 = vmatpush2.bf16.msra.mxu0 %v1414
  %1998 = vmatprep.mubr.bf16.mxu0 %v591
  %1999 = vmatmul.mubr.bf16.gmra.mxu0 %v590
  %v2000 = vpop.f32.mrf.mxu0
  %v2001 = vadd.f32 %v1888, %v2000
  %v2002 = vpop.f32.mrf.mxu0
  %v2003 = vadd.f32 %v1890, %v2002
  %v2004 = vpop.f32.mrf.mxu0
  %v2005 = vadd.f32 %v1892, %v2004
  %v2006 = vpop.f32.mrf.mxu0
  %v2007 = vadd.f32 %v1894, %v2006
  %2008 = vmatprep.mubr.bf16.mxu0 %v603
  %2009 = vmatmul.mubr.bf16.gmra.mxu0 %v602
  %v2010 = vpop.f32.mrf.mxu0
  %v2011 = vadd.f32 %v1898, %v2010
  %v2012 = vpop.f32.mrf.mxu0
  %v2013 = vadd.f32 %v1900, %v2012
  %v2014 = vpop.f32.mrf.mxu0
  %v2015 = vadd.f32 %v1902, %v2014
  %v2016 = vpop.f32.mrf.mxu0
  %v2017 = vadd.f32 %v1904, %v2016
  %2018 = vmatprep.mubr.bf16.mxu0 %v615
  %2019 = vmatmul.mubr.bf16.gmra.mxu0 %v614
  %v2020 = vpop.f32.mrf.mxu0
  %v2021 = vadd.f32 %v1908, %v2020
  %v2022 = vpop.f32.mrf.mxu0
  %v2023 = vadd.f32 %v1910, %v2022
  %v2024 = vpop.f32.mrf.mxu0
  %v2025 = vadd.f32 %v1912, %v2024
  %v2026 = vpop.f32.mrf.mxu0
  %v2027 = vadd.f32 %v1914, %v2026
  %2028 = vmatprep.mubr.bf16.mxu0 %v627
  %2029 = vmatmul.mubr.bf16.gmra.mxu0 %v626
  %v2030 = vpop.f32.mrf.mxu0
  %v2031 = vadd.f32 %v1918, %v2030
  %v2032 = vpop.f32.mrf.mxu0
  %v2033 = vadd.f32 %v1920, %v2032
  %v2034 = vpop.f32.mrf.mxu0
  %v2035 = vadd.f32 %v1922, %v2034
  %v2036 = vpop.f32.mrf.mxu0
  %v2037 = vadd.f32 %v1924, %v2036
  %2038 = vmatprep.mubr.bf16.mxu0 %v639
  %2039 = vmatmul.mubr.bf16.gmra.mxu0 %v638
  %v2040 = vpop.f32.mrf.mxu0
  %v2041 = vadd.f32 %v1928, %v2040
  %v2042 = vpop.f32.mrf.mxu0
  %v2043 = vadd.f32 %v1930, %v2042
  %v2044 = vpop.f32.mrf.mxu0
  %v2045 = vadd.f32 %v1932, %v2044
  %v2046 = vpop.f32.mrf.mxu0
  %v2047 = vadd.f32 %v1934, %v2046
  %2048 = vmatprep.mubr.bf16.mxu0 %v651
  %2049 = vmatmul.mubr.bf16.gmra.mxu0 %v650
  %v2050 = vpop.f32.mrf.mxu0
  %v2051 = vadd.f32 %v1938, %v2050
  %v2052 = vpop.f32.mrf.mxu0
  %v2053 = vadd.f32 %v1940, %v2052
  %v2054 = vpop.f32.mrf.mxu0
  %v2055 = vadd.f32 %v1942, %v2054
  %v2056 = vpop.f32.mrf.mxu0
  %v2057 = vadd.f32 %v1944, %v2056
  %2058 = vmatprep.mubr.bf16.mxu0 %v663
  %2059 = vmatmul.mubr.bf16.gmra.mxu0 %v662
  %v2060 = vpop.f32.mrf.mxu0
  %v2061 = vadd.f32 %v1948, %v2060
  %v2062 = vpop.f32.mrf.mxu0
  %v2063 = vadd.f32 %v1950, %v2062
  %v2064 = vpop.f32.mrf.mxu0
  %v2065 = vadd.f32 %v1952, %v2064
  %v2066 = vpop.f32.mrf.mxu0
  %v2067 = vadd.f32 %v1954, %v2066
  %2068 = vmatprep.mubr.bf16.mxu0 %v675
  %2069 = vmatmul.mubr.bf16.gmra.mxu0 %v674
  %v2070 = vpop.f32.mrf.mxu0
  %v2071 = vadd.f32 %v1958, %v2070
  %v2072 = vpop.f32.mrf.mxu0
  %v2073 = vadd.f32 %v1960, %v2072
  %v2074 = vpop.f32.mrf.mxu0
  %v2075 = vadd.f32 %v1962, %v2074
  %v2076 = vpop.f32.mrf.mxu0
  %v2077 = vadd.f32 %v1964, %v2076
  %2078 = vdwg.mxu0
  %2079 = vmatprep.subr.bf16.mxu0 %v1445
  %2080 = vmatpush1.bf16.msra.mxu0 %v1444
  %2081 = vmatprep.subr.bf16.mxu0 %v1443
  %2082 = vmatpush1.bf16.msra.mxu0 %v1442
  %2083 = vmatprep.subr.bf16.mxu0 %v1441
  %2084 = vmatpush1.bf16.msra.mxu0 %v1440
  %2085 = vmatprep.subr.bf16.mxu0 %v1439
  %2086 = vmatpush1.bf16.msra.mxu0 %v1438
  %2087 = vmatprep.subr.bf16.mxu0 %v1437
  %2088 = vmatpush1.bf16.msra.mxu0 %v1436
  %2089 = vmatprep.subr.bf16.mxu0 %v1435
  %2090 = vmatpush1.bf16.msra.mxu0 %v1434
  %2091 = vmatprep.subr.bf16.mxu0 %v1433
  %2092 = vmatpush1.bf16.msra.mxu0 %v1432
  %2093 = vmatprep.subr.bf16.mxu0 %v1431
  %2094 = vmatpush1.bf16.msra.mxu0 %v1430
  %2095 = vmatprep.subr.bf16.mxu0 %v1461
  %2096 = vmatpush2.bf16.msra.mxu0 %v1460
  %2097 = vmatprep.subr.bf16.mxu0 %v1459
  %2098 = vmatpush2.bf16.msra.mxu0 %v1458
  %2099 = vmatprep.subr.bf16.mxu0 %v1457
  %2100 = vmatpush2.bf16.msra.mxu0 %v1456
  %2101 = vmatprep.subr.bf16.mxu0 %v1455
  %2102 = vmatpush2.bf16.msra.mxu0 %v1454
  %2103 = vmatprep.subr.bf16.mxu0 %v1453
  %2104 = vmatpush2.bf16.msra.mxu0 %v1452
  %2105 = vmatprep.subr.bf16.mxu0 %v1451
  %2106 = vmatpush2.bf16.msra.mxu0 %v1450
  %2107 = vmatprep.subr.bf16.mxu0 %v1449
  %2108 = vmatpush2.bf16.msra.mxu0 %v1448
  %2109 = vmatprep.subr.bf16.mxu0 %v1447
  %2110 = vmatpush2.bf16.msra.mxu0 %v1446
  %2111 = vmatprep.mubr.bf16.mxu0 %v593
  %2112 = vmatmul.mubr.bf16.gmra.mxu0 %v592
  %v2113 = vpop.f32.mrf.mxu0
  %v2114 = vadd.f32 %v2001, %v2113
  %v2115 = vpop.f32.mrf.mxu0
  %v2116 = vadd.f32 %v2003, %v2115
  %v2117 = vpop.f32.mrf.mxu0
  %v2118 = vadd.f32 %v2005, %v2117
  %v2119 = vpop.f32.mrf.mxu0
  %v2120 = vadd.f32 %v2007, %v2119
  %2121 = vmatprep.mubr.bf16.mxu0 %v605
  %2122 = vmatmul.mubr.bf16.gmra.mxu0 %v604
  %v2123 = vpop.f32.mrf.mxu0
  %v2124 = vadd.f32 %v2011, %v2123
  %v2125 = vpop.f32.mrf.mxu0
  %v2126 = vadd.f32 %v2013, %v2125
  %v2127 = vpop.f32.mrf.mxu0
  %v2128 = vadd.f32 %v2015, %v2127
  %v2129 = vpop.f32.mrf.mxu0
  %v2130 = vadd.f32 %v2017, %v2129
  %2131 = vmatprep.mubr.bf16.mxu0 %v617
  %2132 = vmatmul.mubr.bf16.gmra.mxu0 %v616
  %v2133 = vpop.f32.mrf.mxu0
  %v2134 = vadd.f32 %v2021, %v2133
  %v2135 = vpop.f32.mrf.mxu0
  %v2136 = vadd.f32 %v2023, %v2135
  %v2137 = vpop.f32.mrf.mxu0
  %v2138 = vadd.f32 %v2025, %v2137
  %v2139 = vpop.f32.mrf.mxu0
  %v2140 = vadd.f32 %v2027, %v2139
  %2141 = vmatprep.mubr.bf16.mxu0 %v629
  %2142 = vmatmul.mubr.bf16.gmra.mxu0 %v628
  %v2143 = vpop.f32.mrf.mxu0
  %v2144 = vadd.f32 %v2031, %v2143
  %v2145 = vpop.f32.mrf.mxu0
  %v2146 = vadd.f32 %v2033, %v2145
  %v2147 = vpop.f32.mrf.mxu0
  %v2148 = vadd.f32 %v2035, %v2147
  %v2149 = vpop.f32.mrf.mxu0
  %v2150 = vadd.f32 %v2037, %v2149
  %2151 = vmatprep.mubr.bf16.mxu0 %v641
  %2152 = vmatmul.mubr.bf16.gmra.mxu0 %v640
  %v2153 = vpop.f32.mrf.mxu0
  %v2154 = vadd.f32 %v2041, %v2153
  %v2155 = vpop.f32.mrf.mxu0
  %v2156 = vadd.f32 %v2043, %v2155
  %v2157 = vpop.f32.mrf.mxu0
  %v2158 = vadd.f32 %v2045, %v2157
  %v2159 = vpop.f32.mrf.mxu0
  %v2160 = vadd.f32 %v2047, %v2159
  %2161 = vmatprep.mubr.bf16.mxu0 %v653
  %2162 = vmatmul.mubr.bf16.gmra.mxu0 %v652
  %v2163 = vpop.f32.mrf.mxu0
  %v2164 = vadd.f32 %v2051, %v2163
  %v2165 = vpop.f32.mrf.mxu0
  %v2166 = vadd.f32 %v2053, %v2165
  %v2167 = vpop.f32.mrf.mxu0
  %v2168 = vadd.f32 %v2055, %v2167
  %v2169 = vpop.f32.mrf.mxu0
  %v2170 = vadd.f32 %v2057, %v2169
  %2171 = vmatprep.mubr.bf16.mxu0 %v665
  %2172 = vmatmul.mubr.bf16.gmra.mxu0 %v664
  %v2173 = vpop.f32.mrf.mxu0
  %v2174 = vadd.f32 %v2061, %v2173
  %v2175 = vpop.f32.mrf.mxu0
  %v2176 = vadd.f32 %v2063, %v2175
  %v2177 = vpop.f32.mrf.mxu0
  %v2178 = vadd.f32 %v2065, %v2177
  %v2179 = vpop.f32.mrf.mxu0
  %v2180 = vadd.f32 %v2067, %v2179
  %2181 = vmatprep.mubr.bf16.mxu0 %v677
  %2182 = vmatmul.mubr.bf16.gmra.mxu0 %v676
  %v2183 = vpop.f32.mrf.mxu0
  %v2184 = vadd.f32 %v2071, %v2183
  %v2185 = vpop.f32.mrf.mxu0
  %v2186 = vadd.f32 %v2073, %v2185
  %v2187 = vpop.f32.mrf.mxu0
  %v2188 = vadd.f32 %v2075, %v2187
  %v2189 = vpop.f32.mrf.mxu0
  %v2190 = vadd.f32 %v2077, %v2189
  %2191 = vdwg.mxu0
  %2192 = vmatprep.subr.bf16.mxu0 %v1477
  %2193 = vmatpush1.bf16.msra.mxu0 %v1476
  %2194 = vmatprep.subr.bf16.mxu0 %v1475
  %2195 = vmatpush1.bf16.msra.mxu0 %v1474
  %2196 = vmatprep.subr.bf16.mxu0 %v1473
  %2197 = vmatpush1.bf16.msra.mxu0 %v1472
  %2198 = vmatprep.subr.bf16.mxu0 %v1471
  %2199 = vmatpush1.bf16.msra.mxu0 %v1470
  %2200 = vmatprep.subr.bf16.mxu0 %v1469
  %2201 = vmatpush1.bf16.msra.mxu0 %v1468
  %2202 = vmatprep.subr.bf16.mxu0 %v1467
  %2203 = vmatpush1.bf16.msra.mxu0 %v1466
  %2204 = vmatprep.subr.bf16.mxu0 %v1465
  %2205 = vmatpush1.bf16.msra.mxu0 %v1464
  %2206 = vmatprep.subr.bf16.mxu0 %v1463
  %2207 = vmatpush1.bf16.msra.mxu0 %v1462
  %2208 = vmatprep.subr.bf16.mxu0 %v1493
  %2209 = vmatpush2.bf16.msra.mxu0 %v1492
  %2210 = vmatprep.subr.bf16.mxu0 %v1491
  %2211 = vmatpush2.bf16.msra.mxu0 %v1490
  %2212 = vmatprep.subr.bf16.mxu0 %v1489
  %2213 = vmatpush2.bf16.msra.mxu0 %v1488
  %2214 = vmatprep.subr.bf16.mxu0 %v1487
  %2215 = vmatpush2.bf16.msra.mxu0 %v1486
  %2216 = vmatprep.subr.bf16.mxu0 %v1485
  %2217 = vmatpush2.bf16.msra.mxu0 %v1484
  %2218 = vmatprep.subr.bf16.mxu0 %v1483
  %2219 = vmatpush2.bf16.msra.mxu0 %v1482
  %2220 = vmatprep.subr.bf16.mxu0 %v1481
  %2221 = vmatpush2.bf16.msra.mxu0 %v1480
  %2222 = vmatprep.subr.bf16.mxu0 %v1479
  %2223 = vmatpush2.bf16.msra.mxu0 %v1478
  %2224 = vmatprep.mubr.bf16.mxu0 %v595
  %2225 = vmatmul.mubr.bf16.gmra.mxu0 %v594
  %v2226 = vpop.f32.mrf.mxu0
  %v2227 = vadd.f32 %v2114, %v2226
  %v2228 = vpop.f32.mrf.mxu0
  %v2229 = vadd.f32 %v2116, %v2228
  %v2230 = vpop.f32.mrf.mxu0
  %v2231 = vadd.f32 %v2118, %v2230
  %v2232 = vpop.f32.mrf.mxu0
  %v2233 = vadd.f32 %v2120, %v2232
  %2234 = vmatprep.mubr.bf16.mxu0 %v607
  %2235 = vmatmul.mubr.bf16.gmra.mxu0 %v606
  %v2236 = vpop.f32.mrf.mxu0
  %v2237 = vadd.f32 %v2124, %v2236
  %v2238 = vpop.f32.mrf.mxu0
  %v2239 = vadd.f32 %v2126, %v2238
  %v2240 = vpop.f32.mrf.mxu0
  %v2241 = vadd.f32 %v2128, %v2240
  %v2242 = vpop.f32.mrf.mxu0
  %v2243 = vadd.f32 %v2130, %v2242
  %2244 = vmatprep.mubr.bf16.mxu0 %v619
  %2245 = vmatmul.mubr.bf16.gmra.mxu0 %v618
  %v2246 = vpop.f32.mrf.mxu0
  %v2247 = vadd.f32 %v2134, %v2246
  %v2248 = vpop.f32.mrf.mxu0
  %v2249 = vadd.f32 %v2136, %v2248
  %v2250 = vpop.f32.mrf.mxu0
  %v2251 = vadd.f32 %v2138, %v2250
  %v2252 = vpop.f32.mrf.mxu0
  %v2253 = vadd.f32 %v2140, %v2252
  %2254 = vmatprep.mubr.bf16.mxu0 %v631
  %2255 = vmatmul.mubr.bf16.gmra.mxu0 %v630
  %v2256 = vpop.f32.mrf.mxu0
  %v2257 = vadd.f32 %v2144, %v2256
  %v2258 = vpop.f32.mrf.mxu0
  %v2259 = vadd.f32 %v2146, %v2258
  %v2260 = vpop.f32.mrf.mxu0
  %v2261 = vadd.f32 %v2148, %v2260
  %v2262 = vpop.f32.mrf.mxu0
  %v2263 = vadd.f32 %v2150, %v2262
  %2264 = vmatprep.mubr.bf16.mxu0 %v643
  %2265 = vmatmul.mubr.bf16.gmra.mxu0 %v642
  %v2266 = vpop.f32.mrf.mxu0
  %v2267 = vadd.f32 %v2154, %v2266
  %v2268 = vpop.f32.mrf.mxu0
  %v2269 = vadd.f32 %v2156, %v2268
  %v2270 = vpop.f32.mrf.mxu0
  %v2271 = vadd.f32 %v2158, %v2270
  %v2272 = vpop.f32.mrf.mxu0
  %v2273 = vadd.f32 %v2160, %v2272
  %2274 = vmatprep.mubr.bf16.mxu0 %v655
  %2275 = vmatmul.mubr.bf16.gmra.mxu0 %v654
  %v2276 = vpop.f32.mrf.mxu0
  %v2277 = vadd.f32 %v2164, %v2276
  %v2278 = vpop.f32.mrf.mxu0
  %v2279 = vadd.f32 %v2166, %v2278
  %v2280 = vpop.f32.mrf.mxu0
  %v2281 = vadd.f32 %v2168, %v2280
  %v2282 = vpop.f32.mrf.mxu0
  %v2283 = vadd.f32 %v2170, %v2282
  %2284 = vmatprep.mubr.bf16.mxu0 %v667
  %2285 = vmatmul.mubr.bf16.gmra.mxu0 %v666
  %v2286 = vpop.f32.mrf.mxu0
  %v2287 = vadd.f32 %v2174, %v2286
  %v2288 = vpop.f32.mrf.mxu0
  %v2289 = vadd.f32 %v2176, %v2288
  %v2290 = vpop.f32.mrf.mxu0
  %v2291 = vadd.f32 %v2178, %v2290
  %v2292 = vpop.f32.mrf.mxu0
  %v2293 = vadd.f32 %v2180, %v2292
  %2294 = vmatprep.mubr.bf16.mxu0 %v679
  %2295 = vmatmul.mubr.bf16.gmra.mxu0 %v678
  %v2296 = vpop.f32.mrf.mxu0
  %v2297 = vadd.f32 %v2184, %v2296
  %v2298 = vpop.f32.mrf.mxu0
  %v2299 = vadd.f32 %v2186, %v2298
  %v2300 = vpop.f32.mrf.mxu0
  %v2301 = vadd.f32 %v2188, %v2300
  %v2302 = vpop.f32.mrf.mxu0
  %v2303 = vadd.f32 %v2190, %v2302
  %2304 = vdwg.mxu0
  %2305 = vmatprep.subr.bf16.mxu0 %v1509
  %2306 = vmatpush1.bf16.msra.mxu0 %v1508
  %2307 = vmatprep.subr.bf16.mxu0 %v1507
  %2308 = vmatpush1.bf16.msra.mxu0 %v1506
  %2309 = vmatprep.subr.bf16.mxu0 %v1505
  %2310 = vmatpush1.bf16.msra.mxu0 %v1504
  %2311 = vmatprep.subr.bf16.mxu0 %v1503
  %2312 = vmatpush1.bf16.msra.mxu0 %v1502
  %2313 = vmatprep.subr.bf16.mxu0 %v1501
  %2314 = vmatpush1.bf16.msra.mxu0 %v1500
  %2315 = vmatprep.subr.bf16.mxu0 %v1499
  %2316 = vmatpush1.bf16.msra.mxu0 %v1498
  %2317 = vmatprep.subr.bf16.mxu0 %v1497
  %2318 = vmatpush1.bf16.msra.mxu0 %v1496
  %2319 = vmatprep.subr.bf16.mxu0 %v1495
  %2320 = vmatpush1.bf16.msra.mxu0 %v1494
  %2321 = vmatprep.subr.bf16.mxu0 0
  %2322 = vmatpush2.bf16.msra.mxu0 0
  %2323 = vmatprep.subr.bf16.mxu0 0
  %2324 = vmatpush2.bf16.msra.mxu0 0
  %2325 = vmatprep.subr.bf16.mxu0 %v1738
  %2326 = vmatpush2.bf16.msra.mxu0 %v1735
  %2327 = vmatprep.subr.bf16.mxu0 %v1519
  %2328 = vmatpush2.bf16.msra.mxu0 %v1518
  %2329 = vmatprep.subr.bf16.mxu0 %v1517
  %2330 = vmatpush2.bf16.msra.mxu0 %v1516
  %2331 = vmatprep.subr.bf16.mxu0 %v1515
  %2332 = vmatpush2.bf16.msra.mxu0 %v1514
  %2333 = vmatprep.subr.bf16.mxu0 %v1513
  %2334 = vmatpush2.bf16.msra.mxu0 %v1512
  %2335 = vmatprep.subr.bf16.mxu0 %v1511
  %2336 = vmatpush2.bf16.msra.mxu0 %v1510
  %2337 = vmatprep.mubr.bf16.mxu0 %v1710
  %2338 = vmatmul.mubr.bf16.gmra.mxu0 %v596
  %v2339 = vpop.f32.mrf.mxu0
  %v2340 = vadd.f32 %v2227, %v2339
  %v2341 = vpop.f32.mrf.mxu0
  %v2342 = vadd.f32 %v2229, %v2341
  %v2343 = vpop.f32.mrf.mxu0
  %v2344 = vadd.f32 %v2231, %v2343
  %v2345 = vpop.f32.mrf.mxu0
  %v2346 = vadd.f32 %v2233, %v2345
  %2347 = vmatprep.mubr.bf16.mxu0 %v1713
  %2348 = vmatmul.mubr.bf16.gmra.mxu0 %v608
  %v2349 = vpop.f32.mrf.mxu0
  %v2350 = vadd.f32 %v2237, %v2349
  %v2351 = vpop.f32.mrf.mxu0
  %v2352 = vadd.f32 %v2239, %v2351
  %v2353 = vpop.f32.mrf.mxu0
  %v2354 = vadd.f32 %v2241, %v2353
  %v2355 = vpop.f32.mrf.mxu0
  %v2356 = vadd.f32 %v2243, %v2355
  %2357 = vmatprep.mubr.bf16.mxu0 %v1716
  %2358 = vmatmul.mubr.bf16.gmra.mxu0 %v620
  %v2359 = vpop.f32.mrf.mxu0
  %v2360 = vadd.f32 %v2247, %v2359
  %v2361 = vpop.f32.mrf.mxu0
  %v2362 = vadd.f32 %v2249, %v2361
  %v2363 = vpop.f32.mrf.mxu0
  %v2364 = vadd.f32 %v2251, %v2363
  %v2365 = vpop.f32.mrf.mxu0
  %v2366 = vadd.f32 %v2253, %v2365
  %2367 = vmatprep.mubr.bf16.mxu0 %v1719
  %2368 = vmatmul.mubr.bf16.gmra.mxu0 %v632
  %v2369 = vpop.f32.mrf.mxu0
  %v2370 = vadd.f32 %v2257, %v2369
  %v2371 = vpop.f32.mrf.mxu0
  %v2372 = vadd.f32 %v2259, %v2371
  %v2373 = vpop.f32.mrf.mxu0
  %v2374 = vadd.f32 %v2261, %v2373
  %v2375 = vpop.f32.mrf.mxu0
  %v2376 = vadd.f32 %v2263, %v2375
  %2377 = vmatprep.mubr.bf16.mxu0 %v1722
  %2378 = vmatmul.mubr.bf16.gmra.mxu0 %v644
  %v2379 = vpop.f32.mrf.mxu0
  %v2380 = vadd.f32 %v2267, %v2379
  %v2381 = vpop.f32.mrf.mxu0
  %v2382 = vadd.f32 %v2269, %v2381
  %v2383 = vpop.f32.mrf.mxu0
  %v2384 = vadd.f32 %v2271, %v2383
  %v2385 = vpop.f32.mrf.mxu0
  %v2386 = vadd.f32 %v2273, %v2385
  %2387 = vmatprep.mubr.bf16.mxu0 %v1725
  %2388 = vmatmul.mubr.bf16.gmra.mxu0 %v656
  %v2389 = vpop.f32.mrf.mxu0
  %v2390 = vadd.f32 %v2277, %v2389
  %v2391 = vpop.f32.mrf.mxu0
  %v2392 = vadd.f32 %v2279, %v2391
  %v2393 = vpop.f32.mrf.mxu0
  %v2394 = vadd.f32 %v2281, %v2393
  %v2395 = vpop.f32.mrf.mxu0
  %v2396 = vadd.f32 %v2283, %v2395
  %2397 = vmatprep.mubr.bf16.mxu0 %v1728
  %2398 = vmatmul.mubr.bf16.gmra.mxu0 %v668
  %v2399 = vpop.f32.mrf.mxu0
  %v2400 = vadd.f32 %v2287, %v2399
  %v2401 = vpop.f32.mrf.mxu0
  %v2402 = vadd.f32 %v2289, %v2401
  %v2403 = vpop.f32.mrf.mxu0
  %v2404 = vadd.f32 %v2291, %v2403
  %v2405 = vpop.f32.mrf.mxu0
  %v2406 = vadd.f32 %v2293, %v2405
  %2407 = vmatprep.mubr.bf16.mxu0 %v1731
  %2408 = vmatmul.mubr.bf16.gmra.mxu0 %v680
  %v2409 = vpop.f32.mrf.mxu0
  %v2410 = vadd.f32 %v2297, %v2409
  %v2411 = vpop.f32.mrf.mxu0
  %v2412 = vadd.f32 %v2299, %v2411
  %v2413 = vpop.f32.mrf.mxu0
  %v2414 = vadd.f32 %v2301, %v2413
  %v2415 = vpop.f32.mrf.mxu0
  %v2416 = vadd.f32 %v2303, %v2415
  %2417 = vdwg.mxu0
  %2418 = vst [vmem:[%s2] sm:$0xff] %v2340
  %vm2419 = vcmask 588800
  %2420 = vst.msk [vmem:[%s2 + $0x8] sm:$0xff] %vm2419, %v2342
  %2421 = vst [vmem:[%s2 + $0x10] sm:$0xff] %v2344
  %2422 = vst.msk [vmem:[%s2 + $0x18] sm:$0xff] %vm2419, %v2346
  %2423 = vst [vmem:[%s2 + $0x20] sm:$0xff] %v2350
  %2424 = vst.msk [vmem:[%s2 + $0x28] sm:$0xff] %vm2419, %v2352
  %2425 = vst [vmem:[%s2 + $0x30] sm:$0xff] %v2354
  %2426 = vst.msk [vmem:[%s2 + $0x38] sm:$0xff] %vm2419, %v2356
  %2427 = vst [vmem:[%s2 + $0x40] sm:$0xff] %v2360
  %2428 = vst.msk [vmem:[%s2 + $0x48] sm:$0xff] %vm2419, %v2362
  %2429 = vst [vmem:[%s2 + $0x50] sm:$0xff] %v2364
  %2430 = vst.msk [vmem:[%s2 + $0x58] sm:$0xff] %vm2419, %v2366
  %2431 = vst [vmem:[%s2 + $0x60] sm:$0xff] %v2370
  %2432 = vst.msk [vmem:[%s2 + $0x68] sm:$0xff] %vm2419, %v2372
  %2433 = vst [vmem:[%s2 + $0x70] sm:$0xff] %v2374
  %2434 = vst.msk [vmem:[%s2 + $0x78] sm:$0xff] %vm2419, %v2376
  %2435 = vst [vmem:[%s2 + $0x80] sm:$0xff] %v2380
  %2436 = vst.msk [vmem:[%s2 + $0x88] sm:$0xff] %vm2419, %v2382
  %2437 = vst [vmem:[%s2 + $0x90] sm:$0xff] %v2384
  %2438 = vst.msk [vmem:[%s2 + $0x98] sm:$0xff] %vm2419, %v2386
  %2439 = vst [vmem:[%s2 + $0xa0] sm:$0xff] %v2390
  %2440 = vst.msk [vmem:[%s2 + $0xa8] sm:$0xff] %vm2419, %v2392
  %2441 = vst [vmem:[%s2 + $0xb0] sm:$0xff] %v2394
  %2442 = vst.msk [vmem:[%s2 + $0xb8] sm:$0xff] %vm2419, %v2396
  %2443 = vst [vmem:[%s2 + $0xc0] sm:$0xff] %v2400
  %2444 = vst.msk [vmem:[%s2 + $0xc8] sm:$0xff] %vm2419, %v2402
  %2445 = vst [vmem:[%s2 + $0xd0] sm:$0xff] %v2404
  %2446 = vst.msk [vmem:[%s2 + $0xd8] sm:$0xff] %vm2419, %v2406
  %2447 = vst [vmem:[%s2 + $0xe0] sm:$0xff] %v2410
  %2448 = vst.msk [vmem:[%s2 + $0xe8] sm:$0xff] %vm2419, %v2412
  %2449 = vst [vmem:[%s2 + $0xf0] sm:$0xff] %v2414
  %2450 = vst.msk [vmem:[%s2 + $0xf8] sm:$0xff] %vm2419, %v2416
  %v2451 = vadd.f32 %v2340, %v2344
  %v2452 = vadd.f32 %v2451, %v2350
  %v2453 = vadd.f32 %v2452, %v2354
  %v2454 = vadd.f32 %v2453, %v2360
  %v2455 = vadd.f32 %v2454, %v2364
  %v2456 = vadd.f32 %v2455, %v2370
  %v2457 = vadd.f32 %v2456, %v2374
  %v2458 = vadd.f32 %v2457, %v2380
  %v2459 = vadd.f32 %v2458, %v2384
  %v2460 = vadd.f32 %v2459, %v2390
  %v2461 = vadd.f32 %v2460, %v2394
  %v2462 = vadd.f32 %v2461, %v2400
  %v2463 = vadd.f32 %v2462, %v2404
  %v2464 = vadd.f32 %v2463, %v2410
  %v2465 = vadd.f32 %v2464, %v2414
  %v2466 = vrot.slane %v2465, 4
  %v2467 = vadd.f32 %v2465, %v2466
  %v2468 = vrot.slane %v2467, 2
  %v2469 = vadd.f32 %v2467, %v2468
  %v2470 = vrot.slane %v2469, 1
  %v2471 = vadd.f32 %v2469, %v2470
  %v2472 = vsel %vm2419, %v2342, 0.0
  %v2473 = vsel %vm2419, %v2346, 0.0
  %v2474 = vadd.f32 %v2472, %v2473
  %v2475 = vsel %vm2419, %v2352, 0.0
  %v2476 = vadd.f32 %v2474, %v2475
  %v2477 = vsel %vm2419, %v2356, 0.0
  %v2478 = vadd.f32 %v2476, %v2477
  %v2479 = vsel %vm2419, %v2362, 0.0
  %v2480 = vadd.f32 %v2478, %v2479
  %v2481 = vsel %vm2419, %v2366, 0.0
  %v2482 = vadd.f32 %v2480, %v2481
  %v2483 = vsel %vm2419, %v2372, 0.0
  %v2484 = vadd.f32 %v2482, %v2483
  %v2485 = vsel %vm2419, %v2376, 0.0
  %v2486 = vadd.f32 %v2484, %v2485
  %v2487 = vsel %vm2419, %v2382, 0.0
  %v2488 = vadd.f32 %v2486, %v2487
  %v2489 = vsel %vm2419, %v2386, 0.0
  %v2490 = vadd.f32 %v2488, %v2489
  %v2491 = vsel %vm2419, %v2392, 0.0
  %v2492 = vadd.f32 %v2490, %v2491
  %v2493 = vsel %vm2419, %v2396, 0.0
  %v2494 = vadd.f32 %v2492, %v2493
  %v2495 = vsel %vm2419, %v2402, 0.0
  %v2496 = vadd.f32 %v2494, %v2495
  %v2497 = vsel %vm2419, %v2406, 0.0
  %v2498 = vadd.f32 %v2496, %v2497
  %v2499 = vsel %vm2419, %v2412, 0.0
  %v2500 = vadd.f32 %v2498, %v2499
  %v2501 = vsel %vm2419, %v2416, 0.0
  %v2502 = vadd.f32 %v2500, %v2501
  %v2503 = vrot.slane %v2502, 4
  %v2504 = vadd.f32 %v2502, %v2503
  %v2505 = vrot.slane %v2504, 2
  %v2506 = vadd.f32 %v2504, %v2505
  %v2507 = vrot.slane %v2506, 1
  %v2508 = vadd.f32 %v2506, %v2507
  %v2509 = vmul.f32 %v2340, %v2340
  %v2510 = vmul.f32 %v2342, %v2342
  %v2511 = vmul.f32 %v2344, %v2344
  %v2512 = vmul.f32 %v2346, %v2346
  %v2513 = vmul.f32 %v2350, %v2350
  %v2514 = vmul.f32 %v2352, %v2352
  %v2515 = vmul.f32 %v2354, %v2354
  %v2516 = vmul.f32 %v2356, %v2356
  %v2517 = vmul.f32 %v2360, %v2360
  %v2518 = vmul.f32 %v2362, %v2362
  %v2519 = vmul.f32 %v2364, %v2364
  %v2520 = vmul.f32 %v2366, %v2366
  %v2521 = vmul.f32 %v2370, %v2370
  %v2522 = vmul.f32 %v2372, %v2372
  %v2523 = vmul.f32 %v2374, %v2374
  %v2524 = vmul.f32 %v2376, %v2376
  %v2525 = vmul.f32 %v2380, %v2380
  %v2526 = vmul.f32 %v2382, %v2382
  %v2527 = vmul.f32 %v2384, %v2384
  %v2528 = vmul.f32 %v2386, %v2386
  %v2529 = vmul.f32 %v2390, %v2390
  %v2530 = vmul.f32 %v2392, %v2392
  %v2531 = vmul.f32 %v2394, %v2394
  %v2532 = vmul.f32 %v2396, %v2396
  %v2533 = vmul.f32 %v2400, %v2400
  %v2534 = vmul.f32 %v2402, %v2402
  %v2535 = vmul.f32 %v2404, %v2404
  %v2536 = vmul.f32 %v2406, %v2406
  %v2537 = vmul.f32 %v2410, %v2410
  %v2538 = vmul.f32 %v2412, %v2412
  %v2539 = vmul.f32 %v2414, %v2414
  %v2540 = vmul.f32 %v2416, %v2416
  %v2541 = vadd.f32 %v2509, %v2511
  %v2542 = vadd.f32 %v2541, %v2513
  %v2543 = vadd.f32 %v2542, %v2515
  %v2544 = vadd.f32 %v2543, %v2517
  %v2545 = vadd.f32 %v2544, %v2519
  %v2546 = vadd.f32 %v2545, %v2521
  %v2547 = vadd.f32 %v2546, %v2523
  %v2548 = vadd.f32 %v2547, %v2525
  %v2549 = vadd.f32 %v2548, %v2527
  %v2550 = vadd.f32 %v2549, %v2529
  %v2551 = vadd.f32 %v2550, %v2531
  %v2552 = vadd.f32 %v2551, %v2533
  %v2553 = vadd.f32 %v2552, %v2535
  %v2554 = vadd.f32 %v2553, %v2537
  %v2555 = vadd.f32 %v2554, %v2539
  %v2556 = vrot.slane %v2555, 4
  %v2557 = vadd.f32 %v2555, %v2556
  %v2558 = vrot.slane %v2557, 2
  %v2559 = vadd.f32 %v2557, %v2558
  %v2560 = vrot.slane %v2559, 1
  %v2561 = vadd.f32 %v2559, %v2560
  %v2562 = vsel %vm2419, %v2510, 0.0
  %v2563 = vsel %vm2419, %v2512, 0.0
  %v2564 = vadd.f32 %v2562, %v2563
  %v2565 = vsel %vm2419, %v2514, 0.0
  %v2566 = vadd.f32 %v2564, %v2565
  %v2567 = vsel %vm2419, %v2516, 0.0
  %v2568 = vadd.f32 %v2566, %v2567
  %v2569 = vsel %vm2419, %v2518, 0.0
  %v2570 = vadd.f32 %v2568, %v2569
  %v2571 = vsel %vm2419, %v2520, 0.0
  %v2572 = vadd.f32 %v2570, %v2571
  %v2573 = vsel %vm2419, %v2522, 0.0
  %v2574 = vadd.f32 %v2572, %v2573
  %v2575 = vsel %vm2419, %v2524, 0.0
  %v2576 = vadd.f32 %v2574, %v2575
  %v2577 = vsel %vm2419, %v2526, 0.0
  %v2578 = vadd.f32 %v2576, %v2577
  %v2579 = vsel %vm2419, %v2528, 0.0
  %v2580 = vadd.f32 %v2578, %v2579
  %v2581 = vsel %vm2419, %v2530, 0.0
  %v2582 = vadd.f32 %v2580, %v2581
  %v2583 = vsel %vm2419, %v2532, 0.0
  %v2584 = vadd.f32 %v2582, %v2583
  %v2585 = vsel %vm2419, %v2534, 0.0
  %v2586 = vadd.f32 %v2584, %v2585
  %v2587 = vsel %vm2419, %v2536, 0.0
  %v2588 = vadd.f32 %v2586, %v2587
  %v2589 = vsel %vm2419, %v2538, 0.0
  %v2590 = vadd.f32 %v2588, %v2589
  %v2591 = vsel %vm2419, %v2540, 0.0
  %v2592 = vadd.f32 %v2590, %v2591
  %v2593 = vrot.slane %v2592, 4
  %v2594 = vadd.f32 %v2592, %v2593
  %v2595 = vrot.slane %v2594, 2
  %v2596 = vadd.f32 %v2594, %v2595
  %v2597 = vrot.slane %v2596, 1
  %v2598 = vadd.f32 %v2596, %v2597
  %vm2599 = vcmask 1040384
  %v2600 = vsel %vm2599, %v2471, %v2561
  %v2601 = vsel %vm2599, %v2508, %v2598
  %v2604 = vcombine.low %v2600, %v2601
  %v2606 = vunpack.c.l.s4 1983009808
  %v2607 = vunpack.c.0.s8 %v2606
  %v2608 = vlaneseq
  %v2609 = vshrl.u32 %v2608, 7
  %v2610 = vsub.s32 %v2607, %v2609
  %v2611 = vrot.slane %v2604, %v2610
  %vm2613 = vcmask 1041408
  %vm2614 = vcmask 584706
  %vm2615 = vmor %vm2614, %vm2613
  %2616 = vst.msk [vmem:[%s3] sm:$0xf] %vm2615, %v2611
  // Predicated region
  $region10: #{eeg_channelnet_encoder.12} parent=0 // pred_check
    _
  $region11: #{eeg_channelnet_encoder.12} parent=0 // pred_check_branch
    %2618 = sbr.rel (0) target = $region13
  $region12: #{eeg_channelnet_encoder.12} parent=0 // pred_region
    _
  $region13: #{eeg_channelnet_encoder.12} parent=0 // pred_fallthru
    _
  // Predicated region
  $region14: #{eeg_channelnet_encoder.12} parent=0 // pred_check
    _
  $region15: #{eeg_channelnet_encoder.12} parent=0 // pred_check_branch
    %2620 = sbr.rel (0) target = $region17
  $region16: #{eeg_channelnet_encoder.12} parent=0 // pred_region
    _
  $region17: #{eeg_channelnet_encoder.12} parent=0 // pred_fallthru
    _
  // Predicated region
  $region18: #{eeg_channelnet_encoder.12} parent=0 // pred_check
    _
  $region19: #{eeg_channelnet_encoder.12} parent=0 // pred_check_branch
    %2622 = sbr.rel (0) target = $region21
  $region20: #{eeg_channelnet_encoder.12} parent=0 // pred_region
    _
  $region21: #{eeg_channelnet_encoder.12} parent=0 // pred_fallthru
    _
  // Predicated region
  $region22: #{eeg_channelnet_encoder.12} parent=0 // pred_check
    _
  $region23: #{eeg_channelnet_encoder.12} parent=0 // pred_check_branch
    %2624 = sbr.rel (0) target = $region25
  $region24: #{eeg_channelnet_encoder.12} parent=0 // pred_region
    _
  $region25: #{eeg_channelnet_encoder.12} parent=0 // pred_fallthru
    _

// kernel: eeg_channelnet_encoder.17
$region0: #{eeg_channelnet_encoder.17}
  #allocation0 [shape = 'u32[]', space=smem, size = 0x4, offset = 0x4, fixed_abs, tag = 'smem constant byte address 0x4 - core index']
  #allocation1 [shape = 'u32[144,128]{1,0:T(1,128)}', space=vmem, size = 0x12000, scoped, tag = 'internal scratch']
  %s0 = inlined_call_operand.vmem [shape: f32[128,200], index: 0, kind: input, shape index: {}]
  %s1 = inlined_call_operand.vmem [shape: f32[2,200], index: 1, kind: input, shape index: {}]
  %s2 = inlined_call_operand.vmem [shape: f32[128,200], index: 2, kind: input, shape index: {}]
  %s3 = inlined_call_operand.vmem [shape: f32[128,200], index: 3, kind: output, shape index: {}]
  %s4 = sld [smem:[#allocation0]]
  $region22: #{eeg_channelnet_encoder.17} parent=0
    _
  %s6 = ssub.s32 1, %s4
  %s7 = scalar_select 0, %s6, %s4
  // Predicated region
  $region2: #{eeg_channelnet_encoder.17} parent=0 // pred_check
    _
  $region3: #{eeg_channelnet_encoder.17} parent=0 // pred_check_branch
    %9 = sbr.rel (0) target = $region5
  $region4: #{eeg_channelnet_encoder.17} parent=0 // pred_region
    _
  $region5: #{eeg_channelnet_encoder.17} parent=0 // pred_fallthru
    _
  // Predicated region
  $region6: #{eeg_channelnet_encoder.17} parent=0 // pred_check
    _
  $region7: #{eeg_channelnet_encoder.17} parent=0 // pred_check_branch
    %11 = sbr.rel (0) target = $region9
  $region8: #{eeg_channelnet_encoder.17} parent=0 // pred_region
    _
  $region9: #{eeg_channelnet_encoder.17} parent=0 // pred_fallthru
    _
  // Predicated region
  $region10: #{eeg_channelnet_encoder.17} parent=0 // pred_check
    _
  $region11: #{eeg_channelnet_encoder.17} parent=0 // pred_check_branch
    %13 = sbr.rel (0) target = $region13
  $region12: #{eeg_channelnet_encoder.17} parent=0 // pred_region
    _
  $region13: #{eeg_channelnet_encoder.17} parent=0 // pred_fallthru
    _
  %v14 = vld [vmem:[%s0] sm:$0xff]
  %v15 = vld [vmem:[%s0 + $0x8] sm:$0xff]
  %v16 = vld [vmem:[%s0 + $0x10] sm:$0xff]
  %v17 = vld [vmem:[%s0 + $0x18] sm:$0xff]
  %v18 = vld [vmem:[%s0 + $0x20] sm:$0xff]
  %v19 = vld [vmem:[%s0 + $0x28] sm:$0xff]
  %v20 = vld [vmem:[%s0 + $0x30] sm:$0xff]
  %v21 = vld [vmem:[%s0 + $0x38] sm:$0xff]
  %v22 = vld [vmem:[%s0 + $0x40] sm:$0xff]
  %v23 = vld [vmem:[%s0 + $0x48] sm:$0xff]
  %v24 = vld [vmem:[%s0 + $0x50] sm:$0xff]
  %v25 = vld [vmem:[%s0 + $0x58] sm:$0xff]
  %v26 = vld [vmem:[%s0 + $0x60] sm:$0xff]
  %v27 = vld [vmem:[%s0 + $0x68] sm:$0xff]
  %v28 = vld [vmem:[%s0 + $0x70] sm:$0xff]
  %v29 = vld [vmem:[%s0 + $0x78] sm:$0xff]
  %v30 = vld [vmem:[%s0 + $0x80] sm:$0xff]
  %v31 = vld [vmem:[%s0 + $0x88] sm:$0xff]
  %v32 = vld [vmem:[%s0 + $0x90] sm:$0xff]
  %v33 = vld [vmem:[%s0 + $0x98] sm:$0xff]
  %v34 = vld [vmem:[%s0 + $0xa0] sm:$0xff]
  %v35 = vld [vmem:[%s0 + $0xa8] sm:$0xff]
  %v36 = vld [vmem:[%s0 + $0xb0] sm:$0xff]
  %v37 = vld [vmem:[%s0 + $0xb8] sm:$0xff]
  %v38 = vld [vmem:[%s0 + $0xc0] sm:$0xff]
  %v39 = vld [vmem:[%s0 + $0xc8] sm:$0xff]
  %v40 = vld [vmem:[%s0 + $0xd0] sm:$0xff]
  %v41 = vld [vmem:[%s0 + $0xd8] sm:$0xff]
  %v42 = vld [vmem:[%s0 + $0xe0] sm:$0xff]
  %v43 = vld [vmem:[%s0 + $0xe8] sm:$0xff]
  %v44 = vld [vmem:[%s0 + $0xf0] sm:$0xff]
  %v45 = vld [vmem:[%s0 + $0xf8] sm:$0xff]
  %v46 = vld [vmem:[%s1] ss:$2 sm:$0x3]
  %v48 = vlaneseq
  %v49 = vshrl.u32 %v48, 7
  %v50 = vsub.s32 0, %v49
  %v51 = vrot.slane %v46, %v50
  %v52 = vlaneseq
  %v53 = vshrl.u32 %v52, 7
  %v54 = vsub.s32 1, %v53
  %v55 = vrot.slane %v46, %v54
  %v58 = vmul.f32 %v14, %v51
  %v59 = vmul.f32 %v15, %v55
  %v60 = vmul.f32 %v16, %v51
  %v61 = vmul.f32 %v17, %v55
  %v62 = vmul.f32 %v18, %v51
  %v63 = vmul.f32 %v19, %v55
  %v64 = vmul.f32 %v20, %v51
  %v65 = vmul.f32 %v21, %v55
  %v66 = vmul.f32 %v22, %v51
  %v67 = vmul.f32 %v23, %v55
  %v68 = vmul.f32 %v24, %v51
  %v69 = vmul.f32 %v25, %v55
  %v70 = vmul.f32 %v26, %v51
  %v71 = vmul.f32 %v27, %v55
  %v72 = vmul.f32 %v28, %v51
  %v73 = vmul.f32 %v29, %v55
  %v74 = vmul.f32 %v30, %v51
  %v75 = vmul.f32 %v31, %v55
  %v76 = vmul.f32 %v32, %v51
  %v77 = vmul.f32 %v33, %v55
  %v78 = vmul.f32 %v34, %v51
  %v79 = vmul.f32 %v35, %v55
  %v80 = vmul.f32 %v36, %v51
  %v81 = vmul.f32 %v37, %v55
  %v82 = vmul.f32 %v38, %v51
  %v83 = vmul.f32 %v39, %v55
  %v84 = vmul.f32 %v40, %v51
  %v85 = vmul.f32 %v41, %v55
  %v86 = vmul.f32 %v42, %v51
  %v87 = vmul.f32 %v43, %v55
  %v88 = vmul.f32 %v44, %v51
  %v89 = vmul.f32 %v45, %v55
  %s90 = scalar_lea.vmem %s1, 1
  %v91 = vld [vmem:[%s90] ss:$2 sm:$0x3]
  %v93 = vlaneseq
  %v94 = vshrl.u32 %v93, 7
  %v95 = vsub.s32 0, %v94
  %v96 = vrot.slane %v91, %v95
  %v97 = vlaneseq
  %v98 = vshrl.u32 %v97, 7
  %v99 = vsub.s32 1, %v98
  %v100 = vrot.slane %v91, %v99
  %v103 = vadd.f32 %v58, %v96
  %v104 = vadd.f32 %v59, %v100
  %v105 = vadd.f32 %v60, %v96
  %v106 = vadd.f32 %v61, %v100
  %v107 = vadd.f32 %v62, %v96
  %v108 = vadd.f32 %v63, %v100
  %v109 = vadd.f32 %v64, %v96
  %v110 = vadd.f32 %v65, %v100
  %v111 = vadd.f32 %v66, %v96
  %v112 = vadd.f32 %v67, %v100
  %v113 = vadd.f32 %v68, %v96
  %v114 = vadd.f32 %v69, %v100
  %v115 = vadd.f32 %v70, %v96
  %v116 = vadd.f32 %v71, %v100
  %v117 = vadd.f32 %v72, %v96
  %v118 = vadd.f32 %v73, %v100
  %v119 = vadd.f32 %v74, %v96
  %v120 = vadd.f32 %v75, %v100
  %v121 = vadd.f32 %v76, %v96
  %v122 = vadd.f32 %v77, %v100
  %v123 = vadd.f32 %v78, %v96
  %v124 = vadd.f32 %v79, %v100
  %v125 = vadd.f32 %v80, %v96
  %v126 = vadd.f32 %v81, %v100
  %v127 = vadd.f32 %v82, %v96
  %v128 = vadd.f32 %v83, %v100
  %v129 = vadd.f32 %v84, %v96
  %v130 = vadd.f32 %v85, %v100
  %v131 = vadd.f32 %v86, %v96
  %v132 = vadd.f32 %v87, %v100
  %v133 = vadd.f32 %v88, %v96
  %v134 = vadd.f32 %v89, %v100
  %v135 = vld [vmem:[%s2] sm:$0xff]
  %v136 = vld [vmem:[%s2 + $0x8] sm:$0xff]
  %v137 = vld [vmem:[%s2 + $0x10] sm:$0xff]
  %v138 = vld [vmem:[%s2 + $0x18] sm:$0xff]
  %v139 = vld [vmem:[%s2 + $0x20] sm:$0xff]
  %v140 = vld [vmem:[%s2 + $0x28] sm:$0xff]
  %v141 = vld [vmem:[%s2 + $0x30] sm:$0xff]
  %v142 = vld [vmem:[%s2 + $0x38] sm:$0xff]
  %v143 = vld [vmem:[%s2 + $0x40] sm:$0xff]
  %v144 = vld [vmem:[%s2 + $0x48] sm:$0xff]
  %v145 = vld [vmem:[%s2 + $0x50] sm:$0xff]
  %v146 = vld [vmem:[%s2 + $0x58] sm:$0xff]
  %v147 = vld [vmem:[%s2 + $0x60] sm:$0xff]
  %v148 = vld [vmem:[%s2 + $0x68] sm:$0xff]
  %v149 = vld [vmem:[%s2 + $0x70] sm:$0xff]
  %v150 = vld [vmem:[%s2 + $0x78] sm:$0xff]
  %v151 = vld [vmem:[%s2 + $0x80] sm:$0xff]
  %v152 = vld [vmem:[%s2 + $0x88] sm:$0xff]
  %v153 = vld [vmem:[%s2 + $0x90] sm:$0xff]
  %v154 = vld [vmem:[%s2 + $0x98] sm:$0xff]
  %v155 = vld [vmem:[%s2 + $0xa0] sm:$0xff]
  %v156 = vld [vmem:[%s2 + $0xa8] sm:$0xff]
  %v157 = vld [vmem:[%s2 + $0xb0] sm:$0xff]
  %v158 = vld [vmem:[%s2 + $0xb8] sm:$0xff]
  %v159 = vld [vmem:[%s2 + $0xc0] sm:$0xff]
  %v160 = vld [vmem:[%s2 + $0xc8] sm:$0xff]
  %v161 = vld [vmem:[%s2 + $0xd0] sm:$0xff]
  %v162 = vld [vmem:[%s2 + $0xd8] sm:$0xff]
  %v163 = vld [vmem:[%s2 + $0xe0] sm:$0xff]
  %v164 = vld [vmem:[%s2 + $0xe8] sm:$0xff]
  %v165 = vld [vmem:[%s2 + $0xf0] sm:$0xff]
  %v166 = vld [vmem:[%s2 + $0xf8] sm:$0xff]
  %v167 = vadd.f32 %v103, %v135
  %v168 = vadd.f32 %v104, %v136
  %v169 = vadd.f32 %v105, %v137
  %v170 = vadd.f32 %v106, %v138
  %v171 = vadd.f32 %v107, %v139
  %v172 = vadd.f32 %v108, %v140
  %v173 = vadd.f32 %v109, %v141
  %v174 = vadd.f32 %v110, %v142
  %v175 = vadd.f32 %v111, %v143
  %v176 = vadd.f32 %v112, %v144
  %v177 = vadd.f32 %v113, %v145
  %v178 = vadd.f32 %v114, %v146
  %v179 = vadd.f32 %v115, %v147
  %v180 = vadd.f32 %v116, %v148
  %v181 = vadd.f32 %v117, %v149
  %v182 = vadd.f32 %v118, %v150
  %v183 = vadd.f32 %v119, %v151
  %v184 = vadd.f32 %v120, %v152
  %v185 = vadd.f32 %v121, %v153
  %v186 = vadd.f32 %v122, %v154
  %v187 = vadd.f32 %v123, %v155
  %v188 = vadd.f32 %v124, %v156
  %v189 = vadd.f32 %v125, %v157
  %v190 = vadd.f32 %v126, %v158
  %v191 = vadd.f32 %v127, %v159
  %v192 = vadd.f32 %v128, %v160
  %v193 = vadd.f32 %v129, %v161
  %v194 = vadd.f32 %v130, %v162
  %v195 = vadd.f32 %v131, %v163
  %v196 = vadd.f32 %v132, %v164
  %v197 = vadd.f32 %v133, %v165
  %v198 = vadd.f32 %v134, %v166
  %v199 = vmax.f32 %v167, 0.0
  %v200 = vmax.f32 %v168, 0.0
  %v201 = vmax.f32 %v169, 0.0
  %v202 = vmax.f32 %v170, 0.0
  %v203 = vmax.f32 %v171, 0.0
  %v204 = vmax.f32 %v172, 0.0
  %v205 = vmax.f32 %v173, 0.0
  %v206 = vmax.f32 %v174, 0.0
  %v207 = vmax.f32 %v175, 0.0
  %v208 = vmax.f32 %v176, 0.0
  %v209 = vmax.f32 %v177, 0.0
  %v210 = vmax.f32 %v178, 0.0
  %v211 = vmax.f32 %v179, 0.0
  %v212 = vmax.f32 %v180, 0.0
  %v213 = vmax.f32 %v181, 0.0
  %v214 = vmax.f32 %v182, 0.0
  %v215 = vmax.f32 %v183, 0.0
  %v216 = vmax.f32 %v184, 0.0
  %v217 = vmax.f32 %v185, 0.0
  %v218 = vmax.f32 %v186, 0.0
  %v219 = vmax.f32 %v187, 0.0
  %v220 = vmax.f32 %v188, 0.0
  %v221 = vmax.f32 %v189, 0.0
  %v222 = vmax.f32 %v190, 0.0
  %v223 = vmax.f32 %v191, 0.0
  %v224 = vmax.f32 %v192, 0.0
  %v225 = vmax.f32 %v193, 0.0
  %v226 = vmax.f32 %v194, 0.0
  %v227 = vmax.f32 %v195, 0.0
  %v228 = vmax.f32 %v196, 0.0
  %v229 = vmax.f32 %v197, 0.0
  %v230 = vmax.f32 %v198, 0.0
  %231 = vst [vmem:[%s3] sm:$0xff] %v199
  %vm232 = vcmask 588800
  %233 = vst.msk [vmem:[%s3 + $0x8] sm:$0xff] %vm232, %v200
  %234 = vst [vmem:[%s3 + $0x10] sm:$0xff] %v201
  %235 = vst.msk [vmem:[%s3 + $0x18] sm:$0xff] %vm232, %v202
  %236 = vst [vmem:[%s3 + $0x20] sm:$0xff] %v203
  %237 = vst.msk [vmem:[%s3 + $0x28] sm:$0xff] %vm232, %v204
  %238 = vst [vmem:[%s3 + $0x30] sm:$0xff] %v205
  %239 = vst.msk [vmem:[%s3 + $0x38] sm:$0xff] %vm232, %v206
  %240 = vst [vmem:[%s3 + $0x40] sm:$0xff] %v207
  %241 = vst.msk [vmem:[%s3 + $0x48] sm:$0xff] %vm232, %v208
  %242 = vst [vmem:[%s3 + $0x50] sm:$0xff] %v209
  %243 = vst.msk [vmem:[%s3 + $0x58] sm:$0xff] %vm232, %v210
  %244 = vst [vmem:[%s3 + $0x60] sm:$0xff] %v211
  %245 = vst.msk [vmem:[%s3 + $0x68] sm:$0xff] %vm232, %v212
  %246 = vst [vmem:[%s3 + $0x70] sm:$0xff] %v213
  %247 = vst.msk [vmem:[%s3 + $0x78] sm:$0xff] %vm232, %v214
  %248 = vst [vmem:[%s3 + $0x80] sm:$0xff] %v215
  %249 = vst.msk [vmem:[%s3 + $0x88] sm:$0xff] %vm232, %v216
  %250 = vst [vmem:[%s3 + $0x90] sm:$0xff] %v217
  %251 = vst.msk [vmem:[%s3 + $0x98] sm:$0xff] %vm232, %v218
  %252 = vst [vmem:[%s3 + $0xa0] sm:$0xff] %v219
  %253 = vst.msk [vmem:[%s3 + $0xa8] sm:$0xff] %vm232, %v220
  %254 = vst [vmem:[%s3 + $0xb0] sm:$0xff] %v221
  %255 = vst.msk [vmem:[%s3 + $0xb8] sm:$0xff] %vm232, %v222
  %256 = vst [vmem:[%s3 + $0xc0] sm:$0xff] %v223
  %257 = vst.msk [vmem:[%s3 + $0xc8] sm:$0xff] %vm232, %v224
  %258 = vst [vmem:[%s3 + $0xd0] sm:$0xff] %v225
  %259 = vst.msk [vmem:[%s3 + $0xd8] sm:$0xff] %vm232, %v226
  %260 = vst [vmem:[%s3 + $0xe0] sm:$0xff] %v227
  %261 = vst.msk [vmem:[%s3 + $0xe8] sm:$0xff] %vm232, %v228
  %262 = vst [vmem:[%s3 + $0xf0] sm:$0xff] %v229
  %263 = vst.msk [vmem:[%s3 + $0xf8] sm:$0xff] %vm232, %v230
  // Predicated region
  $region14: #{eeg_channelnet_encoder.17} parent=0 // pred_check
    _
  $region15: #{eeg_channelnet_encoder.17} parent=0 // pred_check_branch
    %265 = sbr.rel (0) target = $region17
  $region16: #{eeg_channelnet_encoder.17} parent=0 // pred_region
    _
  $region17: #{eeg_channelnet_encoder.17} parent=0 // pred_fallthru
    _
  // Predicated region
  $region18: #{eeg_channelnet_encoder.17} parent=0 // pred_check
    _
  $region19: #{eeg_channelnet_encoder.17} parent=0 // pred_check_branch
    %267 = sbr.rel (0) target = $region21
  $region20: #{eeg_channelnet_encoder.17} parent=0 // pred_region
    _
  $region21: #{eeg_channelnet_encoder.17} parent=0 // pred_fallthru
    _

// kernel: eeg_channelnet_encoder.14
$region0: #{eeg_channelnet_encoder.14}
  #allocation0 [shape = 'u32[]', space=smem, size = 0x4, offset = 0x4, fixed_abs, tag = 'smem constant byte address 0x4 - core index']
  #allocation1 [shape = 'u32[144,128]{1,0:T(1,128)}', space=vmem, size = 0x12000, scoped, tag = 'internal scratch']
  %s0 = inlined_call_operand.vmem [shape: bf16[128,1800], index: 0, kind: input, shape index: {}]
  %s1 = inlined_call_operand.vmem [shape: bf16[1800,200], index: 1, kind: input, shape index: {}]
  %s2 = inlined_call_operand.vmem [shape: f32[128,200], index: 2, kind: output, shape index: {0}]
  %s3 = inlined_call_operand.vmem [shape: f32[1,2,200], index: 3, kind: output, shape index: {1}]
  %4 = xla_tuple %s2, %s3
  %s5 = sld [smem:[#allocation0]]
  $region26: #{eeg_channelnet_encoder.14} parent=0
    _
  %s7 = ssub.s32 1, %s5
  %s8 = scalar_select 0, %s7, %s5
  // Predicated region
  $region2: #{eeg_channelnet_encoder.14} parent=0 // pred_check
    _
  $region3: #{eeg_channelnet_encoder.14} parent=0 // pred_check_branch
    %10 = sbr.rel (0) target = $region5
  $region4: #{eeg_channelnet_encoder.14} parent=0 // pred_region
    _
  $region5: #{eeg_channelnet_encoder.14} parent=0 // pred_fallthru
    _
  // Predicated region
  $region6: #{eeg_channelnet_encoder.14} parent=0 // pred_check
    _
  $region7: #{eeg_channelnet_encoder.14} parent=0 // pred_check_branch
    %12 = sbr.rel (0) target = $region9
  $region8: #{eeg_channelnet_encoder.14} parent=0 // pred_region
    _
  $region9: #{eeg_channelnet_encoder.14} parent=0 // pred_fallthru
    _
  %v14 = vld [vmem:[%s0] sm:$0xff]
  %v15 = vld [vmem:[%s0 + $0x8] sm:$0xff]
  %v16 = vld [vmem:[%s0 + $0x10] sm:$0xff]
  %v17 = vld [vmem:[%s0 + $0x18] sm:$0xff]
  %v18 = vld [vmem:[%s0 + $0x20] sm:$0xff]
  %v19 = vld [vmem:[%s0 + $0x28] sm:$0xff]
  %v20 = vld [vmem:[%s0 + $0x30] sm:$0xff]
  %v21 = vld [vmem:[%s0 + $0x38] sm:$0xf]
  %v22 = vld [vmem:[%s0 + $0x3c] sm:$0xff]
  %v23 = vld [vmem:[%s0 + $0x44] sm:$0xff]
  %v24 = vld [vmem:[%s0 + $0x4c] sm:$0xff]
  %v25 = vld [vmem:[%s0 + $0x54] sm:$0xff]
  %v26 = vld [vmem:[%s0 + $0x5c] sm:$0xff]
  %v27 = vld [vmem:[%s0 + $0x64] sm:$0xff]
  %v28 = vld [vmem:[%s0 + $0x6c] sm:$0xff]
  %v29 = vld [vmem:[%s0 + $0x74] sm:$0xf]
  %v30 = vld [vmem:[%s0 + $0x78] sm:$0xff]
  %v31 = vld [vmem:[%s0 + $0x80] sm:$0xff]
  %v32 = vld [vmem:[%s0 + $0x88] sm:$0xff]
  %v33 = vld [vmem:[%s0 + $0x90] sm:$0xff]
  %v34 = vld [vmem:[%s0 + $0x98] sm:$0xff]
  %v35 = vld [vmem:[%s0 + $0xa0] sm:$0xff]
  %v36 = vld [vmem:[%s0 + $0xa8] sm:$0xff]
  %v37 = vld [vmem:[%s0 + $0xb0] sm:$0xf]
  %v38 = vld [vmem:[%s0 + $0xb4] sm:$0xff]
  %v39 = vld [vmem:[%s0 + $0xbc] sm:$0xff]
  %v40 = vld [vmem:[%s0 + $0xc4] sm:$0xff]
  %v41 = vld [vmem:[%s0 + $0xcc] sm:$0xff]
  %v42 = vld [vmem:[%s0 + $0xd4] sm:$0xff]
  %v43 = vld [vmem:[%s0 + $0xdc] sm:$0xff]
  %v44 = vld [vmem:[%s0 + $0xe4] sm:$0xff]
  %v45 = vld [vmem:[%s0 + $0xec] sm:$0xf]
  %v46 = vld [vmem:[%s0 + $0xf0] sm:$0xff]
  %v47 = vld [vmem:[%s0 + $0xf8] sm:$0xff]
  %v48 = vld [vmem:[%s0 + $0x100] sm:$0xff]
  %v49 = vld [vmem:[%s0 + $0x108] sm:$0xff]
  %v50 = vld [vmem:[%s0 + $0x110] sm:$0xff]
  %v51 = vld [vmem:[%s0 + $0x118] sm:$0xff]
  %v52 = vld [vmem:[%s0 + $0x120] sm:$0xff]
  %v53 = vld [vmem:[%s0 + $0x128] sm:$0xf]
  %v54 = vld [vmem:[%s0 + $0x12c] sm:$0xff]
  %v55 = vld [vmem:[%s0 + $0x134] sm:$0xff]
  %v56 = vld [vmem:[%s0 + $0x13c] sm:$0xff]
  %v57 = vld [vmem:[%s0 + $0x144] sm:$0xff]
  %v58 = vld [vmem:[%s0 + $0x14c] sm:$0xff]
  %v59 = vld [vmem:[%s0 + $0x154] sm:$0xff]
  %v60 = vld [vmem:[%s0 + $0x15c] sm:$0xff]
  %v61 = vld [vmem:[%s0 + $0x164] sm:$0xf]
  %v62 = vld [vmem:[%s0 + $0x168] sm:$0xff]
  %v63 = vld [vmem:[%s0 + $0x170] sm:$0xff]
  %v64 = vld [vmem:[%s0 + $0x178] sm:$0xff]
  %v65 = vld [vmem:[%s0 + $0x180] sm:$0xff]
  %v66 = vld [vmem:[%s0 + $0x188] sm:$0xff]
  %v67 = vld [vmem:[%s0 + $0x190] sm:$0xff]
  %v68 = vld [vmem:[%s0 + $0x198] sm:$0xff]
  %v69 = vld [vmem:[%s0 + $0x1a0] sm:$0xf]
  %v70 = vld [vmem:[%s0 + $0x1a4] sm:$0xff]
  %v71 = vld [vmem:[%s0 + $0x1ac] sm:$0xff]
  %v72 = vld [vmem:[%s0 + $0x1b4] sm:$0xff]
  %v73 = vld [vmem:[%s0 + $0x1bc] sm:$0xff]
  %v74 = vld [vmem:[%s0 + $0x1c4] sm:$0xff]
  %v75 = vld [vmem:[%s0 + $0x1cc] sm:$0xff]
  %v76 = vld [vmem:[%s0 + $0x1d4] sm:$0xff]
  %v77 = vld [vmem:[%s0 + $0x1dc] sm:$0xf]
  %v78 = vld [vmem:[%s0 + $0x1e0] sm:$0xff]
  %v79 = vld [vmem:[%s0 + $0x1e8] sm:$0xff]
  %v80 = vld [vmem:[%s0 + $0x1f0] sm:$0xff]
  %v81 = vld [vmem:[%s0 + $0x1f8] sm:$0xff]
  %v82 = vld [vmem:[%s0 + $0x200] sm:$0xff]
  %v83 = vld [vmem:[%s0 + $0x208] sm:$0xff]
  %v84 = vld [vmem:[%s0 + $0x210] sm:$0xff]
  %v85 = vld [vmem:[%s0 + $0x218] sm:$0xf]
  %v86 = vld [vmem:[%s0 + $0x21c] sm:$0xff]
  %v87 = vld [vmem:[%s0 + $0x224] sm:$0xff]
  %v88 = vld [vmem:[%s0 + $0x22c] sm:$0xff]
  %v89 = vld [vmem:[%s0 + $0x234] sm:$0xff]
  %v90 = vld [vmem:[%s0 + $0x23c] sm:$0xff]
  %v91 = vld [vmem:[%s0 + $0x244] sm:$0xff]
  %v92 = vld [vmem:[%s0 + $0x24c] sm:$0xff]
  %v93 = vld [vmem:[%s0 + $0x254] sm:$0xf]
  %v94 = vld [vmem:[%s0 + $0x258] sm:$0xff]
  %v95 = vld [vmem:[%s0 + $0x260] sm:$0xff]
  %v96 = vld [vmem:[%s0 + $0x268] sm:$0xff]
  %v97 = vld [vmem:[%s0 + $0x270] sm:$0xff]
  %v98 = vld [vmem:[%s0 + $0x278] sm:$0xff]
  %v99 = vld [vmem:[%s0 + $0x280] sm:$0xff]
  %v100 = vld [vmem:[%s0 + $0x288] sm:$0xff]
  %v101 = vld [vmem:[%s0 + $0x290] sm:$0xf]
  %v102 = vld [vmem:[%s0 + $0x294] sm:$0xff]
  %v103 = vld [vmem:[%s0 + $0x29c] sm:$0xff]
  %v104 = vld [vmem:[%s0 + $0x2a4] sm:$0xff]
  %v105 = vld [vmem:[%s0 + $0x2ac] sm:$0xff]
  %v106 = vld [vmem:[%s0 + $0x2b4] sm:$0xff]
  %v107 = vld [vmem:[%s0 + $0x2bc] sm:$0xff]
  %v108 = vld [vmem:[%s0 + $0x2c4] sm:$0xff]
  %v109 = vld [vmem:[%s0 + $0x2cc] sm:$0xf]
  %v110 = vld [vmem:[%s0 + $0x2d0] sm:$0xff]
  %v111 = vld [vmem:[%s0 + $0x2d8] sm:$0xff]
  %v112 = vld [vmem:[%s0 + $0x2e0] sm:$0xff]
  %v113 = vld [vmem:[%s0 + $0x2e8] sm:$0xff]
  %v114 = vld [vmem:[%s0 + $0x2f0] sm:$0xff]
  %v115 = vld [vmem:[%s0 + $0x2f8] sm:$0xff]
  %v116 = vld [vmem:[%s0 + $0x300] sm:$0xff]
  %v117 = vld [vmem:[%s0 + $0x308] sm:$0xf]
  %v118 = vld [vmem:[%s0 + $0x30c] sm:$0xff]
  %v119 = vld [vmem:[%s0 + $0x314] sm:$0xff]
  %v120 = vld [vmem:[%s0 + $0x31c] sm:$0xff]
  %v121 = vld [vmem:[%s0 + $0x324] sm:$0xff]
  %v122 = vld [vmem:[%s0 + $0x32c] sm:$0xff]
  %v123 = vld [vmem:[%s0 + $0x334] sm:$0xff]
  %v124 = vld [vmem:[%s0 + $0x33c] sm:$0xff]
  %v125 = vld [vmem:[%s0 + $0x344] sm:$0xf]
  %v126 = vld [vmem:[%s0 + $0x348] sm:$0xff]
  %v127 = vld [vmem:[%s0 + $0x350] sm:$0xff]
  %v128 = vld [vmem:[%s0 + $0x358] sm:$0xff]
  %v129 = vld [vmem:[%s0 + $0x360] sm:$0xff]
  %v130 = vld [vmem:[%s0 + $0x368] sm:$0xff]
  %v131 = vld [vmem:[%s0 + $0x370] sm:$0xff]
  %v132 = vld [vmem:[%s0 + $0x378] sm:$0xff]
  %v133 = vld [vmem:[%s0 + $0x380] sm:$0xf]
  %v134 = vld [vmem:[%s0 + $0x384] sm:$0xff]
  %v135 = vld [vmem:[%s0 + $0x38c] sm:$0xff]
  %v136 = vld [vmem:[%s0 + $0x394] sm:$0xff]
  %v137 = vld [vmem:[%s0 + $0x39c] sm:$0xff]
  %v138 = vld [vmem:[%s0 + $0x3a4] sm:$0xff]
  %v139 = vld [vmem:[%s0 + $0x3ac] sm:$0xff]
  %v140 = vld [vmem:[%s0 + $0x3b4] sm:$0xff]
  %v141 = vld [vmem:[%s0 + $0x3bc] sm:$0xf]
  %v142 = vld [vmem:[%s1] sm:$0xff]
  %v143 = vld [vmem:[%s1 + $0x8] sm:$0xff]
  %v144 = vld [vmem:[%s1 + $0x10] sm:$0xff]
  %v145 = vld [vmem:[%s1 + $0x18] sm:$0xff]
  %v146 = vld [vmem:[%s1 + $0x20] sm:$0xff]
  %v147 = vld [vmem:[%s1 + $0x28] sm:$0xff]
  %v148 = vld [vmem:[%s1 + $0x30] sm:$0xff]
  %v149 = vld [vmem:[%s1 + $0x38] sm:$0xff]
  %v150 = vld [vmem:[%s1 + $0x40] sm:$0xff]
  %v151 = vld [vmem:[%s1 + $0x48] sm:$0xff]
  %v152 = vld [vmem:[%s1 + $0x50] sm:$0xff]
  %v153 = vld [vmem:[%s1 + $0x58] sm:$0xff]
  %v154 = vld [vmem:[%s1 + $0x60] sm:$0xff]
  %v155 = vld [vmem:[%s1 + $0x68] sm:$0xff]
  %v156 = vld [vmem:[%s1 + $0x70] sm:$0xff]
  %v157 = vld [vmem:[%s1 + $0x78] sm:$0xff]
  %v158 = vld [vmem:[%s1 + $0x80] sm:$0xff]
  %v159 = vld [vmem:[%s1 + $0x88] sm:$0xff]
  %v160 = vld [vmem:[%s1 + $0x90] sm:$0xff]
  %v161 = vld [vmem:[%s1 + $0x98] sm:$0xff]
  %v162 = vld [vmem:[%s1 + $0xa0] sm:$0xff]
  %v163 = vld [vmem:[%s1 + $0xa8] sm:$0xff]
  %v164 = vld [vmem:[%s1 + $0xb0] sm:$0xff]
  %v165 = vld [vmem:[%s1 + $0xb8] sm:$0xff]
  %v166 = vld [vmem:[%s1 + $0xc0] sm:$0xff]
  %v167 = vld [vmem:[%s1 + $0xc8] sm:$0xff]
  %v168 = vld [vmem:[%s1 + $0xd0] sm:$0xff]
  %v169 = vld [vmem:[%s1 + $0xd8] sm:$0xff]
  %v170 = vld [vmem:[%s1 + $0xe0] sm:$0xff]
  %v171 = vld [vmem:[%s1 + $0xe8] sm:$0xff]
  %v172 = vld [vmem:[%s1 + $0xf0] sm:$0xff]
  %v173 = vld [vmem:[%s1 + $0xf8] sm:$0xff]
  %v174 = vld [vmem:[%s1 + $0x100] sm:$0xff]
  %v175 = vld [vmem:[%s1 + $0x108] sm:$0xff]
  %v176 = vld [vmem:[%s1 + $0x110] sm:$0xff]
  %v177 = vld [vmem:[%s1 + $0x118] sm:$0xff]
  %v178 = vld [vmem:[%s1 + $0x120] sm:$0xff]
  %v179 = vld [vmem:[%s1 + $0x128] sm:$0xff]
  %v180 = vld [vmem:[%s1 + $0x130] sm:$0xff]
  %v181 = vld [vmem:[%s1 + $0x138] sm:$0xff]
  %v182 = vld [vmem:[%s1 + $0x140] sm:$0xff]
  %v183 = vld [vmem:[%s1 + $0x148] sm:$0xff]
  %v184 = vld [vmem:[%s1 + $0x150] sm:$0xff]
  %v185 = vld [vmem:[%s1 + $0x158] sm:$0xff]
  %v186 = vld [vmem:[%s1 + $0x160] sm:$0xff]
  %v187 = vld [vmem:[%s1 + $0x168] sm:$0xff]
  %v188 = vld [vmem:[%s1 + $0x170] sm:$0xff]
  %v189 = vld [vmem:[%s1 + $0x178] sm:$0xff]
  %v190 = vld [vmem:[%s1 + $0x180] sm:$0xff]
  %v191 = vld [vmem:[%s1 + $0x188] sm:$0xff]
  %v192 = vld [vmem:[%s1 + $0x190] sm:$0xff]
  %v193 = vld [vmem:[%s1 + $0x198] sm:$0xff]
  %v194 = vld [vmem:[%s1 + $0x1a0] sm:$0xff]
  %v195 = vld [vmem:[%s1 + $0x1a8] sm:$0xff]
  %v196 = vld [vmem:[%s1 + $0x1b0] sm:$0xff]
  %v197 = vld [vmem:[%s1 + $0x1b8] sm:$0xff]
  %v198 = vld [vmem:[%s1 + $0x1c0] sm:$0xff]
  %v199 = vld [vmem:[%s1 + $0x1c8] sm:$0xff]
  %v200 = vld [vmem:[%s1 + $0x1d0] sm:$0xff]
  %v201 = vld [vmem:[%s1 + $0x1d8] sm:$0xff]
  %v202 = vld [vmem:[%s1 + $0x1e0] sm:$0xff]
  %v203 = vld [vmem:[%s1 + $0x1e8] sm:$0xff]
  %v204 = vld [vmem:[%s1 + $0x1f0] sm:$0xff]
  %v205 = vld [vmem:[%s1 + $0x1f8] sm:$0xff]
  %v206 = vld [vmem:[%s1 + $0x200] sm:$0xff]
  %v207 = vld [vmem:[%s1 + $0x208] sm:$0xff]
  %v208 = vld [vmem:[%s1 + $0x210] sm:$0xff]
  %v209 = vld [vmem:[%s1 + $0x218] sm:$0xff]
  %v210 = vld [vmem:[%s1 + $0x220] sm:$0xff]
  %v211 = vld [vmem:[%s1 + $0x228] sm:$0xff]
  %v212 = vld [vmem:[%s1 + $0x230] sm:$0xff]
  %v213 = vld [vmem:[%s1 + $0x238] sm:$0xff]
  %v214 = vld [vmem:[%s1 + $0x240] sm:$0xff]
  %v215 = vld [vmem:[%s1 + $0x248] sm:$0xff]
  %v216 = vld [vmem:[%s1 + $0x250] sm:$0xff]
  %v217 = vld [vmem:[%s1 + $0x258] sm:$0xff]
  %v218 = vld [vmem:[%s1 + $0x260] sm:$0xff]
  %v219 = vld [vmem:[%s1 + $0x268] sm:$0xff]
  %v220 = vld [vmem:[%s1 + $0x270] sm:$0xff]
  %v221 = vld [vmem:[%s1 + $0x278] sm:$0xff]
  %v222 = vld [vmem:[%s1 + $0x280] sm:$0xff]
  %v223 = vld [vmem:[%s1 + $0x288] sm:$0xff]
  %v224 = vld [vmem:[%s1 + $0x290] sm:$0xff]
  %v225 = vld [vmem:[%s1 + $0x298] sm:$0xff]
  %v226 = vld [vmem:[%s1 + $0x2a0] sm:$0xff]
  %v227 = vld [vmem:[%s1 + $0x2a8] sm:$0xff]
  %v228 = vld [vmem:[%s1 + $0x2b0] sm:$0xff]
  %v229 = vld [vmem:[%s1 + $0x2b8] sm:$0xff]
  %v230 = vld [vmem:[%s1 + $0x2c0] sm:$0xff]
  %v231 = vld [vmem:[%s1 + $0x2c8] sm:$0xff]
  %v232 = vld [vmem:[%s1 + $0x2d0] sm:$0xff]
  %v233 = vld [vmem:[%s1 + $0x2d8] sm:$0xff]
  %v234 = vld [vmem:[%s1 + $0x2e0] sm:$0xff]
  %v235 = vld [vmem:[%s1 + $0x2e8] sm:$0xff]
  %v236 = vld [vmem:[%s1 + $0x2f0] sm:$0xff]
  %v237 = vld [vmem:[%s1 + $0x2f8] sm:$0xff]
  %v238 = vld [vmem:[%s1 + $0x300] sm:$0xff]
  %v239 = vld [vmem:[%s1 + $0x308] sm:$0xff]
  %v240 = vld [vmem:[%s1 + $0x310] sm:$0xff]
  %v241 = vld [vmem:[%s1 + $0x318] sm:$0xff]
  %v242 = vld [vmem:[%s1 + $0x320] sm:$0xff]
  %v243 = vld [vmem:[%s1 + $0x328] sm:$0xff]
  %v244 = vld [vmem:[%s1 + $0x330] sm:$0xff]
  %v245 = vld [vmem:[%s1 + $0x338] sm:$0xff]
  %v246 = vld [vmem:[%s1 + $0x340] sm:$0xff]
  %v247 = vld [vmem:[%s1 + $0x348] sm:$0xff]
  %v248 = vld [vmem:[%s1 + $0x350] sm:$0xff]
  %v249 = vld [vmem:[%s1 + $0x358] sm:$0xff]
  %v250 = vld [vmem:[%s1 + $0x360] sm:$0xff]
  %v251 = vld [vmem:[%s1 + $0x368] sm:$0xff]
  %v252 = vld [vmem:[%s1 + $0x370] sm:$0xff]
  %v253 = vld [vmem:[%s1 + $0x378] sm:$0xff]
  %v254 = vld [vmem:[%s1 + $0x380] sm:$0xff]
  %v255 = vld [vmem:[%s1 + $0x388] sm:$0xff]
  %v256 = vld [vmem:[%s1 + $0x390] sm:$0xff]
  %v257 = vld [vmem:[%s1 + $0x398] sm:$0xff]
  %v258 = vld [vmem:[%s1 + $0x3a0] sm:$0xff]
  %v259 = vld [vmem:[%s1 + $0x3a8] sm:$0xff]
  %v260 = vld [vmem:[%s1 + $0x3b0] sm:$0xff]
  %v261 = vld [vmem:[%s1 + $0x3b8] sm:$0xff]
  %v262 = vld [vmem:[%s1 + $0x3c0] sm:$0xff]
  %v263 = vld [vmem:[%s1 + $0x3c8] sm:$0xff]
  %v264 = vld [vmem:[%s1 + $0x3d0] sm:$0xff]
  %v265 = vld [vmem:[%s1 + $0x3d8] sm:$0xff]
  %v266 = vld [vmem:[%s1 + $0x3e0] sm:$0xff]
  %v267 = vld [vmem:[%s1 + $0x3e8] sm:$0xff]
  %v268 = vld [vmem:[%s1 + $0x3f0] sm:$0xff]
  %v269 = vld [vmem:[%s1 + $0x3f8] sm:$0xff]
  %v270 = vld [vmem:[%s1 + $0x400] sm:$0xff]
  %v271 = vld [vmem:[%s1 + $0x408] sm:$0xff]
  %v272 = vld [vmem:[%s1 + $0x410] sm:$0xff]
  %v273 = vld [vmem:[%s1 + $0x418] sm:$0xff]
  %v274 = vld [vmem:[%s1 + $0x420] sm:$0xff]
  %v275 = vld [vmem:[%s1 + $0x428] sm:$0xff]
  %v276 = vld [vmem:[%s1 + $0x430] sm:$0xff]
  %v277 = vld [vmem:[%s1 + $0x438] sm:$0xff]
  %v278 = vld [vmem:[%s1 + $0x440] sm:$0xff]
  %v279 = vld [vmem:[%s1 + $0x448] sm:$0xff]
  %v280 = vld [vmem:[%s1 + $0x450] sm:$0xff]
  %v281 = vld [vmem:[%s1 + $0x458] sm:$0xff]
  %v282 = vld [vmem:[%s1 + $0x460] sm:$0xff]
  %v283 = vld [vmem:[%s1 + $0x468] sm:$0xff]
  %v284 = vld [vmem:[%s1 + $0x470] sm:$0xff]
  %v285 = vld [vmem:[%s1 + $0x478] sm:$0xff]
  %v286 = vld [vmem:[%s1 + $0x480] sm:$0xff]
  %v287 = vld [vmem:[%s1 + $0x488] sm:$0xff]
  %v288 = vld [vmem:[%s1 + $0x490] sm:$0xff]
  %v289 = vld [vmem:[%s1 + $0x498] sm:$0xff]
  %v290 = vld [vmem:[%s1 + $0x4a0] sm:$0xff]
  %v291 = vld [vmem:[%s1 + $0x4a8] sm:$0xff]
  %v292 = vld [vmem:[%s1 + $0x4b0] sm:$0xff]
  %v293 = vld [vmem:[%s1 + $0x4b8] sm:$0xff]
  %v294 = vld [vmem:[%s1 + $0x4c0] sm:$0xff]
  %v295 = vld [vmem:[%s1 + $0x4c8] sm:$0xff]
  %v296 = vld [vmem:[%s1 + $0x4d0] sm:$0xff]
  %v297 = vld [vmem:[%s1 + $0x4d8] sm:$0xff]
  %v298 = vld [vmem:[%s1 + $0x4e0] sm:$0xff]
  %v299 = vld [vmem:[%s1 + $0x4e8] sm:$0xff]
  %v300 = vld [vmem:[%s1 + $0x4f0] sm:$0xff]
  %v301 = vld [vmem:[%s1 + $0x4f8] sm:$0xff]
  %v302 = vld [vmem:[%s1 + $0x500] sm:$0xff]
  %v303 = vld [vmem:[%s1 + $0x508] sm:$0xff]
  %v304 = vld [vmem:[%s1 + $0x510] sm:$0xff]
  %v305 = vld [vmem:[%s1 + $0x518] sm:$0xff]
  %v306 = vld [vmem:[%s1 + $0x520] sm:$0xff]
  %v307 = vld [vmem:[%s1 + $0x528] sm:$0xff]
  %v308 = vld [vmem:[%s1 + $0x530] sm:$0xff]
  %v309 = vld [vmem:[%s1 + $0x538] sm:$0xff]
  %v310 = vld [vmem:[%s1 + $0x540] sm:$0xff]
  %v311 = vld [vmem:[%s1 + $0x548] sm:$0xff]
  %v312 = vld [vmem:[%s1 + $0x550] sm:$0xff]
  %v313 = vld [vmem:[%s1 + $0x558] sm:$0xff]
  %v314 = vld [vmem:[%s1 + $0x560] sm:$0xff]
  %v315 = vld [vmem:[%s1 + $0x568] sm:$0xff]
  %v316 = vld [vmem:[%s1 + $0x570] sm:$0xff]
  %v317 = vld [vmem:[%s1 + $0x578] sm:$0xff]
  %v318 = vld [vmem:[%s1 + $0x580] sm:$0xff]
  %v319 = vld [vmem:[%s1 + $0x588] sm:$0xff]
  %v320 = vld [vmem:[%s1 + $0x590] sm:$0xff]
  %v321 = vld [vmem:[%s1 + $0x598] sm:$0xff]
  %v322 = vld [vmem:[%s1 + $0x5a0] sm:$0xff]
  %v323 = vld [vmem:[%s1 + $0x5a8] sm:$0xff]
  %v324 = vld [vmem:[%s1 + $0x5b0] sm:$0xff]
  %v325 = vld [vmem:[%s1 + $0x5b8] sm:$0xff]
  %v326 = vld [vmem:[%s1 + $0x5c0] sm:$0xff]
  %v327 = vld [vmem:[%s1 + $0x5c8] sm:$0xff]
  %v328 = vld [vmem:[%s1 + $0x5d0] sm:$0xff]
  %v329 = vld [vmem:[%s1 + $0x5d8] sm:$0xff]
  %v330 = vld [vmem:[%s1 + $0x5e0] sm:$0xff]
  %v331 = vld [vmem:[%s1 + $0x5e8] sm:$0xff]
  %v332 = vld [vmem:[%s1 + $0x5f0] sm:$0xff]
  %v333 = vld [vmem:[%s1 + $0x5f8] sm:$0xff]
  %v334 = vld [vmem:[%s1 + $0x600] sm:$0xff]
  %v335 = vld [vmem:[%s1 + $0x608] sm:$0xff]
  %v336 = vld [vmem:[%s1 + $0x610] sm:$0xff]
  %v337 = vld [vmem:[%s1 + $0x618] sm:$0xff]
  %v338 = vld [vmem:[%s1 + $0x620] sm:$0xff]
  %v339 = vld [vmem:[%s1 + $0x628] sm:$0xff]
  %v340 = vld [vmem:[%s1 + $0x630] sm:$0xff]
  %v341 = vld [vmem:[%s1 + $0x638] sm:$0xff]
  %v342 = vld [vmem:[%s1 + $0x640] sm:$0xff]
  %v343 = vld [vmem:[%s1 + $0x648] sm:$0xff]
  %v344 = vld [vmem:[%s1 + $0x650] sm:$0xff]
  %v345 = vld [vmem:[%s1 + $0x658] sm:$0xff]
  %v346 = vld [vmem:[%s1 + $0x660] sm:$0xff]
  %v347 = vld [vmem:[%s1 + $0x668] sm:$0xff]
  %v348 = vld [vmem:[%s1 + $0x670] sm:$0xff]
  %v349 = vld [vmem:[%s1 + $0x678] sm:$0xff]
  %v350 = vld [vmem:[%s1 + $0x680] sm:$0xff]
  %v351 = vld [vmem:[%s1 + $0x688] sm:$0xff]
  %v352 = vld [vmem:[%s1 + $0x690] sm:$0xff]
  %v353 = vld [vmem:[%s1 + $0x698] sm:$0xff]
  %v354 = vld [vmem:[%s1 + $0x6a0] sm:$0xff]
  %v355 = vld [vmem:[%s1 + $0x6a8] sm:$0xff]
  %v356 = vld [vmem:[%s1 + $0x6b0] sm:$0xff]
  %v357 = vld [vmem:[%s1 + $0x6b8] sm:$0xff]
  %v358 = vld [vmem:[%s1 + $0x6c0] sm:$0xff]
  %v359 = vld [vmem:[%s1 + $0x6c8] sm:$0xff]
  %v360 = vld [vmem:[%s1 + $0x6d0] sm:$0xff]
  %v361 = vld [vmem:[%s1 + $0x6d8] sm:$0xff]
  %v362 = vld [vmem:[%s1 + $0x6e0] sm:$0xff]
  %v363 = vld [vmem:[%s1 + $0x6e8] sm:$0xff]
  %v364 = vld [vmem:[%s1 + $0x6f0] sm:$0xff]
  %v365 = vld [vmem:[%s1 + $0x6f8] sm:$0xff]
  %v366 = vld [vmem:[%s1 + $0x700] sm:$0xff]
  %v495 = vunpack.c.l.b16 %v14
  %v496 = vunpack.c.h.b16 %v14
  %v497 = vunpack.c.l.b16 %v15
  %v498 = vunpack.c.h.b16 %v15
  %v499 = vunpack.c.l.b16 %v16
  %v500 = vunpack.c.h.b16 %v16
  %v501 = vunpack.c.l.b16 %v17
  %v502 = vunpack.c.h.b16 %v17
  %v503 = vunpack.c.l.b16 %v18
  %v504 = vunpack.c.h.b16 %v18
  %v505 = vunpack.c.l.b16 %v19
  %v506 = vunpack.c.h.b16 %v19
  %v507 = vunpack.c.l.b16 %v20
  %v508 = vunpack.c.h.b16 %v20
  %v509 = vunpack.c.l.b16 %v21
  %v510 = vunpack.c.l.b16 %v22
  %v511 = vunpack.c.h.b16 %v22
  %v512 = vunpack.c.l.b16 %v23
  %v513 = vunpack.c.h.b16 %v23
  %v514 = vunpack.c.l.b16 %v24
  %v515 = vunpack.c.h.b16 %v24
  %v516 = vunpack.c.l.b16 %v25
  %v517 = vunpack.c.h.b16 %v25
  %v518 = vunpack.c.l.b16 %v26
  %v519 = vunpack.c.h.b16 %v26
  %v520 = vunpack.c.l.b16 %v27
  %v521 = vunpack.c.h.b16 %v27
  %v522 = vunpack.c.l.b16 %v28
  %v523 = vunpack.c.h.b16 %v28
  %v524 = vunpack.c.l.b16 %v29
  %v525 = vunpack.c.l.b16 %v30
  %v526 = vunpack.c.h.b16 %v30
  %v527 = vunpack.c.l.b16 %v31
  %v528 = vunpack.c.h.b16 %v31
  %v529 = vunpack.c.l.b16 %v32
  %v530 = vunpack.c.h.b16 %v32
  %v531 = vunpack.c.l.b16 %v33
  %v532 = vunpack.c.h.b16 %v33
  %v533 = vunpack.c.l.b16 %v34
  %v534 = vunpack.c.h.b16 %v34
  %v535 = vunpack.c.l.b16 %v35
  %v536 = vunpack.c.h.b16 %v35
  %v537 = vunpack.c.l.b16 %v36
  %v538 = vunpack.c.h.b16 %v36
  %v539 = vunpack.c.l.b16 %v37
  %v540 = vunpack.c.l.b16 %v38
  %v541 = vunpack.c.h.b16 %v38
  %v542 = vunpack.c.l.b16 %v39
  %v543 = vunpack.c.h.b16 %v39
  %v544 = vunpack.c.l.b16 %v40
  %v545 = vunpack.c.h.b16 %v40
  %v546 = vunpack.c.l.b16 %v41
  %v547 = vunpack.c.h.b16 %v41
  %v548 = vunpack.c.l.b16 %v42
  %v549 = vunpack.c.h.b16 %v42
  %v550 = vunpack.c.l.b16 %v43
  %v551 = vunpack.c.h.b16 %v43
  %v552 = vunpack.c.l.b16 %v44
  %v553 = vunpack.c.h.b16 %v44
  %v554 = vunpack.c.l.b16 %v45
  %v555 = vunpack.c.l.b16 %v46
  %v556 = vunpack.c.h.b16 %v46
  %v557 = vunpack.c.l.b16 %v47
  %v558 = vunpack.c.h.b16 %v47
  %v559 = vunpack.c.l.b16 %v48
  %v560 = vunpack.c.h.b16 %v48
  %v561 = vunpack.c.l.b16 %v49
  %v562 = vunpack.c.h.b16 %v49
  %v563 = vunpack.c.l.b16 %v50
  %v564 = vunpack.c.h.b16 %v50
  %v565 = vunpack.c.l.b16 %v51
  %v566 = vunpack.c.h.b16 %v51
  %v567 = vunpack.c.l.b16 %v52
  %v568 = vunpack.c.h.b16 %v52
  %v569 = vunpack.c.l.b16 %v53
  %v570 = vunpack.c.l.b16 %v54
  %v571 = vunpack.c.h.b16 %v54
  %v572 = vunpack.c.l.b16 %v55
  %v573 = vunpack.c.h.b16 %v55
  %v574 = vunpack.c.l.b16 %v56
  %v575 = vunpack.c.h.b16 %v56
  %v576 = vunpack.c.l.b16 %v57
  %v577 = vunpack.c.h.b16 %v57
  %v578 = vunpack.c.l.b16 %v58
  %v579 = vunpack.c.h.b16 %v58
  %v580 = vunpack.c.l.b16 %v59
  %v581 = vunpack.c.h.b16 %v59
  %v582 = vunpack.c.l.b16 %v60
  %v583 = vunpack.c.h.b16 %v60
  %v584 = vunpack.c.l.b16 %v61
  %v585 = vunpack.c.l.b16 %v62
  %v586 = vunpack.c.h.b16 %v62
  %v587 = vunpack.c.l.b16 %v63
  %v588 = vunpack.c.h.b16 %v63
  %v589 = vunpack.c.l.b16 %v64
  %v590 = vunpack.c.h.b16 %v64
  %v591 = vunpack.c.l.b16 %v65
  %v592 = vunpack.c.h.b16 %v65
  %v593 = vunpack.c.l.b16 %v66
  %v594 = vunpack.c.h.b16 %v66
  %v595 = vunpack.c.l.b16 %v67
  %v596 = vunpack.c.h.b16 %v67
  %v597 = vunpack.c.l.b16 %v68
  %v598 = vunpack.c.h.b16 %v68
  %v599 = vunpack.c.l.b16 %v69
  %v600 = vunpack.c.l.b16 %v70
  %v601 = vunpack.c.h.b16 %v70
  %v602 = vunpack.c.l.b16 %v71
  %v603 = vunpack.c.h.b16 %v71
  %v604 = vunpack.c.l.b16 %v72
  %v605 = vunpack.c.h.b16 %v72
  %v606 = vunpack.c.l.b16 %v73
  %v607 = vunpack.c.h.b16 %v73
  %v608 = vunpack.c.l.b16 %v74
  %v609 = vunpack.c.h.b16 %v74
  %v610 = vunpack.c.l.b16 %v75
  %v611 = vunpack.c.h.b16 %v75
  %v612 = vunpack.c.l.b16 %v76
  %v613 = vunpack.c.h.b16 %v76
  %v614 = vunpack.c.l.b16 %v77
  %v615 = vunpack.c.l.b16 %v78
  %v616 = vunpack.c.h.b16 %v78
  %v617 = vunpack.c.l.b16 %v79
  %v618 = vunpack.c.h.b16 %v79
  %v619 = vunpack.c.l.b16 %v80
  %v620 = vunpack.c.h.b16 %v80
  %v621 = vunpack.c.l.b16 %v81
  %v622 = vunpack.c.h.b16 %v81
  %v623 = vunpack.c.l.b16 %v82
  %v624 = vunpack.c.h.b16 %v82
  %v625 = vunpack.c.l.b16 %v83
  %v626 = vunpack.c.h.b16 %v83
  %v627 = vunpack.c.l.b16 %v84
  %v628 = vunpack.c.h.b16 %v84
  %v629 = vunpack.c.l.b16 %v85
  %v630 = vunpack.c.l.b16 %v86
  %v631 = vunpack.c.h.b16 %v86
  %v632 = vunpack.c.l.b16 %v87
  %v633 = vunpack.c.h.b16 %v87
  %v634 = vunpack.c.l.b16 %v88
  %v635 = vunpack.c.h.b16 %v88
  %v636 = vunpack.c.l.b16 %v89
  %v637 = vunpack.c.h.b16 %v89
  %v638 = vunpack.c.l.b16 %v90
  %v639 = vunpack.c.h.b16 %v90
  %v640 = vunpack.c.l.b16 %v91
  %v641 = vunpack.c.h.b16 %v91
  %v642 = vunpack.c.l.b16 %v92
  %v643 = vunpack.c.h.b16 %v92
  %v644 = vunpack.c.l.b16 %v93
  %v645 = vunpack.c.l.b16 %v94
  %v646 = vunpack.c.h.b16 %v94
  %v647 = vunpack.c.l.b16 %v95
  %v648 = vunpack.c.h.b16 %v95
  %v649 = vunpack.c.l.b16 %v96
  %v650 = vunpack.c.h.b16 %v96
  %v651 = vunpack.c.l.b16 %v97
  %v652 = vunpack.c.h.b16 %v97
  %v653 = vunpack.c.l.b16 %v98
  %v654 = vunpack.c.h.b16 %v98
  %v655 = vunpack.c.l.b16 %v99
  %v656 = vunpack.c.h.b16 %v99
  %v657 = vunpack.c.l.b16 %v100
  %v658 = vunpack.c.h.b16 %v100
  %v659 = vunpack.c.l.b16 %v101
  %v660 = vunpack.c.l.b16 %v102
  %v661 = vunpack.c.h.b16 %v102
  %v662 = vunpack.c.l.b16 %v103
  %v663 = vunpack.c.h.b16 %v103
  %v664 = vunpack.c.l.b16 %v104
  %v665 = vunpack.c.h.b16 %v104
  %v666 = vunpack.c.l.b16 %v105
  %v667 = vunpack.c.h.b16 %v105
  %v668 = vunpack.c.l.b16 %v106
  %v669 = vunpack.c.h.b16 %v106
  %v670 = vunpack.c.l.b16 %v107
  %v671 = vunpack.c.h.b16 %v107
  %v672 = vunpack.c.l.b16 %v108
  %v673 = vunpack.c.h.b16 %v108
  %v674 = vunpack.c.l.b16 %v109
  %v675 = vunpack.c.l.b16 %v110
  %v676 = vunpack.c.h.b16 %v110
  %v677 = vunpack.c.l.b16 %v111
  %v678 = vunpack.c.h.b16 %v111
  %v679 = vunpack.c.l.b16 %v112
  %v680 = vunpack.c.h.b16 %v112
  %v681 = vunpack.c.l.b16 %v113
  %v682 = vunpack.c.h.b16 %v113
  %v683 = vunpack.c.l.b16 %v114
  %v684 = vunpack.c.h.b16 %v114
  %v685 = vunpack.c.l.b16 %v115
  %v686 = vunpack.c.h.b16 %v115
  %v687 = vunpack.c.l.b16 %v116
  %v688 = vunpack.c.h.b16 %v116
  %v689 = vunpack.c.l.b16 %v117
  %v690 = vunpack.c.l.b16 %v118
  %v691 = vunpack.c.h.b16 %v118
  %v692 = vunpack.c.l.b16 %v119
  %v693 = vunpack.c.h.b16 %v119
  %v694 = vunpack.c.l.b16 %v120
  %v695 = vunpack.c.h.b16 %v120
  %v696 = vunpack.c.l.b16 %v121
  %v697 = vunpack.c.h.b16 %v121
  %v698 = vunpack.c.l.b16 %v122
  %v699 = vunpack.c.h.b16 %v122
  %v700 = vunpack.c.l.b16 %v123
  %v701 = vunpack.c.h.b16 %v123
  %v702 = vunpack.c.l.b16 %v124
  %v703 = vunpack.c.h.b16 %v124
  %v704 = vunpack.c.l.b16 %v125
  %v705 = vunpack.c.l.b16 %v126
  %v706 = vunpack.c.h.b16 %v126
  %v707 = vunpack.c.l.b16 %v127
  %v708 = vunpack.c.h.b16 %v127
  %v709 = vunpack.c.l.b16 %v128
  %v710 = vunpack.c.h.b16 %v128
  %v711 = vunpack.c.l.b16 %v129
  %v712 = vunpack.c.h.b16 %v129
  %v713 = vunpack.c.l.b16 %v130
  %v714 = vunpack.c.h.b16 %v130
  %v715 = vunpack.c.l.b16 %v131
  %v716 = vunpack.c.h.b16 %v131
  %v717 = vunpack.c.l.b16 %v132
  %v718 = vunpack.c.h.b16 %v132
  %v719 = vunpack.c.l.b16 %v133
  %v720 = vunpack.c.l.b16 %v134
  %v721 = vunpack.c.h.b16 %v134
  %v722 = vunpack.c.l.b16 %v135
  %v723 = vunpack.c.h.b16 %v135
  %v724 = vunpack.c.l.b16 %v136
  %v725 = vunpack.c.h.b16 %v136
  %v726 = vunpack.c.l.b16 %v137
  %v727 = vunpack.c.h.b16 %v137
  %v728 = vunpack.c.l.b16 %v138
  %v729 = vunpack.c.h.b16 %v138
  %v730 = vunpack.c.l.b16 %v139
  %v731 = vunpack.c.h.b16 %v139
  %v732 = vunpack.c.l.b16 %v140
  %v733 = vunpack.c.h.b16 %v140
  %v734 = vunpack.c.l.b16 %v141
  %v735 = vpack.c.b16 %v510, %v495
  %v736 = vpack.c.b16 %v511, %v496
  %v737 = vpack.c.b16 %v512, %v497
  %v738 = vpack.c.b16 %v513, %v498
  %v739 = vpack.c.b16 %v514, %v499
  %v740 = vpack.c.b16 %v515, %v500
  %v741 = vpack.c.b16 %v516, %v501
  %v742 = vpack.c.b16 %v517, %v502
  %v743 = vpack.c.b16 %v518, %v503
  %v744 = vpack.c.b16 %v519, %v504
  %v745 = vpack.c.b16 %v520, %v505
  %v746 = vpack.c.b16 %v521, %v506
  %v747 = vpack.c.b16 %v522, %v507
  %v748 = vpack.c.b16 %v523, %v508
  %v749 = vpack.c.b16 %v524, %v509
  %v750 = vpack.c.b16 %v540, %v525
  %v751 = vpack.c.b16 %v541, %v526
  %v752 = vpack.c.b16 %v542, %v527
  %v753 = vpack.c.b16 %v543, %v528
  %v754 = vpack.c.b16 %v544, %v529
  %v755 = vpack.c.b16 %v545, %v530
  %v756 = vpack.c.b16 %v546, %v531
  %v757 = vpack.c.b16 %v547, %v532
  %v758 = vpack.c.b16 %v548, %v533
  %v759 = vpack.c.b16 %v549, %v534
  %v760 = vpack.c.b16 %v550, %v535
  %v761 = vpack.c.b16 %v551, %v536
  %v762 = vpack.c.b16 %v552, %v537
  %v763 = vpack.c.b16 %v553, %v538
  %v764 = vpack.c.b16 %v554, %v539
  %v765 = vpack.c.b16 %v570, %v555
  %v766 = vpack.c.b16 %v571, %v556
  %v767 = vpack.c.b16 %v572, %v557
  %v768 = vpack.c.b16 %v573, %v558
  %v769 = vpack.c.b16 %v574, %v559
  %v770 = vpack.c.b16 %v575, %v560
  %v771 = vpack.c.b16 %v576, %v561
  %v772 = vpack.c.b16 %v577, %v562
  %v773 = vpack.c.b16 %v578, %v563
  %v774 = vpack.c.b16 %v579, %v564
  %v775 = vpack.c.b16 %v580, %v565
  %v776 = vpack.c.b16 %v581, %v566
  %v777 = vpack.c.b16 %v582, %v567
  %v778 = vpack.c.b16 %v583, %v568
  %v779 = vpack.c.b16 %v584, %v569
  %v780 = vpack.c.b16 %v600, %v585
  %v781 = vpack.c.b16 %v601, %v586
  %v782 = vpack.c.b16 %v602, %v587
  %v783 = vpack.c.b16 %v603, %v588
  %v784 = vpack.c.b16 %v604, %v589
  %v785 = vpack.c.b16 %v605, %v590
  %v786 = vpack.c.b16 %v606, %v591
  %v787 = vpack.c.b16 %v607, %v592
  %v788 = vpack.c.b16 %v608, %v593
  %v789 = vpack.c.b16 %v609, %v594
  %v790 = vpack.c.b16 %v610, %v595
  %v791 = vpack.c.b16 %v611, %v596
  %v792 = vpack.c.b16 %v612, %v597
  %v793 = vpack.c.b16 %v613, %v598
  %v794 = vpack.c.b16 %v614, %v599
  %v795 = vpack.c.b16 %v630, %v615
  %v796 = vpack.c.b16 %v631, %v616
  %v797 = vpack.c.b16 %v632, %v617
  %v798 = vpack.c.b16 %v633, %v618
  %v799 = vpack.c.b16 %v634, %v619
  %v800 = vpack.c.b16 %v635, %v620
  %v801 = vpack.c.b16 %v636, %v621
  %v802 = vpack.c.b16 %v637, %v622
  %v803 = vpack.c.b16 %v638, %v623
  %v804 = vpack.c.b16 %v639, %v624
  %v805 = vpack.c.b16 %v640, %v625
  %v806 = vpack.c.b16 %v641, %v626
  %v807 = vpack.c.b16 %v642, %v627
  %v808 = vpack.c.b16 %v643, %v628
  %v809 = vpack.c.b16 %v644, %v629
  %v810 = vpack.c.b16 %v660, %v645
  %v811 = vpack.c.b16 %v661, %v646
  %v812 = vpack.c.b16 %v662, %v647
  %v813 = vpack.c.b16 %v663, %v648
  %v814 = vpack.c.b16 %v664, %v649
  %v815 = vpack.c.b16 %v665, %v650
  %v816 = vpack.c.b16 %v666, %v651
  %v817 = vpack.c.b16 %v667, %v652
  %v818 = vpack.c.b16 %v668, %v653
  %v819 = vpack.c.b16 %v669, %v654
  %v820 = vpack.c.b16 %v670, %v655
  %v821 = vpack.c.b16 %v671, %v656
  %v822 = vpack.c.b16 %v672, %v657
  %v823 = vpack.c.b16 %v673, %v658
  %v824 = vpack.c.b16 %v674, %v659
  %v825 = vpack.c.b16 %v690, %v675
  %v826 = vpack.c.b16 %v691, %v676
  %v827 = vpack.c.b16 %v692, %v677
  %v828 = vpack.c.b16 %v693, %v678
  %v829 = vpack.c.b16 %v694, %v679
  %v830 = vpack.c.b16 %v695, %v680
  %v831 = vpack.c.b16 %v696, %v681
  %v832 = vpack.c.b16 %v697, %v682
  %v833 = vpack.c.b16 %v698, %v683
  %v834 = vpack.c.b16 %v699, %v684
  %v835 = vpack.c.b16 %v700, %v685
  %v836 = vpack.c.b16 %v701, %v686
  %v837 = vpack.c.b16 %v702, %v687
  %v838 = vpack.c.b16 %v703, %v688
  %v839 = vpack.c.b16 %v704, %v689
  %v840 = vpack.c.b16 %v720, %v705
  %v841 = vpack.c.b16 %v721, %v706
  %v842 = vpack.c.b16 %v722, %v707
  %v843 = vpack.c.b16 %v723, %v708
  %v844 = vpack.c.b16 %v724, %v709
  %v845 = vpack.c.b16 %v725, %v710
  %v846 = vpack.c.b16 %v726, %v711
  %v847 = vpack.c.b16 %v727, %v712
  %v848 = vpack.c.b16 %v728, %v713
  %v849 = vpack.c.b16 %v729, %v714
  %v850 = vpack.c.b16 %v730, %v715
  %v851 = vpack.c.b16 %v731, %v716
  %v852 = vpack.c.b16 %v732, %v717
  %v853 = vpack.c.b16 %v733, %v718
  %v854 = vpack.c.b16 %v734, %v719
  %v1192 = vunpack.c.l.b16 %v142
  %v1193 = vunpack.c.h.b16 %v142
  %v1194 = vunpack.c.l.b16 %v143
  %v1195 = vunpack.c.h.b16 %v143
  %v1196 = vunpack.c.l.b16 %v144
  %v1197 = vunpack.c.h.b16 %v144
  %v1198 = vunpack.c.l.b16 %v145
  %v1199 = vunpack.c.h.b16 %v145
  %v1200 = vunpack.c.l.b16 %v146
  %v1201 = vunpack.c.h.b16 %v146
  %v1202 = vunpack.c.l.b16 %v147
  %v1203 = vunpack.c.h.b16 %v147
  %v1204 = vunpack.c.l.b16 %v148
  %v1205 = vunpack.c.h.b16 %v148
  %v1206 = vunpack.c.l.b16 %v149
  %v1207 = vunpack.c.h.b16 %v149
  %v1208 = vunpack.c.l.b16 %v150
  %v1209 = vunpack.c.h.b16 %v150
  %v1210 = vunpack.c.l.b16 %v151
  %v1211 = vunpack.c.h.b16 %v151
  %v1212 = vunpack.c.l.b16 %v152
  %v1213 = vunpack.c.h.b16 %v152
  %v1214 = vunpack.c.l.b16 %v153
  %v1215 = vunpack.c.h.b16 %v153
  %v1216 = vunpack.c.l.b16 %v154
  %v1217 = vunpack.c.h.b16 %v154
  %v1218 = vunpack.c.l.b16 %v155
  %v1219 = vunpack.c.h.b16 %v155
  %v1220 = vunpack.c.l.b16 %v156
  %v1221 = vunpack.c.h.b16 %v156
  %v1222 = vunpack.c.l.b16 %v157
  %v1223 = vunpack.c.h.b16 %v157
  %v1224 = vunpack.c.l.b16 %v158
  %v1225 = vunpack.c.h.b16 %v158
  %v1226 = vunpack.c.l.b16 %v159
  %v1227 = vunpack.c.h.b16 %v159
  %v1228 = vunpack.c.l.b16 %v160
  %v1229 = vunpack.c.h.b16 %v160
  %v1230 = vunpack.c.l.b16 %v161
  %v1231 = vunpack.c.h.b16 %v161
  %v1232 = vunpack.c.l.b16 %v162
  %v1233 = vunpack.c.h.b16 %v162
  %v1234 = vunpack.c.l.b16 %v163
  %v1235 = vunpack.c.h.b16 %v163
  %v1236 = vunpack.c.l.b16 %v164
  %v1237 = vunpack.c.h.b16 %v164
  %v1238 = vunpack.c.l.b16 %v165
  %v1239 = vunpack.c.h.b16 %v165
  %v1240 = vunpack.c.l.b16 %v166
  %v1241 = vunpack.c.h.b16 %v166
  %v1242 = vunpack.c.l.b16 %v167
  %v1243 = vunpack.c.h.b16 %v167
  %v1244 = vunpack.c.l.b16 %v168
  %v1245 = vunpack.c.h.b16 %v168
  %v1246 = vunpack.c.l.b16 %v169
  %v1247 = vunpack.c.h.b16 %v169
  %v1248 = vunpack.c.l.b16 %v170
  %v1249 = vunpack.c.h.b16 %v170
  %v1250 = vunpack.c.l.b16 %v171
  %v1251 = vunpack.c.h.b16 %v171
  %v1252 = vunpack.c.l.b16 %v172
  %v1253 = vunpack.c.h.b16 %v172
  %v1254 = vunpack.c.l.b16 %v173
  %v1255 = vunpack.c.h.b16 %v173
  %v1256 = vunpack.c.l.b16 %v174
  %v1257 = vunpack.c.h.b16 %v174
  %v1258 = vunpack.c.l.b16 %v175
  %v1259 = vunpack.c.h.b16 %v175
  %v1260 = vunpack.c.l.b16 %v176
  %v1261 = vunpack.c.h.b16 %v176
  %v1262 = vunpack.c.l.b16 %v177
  %v1263 = vunpack.c.h.b16 %v177
  %v1264 = vunpack.c.l.b16 %v178
  %v1265 = vunpack.c.h.b16 %v178
  %v1266 = vunpack.c.l.b16 %v179
  %v1267 = vunpack.c.h.b16 %v179
  %v1268 = vunpack.c.l.b16 %v180
  %v1269 = vunpack.c.h.b16 %v180
  %v1270 = vunpack.c.l.b16 %v181
  %v1271 = vunpack.c.h.b16 %v181
  %v1272 = vunpack.c.l.b16 %v182
  %v1273 = vunpack.c.h.b16 %v182
  %v1274 = vunpack.c.l.b16 %v183
  %v1275 = vunpack.c.h.b16 %v183
  %v1276 = vunpack.c.l.b16 %v184
  %v1277 = vunpack.c.h.b16 %v184
  %v1278 = vunpack.c.l.b16 %v185
  %v1279 = vunpack.c.h.b16 %v185
  %v1280 = vunpack.c.l.b16 %v186
  %v1281 = vunpack.c.h.b16 %v186
  %v1282 = vunpack.c.l.b16 %v187
  %v1283 = vunpack.c.h.b16 %v187
  %v1284 = vunpack.c.l.b16 %v188
  %v1285 = vunpack.c.h.b16 %v188
  %v1286 = vunpack.c.l.b16 %v189
  %v1287 = vunpack.c.h.b16 %v189
  %v1288 = vunpack.c.l.b16 %v190
  %v1289 = vunpack.c.h.b16 %v190
  %v1290 = vunpack.c.l.b16 %v191
  %v1291 = vunpack.c.h.b16 %v191
  %v1292 = vunpack.c.l.b16 %v192
  %v1293 = vunpack.c.h.b16 %v192
  %v1294 = vunpack.c.l.b16 %v193
  %v1295 = vunpack.c.h.b16 %v193
  %v1296 = vunpack.c.l.b16 %v194
  %v1297 = vunpack.c.h.b16 %v194
  %v1298 = vunpack.c.l.b16 %v195
  %v1299 = vunpack.c.h.b16 %v195
  %v1300 = vunpack.c.l.b16 %v196
  %v1301 = vunpack.c.h.b16 %v196
  %v1302 = vunpack.c.l.b16 %v197
  %v1303 = vunpack.c.h.b16 %v197
  %v1304 = vunpack.c.l.b16 %v198
  %v1305 = vunpack.c.h.b16 %v198
  %v1306 = vunpack.c.l.b16 %v199
  %v1307 = vunpack.c.h.b16 %v199
  %v1308 = vunpack.c.l.b16 %v200
  %v1309 = vunpack.c.h.b16 %v200
  %v1310 = vunpack.c.l.b16 %v201
  %v1311 = vunpack.c.h.b16 %v201
  %v1312 = vunpack.c.l.b16 %v202
  %v1313 = vunpack.c.h.b16 %v202
  %v1314 = vunpack.c.l.b16 %v203
  %v1315 = vunpack.c.h.b16 %v203
  %v1316 = vunpack.c.l.b16 %v204
  %v1317 = vunpack.c.h.b16 %v204
  %v1318 = vunpack.c.l.b16 %v205
  %v1319 = vunpack.c.h.b16 %v205
  %v1320 = vunpack.c.l.b16 %v206
  %v1321 = vunpack.c.h.b16 %v206
  %v1322 = vunpack.c.l.b16 %v207
  %v1323 = vunpack.c.h.b16 %v207
  %v1324 = vunpack.c.l.b16 %v208
  %v1325 = vunpack.c.h.b16 %v208
  %v1326 = vunpack.c.l.b16 %v209
  %v1327 = vunpack.c.h.b16 %v209
  %v1328 = vunpack.c.l.b16 %v210
  %v1329 = vunpack.c.h.b16 %v210
  %v1330 = vunpack.c.l.b16 %v211
  %v1331 = vunpack.c.h.b16 %v211
  %v1332 = vunpack.c.l.b16 %v212
  %v1333 = vunpack.c.h.b16 %v212
  %v1334 = vunpack.c.l.b16 %v213
  %v1335 = vunpack.c.h.b16 %v213
  %v1336 = vunpack.c.l.b16 %v214
  %v1337 = vunpack.c.h.b16 %v214
  %v1338 = vunpack.c.l.b16 %v215
  %v1339 = vunpack.c.h.b16 %v215
  %v1340 = vunpack.c.l.b16 %v216
  %v1341 = vunpack.c.h.b16 %v216
  %v1342 = vunpack.c.l.b16 %v217
  %v1343 = vunpack.c.h.b16 %v217
  %v1344 = vunpack.c.l.b16 %v218
  %v1345 = vunpack.c.h.b16 %v218
  %v1346 = vunpack.c.l.b16 %v219
  %v1347 = vunpack.c.h.b16 %v219
  %v1348 = vunpack.c.l.b16 %v220
  %v1349 = vunpack.c.h.b16 %v220
  %v1350 = vunpack.c.l.b16 %v221
  %v1351 = vunpack.c.h.b16 %v221
  %v1352 = vunpack.c.l.b16 %v222
  %v1353 = vunpack.c.h.b16 %v222
  %v1354 = vunpack.c.l.b16 %v223
  %v1355 = vunpack.c.h.b16 %v223
  %v1356 = vunpack.c.l.b16 %v224
  %v1357 = vunpack.c.h.b16 %v224
  %v1358 = vunpack.c.l.b16 %v225
  %v1359 = vunpack.c.h.b16 %v225
  %v1360 = vunpack.c.l.b16 %v226
  %v1361 = vunpack.c.h.b16 %v226
  %v1362 = vunpack.c.l.b16 %v227
  %v1363 = vunpack.c.h.b16 %v227
  %v1364 = vunpack.c.l.b16 %v228
  %v1365 = vunpack.c.h.b16 %v228
  %v1366 = vunpack.c.l.b16 %v229
  %v1367 = vunpack.c.h.b16 %v229
  %v1368 = vunpack.c.l.b16 %v230
  %v1369 = vunpack.c.h.b16 %v230
  %v1370 = vunpack.c.l.b16 %v231
  %v1371 = vunpack.c.h.b16 %v231
  %v1372 = vunpack.c.l.b16 %v232
  %v1373 = vunpack.c.h.b16 %v232
  %v1374 = vunpack.c.l.b16 %v233
  %v1375 = vunpack.c.h.b16 %v233
  %v1376 = vunpack.c.l.b16 %v234
  %v1377 = vunpack.c.h.b16 %v234
  %v1378 = vunpack.c.l.b16 %v235
  %v1379 = vunpack.c.h.b16 %v235
  %v1380 = vunpack.c.l.b16 %v236
  %v1381 = vunpack.c.h.b16 %v236
  %v1382 = vunpack.c.l.b16 %v237
  %v1383 = vunpack.c.h.b16 %v237
  %v1384 = vunpack.c.l.b16 %v238
  %v1385 = vunpack.c.h.b16 %v238
  %v1386 = vunpack.c.l.b16 %v239
  %v1387 = vunpack.c.h.b16 %v239
  %v1388 = vunpack.c.l.b16 %v240
  %v1389 = vunpack.c.h.b16 %v240
  %v1390 = vunpack.c.l.b16 %v241
  %v1391 = vunpack.c.h.b16 %v241
  %v1392 = vunpack.c.l.b16 %v242
  %v1393 = vunpack.c.h.b16 %v242
  %v1394 = vunpack.c.l.b16 %v243
  %v1395 = vunpack.c.h.b16 %v243
  %v1396 = vunpack.c.l.b16 %v244
  %v1397 = vunpack.c.h.b16 %v244
  %v1398 = vunpack.c.l.b16 %v245
  %v1399 = vunpack.c.h.b16 %v245
  %v1400 = vunpack.c.l.b16 %v246
  %v1401 = vunpack.c.h.b16 %v246
  %v1402 = vunpack.c.l.b16 %v247
  %v1403 = vunpack.c.h.b16 %v247
  %v1404 = vunpack.c.l.b16 %v248
  %v1405 = vunpack.c.h.b16 %v248
  %v1406 = vunpack.c.l.b16 %v249
  %v1407 = vunpack.c.h.b16 %v249
  %v1408 = vunpack.c.l.b16 %v250
  %v1409 = vunpack.c.h.b16 %v250
  %v1410 = vunpack.c.l.b16 %v251
  %v1411 = vunpack.c.h.b16 %v251
  %v1412 = vunpack.c.l.b16 %v252
  %v1413 = vunpack.c.h.b16 %v252
  %v1414 = vunpack.c.l.b16 %v253
  %v1415 = vunpack.c.h.b16 %v253
  %v1416 = vunpack.c.l.b16 %v254
  %v1417 = vunpack.c.h.b16 %v254
  %v1418 = vunpack.c.l.b16 %v255
  %v1419 = vunpack.c.h.b16 %v255
  %v1420 = vunpack.c.l.b16 %v256
  %v1421 = vunpack.c.h.b16 %v256
  %v1422 = vunpack.c.l.b16 %v257
  %v1423 = vunpack.c.h.b16 %v257
  %v1424 = vunpack.c.l.b16 %v258
  %v1425 = vunpack.c.h.b16 %v258
  %v1426 = vunpack.c.l.b16 %v259
  %v1427 = vunpack.c.h.b16 %v259
  %v1428 = vunpack.c.l.b16 %v260
  %v1429 = vunpack.c.h.b16 %v260
  %v1430 = vunpack.c.l.b16 %v261
  %v1431 = vunpack.c.h.b16 %v261
  %v1432 = vunpack.c.l.b16 %v262
  %v1433 = vunpack.c.h.b16 %v262
  %v1434 = vunpack.c.l.b16 %v263
  %v1435 = vunpack.c.h.b16 %v263
  %v1436 = vunpack.c.l.b16 %v264
  %v1437 = vunpack.c.h.b16 %v264
  %v1438 = vunpack.c.l.b16 %v265
  %v1439 = vunpack.c.h.b16 %v265
  %v1440 = vunpack.c.l.b16 %v266
  %v1441 = vunpack.c.h.b16 %v266
  %v1442 = vunpack.c.l.b16 %v267
  %v1443 = vunpack.c.h.b16 %v267
  %v1444 = vunpack.c.l.b16 %v268
  %v1445 = vunpack.c.h.b16 %v268
  %v1446 = vunpack.c.l.b16 %v269
  %v1447 = vunpack.c.h.b16 %v269
  %v1448 = vunpack.c.l.b16 %v270
  %v1449 = vunpack.c.h.b16 %v270
  %v1450 = vunpack.c.l.b16 %v271
  %v1451 = vunpack.c.h.b16 %v271
  %v1452 = vunpack.c.l.b16 %v272
  %v1453 = vunpack.c.h.b16 %v272
  %v1454 = vunpack.c.l.b16 %v273
  %v1455 = vunpack.c.h.b16 %v273
  %v1456 = vunpack.c.l.b16 %v274
  %v1457 = vunpack.c.h.b16 %v274
  %v1458 = vunpack.c.l.b16 %v275
  %v1459 = vunpack.c.h.b16 %v275
  %v1460 = vunpack.c.l.b16 %v276
  %v1461 = vunpack.c.h.b16 %v276
  %v1462 = vunpack.c.l.b16 %v277
  %v1463 = vunpack.c.h.b16 %v277
  %v1464 = vunpack.c.l.b16 %v278
  %v1465 = vunpack.c.h.b16 %v278
  %v1466 = vunpack.c.l.b16 %v279
  %v1467 = vunpack.c.h.b16 %v279
  %v1468 = vunpack.c.l.b16 %v280
  %v1469 = vunpack.c.h.b16 %v280
  %v1470 = vunpack.c.l.b16 %v281
  %v1471 = vunpack.c.h.b16 %v281
  %v1472 = vunpack.c.l.b16 %v282
  %v1473 = vunpack.c.h.b16 %v282
  %v1474 = vunpack.c.l.b16 %v283
  %v1475 = vunpack.c.h.b16 %v283
  %v1476 = vunpack.c.l.b16 %v284
  %v1477 = vunpack.c.h.b16 %v284
  %v1478 = vunpack.c.l.b16 %v285
  %v1479 = vunpack.c.h.b16 %v285
  %v1480 = vunpack.c.l.b16 %v286
  %v1481 = vunpack.c.h.b16 %v286
  %v1482 = vunpack.c.l.b16 %v287
  %v1483 = vunpack.c.h.b16 %v287
  %v1484 = vunpack.c.l.b16 %v288
  %v1485 = vunpack.c.h.b16 %v288
  %v1486 = vunpack.c.l.b16 %v289
  %v1487 = vunpack.c.h.b16 %v289
  %v1488 = vunpack.c.l.b16 %v290
  %v1489 = vunpack.c.h.b16 %v290
  %v1490 = vunpack.c.l.b16 %v291
  %v1491 = vunpack.c.h.b16 %v291
  %v1492 = vunpack.c.l.b16 %v292
  %v1493 = vunpack.c.h.b16 %v292
  %v1494 = vunpack.c.l.b16 %v293
  %v1495 = vunpack.c.h.b16 %v293
  %v1496 = vunpack.c.l.b16 %v294
  %v1497 = vunpack.c.h.b16 %v294
  %v1498 = vunpack.c.l.b16 %v295
  %v1499 = vunpack.c.h.b16 %v295
  %v1500 = vunpack.c.l.b16 %v296
  %v1501 = vunpack.c.h.b16 %v296
  %v1502 = vunpack.c.l.b16 %v297
  %v1503 = vunpack.c.h.b16 %v297
  %v1504 = vunpack.c.l.b16 %v298
  %v1505 = vunpack.c.h.b16 %v298
  %v1506 = vunpack.c.l.b16 %v299
  %v1507 = vunpack.c.h.b16 %v299
  %v1508 = vunpack.c.l.b16 %v300
  %v1509 = vunpack.c.h.b16 %v300
  %v1510 = vunpack.c.l.b16 %v301
  %v1511 = vunpack.c.h.b16 %v301
  %v1512 = vunpack.c.l.b16 %v302
  %v1513 = vunpack.c.h.b16 %v302
  %v1514 = vunpack.c.l.b16 %v303
  %v1515 = vunpack.c.h.b16 %v303
  %v1516 = vunpack.c.l.b16 %v304
  %v1517 = vunpack.c.h.b16 %v304
  %v1518 = vunpack.c.l.b16 %v305
  %v1519 = vunpack.c.h.b16 %v305
  %v1520 = vunpack.c.l.b16 %v306
  %v1521 = vunpack.c.h.b16 %v306
  %v1522 = vunpack.c.l.b16 %v307
  %v1523 = vunpack.c.h.b16 %v307
  %v1524 = vunpack.c.l.b16 %v308
  %v1525 = vunpack.c.h.b16 %v308
  %v1526 = vunpack.c.l.b16 %v309
  %v1527 = vunpack.c.h.b16 %v309
  %v1528 = vunpack.c.l.b16 %v310
  %v1529 = vunpack.c.h.b16 %v310
  %v1530 = vunpack.c.l.b16 %v311
  %v1531 = vunpack.c.h.b16 %v311
  %v1532 = vunpack.c.l.b16 %v312
  %v1533 = vunpack.c.h.b16 %v312
  %v1534 = vunpack.c.l.b16 %v313
  %v1535 = vunpack.c.h.b16 %v313
  %v1536 = vunpack.c.l.b16 %v314
  %v1537 = vunpack.c.h.b16 %v314
  %v1538 = vunpack.c.l.b16 %v315
  %v1539 = vunpack.c.h.b16 %v315
  %v1540 = vunpack.c.l.b16 %v316
  %v1541 = vunpack.c.h.b16 %v316
  %v1542 = vunpack.c.l.b16 %v317
  %v1543 = vunpack.c.h.b16 %v317
  %v1544 = vunpack.c.l.b16 %v318
  %v1545 = vunpack.c.h.b16 %v318
  %v1546 = vunpack.c.l.b16 %v319
  %v1547 = vunpack.c.h.b16 %v319
  %v1548 = vunpack.c.l.b16 %v320
  %v1549 = vunpack.c.h.b16 %v320
  %v1550 = vunpack.c.l.b16 %v321
  %v1551 = vunpack.c.h.b16 %v321
  %v1552 = vunpack.c.l.b16 %v322
  %v1553 = vunpack.c.h.b16 %v322
  %v1554 = vunpack.c.l.b16 %v323
  %v1555 = vunpack.c.h.b16 %v323
  %v1556 = vunpack.c.l.b16 %v324
  %v1557 = vunpack.c.h.b16 %v324
  %v1558 = vunpack.c.l.b16 %v325
  %v1559 = vunpack.c.h.b16 %v325
  %v1560 = vunpack.c.l.b16 %v326
  %v1561 = vunpack.c.h.b16 %v326
  %v1562 = vunpack.c.l.b16 %v327
  %v1563 = vunpack.c.h.b16 %v327
  %v1564 = vunpack.c.l.b16 %v328
  %v1565 = vunpack.c.h.b16 %v328
  %v1566 = vunpack.c.l.b16 %v329
  %v1567 = vunpack.c.h.b16 %v329
  %v1568 = vunpack.c.l.b16 %v330
  %v1569 = vunpack.c.h.b16 %v330
  %v1570 = vunpack.c.l.b16 %v331
  %v1571 = vunpack.c.h.b16 %v331
  %v1572 = vunpack.c.l.b16 %v332
  %v1573 = vunpack.c.h.b16 %v332
  %v1574 = vunpack.c.l.b16 %v333
  %v1575 = vunpack.c.h.b16 %v333
  %v1576 = vunpack.c.l.b16 %v334
  %v1577 = vunpack.c.h.b16 %v334
  %v1578 = vunpack.c.l.b16 %v335
  %v1579 = vunpack.c.h.b16 %v335
  %v1580 = vunpack.c.l.b16 %v336
  %v1581 = vunpack.c.h.b16 %v336
  %v1582 = vunpack.c.l.b16 %v337
  %v1583 = vunpack.c.h.b16 %v337
  %v1584 = vunpack.c.l.b16 %v338
  %v1585 = vunpack.c.h.b16 %v338
  %v1586 = vunpack.c.l.b16 %v339
  %v1587 = vunpack.c.h.b16 %v339
  %v1588 = vunpack.c.l.b16 %v340
  %v1589 = vunpack.c.h.b16 %v340
  %v1590 = vunpack.c.l.b16 %v341
  %v1591 = vunpack.c.h.b16 %v341
  %v1592 = vunpack.c.l.b16 %v342
  %v1593 = vunpack.c.h.b16 %v342
  %v1594 = vunpack.c.l.b16 %v343
  %v1595 = vunpack.c.h.b16 %v343
  %v1596 = vunpack.c.l.b16 %v344
  %v1597 = vunpack.c.h.b16 %v344
  %v1598 = vunpack.c.l.b16 %v345
  %v1599 = vunpack.c.h.b16 %v345
  %v1600 = vunpack.c.l.b16 %v346
  %v1601 = vunpack.c.h.b16 %v346
  %v1602 = vunpack.c.l.b16 %v347
  %v1603 = vunpack.c.h.b16 %v347
  %v1604 = vunpack.c.l.b16 %v348
  %v1605 = vunpack.c.h.b16 %v348
  %v1606 = vunpack.c.l.b16 %v349
  %v1607 = vunpack.c.h.b16 %v349
  %v1608 = vunpack.c.l.b16 %v350
  %v1609 = vunpack.c.h.b16 %v350
  %v1610 = vunpack.c.l.b16 %v351
  %v1611 = vunpack.c.h.b16 %v351
  %v1612 = vunpack.c.l.b16 %v352
  %v1613 = vunpack.c.h.b16 %v352
  %v1614 = vunpack.c.l.b16 %v353
  %v1615 = vunpack.c.h.b16 %v353
  %v1616 = vunpack.c.l.b16 %v354
  %v1617 = vunpack.c.h.b16 %v354
  %v1618 = vunpack.c.l.b16 %v355
  %v1619 = vunpack.c.h.b16 %v355
  %v1620 = vunpack.c.l.b16 %v356
  %v1621 = vunpack.c.h.b16 %v356
  %v1622 = vunpack.c.l.b16 %v357
  %v1623 = vunpack.c.h.b16 %v357
  %v1624 = vunpack.c.l.b16 %v358
  %v1625 = vunpack.c.h.b16 %v358
  %v1626 = vunpack.c.l.b16 %v359
  %v1627 = vunpack.c.h.b16 %v359
  %v1628 = vunpack.c.l.b16 %v360
  %v1629 = vunpack.c.h.b16 %v360
  %v1630 = vunpack.c.l.b16 %v361
  %v1631 = vunpack.c.h.b16 %v361
  %v1632 = vunpack.c.l.b16 %v362
  %v1633 = vunpack.c.h.b16 %v362
  %v1634 = vunpack.c.l.b16 %v363
  %v1635 = vunpack.c.h.b16 %v363
  %v1636 = vunpack.c.l.b16 %v364
  %v1637 = vunpack.c.h.b16 %v364
  %v1638 = vunpack.c.l.b16 %v365
  %v1639 = vunpack.c.h.b16 %v365
  %v1640 = vunpack.c.l.b16 %v366
  %v1641 = vunpack.c.h.b16 %v366
  %v1642 = vpack.c.b16 %v1194, %v1192
  %v1643 = vpack.c.b16 %v1195, %v1193
  %v1644 = vpack.c.b16 %v1198, %v1196
  %v1645 = vpack.c.b16 %v1199, %v1197
  %v1646 = vpack.c.b16 %v1202, %v1200
  %v1647 = vpack.c.b16 %v1203, %v1201
  %v1648 = vpack.c.b16 %v1206, %v1204
  %v1649 = vpack.c.b16 %v1207, %v1205
  %v1650 = vpack.c.b16 %v1210, %v1208
  %v1651 = vpack.c.b16 %v1211, %v1209
  %v1652 = vpack.c.b16 %v1214, %v1212
  %v1653 = vpack.c.b16 %v1215, %v1213
  %v1654 = vpack.c.b16 %v1218, %v1216
  %v1655 = vpack.c.b16 %v1219, %v1217
  %v1656 = vpack.c.b16 %v1222, %v1220
  %v1657 = vpack.c.b16 %v1223, %v1221
  %v1658 = vpack.c.b16 %v1226, %v1224
  %v1659 = vpack.c.b16 %v1227, %v1225
  %v1660 = vpack.c.b16 %v1230, %v1228
  %v1661 = vpack.c.b16 %v1231, %v1229
  %v1662 = vpack.c.b16 %v1234, %v1232
  %v1663 = vpack.c.b16 %v1235, %v1233
  %v1664 = vpack.c.b16 %v1238, %v1236
  %v1665 = vpack.c.b16 %v1239, %v1237
  %v1666 = vpack.c.b16 %v1242, %v1240
  %v1667 = vpack.c.b16 %v1243, %v1241
  %v1668 = vpack.c.b16 %v1246, %v1244
  %v1669 = vpack.c.b16 %v1247, %v1245
  %v1670 = vpack.c.b16 %v1250, %v1248
  %v1671 = vpack.c.b16 %v1251, %v1249
  %v1672 = vpack.c.b16 %v1254, %v1252
  %v1673 = vpack.c.b16 %v1255, %v1253
  %v1674 = vpack.c.b16 %v1258, %v1256
  %v1675 = vpack.c.b16 %v1259, %v1257
  %v1676 = vpack.c.b16 %v1262, %v1260
  %v1677 = vpack.c.b16 %v1263, %v1261
  %v1678 = vpack.c.b16 %v1266, %v1264
  %v1679 = vpack.c.b16 %v1267, %v1265
  %v1680 = vpack.c.b16 %v1270, %v1268
  %v1681 = vpack.c.b16 %v1271, %v1269
  %v1682 = vpack.c.b16 %v1274, %v1272
  %v1683 = vpack.c.b16 %v1275, %v1273
  %v1684 = vpack.c.b16 %v1278, %v1276
  %v1685 = vpack.c.b16 %v1279, %v1277
  %v1686 = vpack.c.b16 %v1282, %v1280
  %v1687 = vpack.c.b16 %v1283, %v1281
  %v1688 = vpack.c.b16 %v1286, %v1284
  %v1689 = vpack.c.b16 %v1287, %v1285
  %v1690 = vpack.c.b16 %v1290, %v1288
  %v1691 = vpack.c.b16 %v1291, %v1289
  %v1692 = vpack.c.b16 %v1294, %v1292
  %v1693 = vpack.c.b16 %v1295, %v1293
  %v1694 = vpack.c.b16 %v1298, %v1296
  %v1695 = vpack.c.b16 %v1299, %v1297
  %v1696 = vpack.c.b16 %v1302, %v1300
  %v1697 = vpack.c.b16 %v1303, %v1301
  %v1698 = vpack.c.b16 %v1306, %v1304
  %v1699 = vpack.c.b16 %v1307, %v1305
  %v1700 = vpack.c.b16 %v1310, %v1308
  %v1701 = vpack.c.b16 %v1311, %v1309
  %v1702 = vpack.c.b16 %v1314, %v1312
  %v1703 = vpack.c.b16 %v1315, %v1313
  %v1704 = vpack.c.b16 %v1318, %v1316
  %v1705 = vpack.c.b16 %v1319, %v1317
  %v1706 = vpack.c.b16 %v1322, %v1320
  %v1707 = vpack.c.b16 %v1323, %v1321
  %v1708 = vpack.c.b16 %v1326, %v1324
  %v1709 = vpack.c.b16 %v1327, %v1325
  %v1710 = vpack.c.b16 %v1330, %v1328
  %v1711 = vpack.c.b16 %v1331, %v1329
  %v1712 = vpack.c.b16 %v1334, %v1332
  %v1713 = vpack.c.b16 %v1335, %v1333
  %v1714 = vpack.c.b16 %v1338, %v1336
  %v1715 = vpack.c.b16 %v1339, %v1337
  %v1716 = vpack.c.b16 %v1342, %v1340
  %v1717 = vpack.c.b16 %v1343, %v1341
  %v1718 = vpack.c.b16 %v1346, %v1344
  %v1719 = vpack.c.b16 %v1347, %v1345
  %v1720 = vpack.c.b16 %v1350, %v1348
  %v1721 = vpack.c.b16 %v1351, %v1349
  %v1722 = vpack.c.b16 %v1354, %v1352
  %v1723 = vpack.c.b16 %v1355, %v1353
  %v1724 = vpack.c.b16 %v1358, %v1356
  %v1725 = vpack.c.b16 %v1359, %v1357
  %v1726 = vpack.c.b16 %v1362, %v1360
  %v1727 = vpack.c.b16 %v1363, %v1361
  %v1728 = vpack.c.b16 %v1366, %v1364
  %v1729 = vpack.c.b16 %v1367, %v1365
  %v1730 = vpack.c.b16 %v1370, %v1368
  %v1731 = vpack.c.b16 %v1371, %v1369
  %v1732 = vpack.c.b16 %v1374, %v1372
  %v1733 = vpack.c.b16 %v1375, %v1373
  %v1734 = vpack.c.b16 %v1378, %v1376
  %v1735 = vpack.c.b16 %v1379, %v1377
  %v1736 = vpack.c.b16 %v1382, %v1380
  %v1737 = vpack.c.b16 %v1383, %v1381
  %v1738 = vpack.c.b16 %v1386, %v1384
  %v1739 = vpack.c.b16 %v1387, %v1385
  %v1740 = vpack.c.b16 %v1390, %v1388
  %v1741 = vpack.c.b16 %v1391, %v1389
  %v1742 = vpack.c.b16 %v1394, %v1392
  %v1743 = vpack.c.b16 %v1395, %v1393
  %v1744 = vpack.c.b16 %v1398, %v1396
  %v1745 = vpack.c.b16 %v1399, %v1397
  %v1746 = vpack.c.b16 %v1402, %v1400
  %v1747 = vpack.c.b16 %v1403, %v1401
  %v1748 = vpack.c.b16 %v1406, %v1404
  %v1749 = vpack.c.b16 %v1407, %v1405
  %v1750 = vpack.c.b16 %v1410, %v1408
  %v1751 = vpack.c.b16 %v1411, %v1409
  %v1752 = vpack.c.b16 %v1414, %v1412
  %v1753 = vpack.c.b16 %v1415, %v1413
  %v1754 = vpack.c.b16 %v1418, %v1416
  %v1755 = vpack.c.b16 %v1419, %v1417
  %v1756 = vpack.c.b16 %v1422, %v1420
  %v1757 = vpack.c.b16 %v1423, %v1421
  %v1758 = vpack.c.b16 %v1426, %v1424
  %v1759 = vpack.c.b16 %v1427, %v1425
  %v1760 = vpack.c.b16 %v1430, %v1428
  %v1761 = vpack.c.b16 %v1431, %v1429
  %v1762 = vpack.c.b16 %v1434, %v1432
  %v1763 = vpack.c.b16 %v1435, %v1433
  %v1764 = vpack.c.b16 %v1438, %v1436
  %v1765 = vpack.c.b16 %v1439, %v1437
  %v1766 = vpack.c.b16 %v1442, %v1440
  %v1767 = vpack.c.b16 %v1443, %v1441
  %v1768 = vpack.c.b16 %v1446, %v1444
  %v1769 = vpack.c.b16 %v1447, %v1445
  %v1770 = vpack.c.b16 %v1450, %v1448
  %v1771 = vpack.c.b16 %v1451, %v1449
  %v1772 = vpack.c.b16 %v1454, %v1452
  %v1773 = vpack.c.b16 %v1455, %v1453
  %v1774 = vpack.c.b16 %v1458, %v1456
  %v1775 = vpack.c.b16 %v1459, %v1457
  %v1776 = vpack.c.b16 %v1462, %v1460
  %v1777 = vpack.c.b16 %v1463, %v1461
  %v1778 = vpack.c.b16 %v1466, %v1464
  %v1779 = vpack.c.b16 %v1467, %v1465
  %v1780 = vpack.c.b16 %v1470, %v1468
  %v1781 = vpack.c.b16 %v1471, %v1469
  %v1782 = vpack.c.b16 %v1474, %v1472
  %v1783 = vpack.c.b16 %v1475, %v1473
  %v1784 = vpack.c.b16 %v1478, %v1476
  %v1785 = vpack.c.b16 %v1479, %v1477
  %v1786 = vpack.c.b16 %v1482, %v1480
  %v1787 = vpack.c.b16 %v1483, %v1481
  %v1788 = vpack.c.b16 %v1486, %v1484
  %v1789 = vpack.c.b16 %v1487, %v1485
  %v1790 = vpack.c.b16 %v1490, %v1488
  %v1791 = vpack.c.b16 %v1491, %v1489
  %v1792 = vpack.c.b16 %v1494, %v1492
  %v1793 = vpack.c.b16 %v1495, %v1493
  %v1794 = vpack.c.b16 %v1498, %v1496
  %v1795 = vpack.c.b16 %v1499, %v1497
  %v1796 = vpack.c.b16 %v1502, %v1500
  %v1797 = vpack.c.b16 %v1503, %v1501
  %v1798 = vpack.c.b16 %v1506, %v1504
  %v1799 = vpack.c.b16 %v1507, %v1505
  %v1800 = vpack.c.b16 %v1510, %v1508
  %v1801 = vpack.c.b16 %v1511, %v1509
  %v1802 = vpack.c.b16 %v1514, %v1512
  %v1803 = vpack.c.b16 %v1515, %v1513
  %v1804 = vpack.c.b16 %v1518, %v1516
  %v1805 = vpack.c.b16 %v1519, %v1517
  %v1806 = vpack.c.b16 %v1522, %v1520
  %v1807 = vpack.c.b16 %v1523, %v1521
  %v1808 = vpack.c.b16 %v1526, %v1524
  %v1809 = vpack.c.b16 %v1527, %v1525
  %v1810 = vpack.c.b16 %v1530, %v1528
  %v1811 = vpack.c.b16 %v1531, %v1529
  %v1812 = vpack.c.b16 %v1534, %v1532
  %v1813 = vpack.c.b16 %v1535, %v1533
  %v1814 = vpack.c.b16 %v1538, %v1536
  %v1815 = vpack.c.b16 %v1539, %v1537
  %v1816 = vpack.c.b16 %v1542, %v1540
  %v1817 = vpack.c.b16 %v1543, %v1541
  %v1818 = vpack.c.b16 %v1546, %v1544
  %v1819 = vpack.c.b16 %v1547, %v1545
  %v1820 = vpack.c.b16 %v1550, %v1548
  %v1821 = vpack.c.b16 %v1551, %v1549
  %v1822 = vpack.c.b16 %v1554, %v1552
  %v1823 = vpack.c.b16 %v1555, %v1553
  %v1824 = vpack.c.b16 %v1558, %v1556
  %v1825 = vpack.c.b16 %v1559, %v1557
  %v1826 = vpack.c.b16 %v1562, %v1560
  %v1827 = vpack.c.b16 %v1563, %v1561
  %v1828 = vpack.c.b16 %v1566, %v1564
  %v1829 = vpack.c.b16 %v1567, %v1565
  %v1830 = vpack.c.b16 %v1570, %v1568
  %v1831 = vpack.c.b16 %v1571, %v1569
  %v1832 = vpack.c.b16 %v1574, %v1572
  %v1833 = vpack.c.b16 %v1575, %v1573
  %v1834 = vpack.c.b16 %v1578, %v1576
  %v1835 = vpack.c.b16 %v1579, %v1577
  %v1836 = vpack.c.b16 %v1582, %v1580
  %v1837 = vpack.c.b16 %v1583, %v1581
  %v1838 = vpack.c.b16 %v1586, %v1584
  %v1839 = vpack.c.b16 %v1587, %v1585
  %v1840 = vpack.c.b16 %v1590, %v1588
  %v1841 = vpack.c.b16 %v1591, %v1589
  %v1842 = vpack.c.b16 %v1594, %v1592
  %v1843 = vpack.c.b16 %v1595, %v1593
  %v1844 = vpack.c.b16 %v1598, %v1596
  %v1845 = vpack.c.b16 %v1599, %v1597
  %v1846 = vpack.c.b16 %v1602, %v1600
  %v1847 = vpack.c.b16 %v1603, %v1601
  %v1848 = vpack.c.b16 %v1606, %v1604
  %v1849 = vpack.c.b16 %v1607, %v1605
  %v1850 = vpack.c.b16 %v1610, %v1608
  %v1851 = vpack.c.b16 %v1611, %v1609
  %v1852 = vpack.c.b16 %v1614, %v1612
  %v1853 = vpack.c.b16 %v1615, %v1613
  %v1854 = vpack.c.b16 %v1618, %v1616
  %v1855 = vpack.c.b16 %v1619, %v1617
  %v1856 = vpack.c.b16 %v1622, %v1620
  %v1857 = vpack.c.b16 %v1623, %v1621
  %v1858 = vpack.c.b16 %v1626, %v1624
  %v1859 = vpack.c.b16 %v1627, %v1625
  %v1860 = vpack.c.b16 %v1630, %v1628
  %v1861 = vpack.c.b16 %v1631, %v1629
  %v1862 = vpack.c.b16 %v1634, %v1632
  %v1863 = vpack.c.b16 %v1635, %v1633
  %v1864 = vpack.c.b16 %v1638, %v1636
  %v1865 = vpack.c.b16 %v1639, %v1637
  %v1866 = vpack.c.b16 %v1640, %v1640
  %v1867 = vpack.c.b16 %v1641, %v1641
  %vm2092 = vcmask 64512
  %v2094 = vsel %vm2092, %v749, 0
  %v2097 = vsel %vm2092, %v764, 0
  %v2100 = vsel %vm2092, %v779, 0
  %v2103 = vsel %vm2092, %v794, 0
  %v2106 = vsel %vm2092, %v809, 0
  %v2109 = vsel %vm2092, %v824, 0
  %v2112 = vsel %vm2092, %v839, 0
  %v2115 = vsel %vm2092, %v854, 0
  %vm2117 = vcmask 1043456
  %v2119 = vsel %vm2117, %v1866, 0
  %v2122 = vsel %vm2117, %v1867, 0
  %2124 = vmatprep.subr.bf16.mxu0 %v1657
  %2125 = vmatpush1.bf16.msra.mxu0 %v1656
  %2126 = vmatprep.subr.bf16.mxu0 %v1655
  %2127 = vmatpush1.bf16.msra.mxu0 %v1654
  %2128 = vmatprep.subr.bf16.mxu0 %v1653
  %2129 = vmatpush1.bf16.msra.mxu0 %v1652
  %2130 = vmatprep.subr.bf16.mxu0 %v1651
  %2131 = vmatpush1.bf16.msra.mxu0 %v1650
  %2132 = vmatprep.subr.bf16.mxu0 %v1649
  %2133 = vmatpush1.bf16.msra.mxu0 %v1648
  %2134 = vmatprep.subr.bf16.mxu0 %v1647
  %2135 = vmatpush1.bf16.msra.mxu0 %v1646
  %2136 = vmatprep.subr.bf16.mxu0 %v1645
  %2137 = vmatpush1.bf16.msra.mxu0 %v1644
  %2138 = vmatprep.subr.bf16.mxu0 %v1643
  %2139 = vmatpush1.bf16.msra.mxu0 %v1642
  %2140 = vmatprep.subr.bf16.mxu0 %v1673
  %2141 = vmatpush2.bf16.msra.mxu0 %v1672
  %2142 = vmatprep.subr.bf16.mxu0 %v1671
  %2143 = vmatpush2.bf16.msra.mxu0 %v1670
  %2144 = vmatprep.subr.bf16.mxu0 %v1669
  %2145 = vmatpush2.bf16.msra.mxu0 %v1668
  %2146 = vmatprep.subr.bf16.mxu0 %v1667
  %2147 = vmatpush2.bf16.msra.mxu0 %v1666
  %2148 = vmatprep.subr.bf16.mxu0 %v1665
  %2149 = vmatpush2.bf16.msra.mxu0 %v1664
  %2150 = vmatprep.subr.bf16.mxu0 %v1663
  %2151 = vmatpush2.bf16.msra.mxu0 %v1662
  %2152 = vmatprep.subr.bf16.mxu0 %v1661
  %2153 = vmatpush2.bf16.msra.mxu0 %v1660
  %2154 = vmatprep.subr.bf16.mxu0 %v1659
  %2155 = vmatpush2.bf16.msra.mxu0 %v1658
  %2156 = vmatprep.mubr.bf16.mxu0 %v736
  %2157 = vmatmul.mubr.bf16.gmra.mxu0 %v735
  %v2158 = vpop.f32.mrf.mxu0
  %v2159 = vadd.f32 0.0, %v2158
  %v2160 = vpop.f32.mrf.mxu0
  %v2161 = vadd.f32 0.0, %v2160
  %v2162 = vpop.f32.mrf.mxu0
  %v2163 = vadd.f32 0.0, %v2162
  %v2164 = vpop.f32.mrf.mxu0
  %v2165 = vadd.f32 0.0, %v2164
  %2166 = vmatprep.mubr.bf16.mxu0 %v751
  %2167 = vmatmul.mubr.bf16.gmra.mxu0 %v750
  %v2168 = vpop.f32.mrf.mxu0
  %v2169 = vadd.f32 0.0, %v2168
  %v2170 = vpop.f32.mrf.mxu0
  %v2171 = vadd.f32 0.0, %v2170
  %v2172 = vpop.f32.mrf.mxu0
  %v2173 = vadd.f32 0.0, %v2172
  %v2174 = vpop.f32.mrf.mxu0
  %v2175 = vadd.f32 0.0, %v2174
  %2176 = vmatprep.mubr.bf16.mxu0 %v766
  %2177 = vmatmul.mubr.bf16.gmra.mxu0 %v765
  %v2178 = vpop.f32.mrf.mxu0
  %v2179 = vadd.f32 0.0, %v2178
  %v2180 = vpop.f32.mrf.mxu0
  %v2181 = vadd.f32 0.0, %v2180
  %v2182 = vpop.f32.mrf.mxu0
  %v2183 = vadd.f32 0.0, %v2182
  %v2184 = vpop.f32.mrf.mxu0
  %v2185 = vadd.f32 0.0, %v2184
  %2186 = vmatprep.mubr.bf16.mxu0 %v781
  %2187 = vmatmul.mubr.bf16.gmra.mxu0 %v780
  %v2188 = vpop.f32.mrf.mxu0
  %v2189 = vadd.f32 0.0, %v2188
  %v2190 = vpop.f32.mrf.mxu0
  %v2191 = vadd.f32 0.0, %v2190
  %v2192 = vpop.f32.mrf.mxu0
  %v2193 = vadd.f32 0.0, %v2192
  %v2194 = vpop.f32.mrf.mxu0
  %v2195 = vadd.f32 0.0, %v2194
  %2196 = vmatprep.mubr.bf16.mxu0 %v796
  %2197 = vmatmul.mubr.bf16.gmra.mxu0 %v795
  %v2198 = vpop.f32.mrf.mxu0
  %v2199 = vadd.f32 0.0, %v2198
  %v2200 = vpop.f32.mrf.mxu0
  %v2201 = vadd.f32 0.0, %v2200
  %v2202 = vpop.f32.mrf.mxu0
  %v2203 = vadd.f32 0.0, %v2202
  %v2204 = vpop.f32.mrf.mxu0
  %v2205 = vadd.f32 0.0, %v2204
  %2206 = vmatprep.mubr.bf16.mxu0 %v811
  %2207 = vmatmul.mubr.bf16.gmra.mxu0 %v810
  %v2208 = vpop.f32.mrf.mxu0
  %v2209 = vadd.f32 0.0, %v2208
  %v2210 = vpop.f32.mrf.mxu0
  %v2211 = vadd.f32 0.0, %v2210
  %v2212 = vpop.f32.mrf.mxu0
  %v2213 = vadd.f32 0.0, %v2212
  %v2214 = vpop.f32.mrf.mxu0
  %v2215 = vadd.f32 0.0, %v2214
  %2216 = vmatprep.mubr.bf16.mxu0 %v826
  %2217 = vmatmul.mubr.bf16.gmra.mxu0 %v825
  %v2218 = vpop.f32.mrf.mxu0
  %v2219 = vadd.f32 0.0, %v2218
  %v2220 = vpop.f32.mrf.mxu0
  %v2221 = vadd.f32 0.0, %v2220
  %v2222 = vpop.f32.mrf.mxu0
  %v2223 = vadd.f32 0.0, %v2222
  %v2224 = vpop.f32.mrf.mxu0
  %v2225 = vadd.f32 0.0, %v2224
  %2226 = vmatprep.mubr.bf16.mxu0 %v841
  %2227 = vmatmul.mubr.bf16.gmra.mxu0 %v840
  %v2228 = vpop.f32.mrf.mxu0
  %v2229 = vadd.f32 0.0, %v2228
  %v2230 = vpop.f32.mrf.mxu0
  %v2231 = vadd.f32 0.0, %v2230
  %v2232 = vpop.f32.mrf.mxu0
  %v2233 = vadd.f32 0.0, %v2232
  %v2234 = vpop.f32.mrf.mxu0
  %v2235 = vadd.f32 0.0, %v2234
  %2236 = vdwg.mxu0
  %2237 = vmatprep.subr.bf16.mxu0 %v1689
  %2238 = vmatpush1.bf16.msra.mxu0 %v1688
  %2239 = vmatprep.subr.bf16.mxu0 %v1687
  %2240 = vmatpush1.bf16.msra.mxu0 %v1686
  %2241 = vmatprep.subr.bf16.mxu0 %v1685
  %2242 = vmatpush1.bf16.msra.mxu0 %v1684
  %2243 = vmatprep.subr.bf16.mxu0 %v1683
  %2244 = vmatpush1.bf16.msra.mxu0 %v1682
  %2245 = vmatprep.subr.bf16.mxu0 %v1681
  %2246 = vmatpush1.bf16.msra.mxu0 %v1680
  %2247 = vmatprep.subr.bf16.mxu0 %v1679
  %2248 = vmatpush1.bf16.msra.mxu0 %v1678
  %2249 = vmatprep.subr.bf16.mxu0 %v1677
  %2250 = vmatpush1.bf16.msra.mxu0 %v1676
  %2251 = vmatprep.subr.bf16.mxu0 %v1675
  %2252 = vmatpush1.bf16.msra.mxu0 %v1674
  %2253 = vmatprep.subr.bf16.mxu0 %v1705
  %2254 = vmatpush2.bf16.msra.mxu0 %v1704
  %2255 = vmatprep.subr.bf16.mxu0 %v1703
  %2256 = vmatpush2.bf16.msra.mxu0 %v1702
  %2257 = vmatprep.subr.bf16.mxu0 %v1701
  %2258 = vmatpush2.bf16.msra.mxu0 %v1700
  %2259 = vmatprep.subr.bf16.mxu0 %v1699
  %2260 = vmatpush2.bf16.msra.mxu0 %v1698
  %2261 = vmatprep.subr.bf16.mxu0 %v1697
  %2262 = vmatpush2.bf16.msra.mxu0 %v1696
  %2263 = vmatprep.subr.bf16.mxu0 %v1695
  %2264 = vmatpush2.bf16.msra.mxu0 %v1694
  %2265 = vmatprep.subr.bf16.mxu0 %v1693
  %2266 = vmatpush2.bf16.msra.mxu0 %v1692
  %2267 = vmatprep.subr.bf16.mxu0 %v1691
  %2268 = vmatpush2.bf16.msra.mxu0 %v1690
  %2269 = vmatprep.mubr.bf16.mxu0 %v738
  %2270 = vmatmul.mubr.bf16.gmra.mxu0 %v737
  %v2271 = vpop.f32.mrf.mxu0
  %v2272 = vadd.f32 %v2159, %v2271
  %v2273 = vpop.f32.mrf.mxu0
  %v2274 = vadd.f32 %v2161, %v2273
  %v2275 = vpop.f32.mrf.mxu0
  %v2276 = vadd.f32 %v2163, %v2275
  %v2277 = vpop.f32.mrf.mxu0
  %v2278 = vadd.f32 %v2165, %v2277
  %2279 = vmatprep.mubr.bf16.mxu0 %v753
  %2280 = vmatmul.mubr.bf16.gmra.mxu0 %v752
  %v2281 = vpop.f32.mrf.mxu0
  %v2282 = vadd.f32 %v2169, %v2281
  %v2283 = vpop.f32.mrf.mxu0
  %v2284 = vadd.f32 %v2171, %v2283
  %v2285 = vpop.f32.mrf.mxu0
  %v2286 = vadd.f32 %v2173, %v2285
  %v2287 = vpop.f32.mrf.mxu0
  %v2288 = vadd.f32 %v2175, %v2287
  %2289 = vmatprep.mubr.bf16.mxu0 %v768
  %2290 = vmatmul.mubr.bf16.gmra.mxu0 %v767
  %v2291 = vpop.f32.mrf.mxu0
  %v2292 = vadd.f32 %v2179, %v2291
  %v2293 = vpop.f32.mrf.mxu0
  %v2294 = vadd.f32 %v2181, %v2293
  %v2295 = vpop.f32.mrf.mxu0
  %v2296 = vadd.f32 %v2183, %v2295
  %v2297 = vpop.f32.mrf.mxu0
  %v2298 = vadd.f32 %v2185, %v2297
  %2299 = vmatprep.mubr.bf16.mxu0 %v783
  %2300 = vmatmul.mubr.bf16.gmra.mxu0 %v782
  %v2301 = vpop.f32.mrf.mxu0
  %v2302 = vadd.f32 %v2189, %v2301
  %v2303 = vpop.f32.mrf.mxu0
  %v2304 = vadd.f32 %v2191, %v2303
  %v2305 = vpop.f32.mrf.mxu0
  %v2306 = vadd.f32 %v2193, %v2305
  %v2307 = vpop.f32.mrf.mxu0
  %v2308 = vadd.f32 %v2195, %v2307
  %2309 = vmatprep.mubr.bf16.mxu0 %v798
  %2310 = vmatmul.mubr.bf16.gmra.mxu0 %v797
  %v2311 = vpop.f32.mrf.mxu0
  %v2312 = vadd.f32 %v2199, %v2311
  %v2313 = vpop.f32.mrf.mxu0
  %v2314 = vadd.f32 %v2201, %v2313
  %v2315 = vpop.f32.mrf.mxu0
  %v2316 = vadd.f32 %v2203, %v2315
  %v2317 = vpop.f32.mrf.mxu0
  %v2318 = vadd.f32 %v2205, %v2317
  %2319 = vmatprep.mubr.bf16.mxu0 %v813
  %2320 = vmatmul.mubr.bf16.gmra.mxu0 %v812
  %v2321 = vpop.f32.mrf.mxu0
  %v2322 = vadd.f32 %v2209, %v2321
  %v2323 = vpop.f32.mrf.mxu0
  %v2324 = vadd.f32 %v2211, %v2323
  %v2325 = vpop.f32.mrf.mxu0
  %v2326 = vadd.f32 %v2213, %v2325
  %v2327 = vpop.f32.mrf.mxu0
  %v2328 = vadd.f32 %v2215, %v2327
  %2329 = vmatprep.mubr.bf16.mxu0 %v828
  %2330 = vmatmul.mubr.bf16.gmra.mxu0 %v827
  %v2331 = vpop.f32.mrf.mxu0
  %v2332 = vadd.f32 %v2219, %v2331
  %v2333 = vpop.f32.mrf.mxu0
  %v2334 = vadd.f32 %v2221, %v2333
  %v2335 = vpop.f32.mrf.mxu0
  %v2336 = vadd.f32 %v2223, %v2335
  %v2337 = vpop.f32.mrf.mxu0
  %v2338 = vadd.f32 %v2225, %v2337
  %2339 = vmatprep.mubr.bf16.mxu0 %v843
  %2340 = vmatmul.mubr.bf16.gmra.mxu0 %v842
  %v2341 = vpop.f32.mrf.mxu0
  %v2342 = vadd.f32 %v2229, %v2341
  %v2343 = vpop.f32.mrf.mxu0
  %v2344 = vadd.f32 %v2231, %v2343
  %v2345 = vpop.f32.mrf.mxu0
  %v2346 = vadd.f32 %v2233, %v2345
  %v2347 = vpop.f32.mrf.mxu0
  %v2348 = vadd.f32 %v2235, %v2347
  %2349 = vdwg.mxu0
  %2350 = vmatprep.subr.bf16.mxu0 %v1721
  %2351 = vmatpush1.bf16.msra.mxu0 %v1720
  %2352 = vmatprep.subr.bf16.mxu0 %v1719
  %2353 = vmatpush1.bf16.msra.mxu0 %v1718
  %2354 = vmatprep.subr.bf16.mxu0 %v1717
  %2355 = vmatpush1.bf16.msra.mxu0 %v1716
  %2356 = vmatprep.subr.bf16.mxu0 %v1715
  %2357 = vmatpush1.bf16.msra.mxu0 %v1714
  %2358 = vmatprep.subr.bf16.mxu0 %v1713
  %2359 = vmatpush1.bf16.msra.mxu0 %v1712
  %2360 = vmatprep.subr.bf16.mxu0 %v1711
  %2361 = vmatpush1.bf16.msra.mxu0 %v1710
  %2362 = vmatprep.subr.bf16.mxu0 %v1709
  %2363 = vmatpush1.bf16.msra.mxu0 %v1708
  %2364 = vmatprep.subr.bf16.mxu0 %v1707
  %2365 = vmatpush1.bf16.msra.mxu0 %v1706
  %2366 = vmatprep.subr.bf16.mxu0 %v1737
  %2367 = vmatpush2.bf16.msra.mxu0 %v1736
  %2368 = vmatprep.subr.bf16.mxu0 %v1735
  %2369 = vmatpush2.bf16.msra.mxu0 %v1734
  %2370 = vmatprep.subr.bf16.mxu0 %v1733
  %2371 = vmatpush2.bf16.msra.mxu0 %v1732
  %2372 = vmatprep.subr.bf16.mxu0 %v1731
  %2373 = vmatpush2.bf16.msra.mxu0 %v1730
  %2374 = vmatprep.subr.bf16.mxu0 %v1729
  %2375 = vmatpush2.bf16.msra.mxu0 %v1728
  %2376 = vmatprep.subr.bf16.mxu0 %v1727
  %2377 = vmatpush2.bf16.msra.mxu0 %v1726
  %2378 = vmatprep.subr.bf16.mxu0 %v1725
  %2379 = vmatpush2.bf16.msra.mxu0 %v1724
  %2380 = vmatprep.subr.bf16.mxu0 %v1723
  %2381 = vmatpush2.bf16.msra.mxu0 %v1722
  %2382 = vmatprep.mubr.bf16.mxu0 %v740
  %2383 = vmatmul.mubr.bf16.gmra.mxu0 %v739
  %v2384 = vpop.f32.mrf.mxu0
  %v2385 = vadd.f32 %v2272, %v2384
  %v2386 = vpop.f32.mrf.mxu0
  %v2387 = vadd.f32 %v2274, %v2386
  %v2388 = vpop.f32.mrf.mxu0
  %v2389 = vadd.f32 %v2276, %v2388
  %v2390 = vpop.f32.mrf.mxu0
  %v2391 = vadd.f32 %v2278, %v2390
  %2392 = vmatprep.mubr.bf16.mxu0 %v755
  %2393 = vmatmul.mubr.bf16.gmra.mxu0 %v754
  %v2394 = vpop.f32.mrf.mxu0
  %v2395 = vadd.f32 %v2282, %v2394
  %v2396 = vpop.f32.mrf.mxu0
  %v2397 = vadd.f32 %v2284, %v2396
  %v2398 = vpop.f32.mrf.mxu0
  %v2399 = vadd.f32 %v2286, %v2398
  %v2400 = vpop.f32.mrf.mxu0
  %v2401 = vadd.f32 %v2288, %v2400
  %2402 = vmatprep.mubr.bf16.mxu0 %v770
  %2403 = vmatmul.mubr.bf16.gmra.mxu0 %v769
  %v2404 = vpop.f32.mrf.mxu0
  %v2405 = vadd.f32 %v2292, %v2404
  %v2406 = vpop.f32.mrf.mxu0
  %v2407 = vadd.f32 %v2294, %v2406
  %v2408 = vpop.f32.mrf.mxu0
  %v2409 = vadd.f32 %v2296, %v2408
  %v2410 = vpop.f32.mrf.mxu0
  %v2411 = vadd.f32 %v2298, %v2410
  %2412 = vmatprep.mubr.bf16.mxu0 %v785
  %2413 = vmatmul.mubr.bf16.gmra.mxu0 %v784
  %v2414 = vpop.f32.mrf.mxu0
  %v2415 = vadd.f32 %v2302, %v2414
  %v2416 = vpop.f32.mrf.mxu0
  %v2417 = vadd.f32 %v2304, %v2416
  %v2418 = vpop.f32.mrf.mxu0
  %v2419 = vadd.f32 %v2306, %v2418
  %v2420 = vpop.f32.mrf.mxu0
  %v2421 = vadd.f32 %v2308, %v2420
  %2422 = vmatprep.mubr.bf16.mxu0 %v800
  %2423 = vmatmul.mubr.bf16.gmra.mxu0 %v799
  %v2424 = vpop.f32.mrf.mxu0
  %v2425 = vadd.f32 %v2312, %v2424
  %v2426 = vpop.f32.mrf.mxu0
  %v2427 = vadd.f32 %v2314, %v2426
  %v2428 = vpop.f32.mrf.mxu0
  %v2429 = vadd.f32 %v2316, %v2428
  %v2430 = vpop.f32.mrf.mxu0
  %v2431 = vadd.f32 %v2318, %v2430
  %2432 = vmatprep.mubr.bf16.mxu0 %v815
  %2433 = vmatmul.mubr.bf16.gmra.mxu0 %v814
  %v2434 = vpop.f32.mrf.mxu0
  %v2435 = vadd.f32 %v2322, %v2434
  %v2436 = vpop.f32.mrf.mxu0
  %v2437 = vadd.f32 %v2324, %v2436
  %v2438 = vpop.f32.mrf.mxu0
  %v2439 = vadd.f32 %v2326, %v2438
  %v2440 = vpop.f32.mrf.mxu0
  %v2441 = vadd.f32 %v2328, %v2440
  %2442 = vmatprep.mubr.bf16.mxu0 %v830
  %2443 = vmatmul.mubr.bf16.gmra.mxu0 %v829
  %v2444 = vpop.f32.mrf.mxu0
  %v2445 = vadd.f32 %v2332, %v2444
  %v2446 = vpop.f32.mrf.mxu0
  %v2447 = vadd.f32 %v2334, %v2446
  %v2448 = vpop.f32.mrf.mxu0
  %v2449 = vadd.f32 %v2336, %v2448
  %v2450 = vpop.f32.mrf.mxu0
  %v2451 = vadd.f32 %v2338, %v2450
  %2452 = vmatprep.mubr.bf16.mxu0 %v845
  %2453 = vmatmul.mubr.bf16.gmra.mxu0 %v844
  %v2454 = vpop.f32.mrf.mxu0
  %v2455 = vadd.f32 %v2342, %v2454
  %v2456 = vpop.f32.mrf.mxu0
  %v2457 = vadd.f32 %v2344, %v2456
  %v2458 = vpop.f32.mrf.mxu0
  %v2459 = vadd.f32 %v2346, %v2458
  %v2460 = vpop.f32.mrf.mxu0
  %v2461 = vadd.f32 %v2348, %v2460
  %2462 = vdwg.mxu0
  %2463 = vmatprep.subr.bf16.mxu0 %v1753
  %2464 = vmatpush1.bf16.msra.mxu0 %v1752
  %2465 = vmatprep.subr.bf16.mxu0 %v1751
  %2466 = vmatpush1.bf16.msra.mxu0 %v1750
  %2467 = vmatprep.subr.bf16.mxu0 %v1749
  %2468 = vmatpush1.bf16.msra.mxu0 %v1748
  %2469 = vmatprep.subr.bf16.mxu0 %v1747
  %2470 = vmatpush1.bf16.msra.mxu0 %v1746
  %2471 = vmatprep.subr.bf16.mxu0 %v1745
  %2472 = vmatpush1.bf16.msra.mxu0 %v1744
  %2473 = vmatprep.subr.bf16.mxu0 %v1743
  %2474 = vmatpush1.bf16.msra.mxu0 %v1742
  %2475 = vmatprep.subr.bf16.mxu0 %v1741
  %2476 = vmatpush1.bf16.msra.mxu0 %v1740
  %2477 = vmatprep.subr.bf16.mxu0 %v1739
  %2478 = vmatpush1.bf16.msra.mxu0 %v1738
  %2479 = vmatprep.subr.bf16.mxu0 %v1769
  %2480 = vmatpush2.bf16.msra.mxu0 %v1768
  %2481 = vmatprep.subr.bf16.mxu0 %v1767
  %2482 = vmatpush2.bf16.msra.mxu0 %v1766
  %2483 = vmatprep.subr.bf16.mxu0 %v1765
  %2484 = vmatpush2.bf16.msra.mxu0 %v1764
  %2485 = vmatprep.subr.bf16.mxu0 %v1763
  %2486 = vmatpush2.bf16.msra.mxu0 %v1762
  %2487 = vmatprep.subr.bf16.mxu0 %v1761
  %2488 = vmatpush2.bf16.msra.mxu0 %v1760
  %2489 = vmatprep.subr.bf16.mxu0 %v1759
  %2490 = vmatpush2.bf16.msra.mxu0 %v1758
  %2491 = vmatprep.subr.bf16.mxu0 %v1757
  %2492 = vmatpush2.bf16.msra.mxu0 %v1756
  %2493 = vmatprep.subr.bf16.mxu0 %v1755
  %2494 = vmatpush2.bf16.msra.mxu0 %v1754
  %2495 = vmatprep.mubr.bf16.mxu0 %v742
  %2496 = vmatmul.mubr.bf16.gmra.mxu0 %v741
  %v2497 = vpop.f32.mrf.mxu0
  %v2498 = vadd.f32 %v2385, %v2497
  %v2499 = vpop.f32.mrf.mxu0
  %v2500 = vadd.f32 %v2387, %v2499
  %v2501 = vpop.f32.mrf.mxu0
  %v2502 = vadd.f32 %v2389, %v2501
  %v2503 = vpop.f32.mrf.mxu0
  %v2504 = vadd.f32 %v2391, %v2503
  %2505 = vmatprep.mubr.bf16.mxu0 %v757
  %2506 = vmatmul.mubr.bf16.gmra.mxu0 %v756
  %v2507 = vpop.f32.mrf.mxu0
  %v2508 = vadd.f32 %v2395, %v2507
  %v2509 = vpop.f32.mrf.mxu0
  %v2510 = vadd.f32 %v2397, %v2509
  %v2511 = vpop.f32.mrf.mxu0
  %v2512 = vadd.f32 %v2399, %v2511
  %v2513 = vpop.f32.mrf.mxu0
  %v2514 = vadd.f32 %v2401, %v2513
  %2515 = vmatprep.mubr.bf16.mxu0 %v772
  %2516 = vmatmul.mubr.bf16.gmra.mxu0 %v771
  %v2517 = vpop.f32.mrf.mxu0
  %v2518 = vadd.f32 %v2405, %v2517
  %v2519 = vpop.f32.mrf.mxu0
  %v2520 = vadd.f32 %v2407, %v2519
  %v2521 = vpop.f32.mrf.mxu0
  %v2522 = vadd.f32 %v2409, %v2521
  %v2523 = vpop.f32.mrf.mxu0
  %v2524 = vadd.f32 %v2411, %v2523
  %2525 = vmatprep.mubr.bf16.mxu0 %v787
  %2526 = vmatmul.mubr.bf16.gmra.mxu0 %v786
  %v2527 = vpop.f32.mrf.mxu0
  %v2528 = vadd.f32 %v2415, %v2527
  %v2529 = vpop.f32.mrf.mxu0
  %v2530 = vadd.f32 %v2417, %v2529
  %v2531 = vpop.f32.mrf.mxu0
  %v2532 = vadd.f32 %v2419, %v2531
  %v2533 = vpop.f32.mrf.mxu0
  %v2534 = vadd.f32 %v2421, %v2533
  %2535 = vmatprep.mubr.bf16.mxu0 %v802
  %2536 = vmatmul.mubr.bf16.gmra.mxu0 %v801
  %v2537 = vpop.f32.mrf.mxu0
  %v2538 = vadd.f32 %v2425, %v2537
  %v2539 = vpop.f32.mrf.mxu0
  %v2540 = vadd.f32 %v2427, %v2539
  %v2541 = vpop.f32.mrf.mxu0
  %v2542 = vadd.f32 %v2429, %v2541
  %v2543 = vpop.f32.mrf.mxu0
  %v2544 = vadd.f32 %v2431, %v2543
  %2545 = vmatprep.mubr.bf16.mxu0 %v817
  %2546 = vmatmul.mubr.bf16.gmra.mxu0 %v816
  %v2547 = vpop.f32.mrf.mxu0
  %v2548 = vadd.f32 %v2435, %v2547
  %v2549 = vpop.f32.mrf.mxu0
  %v2550 = vadd.f32 %v2437, %v2549
  %v2551 = vpop.f32.mrf.mxu0
  %v2552 = vadd.f32 %v2439, %v2551
  %v2553 = vpop.f32.mrf.mxu0
  %v2554 = vadd.f32 %v2441, %v2553
  %2555 = vmatprep.mubr.bf16.mxu0 %v832
  %2556 = vmatmul.mubr.bf16.gmra.mxu0 %v831
  %v2557 = vpop.f32.mrf.mxu0
  %v2558 = vadd.f32 %v2445, %v2557
  %v2559 = vpop.f32.mrf.mxu0
  %v2560 = vadd.f32 %v2447, %v2559
  %v2561 = vpop.f32.mrf.mxu0
  %v2562 = vadd.f32 %v2449, %v2561
  %v2563 = vpop.f32.mrf.mxu0
  %v2564 = vadd.f32 %v2451, %v2563
  %2565 = vmatprep.mubr.bf16.mxu0 %v847
  %2566 = vmatmul.mubr.bf16.gmra.mxu0 %v846
  %v2567 = vpop.f32.mrf.mxu0
  %v2568 = vadd.f32 %v2455, %v2567
  %v2569 = vpop.f32.mrf.mxu0
  %v2570 = vadd.f32 %v2457, %v2569
  %v2571 = vpop.f32.mrf.mxu0
  %v2572 = vadd.f32 %v2459, %v2571
  %v2573 = vpop.f32.mrf.mxu0
  %v2574 = vadd.f32 %v2461, %v2573
  %2575 = vdwg.mxu0
  %2576 = vmatprep.subr.bf16.mxu0 %v1785
  %2577 = vmatpush1.bf16.msra.mxu0 %v1784
  %2578 = vmatprep.subr.bf16.mxu0 %v1783
  %2579 = vmatpush1.bf16.msra.mxu0 %v1782
  %2580 = vmatprep.subr.bf16.mxu0 %v1781
  %2581 = vmatpush1.bf16.msra.mxu0 %v1780
  %2582 = vmatprep.subr.bf16.mxu0 %v1779
  %2583 = vmatpush1.bf16.msra.mxu0 %v1778
  %2584 = vmatprep.subr.bf16.mxu0 %v1777
  %2585 = vmatpush1.bf16.msra.mxu0 %v1776
  %2586 = vmatprep.subr.bf16.mxu0 %v1775
  %2587 = vmatpush1.bf16.msra.mxu0 %v1774
  %2588 = vmatprep.subr.bf16.mxu0 %v1773
  %2589 = vmatpush1.bf16.msra.mxu0 %v1772
  %2590 = vmatprep.subr.bf16.mxu0 %v1771
  %2591 = vmatpush1.bf16.msra.mxu0 %v1770
  %2592 = vmatprep.subr.bf16.mxu0 %v1801
  %2593 = vmatpush2.bf16.msra.mxu0 %v1800
  %2594 = vmatprep.subr.bf16.mxu0 %v1799
  %2595 = vmatpush2.bf16.msra.mxu0 %v1798
  %2596 = vmatprep.subr.bf16.mxu0 %v1797
  %2597 = vmatpush2.bf16.msra.mxu0 %v1796
  %2598 = vmatprep.subr.bf16.mxu0 %v1795
  %2599 = vmatpush2.bf16.msra.mxu0 %v1794
  %2600 = vmatprep.subr.bf16.mxu0 %v1793
  %2601 = vmatpush2.bf16.msra.mxu0 %v1792
  %2602 = vmatprep.subr.bf16.mxu0 %v1791
  %2603 = vmatpush2.bf16.msra.mxu0 %v1790
  %2604 = vmatprep.subr.bf16.mxu0 %v1789
  %2605 = vmatpush2.bf16.msra.mxu0 %v1788
  %2606 = vmatprep.subr.bf16.mxu0 %v1787
  %2607 = vmatpush2.bf16.msra.mxu0 %v1786
  %2608 = vmatprep.mubr.bf16.mxu0 %v744
  %2609 = vmatmul.mubr.bf16.gmra.mxu0 %v743
  %v2610 = vpop.f32.mrf.mxu0
  %v2611 = vadd.f32 %v2498, %v2610
  %v2612 = vpop.f32.mrf.mxu0
  %v2613 = vadd.f32 %v2500, %v2612
  %v2614 = vpop.f32.mrf.mxu0
  %v2615 = vadd.f32 %v2502, %v2614
  %v2616 = vpop.f32.mrf.mxu0
  %v2617 = vadd.f32 %v2504, %v2616
  %2618 = vmatprep.mubr.bf16.mxu0 %v759
  %2619 = vmatmul.mubr.bf16.gmra.mxu0 %v758
  %v2620 = vpop.f32.mrf.mxu0
  %v2621 = vadd.f32 %v2508, %v2620
  %v2622 = vpop.f32.mrf.mxu0
  %v2623 = vadd.f32 %v2510, %v2622
  %v2624 = vpop.f32.mrf.mxu0
  %v2625 = vadd.f32 %v2512, %v2624
  %v2626 = vpop.f32.mrf.mxu0
  %v2627 = vadd.f32 %v2514, %v2626
  %2628 = vmatprep.mubr.bf16.mxu0 %v774
  %2629 = vmatmul.mubr.bf16.gmra.mxu0 %v773
  %v2630 = vpop.f32.mrf.mxu0
  %v2631 = vadd.f32 %v2518, %v2630
  %v2632 = vpop.f32.mrf.mxu0
  %v2633 = vadd.f32 %v2520, %v2632
  %v2634 = vpop.f32.mrf.mxu0
  %v2635 = vadd.f32 %v2522, %v2634
  %v2636 = vpop.f32.mrf.mxu0
  %v2637 = vadd.f32 %v2524, %v2636
  %2638 = vmatprep.mubr.bf16.mxu0 %v789
  %2639 = vmatmul.mubr.bf16.gmra.mxu0 %v788
  %v2640 = vpop.f32.mrf.mxu0
  %v2641 = vadd.f32 %v2528, %v2640
  %v2642 = vpop.f32.mrf.mxu0
  %v2643 = vadd.f32 %v2530, %v2642
  %v2644 = vpop.f32.mrf.mxu0
  %v2645 = vadd.f32 %v2532, %v2644
  %v2646 = vpop.f32.mrf.mxu0
  %v2647 = vadd.f32 %v2534, %v2646
  %2648 = vmatprep.mubr.bf16.mxu0 %v804
  %2649 = vmatmul.mubr.bf16.gmra.mxu0 %v803
  %v2650 = vpop.f32.mrf.mxu0
  %v2651 = vadd.f32 %v2538, %v2650
  %v2652 = vpop.f32.mrf.mxu0
  %v2653 = vadd.f32 %v2540, %v2652
  %v2654 = vpop.f32.mrf.mxu0
  %v2655 = vadd.f32 %v2542, %v2654
  %v2656 = vpop.f32.mrf.mxu0
  %v2657 = vadd.f32 %v2544, %v2656
  %2658 = vmatprep.mubr.bf16.mxu0 %v819
  %2659 = vmatmul.mubr.bf16.gmra.mxu0 %v818
  %v2660 = vpop.f32.mrf.mxu0
  %v2661 = vadd.f32 %v2548, %v2660
  %v2662 = vpop.f32.mrf.mxu0
  %v2663 = vadd.f32 %v2550, %v2662
  %v2664 = vpop.f32.mrf.mxu0
  %v2665 = vadd.f32 %v2552, %v2664
  %v2666 = vpop.f32.mrf.mxu0
  %v2667 = vadd.f32 %v2554, %v2666
  %2668 = vmatprep.mubr.bf16.mxu0 %v834
  %2669 = vmatmul.mubr.bf16.gmra.mxu0 %v833
  %v2670 = vpop.f32.mrf.mxu0
  %v2671 = vadd.f32 %v2558, %v2670
  %v2672 = vpop.f32.mrf.mxu0
  %v2673 = vadd.f32 %v2560, %v2672
  %v2674 = vpop.f32.mrf.mxu0
  %v2675 = vadd.f32 %v2562, %v2674
  %v2676 = vpop.f32.mrf.mxu0
  %v2677 = vadd.f32 %v2564, %v2676
  %2678 = vmatprep.mubr.bf16.mxu0 %v849
  %2679 = vmatmul.mubr.bf16.gmra.mxu0 %v848
  %v2680 = vpop.f32.mrf.mxu0
  %v2681 = vadd.f32 %v2568, %v2680
  %v2682 = vpop.f32.mrf.mxu0
  %v2683 = vadd.f32 %v2570, %v2682
  %v2684 = vpop.f32.mrf.mxu0
  %v2685 = vadd.f32 %v2572, %v2684
  %v2686 = vpop.f32.mrf.mxu0
  %v2687 = vadd.f32 %v2574, %v2686
  %2688 = vdwg.mxu0
  %2689 = vmatprep.subr.bf16.mxu0 %v1817
  %2690 = vmatpush1.bf16.msra.mxu0 %v1816
  %2691 = vmatprep.subr.bf16.mxu0 %v1815
  %2692 = vmatpush1.bf16.msra.mxu0 %v1814
  %2693 = vmatprep.subr.bf16.mxu0 %v1813
  %2694 = vmatpush1.bf16.msra.mxu0 %v1812
  %2695 = vmatprep.subr.bf16.mxu0 %v1811
  %2696 = vmatpush1.bf16.msra.mxu0 %v1810
  %2697 = vmatprep.subr.bf16.mxu0 %v1809
  %2698 = vmatpush1.bf16.msra.mxu0 %v1808
  %2699 = vmatprep.subr.bf16.mxu0 %v1807
  %2700 = vmatpush1.bf16.msra.mxu0 %v1806
  %2701 = vmatprep.subr.bf16.mxu0 %v1805
  %2702 = vmatpush1.bf16.msra.mxu0 %v1804
  %2703 = vmatprep.subr.bf16.mxu0 %v1803
  %2704 = vmatpush1.bf16.msra.mxu0 %v1802
  %2705 = vmatprep.subr.bf16.mxu0 %v1833
  %2706 = vmatpush2.bf16.msra.mxu0 %v1832
  %2707 = vmatprep.subr.bf16.mxu0 %v1831
  %2708 = vmatpush2.bf16.msra.mxu0 %v1830
  %2709 = vmatprep.subr.bf16.mxu0 %v1829
  %2710 = vmatpush2.bf16.msra.mxu0 %v1828
  %2711 = vmatprep.subr.bf16.mxu0 %v1827
  %2712 = vmatpush2.bf16.msra.mxu0 %v1826
  %2713 = vmatprep.subr.bf16.mxu0 %v1825
  %2714 = vmatpush2.bf16.msra.mxu0 %v1824
  %2715 = vmatprep.subr.bf16.mxu0 %v1823
  %2716 = vmatpush2.bf16.msra.mxu0 %v1822
  %2717 = vmatprep.subr.bf16.mxu0 %v1821
  %2718 = vmatpush2.bf16.msra.mxu0 %v1820
  %2719 = vmatprep.subr.bf16.mxu0 %v1819
  %2720 = vmatpush2.bf16.msra.mxu0 %v1818
  %2721 = vmatprep.mubr.bf16.mxu0 %v746
  %2722 = vmatmul.mubr.bf16.gmra.mxu0 %v745
  %v2723 = vpop.f32.mrf.mxu0
  %v2724 = vadd.f32 %v2611, %v2723
  %v2725 = vpop.f32.mrf.mxu0
  %v2726 = vadd.f32 %v2613, %v2725
  %v2727 = vpop.f32.mrf.mxu0
  %v2728 = vadd.f32 %v2615, %v2727
  %v2729 = vpop.f32.mrf.mxu0
  %v2730 = vadd.f32 %v2617, %v2729
  %2731 = vmatprep.mubr.bf16.mxu0 %v761
  %2732 = vmatmul.mubr.bf16.gmra.mxu0 %v760
  %v2733 = vpop.f32.mrf.mxu0
  %v2734 = vadd.f32 %v2621, %v2733
  %v2735 = vpop.f32.mrf.mxu0
  %v2736 = vadd.f32 %v2623, %v2735
  %v2737 = vpop.f32.mrf.mxu0
  %v2738 = vadd.f32 %v2625, %v2737
  %v2739 = vpop.f32.mrf.mxu0
  %v2740 = vadd.f32 %v2627, %v2739
  %2741 = vmatprep.mubr.bf16.mxu0 %v776
  %2742 = vmatmul.mubr.bf16.gmra.mxu0 %v775
  %v2743 = vpop.f32.mrf.mxu0
  %v2744 = vadd.f32 %v2631, %v2743
  %v2745 = vpop.f32.mrf.mxu0
  %v2746 = vadd.f32 %v2633, %v2745
  %v2747 = vpop.f32.mrf.mxu0
  %v2748 = vadd.f32 %v2635, %v2747
  %v2749 = vpop.f32.mrf.mxu0
  %v2750 = vadd.f32 %v2637, %v2749
  %2751 = vmatprep.mubr.bf16.mxu0 %v791
  %2752 = vmatmul.mubr.bf16.gmra.mxu0 %v790
  %v2753 = vpop.f32.mrf.mxu0
  %v2754 = vadd.f32 %v2641, %v2753
  %v2755 = vpop.f32.mrf.mxu0
  %v2756 = vadd.f32 %v2643, %v2755
  %v2757 = vpop.f32.mrf.mxu0
  %v2758 = vadd.f32 %v2645, %v2757
  %v2759 = vpop.f32.mrf.mxu0
  %v2760 = vadd.f32 %v2647, %v2759
  %2761 = vmatprep.mubr.bf16.mxu0 %v806
  %2762 = vmatmul.mubr.bf16.gmra.mxu0 %v805
  %v2763 = vpop.f32.mrf.mxu0
  %v2764 = vadd.f32 %v2651, %v2763
  %v2765 = vpop.f32.mrf.mxu0
  %v2766 = vadd.f32 %v2653, %v2765
  %v2767 = vpop.f32.mrf.mxu0
  %v2768 = vadd.f32 %v2655, %v2767
  %v2769 = vpop.f32.mrf.mxu0
  %v2770 = vadd.f32 %v2657, %v2769
  %2771 = vmatprep.mubr.bf16.mxu0 %v821
  %2772 = vmatmul.mubr.bf16.gmra.mxu0 %v820
  %v2773 = vpop.f32.mrf.mxu0
  %v2774 = vadd.f32 %v2661, %v2773
  %v2775 = vpop.f32.mrf.mxu0
  %v2776 = vadd.f32 %v2663, %v2775
  %v2777 = vpop.f32.mrf.mxu0
  %v2778 = vadd.f32 %v2665, %v2777
  %v2779 = vpop.f32.mrf.mxu0
  %v2780 = vadd.f32 %v2667, %v2779
  %2781 = vmatprep.mubr.bf16.mxu0 %v836
  %2782 = vmatmul.mubr.bf16.gmra.mxu0 %v835
  %v2783 = vpop.f32.mrf.mxu0
  %v2784 = vadd.f32 %v2671, %v2783
  %v2785 = vpop.f32.mrf.mxu0
  %v2786 = vadd.f32 %v2673, %v2785
  %v2787 = vpop.f32.mrf.mxu0
  %v2788 = vadd.f32 %v2675, %v2787
  %v2789 = vpop.f32.mrf.mxu0
  %v2790 = vadd.f32 %v2677, %v2789
  %2791 = vmatprep.mubr.bf16.mxu0 %v851
  %2792 = vmatmul.mubr.bf16.gmra.mxu0 %v850
  %v2793 = vpop.f32.mrf.mxu0
  %v2794 = vadd.f32 %v2681, %v2793
  %v2795 = vpop.f32.mrf.mxu0
  %v2796 = vadd.f32 %v2683, %v2795
  %v2797 = vpop.f32.mrf.mxu0
  %v2798 = vadd.f32 %v2685, %v2797
  %v2799 = vpop.f32.mrf.mxu0
  %v2800 = vadd.f32 %v2687, %v2799
  %2801 = vdwg.mxu0
  %2802 = vmatprep.subr.bf16.mxu0 %v1849
  %2803 = vmatpush1.bf16.msra.mxu0 %v1848
  %2804 = vmatprep.subr.bf16.mxu0 %v1847
  %2805 = vmatpush1.bf16.msra.mxu0 %v1846
  %2806 = vmatprep.subr.bf16.mxu0 %v1845
  %2807 = vmatpush1.bf16.msra.mxu0 %v1844
  %2808 = vmatprep.subr.bf16.mxu0 %v1843
  %2809 = vmatpush1.bf16.msra.mxu0 %v1842
  %2810 = vmatprep.subr.bf16.mxu0 %v1841
  %2811 = vmatpush1.bf16.msra.mxu0 %v1840
  %2812 = vmatprep.subr.bf16.mxu0 %v1839
  %2813 = vmatpush1.bf16.msra.mxu0 %v1838
  %2814 = vmatprep.subr.bf16.mxu0 %v1837
  %2815 = vmatpush1.bf16.msra.mxu0 %v1836
  %2816 = vmatprep.subr.bf16.mxu0 %v1835
  %2817 = vmatpush1.bf16.msra.mxu0 %v1834
  %2818 = vmatprep.subr.bf16.mxu0 %v1865
  %2819 = vmatpush2.bf16.msra.mxu0 %v1864
  %2820 = vmatprep.subr.bf16.mxu0 %v1863
  %2821 = vmatpush2.bf16.msra.mxu0 %v1862
  %2822 = vmatprep.subr.bf16.mxu0 %v1861
  %2823 = vmatpush2.bf16.msra.mxu0 %v1860
  %2824 = vmatprep.subr.bf16.mxu0 %v1859
  %2825 = vmatpush2.bf16.msra.mxu0 %v1858
  %2826 = vmatprep.subr.bf16.mxu0 %v1857
  %2827 = vmatpush2.bf16.msra.mxu0 %v1856
  %2828 = vmatprep.subr.bf16.mxu0 %v1855
  %2829 = vmatpush2.bf16.msra.mxu0 %v1854
  %2830 = vmatprep.subr.bf16.mxu0 %v1853
  %2831 = vmatpush2.bf16.msra.mxu0 %v1852
  %2832 = vmatprep.subr.bf16.mxu0 %v1851
  %2833 = vmatpush2.bf16.msra.mxu0 %v1850
  %2834 = vmatprep.mubr.bf16.mxu0 %v748
  %2835 = vmatmul.mubr.bf16.gmra.mxu0 %v747
  %v2836 = vpop.f32.mrf.mxu0
  %v2837 = vadd.f32 %v2724, %v2836
  %v2838 = vpop.f32.mrf.mxu0
  %v2839 = vadd.f32 %v2726, %v2838
  %v2840 = vpop.f32.mrf.mxu0
  %v2841 = vadd.f32 %v2728, %v2840
  %v2842 = vpop.f32.mrf.mxu0
  %v2843 = vadd.f32 %v2730, %v2842
  %2844 = vmatprep.mubr.bf16.mxu0 %v763
  %2845 = vmatmul.mubr.bf16.gmra.mxu0 %v762
  %v2846 = vpop.f32.mrf.mxu0
  %v2847 = vadd.f32 %v2734, %v2846
  %v2848 = vpop.f32.mrf.mxu0
  %v2849 = vadd.f32 %v2736, %v2848
  %v2850 = vpop.f32.mrf.mxu0
  %v2851 = vadd.f32 %v2738, %v2850
  %v2852 = vpop.f32.mrf.mxu0
  %v2853 = vadd.f32 %v2740, %v2852
  %2854 = vmatprep.mubr.bf16.mxu0 %v778
  %2855 = vmatmul.mubr.bf16.gmra.mxu0 %v777
  %v2856 = vpop.f32.mrf.mxu0
  %v2857 = vadd.f32 %v2744, %v2856
  %v2858 = vpop.f32.mrf.mxu0
  %v2859 = vadd.f32 %v2746, %v2858
  %v2860 = vpop.f32.mrf.mxu0
  %v2861 = vadd.f32 %v2748, %v2860
  %v2862 = vpop.f32.mrf.mxu0
  %v2863 = vadd.f32 %v2750, %v2862
  %2864 = vmatprep.mubr.bf16.mxu0 %v793
  %2865 = vmatmul.mubr.bf16.gmra.mxu0 %v792
  %v2866 = vpop.f32.mrf.mxu0
  %v2867 = vadd.f32 %v2754, %v2866
  %v2868 = vpop.f32.mrf.mxu0
  %v2869 = vadd.f32 %v2756, %v2868
  %v2870 = vpop.f32.mrf.mxu0
  %v2871 = vadd.f32 %v2758, %v2870
  %v2872 = vpop.f32.mrf.mxu0
  %v2873 = vadd.f32 %v2760, %v2872
  %2874 = vmatprep.mubr.bf16.mxu0 %v808
  %2875 = vmatmul.mubr.bf16.gmra.mxu0 %v807
  %v2876 = vpop.f32.mrf.mxu0
  %v2877 = vadd.f32 %v2764, %v2876
  %v2878 = vpop.f32.mrf.mxu0
  %v2879 = vadd.f32 %v2766, %v2878
  %v2880 = vpop.f32.mrf.mxu0
  %v2881 = vadd.f32 %v2768, %v2880
  %v2882 = vpop.f32.mrf.mxu0
  %v2883 = vadd.f32 %v2770, %v2882
  %2884 = vmatprep.mubr.bf16.mxu0 %v823
  %2885 = vmatmul.mubr.bf16.gmra.mxu0 %v822
  %v2886 = vpop.f32.mrf.mxu0
  %v2887 = vadd.f32 %v2774, %v2886
  %v2888 = vpop.f32.mrf.mxu0
  %v2889 = vadd.f32 %v2776, %v2888
  %v2890 = vpop.f32.mrf.mxu0
  %v2891 = vadd.f32 %v2778, %v2890
  %v2892 = vpop.f32.mrf.mxu0
  %v2893 = vadd.f32 %v2780, %v2892
  %2894 = vmatprep.mubr.bf16.mxu0 %v838
  %2895 = vmatmul.mubr.bf16.gmra.mxu0 %v837
  %v2896 = vpop.f32.mrf.mxu0
  %v2897 = vadd.f32 %v2784, %v2896
  %v2898 = vpop.f32.mrf.mxu0
  %v2899 = vadd.f32 %v2786, %v2898
  %v2900 = vpop.f32.mrf.mxu0
  %v2901 = vadd.f32 %v2788, %v2900
  %v2902 = vpop.f32.mrf.mxu0
  %v2903 = vadd.f32 %v2790, %v2902
  %2904 = vmatprep.mubr.bf16.mxu0 %v853
  %2905 = vmatmul.mubr.bf16.gmra.mxu0 %v852
  %v2906 = vpop.f32.mrf.mxu0
  %v2907 = vadd.f32 %v2794, %v2906
  %v2908 = vpop.f32.mrf.mxu0
  %v2909 = vadd.f32 %v2796, %v2908
  %v2910 = vpop.f32.mrf.mxu0
  %v2911 = vadd.f32 %v2798, %v2910
  %v2912 = vpop.f32.mrf.mxu0
  %v2913 = vadd.f32 %v2800, %v2912
  %2914 = vdwg.mxu0
  %2915 = vmatprep.subr.bf16.mxu0 0
  %2916 = vmatpush1.bf16.msra.mxu0 0
  %2917 = vmatprep.subr.bf16.mxu0 0
  %2918 = vmatpush1.bf16.msra.mxu0 0
  %2919 = vmatprep.subr.bf16.mxu0 0
  %2920 = vmatpush1.bf16.msra.mxu0 0
  %2921 = vmatprep.subr.bf16.mxu0 0
  %2922 = vmatpush1.bf16.msra.mxu0 0
  %2923 = vmatprep.subr.bf16.mxu0 0
  %2924 = vmatpush1.bf16.msra.mxu0 0
  %2925 = vmatprep.subr.bf16.mxu0 0
  %2926 = vmatpush1.bf16.msra.mxu0 0
  %2927 = vmatprep.subr.bf16.mxu0 0
  %2928 = vmatpush1.bf16.msra.mxu0 0
  %2929 = vmatprep.subr.bf16.mxu0 %v2122
  %2930 = vmatpush1.bf16.msra.mxu0 %v2119
  %2931 = vmatprep.subr.bf16.mxu0 0
  %2932 = vmatpush2.bf16.msra.mxu0 0
  %2933 = vmatprep.subr.bf16.mxu0 0
  %2934 = vmatpush2.bf16.msra.mxu0 0
  %2935 = vmatprep.subr.bf16.mxu0 0
  %2936 = vmatpush2.bf16.msra.mxu0 0
  %2937 = vmatprep.subr.bf16.mxu0 0
  %2938 = vmatpush2.bf16.msra.mxu0 0
  %2939 = vmatprep.subr.bf16.mxu0 0
  %2940 = vmatpush2.bf16.msra.mxu0 0
  %2941 = vmatprep.subr.bf16.mxu0 0
  %2942 = vmatpush2.bf16.msra.mxu0 0
  %2943 = vmatprep.subr.bf16.mxu0 0
  %2944 = vmatpush2.bf16.msra.mxu0 0
  %2945 = vmatprep.subr.bf16.mxu0 0
  %2946 = vmatpush2.bf16.msra.mxu0 0
  %2947 = vmatprep.mubr.bf16.mxu0 0
  %2948 = vmatmul.mubr.bf16.gmra.mxu0 %v2094
  %v2949 = vpop.f32.mrf.mxu0
  %v2950 = vadd.f32 %v2837, %v2949
  %v2951 = vpop.f32.mrf.mxu0
  %v2952 = vadd.f32 %v2839, %v2951
  %v2953 = vpop.f32.mrf.mxu0
  %v2954 = vadd.f32 %v2841, %v2953
  %v2955 = vpop.f32.mrf.mxu0
  %v2956 = vadd.f32 %v2843, %v2955
  %2957 = vmatprep.mubr.bf16.mxu0 0
  %2958 = vmatmul.mubr.bf16.gmra.mxu0 %v2097
  %v2959 = vpop.f32.mrf.mxu0
  %v2960 = vadd.f32 %v2847, %v2959
  %v2961 = vpop.f32.mrf.mxu0
  %v2962 = vadd.f32 %v2849, %v2961
  %v2963 = vpop.f32.mrf.mxu0
  %v2964 = vadd.f32 %v2851, %v2963
  %v2965 = vpop.f32.mrf.mxu0
  %v2966 = vadd.f32 %v2853, %v2965
  %2967 = vmatprep.mubr.bf16.mxu0 0
  %2968 = vmatmul.mubr.bf16.gmra.mxu0 %v2100
  %v2969 = vpop.f32.mrf.mxu0
  %v2970 = vadd.f32 %v2857, %v2969
  %v2971 = vpop.f32.mrf.mxu0
  %v2972 = vadd.f32 %v2859, %v2971
  %v2973 = vpop.f32.mrf.mxu0
  %v2974 = vadd.f32 %v2861, %v2973
  %v2975 = vpop.f32.mrf.mxu0
  %v2976 = vadd.f32 %v2863, %v2975
  %2977 = vmatprep.mubr.bf16.mxu0 0
  %2978 = vmatmul.mubr.bf16.gmra.mxu0 %v2103
  %v2979 = vpop.f32.mrf.mxu0
  %v2980 = vadd.f32 %v2867, %v2979
  %v2981 = vpop.f32.mrf.mxu0
  %v2982 = vadd.f32 %v2869, %v2981
  %v2983 = vpop.f32.mrf.mxu0
  %v2984 = vadd.f32 %v2871, %v2983
  %v2985 = vpop.f32.mrf.mxu0
  %v2986 = vadd.f32 %v2873, %v2985
  %2987 = vmatprep.mubr.bf16.mxu0 0
  %2988 = vmatmul.mubr.bf16.gmra.mxu0 %v2106
  %v2989 = vpop.f32.mrf.mxu0
  %v2990 = vadd.f32 %v2877, %v2989
  %v2991 = vpop.f32.mrf.mxu0
  %v2992 = vadd.f32 %v2879, %v2991
  %v2993 = vpop.f32.mrf.mxu0
  %v2994 = vadd.f32 %v2881, %v2993
  %v2995 = vpop.f32.mrf.mxu0
  %v2996 = vadd.f32 %v2883, %v2995
  %2997 = vmatprep.mubr.bf16.mxu0 0
  %2998 = vmatmul.mubr.bf16.gmra.mxu0 %v2109
  %v2999 = vpop.f32.mrf.mxu0
  %v3000 = vadd.f32 %v2887, %v2999
  %v3001 = vpop.f32.mrf.mxu0
  %v3002 = vadd.f32 %v2889, %v3001
  %v3003 = vpop.f32.mrf.mxu0
  %v3004 = vadd.f32 %v2891, %v3003
  %v3005 = vpop.f32.mrf.mxu0
  %v3006 = vadd.f32 %v2893, %v3005
  %3007 = vmatprep.mubr.bf16.mxu0 0
  %3008 = vmatmul.mubr.bf16.gmra.mxu0 %v2112
  %v3009 = vpop.f32.mrf.mxu0
  %v3010 = vadd.f32 %v2897, %v3009
  %v3011 = vpop.f32.mrf.mxu0
  %v3012 = vadd.f32 %v2899, %v3011
  %v3013 = vpop.f32.mrf.mxu0
  %v3014 = vadd.f32 %v2901, %v3013
  %v3015 = vpop.f32.mrf.mxu0
  %v3016 = vadd.f32 %v2903, %v3015
  %3017 = vmatprep.mubr.bf16.mxu0 0
  %3018 = vmatmul.mubr.bf16.gmra.mxu0 %v2115
  %v3019 = vpop.f32.mrf.mxu0
  %v3020 = vadd.f32 %v2907, %v3019
  %v3021 = vpop.f32.mrf.mxu0
  %v3022 = vadd.f32 %v2909, %v3021
  %v3023 = vpop.f32.mrf.mxu0
  %v3024 = vadd.f32 %v2911, %v3023
  %v3025 = vpop.f32.mrf.mxu0
  %v3026 = vadd.f32 %v2913, %v3025
  %3027 = vdwg.mxu0
  %3028 = vst [vmem:[%s2] sm:$0xff] %v2950
  %vm3029 = vcmask 588800
  %3030 = vst.msk [vmem:[%s2 + $0x8] sm:$0xff] %vm3029, %v2952
  %3031 = vst [vmem:[%s2 + $0x10] sm:$0xff] %v2954
  %3032 = vst.msk [vmem:[%s2 + $0x18] sm:$0xff] %vm3029, %v2956
  %3033 = vst [vmem:[%s2 + $0x20] sm:$0xff] %v2960
  %3034 = vst.msk [vmem:[%s2 + $0x28] sm:$0xff] %vm3029, %v2962
  %3035 = vst [vmem:[%s2 + $0x30] sm:$0xff] %v2964
  %3036 = vst.msk [vmem:[%s2 + $0x38] sm:$0xff] %vm3029, %v2966
  %3037 = vst [vmem:[%s2 + $0x40] sm:$0xff] %v2970
  %3038 = vst.msk [vmem:[%s2 + $0x48] sm:$0xff] %vm3029, %v2972
  %3039 = vst [vmem:[%s2 + $0x50] sm:$0xff] %v2974
  %3040 = vst.msk [vmem:[%s2 + $0x58] sm:$0xff] %vm3029, %v2976
  %3041 = vst [vmem:[%s2 + $0x60] sm:$0xff] %v2980
  %3042 = vst.msk [vmem:[%s2 + $0x68] sm:$0xff] %vm3029, %v2982
  %3043 = vst [vmem:[%s2 + $0x70] sm:$0xff] %v2984
  %3044 = vst.msk [vmem:[%s2 + $0x78] sm:$0xff] %vm3029, %v2986
  %3045 = vst [vmem:[%s2 + $0x80] sm:$0xff] %v2990
  %3046 = vst.msk [vmem:[%s2 + $0x88] sm:$0xff] %vm3029, %v2992
  %3047 = vst [vmem:[%s2 + $0x90] sm:$0xff] %v2994
  %3048 = vst.msk [vmem:[%s2 + $0x98] sm:$0xff] %vm3029, %v2996
  %3049 = vst [vmem:[%s2 + $0xa0] sm:$0xff] %v3000
  %3050 = vst.msk [vmem:[%s2 + $0xa8] sm:$0xff] %vm3029, %v3002
  %3051 = vst [vmem:[%s2 + $0xb0] sm:$0xff] %v3004
  %3052 = vst.msk [vmem:[%s2 + $0xb8] sm:$0xff] %vm3029, %v3006
  %3053 = vst [vmem:[%s2 + $0xc0] sm:$0xff] %v3010
  %3054 = vst.msk [vmem:[%s2 + $0xc8] sm:$0xff] %vm3029, %v3012
  %3055 = vst [vmem:[%s2 + $0xd0] sm:$0xff] %v3014
  %3056 = vst.msk [vmem:[%s2 + $0xd8] sm:$0xff] %vm3029, %v3016
  %3057 = vst [vmem:[%s2 + $0xe0] sm:$0xff] %v3020
  %3058 = vst.msk [vmem:[%s2 + $0xe8] sm:$0xff] %vm3029, %v3022
  %3059 = vst [vmem:[%s2 + $0xf0] sm:$0xff] %v3024
  %3060 = vst.msk [vmem:[%s2 + $0xf8] sm:$0xff] %vm3029, %v3026
  %v3061 = vadd.f32 %v2950, %v2954
  %v3062 = vadd.f32 %v3061, %v2960
  %v3063 = vadd.f32 %v3062, %v2964
  %v3064 = vadd.f32 %v3063, %v2970
  %v3065 = vadd.f32 %v3064, %v2974
  %v3066 = vadd.f32 %v3065, %v2980
  %v3067 = vadd.f32 %v3066, %v2984
  %v3068 = vadd.f32 %v3067, %v2990
  %v3069 = vadd.f32 %v3068, %v2994
  %v3070 = vadd.f32 %v3069, %v3000
  %v3071 = vadd.f32 %v3070, %v3004
  %v3072 = vadd.f32 %v3071, %v3010
  %v3073 = vadd.f32 %v3072, %v3014
  %v3074 = vadd.f32 %v3073, %v3020
  %v3075 = vadd.f32 %v3074, %v3024
  %v3076 = vrot.slane %v3075, 4
  %v3077 = vadd.f32 %v3075, %v3076
  %v3078 = vrot.slane %v3077, 2
  %v3079 = vadd.f32 %v3077, %v3078
  %v3080 = vrot.slane %v3079, 1
  %v3081 = vadd.f32 %v3079, %v3080
  %v3082 = vsel %vm3029, %v2952, 0.0
  %v3083 = vsel %vm3029, %v2956, 0.0
  %v3084 = vadd.f32 %v3082, %v3083
  %v3085 = vsel %vm3029, %v2962, 0.0
  %v3086 = vadd.f32 %v3084, %v3085
  %v3087 = vsel %vm3029, %v2966, 0.0
  %v3088 = vadd.f32 %v3086, %v3087
  %v3089 = vsel %vm3029, %v2972, 0.0
  %v3090 = vadd.f32 %v3088, %v3089
  %v3091 = vsel %vm3029, %v2976, 0.0
  %v3092 = vadd.f32 %v3090, %v3091
  %v3093 = vsel %vm3029, %v2982, 0.0
  %v3094 = vadd.f32 %v3092, %v3093
  %v3095 = vsel %vm3029, %v2986, 0.0
  %v3096 = vadd.f32 %v3094, %v3095
  %v3097 = vsel %vm3029, %v2992, 0.0
  %v3098 = vadd.f32 %v3096, %v3097
  %v3099 = vsel %vm3029, %v2996, 0.0
  %v3100 = vadd.f32 %v3098, %v3099
  %v3101 = vsel %vm3029, %v3002, 0.0
  %v3102 = vadd.f32 %v3100, %v3101
  %v3103 = vsel %vm3029, %v3006, 0.0
  %v3104 = vadd.f32 %v3102, %v3103
  %v3105 = vsel %vm3029, %v3012, 0.0
  %v3106 = vadd.f32 %v3104, %v3105
  %v3107 = vsel %vm3029, %v3016, 0.0
  %v3108 = vadd.f32 %v3106, %v3107
  %v3109 = vsel %vm3029, %v3022, 0.0
  %v3110 = vadd.f32 %v3108, %v3109
  %v3111 = vsel %vm3029, %v3026, 0.0
  %v3112 = vadd.f32 %v3110, %v3111
  %v3113 = vrot.slane %v3112, 4
  %v3114 = vadd.f32 %v3112, %v3113
  %v3115 = vrot.slane %v3114, 2
  %v3116 = vadd.f32 %v3114, %v3115
  %v3117 = vrot.slane %v3116, 1
  %v3118 = vadd.f32 %v3116, %v3117
  %v3119 = vmul.f32 %v2950, %v2950
  %v3120 = vmul.f32 %v2952, %v2952
  %v3121 = vmul.f32 %v2954, %v2954
  %v3122 = vmul.f32 %v2956, %v2956
  %v3123 = vmul.f32 %v2960, %v2960
  %v3124 = vmul.f32 %v2962, %v2962
  %v3125 = vmul.f32 %v2964, %v2964
  %v3126 = vmul.f32 %v2966, %v2966
  %v3127 = vmul.f32 %v2970, %v2970
  %v3128 = vmul.f32 %v2972, %v2972
  %v3129 = vmul.f32 %v2974, %v2974
  %v3130 = vmul.f32 %v2976, %v2976
  %v3131 = vmul.f32 %v2980, %v2980
  %v3132 = vmul.f32 %v2982, %v2982
  %v3133 = vmul.f32 %v2984, %v2984
  %v3134 = vmul.f32 %v2986, %v2986
  %v3135 = vmul.f32 %v2990, %v2990
  %v3136 = vmul.f32 %v2992, %v2992
  %v3137 = vmul.f32 %v2994, %v2994
  %v3138 = vmul.f32 %v2996, %v2996
  %v3139 = vmul.f32 %v3000, %v3000
  %v3140 = vmul.f32 %v3002, %v3002
  %v3141 = vmul.f32 %v3004, %v3004
  %v3142 = vmul.f32 %v3006, %v3006
  %v3143 = vmul.f32 %v3010, %v3010
  %v3144 = vmul.f32 %v3012, %v3012
  %v3145 = vmul.f32 %v3014, %v3014
  %v3146 = vmul.f32 %v3016, %v3016
  %v3147 = vmul.f32 %v3020, %v3020
  %v3148 = vmul.f32 %v3022, %v3022
  %v3149 = vmul.f32 %v3024, %v3024
  %v3150 = vmul.f32 %v3026, %v3026
  %v3151 = vadd.f32 %v3119, %v3121
  %v3152 = vadd.f32 %v3151, %v3123
  %v3153 = vadd.f32 %v3152, %v3125
  %v3154 = vadd.f32 %v3153, %v3127
  %v3155 = vadd.f32 %v3154, %v3129
  %v3156 = vadd.f32 %v3155, %v3131
  %v3157 = vadd.f32 %v3156, %v3133
  %v3158 = vadd.f32 %v3157, %v3135
  %v3159 = vadd.f32 %v3158, %v3137
  %v3160 = vadd.f32 %v3159, %v3139
  %v3161 = vadd.f32 %v3160, %v3141
  %v3162 = vadd.f32 %v3161, %v3143
  %v3163 = vadd.f32 %v3162, %v3145
  %v3164 = vadd.f32 %v3163, %v3147
  %v3165 = vadd.f32 %v3164, %v3149
  %v3166 = vrot.slane %v3165, 4
  %v3167 = vadd.f32 %v3165, %v3166
  %v3168 = vrot.slane %v3167, 2
  %v3169 = vadd.f32 %v3167, %v3168
  %v3170 = vrot.slane %v3169, 1
  %v3171 = vadd.f32 %v3169, %v3170
  %v3172 = vsel %vm3029, %v3120, 0.0
  %v3173 = vsel %vm3029, %v3122, 0.0
  %v3174 = vadd.f32 %v3172, %v3173
  %v3175 = vsel %vm3029, %v3124, 0.0
  %v3176 = vadd.f32 %v3174, %v3175
  %v3177 = vsel %vm3029, %v3126, 0.0
  %v3178 = vadd.f32 %v3176, %v3177
  %v3179 = vsel %vm3029, %v3128, 0.0
  %v3180 = vadd.f32 %v3178, %v3179
  %v3181 = vsel %vm3029, %v3130, 0.0
  %v3182 = vadd.f32 %v3180, %v3181
  %v3183 = vsel %vm3029, %v3132, 0.0
  %v3184 = vadd.f32 %v3182, %v3183
  %v3185 = vsel %vm3029, %v3134, 0.0
  %v3186 = vadd.f32 %v3184, %v3185
  %v3187 = vsel %vm3029, %v3136, 0.0
  %v3188 = vadd.f32 %v3186, %v3187
  %v3189 = vsel %vm3029, %v3138, 0.0
  %v3190 = vadd.f32 %v3188, %v3189
  %v3191 = vsel %vm3029, %v3140, 0.0
  %v3192 = vadd.f32 %v3190, %v3191
  %v3193 = vsel %vm3029, %v3142, 0.0
  %v3194 = vadd.f32 %v3192, %v3193
  %v3195 = vsel %vm3029, %v3144, 0.0
  %v3196 = vadd.f32 %v3194, %v3195
  %v3197 = vsel %vm3029, %v3146, 0.0
  %v3198 = vadd.f32 %v3196, %v3197
  %v3199 = vsel %vm3029, %v3148, 0.0
  %v3200 = vadd.f32 %v3198, %v3199
  %v3201 = vsel %vm3029, %v3150, 0.0
  %v3202 = vadd.f32 %v3200, %v3201
  %v3203 = vrot.slane %v3202, 4
  %v3204 = vadd.f32 %v3202, %v3203
  %v3205 = vrot.slane %v3204, 2
  %v3206 = vadd.f32 %v3204, %v3205
  %v3207 = vrot.slane %v3206, 1
  %v3208 = vadd.f32 %v3206, %v3207
  %vm3209 = vcmask 1040384
  %v3210 = vsel %vm3209, %v3081, %v3171
  %v3211 = vsel %vm3209, %v3118, %v3208
  %v3214 = vcombine.low %v3210, %v3211
  %v3216 = vunpack.c.l.s4 1983009808
  %v3217 = vunpack.c.0.s8 %v3216
  %v3218 = vlaneseq
  %v3219 = vshrl.u32 %v3218, 7
  %v3220 = vsub.s32 %v3217, %v3219
  %v3221 = vrot.slane %v3214, %v3220
  %vm3223 = vcmask 1041408
  %vm3224 = vcmask 584706
  %vm3225 = vmor %vm3224, %vm3223
  %3226 = vst.msk [vmem:[%s3] sm:$0xf] %vm3225, %v3221
  // Predicated region
  $region10: #{eeg_channelnet_encoder.14} parent=0 // pred_check
    _
  $region11: #{eeg_channelnet_encoder.14} parent=0 // pred_check_branch
    %3228 = sbr.rel (0) target = $region13
  $region12: #{eeg_channelnet_encoder.14} parent=0 // pred_region
    _
  $region13: #{eeg_channelnet_encoder.14} parent=0 // pred_fallthru
    _
  // Predicated region
  $region14: #{eeg_channelnet_encoder.14} parent=0 // pred_check
    _
  $region15: #{eeg_channelnet_encoder.14} parent=0 // pred_check_branch
    %3230 = sbr.rel (0) target = $region17
  $region16: #{eeg_channelnet_encoder.14} parent=0 // pred_region
    _
  $region17: #{eeg_channelnet_encoder.14} parent=0 // pred_fallthru
    _
  // Predicated region
  $region18: #{eeg_channelnet_encoder.14} parent=0 // pred_check
    _
  $region19: #{eeg_channelnet_encoder.14} parent=0 // pred_check_branch
    %3232 = sbr.rel (0) target = $region21
  $region20: #{eeg_channelnet_encoder.14} parent=0 // pred_region
    _
  $region21: #{eeg_channelnet_encoder.14} parent=0 // pred_fallthru
    _
  // Predicated region
  $region22: #{eeg_channelnet_encoder.14} parent=0 // pred_check
    _
  $region23: #{eeg_channelnet_encoder.14} parent=0 // pred_check_branch
    %3234 = sbr.rel (0) target = $region25
  $region24: #{eeg_channelnet_encoder.14} parent=0 // pred_region
    _
  $region25: #{eeg_channelnet_encoder.14} parent=0 // pred_fallthru
    _

// kernel: eeg_channelnet_encoder.18
$region0: #{eeg_channelnet_encoder.18}
  #allocation0 [shape = 'u32[]', space=smem, size = 0x4, offset = 0x4, fixed_abs, tag = 'smem constant byte address 0x4 - core index']
  #allocation1 [shape = 'u32[144,128]{1,0:T(1,128)}', space=vmem, size = 0x12000, scoped, tag = 'internal scratch']
  %s0 = inlined_call_operand.vmem [shape: bf16[48,3000], index: 0, kind: input, shape index: {}]
  %s1 = inlined_call_operand.vmem [shape: bf16[3000,50], index: 1, kind: input, shape index: {}]
  %s2 = inlined_call_operand.vmem [shape: f32[1,50], index: 2, kind: input, shape index: {}]
  %s3 = inlined_call_operand.vmem [shape: f32[48,50], index: 3, kind: output, shape index: {}]
  %s4 = sld [smem:[#allocation0]]
  $region22: #{eeg_channelnet_encoder.18} parent=0
    _
  %s6 = ssub.s32 1, %s4
  %s7 = scalar_select 0, %s6, %s4
  // Predicated region
  $region2: #{eeg_channelnet_encoder.18} parent=0 // pred_check
    _
  $region3: #{eeg_channelnet_encoder.18} parent=0 // pred_check_branch
    %9 = sbr.rel (0) target = $region5
  $region4: #{eeg_channelnet_encoder.18} parent=0 // pred_region
    _
  $region5: #{eeg_channelnet_encoder.18} parent=0 // pred_fallthru
    _
  // Predicated region
  $region6: #{eeg_channelnet_encoder.18} parent=0 // pred_check
    _
  $region7: #{eeg_channelnet_encoder.18} parent=0 // pred_check_branch
    %11 = sbr.rel (0) target = $region9
  $region8: #{eeg_channelnet_encoder.18} parent=0 // pred_region
    _
  $region9: #{eeg_channelnet_encoder.18} parent=0 // pred_fallthru
    _
  // Predicated region
  $region10: #{eeg_channelnet_encoder.18} parent=0 // pred_check
    _
  $region11: #{eeg_channelnet_encoder.18} parent=0 // pred_check_branch
    %13 = sbr.rel (0) target = $region13
  $region12: #{eeg_channelnet_encoder.18} parent=0 // pred_region
    _
  $region13: #{eeg_channelnet_encoder.18} parent=0 // pred_fallthru
    _
  %v15 = vld [vmem:[%s0] sm:$0xff]
  %v16 = vld [vmem:[%s0 + $0x8] sm:$0xff]
  %v17 = vld [vmem:[%s0 + $0x10] sm:$0xff]
  %v18 = vld [vmem:[%s0 + $0x18] sm:$0xff]
  %v19 = vld [vmem:[%s0 + $0x20] sm:$0xff]
  %v20 = vld [vmem:[%s0 + $0x28] sm:$0xff]
  %v21 = vld [vmem:[%s0 + $0x30] sm:$0xff]
  %v22 = vld [vmem:[%s0 + $0x38] sm:$0xff]
  %v23 = vld [vmem:[%s0 + $0x40] sm:$0xff]
  %v24 = vld [vmem:[%s0 + $0x48] sm:$0xff]
  %v25 = vld [vmem:[%s0 + $0x50] sm:$0xff]
  %v26 = vld [vmem:[%s0 + $0x58] sm:$0xff]
  %v27 = vld [vmem:[%s0 + $0x60] sm:$0xff]
  %v28 = vld [vmem:[%s0 + $0x68] sm:$0xff]
  %v29 = vld [vmem:[%s0 + $0x70] sm:$0xff]
  %v30 = vld [vmem:[%s0 + $0x78] sm:$0xff]
  %v31 = vld [vmem:[%s0 + $0x80] sm:$0xff]
  %v32 = vld [vmem:[%s0 + $0x88] sm:$0xff]
  %v33 = vld [vmem:[%s0 + $0x90] sm:$0xff]
  %v34 = vld [vmem:[%s0 + $0x98] sm:$0xff]
  %v35 = vld [vmem:[%s0 + $0xa0] sm:$0xff]
  %v36 = vld [vmem:[%s0 + $0xa8] sm:$0xff]
  %v37 = vld [vmem:[%s0 + $0xb0] sm:$0xff]
  %v38 = vld [vmem:[%s0 + $0xb8] sm:$0xff]
  %v39 = vld [vmem:[%s0 + $0xc0] sm:$0xff]
  %v40 = vld [vmem:[%s0 + $0xc8] sm:$0xff]
  %v41 = vld [vmem:[%s0 + $0xd0] sm:$0xff]
  %v42 = vld [vmem:[%s0 + $0xd8] sm:$0xff]
  %v43 = vld [vmem:[%s0 + $0xe0] sm:$0xff]
  %v44 = vld [vmem:[%s0 + $0xe8] sm:$0xff]
  %v45 = vld [vmem:[%s0 + $0xf0] sm:$0xff]
  %v46 = vld [vmem:[%s0 + $0xf8] sm:$0xff]
  %v47 = vld [vmem:[%s0 + $0x100] sm:$0xff]
  %v48 = vld [vmem:[%s0 + $0x108] sm:$0xff]
  %v49 = vld [vmem:[%s0 + $0x110] sm:$0xff]
  %v50 = vld [vmem:[%s0 + $0x118] sm:$0xff]
  %v51 = vld [vmem:[%s0 + $0x120] sm:$0xff]
  %v52 = vld [vmem:[%s0 + $0x128] sm:$0xff]
  %v53 = vld [vmem:[%s0 + $0x130] sm:$0xff]
  %v54 = vld [vmem:[%s0 + $0x138] sm:$0xff]
  %v55 = vld [vmem:[%s0 + $0x140] sm:$0xff]
  %v56 = vld [vmem:[%s0 + $0x148] sm:$0xff]
  %v57 = vld [vmem:[%s0 + $0x150] sm:$0xff]
  %v58 = vld [vmem:[%s0 + $0x158] sm:$0xff]
  %v59 = vld [vmem:[%s0 + $0x160] sm:$0xff]
  %v60 = vld [vmem:[%s0 + $0x168] sm:$0xff]
  %v61 = vld [vmem:[%s0 + $0x170] sm:$0xff]
  %v62 = vld [vmem:[%s0 + $0x178] sm:$0xff]
  %v63 = vld [vmem:[%s0 + $0x180] sm:$0xff]
  %v64 = vld [vmem:[%s0 + $0x188] sm:$0xff]
  %v65 = vld [vmem:[%s0 + $0x190] sm:$0xff]
  %v66 = vld [vmem:[%s0 + $0x198] sm:$0xff]
  %v67 = vld [vmem:[%s0 + $0x1a0] sm:$0xff]
  %v68 = vld [vmem:[%s0 + $0x1a8] sm:$0xff]
  %v69 = vld [vmem:[%s0 + $0x1b0] sm:$0xff]
  %v70 = vld [vmem:[%s0 + $0x1b8] sm:$0xff]
  %v71 = vld [vmem:[%s0 + $0x1c0] sm:$0xff]
  %v72 = vld [vmem:[%s0 + $0x1c8] sm:$0xff]
  %v73 = vld [vmem:[%s0 + $0x1d0] sm:$0xff]
  %v74 = vld [vmem:[%s0 + $0x1d8] sm:$0xff]
  %v75 = vld [vmem:[%s0 + $0x1e0] sm:$0xff]
  %v76 = vld [vmem:[%s0 + $0x1e8] sm:$0xff]
  %v77 = vld [vmem:[%s0 + $0x1f0] sm:$0xff]
  %v78 = vld [vmem:[%s0 + $0x1f8] sm:$0xff]
  %v79 = vld [vmem:[%s0 + $0x200] sm:$0xff]
  %v80 = vld [vmem:[%s0 + $0x208] sm:$0xff]
  %v81 = vld [vmem:[%s0 + $0x210] sm:$0xff]
  %v82 = vld [vmem:[%s0 + $0x218] sm:$0xff]
  %v83 = vld [vmem:[%s0 + $0x220] sm:$0xff]
  %v84 = vld [vmem:[%s0 + $0x228] sm:$0xff]
  %v85 = vld [vmem:[%s0 + $0x230] sm:$0xff]
  %v86 = vld [vmem:[%s0 + $0x238] sm:$0xff]
  %v87 = vld [vmem:[%s1] sm:$0xf]
  %v88 = vld [vmem:[%s1 + $0x4] sm:$0xf]
  %v89 = vld [vmem:[%s1 + $0x8] sm:$0xf]
  %v90 = vld [vmem:[%s1 + $0xc] sm:$0xf]
  %v91 = vld [vmem:[%s1 + $0x10] sm:$0xf]
  %v92 = vld [vmem:[%s1 + $0x14] sm:$0xf]
  %v93 = vld [vmem:[%s1 + $0x18] sm:$0xf]
  %v94 = vld [vmem:[%s1 + $0x1c] sm:$0xf]
  %v95 = vld [vmem:[%s1 + $0x20] sm:$0xf]
  %v96 = vld [vmem:[%s1 + $0x24] sm:$0xf]
  %v97 = vld [vmem:[%s1 + $0x28] sm:$0xf]
  %v98 = vld [vmem:[%s1 + $0x2c] sm:$0xf]
  %v99 = vld [vmem:[%s1 + $0x30] sm:$0xf]
  %v100 = vld [vmem:[%s1 + $0x34] sm:$0xf]
  %v101 = vld [vmem:[%s1 + $0x38] sm:$0xf]
  %v102 = vld [vmem:[%s1 + $0x3c] sm:$0xf]
  %v103 = vld [vmem:[%s1 + $0x40] sm:$0xf]
  %v104 = vld [vmem:[%s1 + $0x44] sm:$0xf]
  %v105 = vld [vmem:[%s1 + $0x48] sm:$0xf]
  %v106 = vld [vmem:[%s1 + $0x4c] sm:$0xf]
  %v107 = vld [vmem:[%s1 + $0x50] sm:$0xf]
  %v108 = vld [vmem:[%s1 + $0x54] sm:$0xf]
  %v109 = vld [vmem:[%s1 + $0x58] sm:$0xf]
  %v110 = vld [vmem:[%s1 + $0x5c] sm:$0xf]
  %v111 = vld [vmem:[%s1 + $0x60] sm:$0xf]
  %v112 = vld [vmem:[%s1 + $0x64] sm:$0xf]
  %v113 = vld [vmem:[%s1 + $0x68] sm:$0xf]
  %v114 = vld [vmem:[%s1 + $0x6c] sm:$0xf]
  %v115 = vld [vmem:[%s1 + $0x70] sm:$0xf]
  %v116 = vld [vmem:[%s1 + $0x74] sm:$0xf]
  %v117 = vld [vmem:[%s1 + $0x78] sm:$0xf]
  %v118 = vld [vmem:[%s1 + $0x7c] sm:$0xf]
  %v119 = vld [vmem:[%s1 + $0x80] sm:$0xf]
  %v120 = vld [vmem:[%s1 + $0x84] sm:$0xf]
  %v121 = vld [vmem:[%s1 + $0x88] sm:$0xf]
  %v122 = vld [vmem:[%s1 + $0x8c] sm:$0xf]
  %v123 = vld [vmem:[%s1 + $0x90] sm:$0xf]
  %v124 = vld [vmem:[%s1 + $0x94] sm:$0xf]
  %v125 = vld [vmem:[%s1 + $0x98] sm:$0xf]
  %v126 = vld [vmem:[%s1 + $0x9c] sm:$0xf]
  %v127 = vld [vmem:[%s1 + $0xa0] sm:$0xf]
  %v128 = vld [vmem:[%s1 + $0xa4] sm:$0xf]
  %v129 = vld [vmem:[%s1 + $0xa8] sm:$0xf]
  %v130 = vld [vmem:[%s1 + $0xac] sm:$0xf]
  %v131 = vld [vmem:[%s1 + $0xb0] sm:$0xf]
  %v132 = vld [vmem:[%s1 + $0xb4] sm:$0xf]
  %v133 = vld [vmem:[%s1 + $0xb8] sm:$0xf]
  %v134 = vld [vmem:[%s1 + $0xbc] sm:$0xf]
  %v135 = vld [vmem:[%s1 + $0xc0] sm:$0xf]
  %v136 = vld [vmem:[%s1 + $0xc4] sm:$0xf]
  %v137 = vld [vmem:[%s1 + $0xc8] sm:$0xf]
  %v138 = vld [vmem:[%s1 + $0xcc] sm:$0xf]
  %v139 = vld [vmem:[%s1 + $0xd0] sm:$0xf]
  %v140 = vld [vmem:[%s1 + $0xd4] sm:$0xf]
  %v141 = vld [vmem:[%s1 + $0xd8] sm:$0xf]
  %v142 = vld [vmem:[%s1 + $0xdc] sm:$0xf]
  %v143 = vld [vmem:[%s1 + $0xe0] sm:$0xf]
  %v144 = vld [vmem:[%s1 + $0xe4] sm:$0xf]
  %v145 = vld [vmem:[%s1 + $0xe8] sm:$0xf]
  %v146 = vld [vmem:[%s1 + $0xec] sm:$0xf]
  %v147 = vld [vmem:[%s1 + $0xf0] sm:$0xf]
  %v148 = vld [vmem:[%s1 + $0xf4] sm:$0xf]
  %v149 = vld [vmem:[%s1 + $0xf8] sm:$0xf]
  %v150 = vld [vmem:[%s1 + $0xfc] sm:$0xf]
  %v151 = vld [vmem:[%s1 + $0x100] sm:$0xf]
  %v152 = vld [vmem:[%s1 + $0x104] sm:$0xf]
  %v153 = vld [vmem:[%s1 + $0x108] sm:$0xf]
  %v154 = vld [vmem:[%s1 + $0x10c] sm:$0xf]
  %v155 = vld [vmem:[%s1 + $0x110] sm:$0xf]
  %v156 = vld [vmem:[%s1 + $0x114] sm:$0xf]
  %v157 = vld [vmem:[%s1 + $0x118] sm:$0xf]
  %v158 = vld [vmem:[%s1 + $0x11c] sm:$0xf]
  %v159 = vld [vmem:[%s1 + $0x120] sm:$0xf]
  %v160 = vld [vmem:[%s1 + $0x124] sm:$0xf]
  %v161 = vld [vmem:[%s1 + $0x128] sm:$0xf]
  %v162 = vld [vmem:[%s1 + $0x12c] sm:$0xf]
  %v163 = vld [vmem:[%s1 + $0x130] sm:$0xf]
  %v164 = vld [vmem:[%s1 + $0x134] sm:$0xf]
  %v165 = vld [vmem:[%s1 + $0x138] sm:$0xf]
  %v166 = vld [vmem:[%s1 + $0x13c] sm:$0xf]
  %v167 = vld [vmem:[%s1 + $0x140] sm:$0xf]
  %v168 = vld [vmem:[%s1 + $0x144] sm:$0xf]
  %v169 = vld [vmem:[%s1 + $0x148] sm:$0xf]
  %v170 = vld [vmem:[%s1 + $0x14c] sm:$0xf]
  %v171 = vld [vmem:[%s1 + $0x150] sm:$0xf]
  %v172 = vld [vmem:[%s1 + $0x154] sm:$0xf]
  %v173 = vld [vmem:[%s1 + $0x158] sm:$0xf]
  %v174 = vld [vmem:[%s1 + $0x15c] sm:$0xf]
  %v175 = vld [vmem:[%s1 + $0x160] sm:$0xf]
  %v176 = vld [vmem:[%s1 + $0x164] sm:$0xf]
  %v177 = vld [vmem:[%s1 + $0x168] sm:$0xf]
  %v178 = vld [vmem:[%s1 + $0x16c] sm:$0xf]
  %v179 = vld [vmem:[%s1 + $0x170] sm:$0xf]
  %v180 = vld [vmem:[%s1 + $0x174] sm:$0xf]
  %v181 = vld [vmem:[%s1 + $0x178] sm:$0xf]
  %v182 = vld [vmem:[%s1 + $0x17c] sm:$0xf]
  %v183 = vld [vmem:[%s1 + $0x180] sm:$0xf]
  %v184 = vld [vmem:[%s1 + $0x184] sm:$0xf]
  %v185 = vld [vmem:[%s1 + $0x188] sm:$0xf]
  %v186 = vld [vmem:[%s1 + $0x18c] sm:$0xf]
  %v187 = vld [vmem:[%s1 + $0x190] sm:$0xf]
  %v188 = vld [vmem:[%s1 + $0x194] sm:$0xf]
  %v189 = vld [vmem:[%s1 + $0x198] sm:$0xf]
  %v190 = vld [vmem:[%s1 + $0x19c] sm:$0xf]
  %v191 = vld [vmem:[%s1 + $0x1a0] sm:$0xf]
  %v192 = vld [vmem:[%s1 + $0x1a4] sm:$0xf]
  %v193 = vld [vmem:[%s1 + $0x1a8] sm:$0xf]
  %v194 = vld [vmem:[%s1 + $0x1ac] sm:$0xf]
  %v195 = vld [vmem:[%s1 + $0x1b0] sm:$0xf]
  %v196 = vld [vmem:[%s1 + $0x1b4] sm:$0xf]
  %v197 = vld [vmem:[%s1 + $0x1b8] sm:$0xf]
  %v198 = vld [vmem:[%s1 + $0x1bc] sm:$0xf]
  %v199 = vld [vmem:[%s1 + $0x1c0] sm:$0xf]
  %v200 = vld [vmem:[%s1 + $0x1c4] sm:$0xf]
  %v201 = vld [vmem:[%s1 + $0x1c8] sm:$0xf]
  %v202 = vld [vmem:[%s1 + $0x1cc] sm:$0xf]
  %v203 = vld [vmem:[%s1 + $0x1d0] sm:$0xf]
  %v204 = vld [vmem:[%s1 + $0x1d4] sm:$0xf]
  %v205 = vld [vmem:[%s1 + $0x1d8] sm:$0xf]
  %v206 = vld [vmem:[%s1 + $0x1dc] sm:$0xf]
  %v207 = vld [vmem:[%s1 + $0x1e0] sm:$0xf]
  %v208 = vld [vmem:[%s1 + $0x1e4] sm:$0xf]
  %v209 = vld [vmem:[%s1 + $0x1e8] sm:$0xf]
  %v210 = vld [vmem:[%s1 + $0x1ec] sm:$0xf]
  %v211 = vld [vmem:[%s1 + $0x1f0] sm:$0xf]
  %v212 = vld [vmem:[%s1 + $0x1f4] sm:$0xf]
  %v213 = vld [vmem:[%s1 + $0x1f8] sm:$0xf]
  %v214 = vld [vmem:[%s1 + $0x1fc] sm:$0xf]
  %v215 = vld [vmem:[%s1 + $0x200] sm:$0xf]
  %v216 = vld [vmem:[%s1 + $0x204] sm:$0xf]
  %v217 = vld [vmem:[%s1 + $0x208] sm:$0xf]
  %v218 = vld [vmem:[%s1 + $0x20c] sm:$0xf]
  %v219 = vld [vmem:[%s1 + $0x210] sm:$0xf]
  %v220 = vld [vmem:[%s1 + $0x214] sm:$0xf]
  %v221 = vld [vmem:[%s1 + $0x218] sm:$0xf]
  %v222 = vld [vmem:[%s1 + $0x21c] sm:$0xf]
  %v223 = vld [vmem:[%s1 + $0x220] sm:$0xf]
  %v224 = vld [vmem:[%s1 + $0x224] sm:$0xf]
  %v225 = vld [vmem:[%s1 + $0x228] sm:$0xf]
  %v226 = vld [vmem:[%s1 + $0x22c] sm:$0xf]
  %v227 = vld [vmem:[%s1 + $0x230] sm:$0xf]
  %v228 = vld [vmem:[%s1 + $0x234] sm:$0xf]
  %v229 = vld [vmem:[%s1 + $0x238] sm:$0xf]
  %v230 = vld [vmem:[%s1 + $0x23c] sm:$0xf]
  %v231 = vld [vmem:[%s1 + $0x240] sm:$0xf]
  %v232 = vld [vmem:[%s1 + $0x244] sm:$0xf]
  %v233 = vld [vmem:[%s1 + $0x248] sm:$0xf]
  %v234 = vld [vmem:[%s1 + $0x24c] sm:$0xf]
  %v235 = vld [vmem:[%s1 + $0x250] sm:$0xf]
  %v236 = vld [vmem:[%s1 + $0x254] sm:$0xf]
  %v237 = vld [vmem:[%s1 + $0x258] sm:$0xf]
  %v238 = vld [vmem:[%s1 + $0x25c] sm:$0xf]
  %v239 = vld [vmem:[%s1 + $0x260] sm:$0xf]
  %v240 = vld [vmem:[%s1 + $0x264] sm:$0xf]
  %v241 = vld [vmem:[%s1 + $0x268] sm:$0xf]
  %v242 = vld [vmem:[%s1 + $0x26c] sm:$0xf]
  %v243 = vld [vmem:[%s1 + $0x270] sm:$0xf]
  %v244 = vld [vmem:[%s1 + $0x274] sm:$0xf]
  %v245 = vld [vmem:[%s1 + $0x278] sm:$0xf]
  %v246 = vld [vmem:[%s1 + $0x27c] sm:$0xf]
  %v247 = vld [vmem:[%s1 + $0x280] sm:$0xf]
  %v248 = vld [vmem:[%s1 + $0x284] sm:$0xf]
  %v249 = vld [vmem:[%s1 + $0x288] sm:$0xf]
  %v250 = vld [vmem:[%s1 + $0x28c] sm:$0xf]
  %v251 = vld [vmem:[%s1 + $0x290] sm:$0xf]
  %v252 = vld [vmem:[%s1 + $0x294] sm:$0xf]
  %v253 = vld [vmem:[%s1 + $0x298] sm:$0xf]
  %v254 = vld [vmem:[%s1 + $0x29c] sm:$0xf]
  %v255 = vld [vmem:[%s1 + $0x2a0] sm:$0xf]
  %v256 = vld [vmem:[%s1 + $0x2a4] sm:$0xf]
  %v257 = vld [vmem:[%s1 + $0x2a8] sm:$0xf]
  %v258 = vld [vmem:[%s1 + $0x2ac] sm:$0xf]
  %v259 = vld [vmem:[%s1 + $0x2b0] sm:$0xf]
  %v260 = vld [vmem:[%s1 + $0x2b4] sm:$0xf]
  %v261 = vld [vmem:[%s1 + $0x2b8] sm:$0xf]
  %v262 = vld [vmem:[%s1 + $0x2bc] sm:$0xf]
  %v263 = vld [vmem:[%s1 + $0x2c0] sm:$0xf]
  %v264 = vld [vmem:[%s1 + $0x2c4] sm:$0xf]
  %v265 = vld [vmem:[%s1 + $0x2c8] sm:$0xf]
  %v266 = vld [vmem:[%s1 + $0x2cc] sm:$0xf]
  %v267 = vld [vmem:[%s1 + $0x2d0] sm:$0xf]
  %v268 = vld [vmem:[%s1 + $0x2d4] sm:$0xf]
  %v269 = vld [vmem:[%s1 + $0x2d8] sm:$0xf]
  %v270 = vld [vmem:[%s1 + $0x2dc] sm:$0xf]
  %v271 = vld [vmem:[%s1 + $0x2e0] sm:$0xf]
  %v272 = vld [vmem:[%s1 + $0x2e4] sm:$0xf]
  %v273 = vld [vmem:[%s1 + $0x2e8] sm:$0xf]
  %v274 = vld [vmem:[%s1 + $0x2ec] sm:$0xf]
  %v275 = vld [vmem:[%s1 + $0x2f0] sm:$0xf]
  %v276 = vld [vmem:[%s1 + $0x2f4] sm:$0xf]
  %v277 = vld [vmem:[%s1 + $0x2f8] sm:$0xf]
  %v278 = vld [vmem:[%s1 + $0x2fc] sm:$0xf]
  %v279 = vld [vmem:[%s1 + $0x300] sm:$0xf]
  %v280 = vld [vmem:[%s1 + $0x304] sm:$0xf]
  %v281 = vld [vmem:[%s1 + $0x308] sm:$0xf]
  %v282 = vld [vmem:[%s1 + $0x30c] sm:$0xf]
  %v283 = vld [vmem:[%s1 + $0x310] sm:$0xf]
  %v284 = vld [vmem:[%s1 + $0x314] sm:$0xf]
  %v285 = vld [vmem:[%s1 + $0x318] sm:$0xf]
  %v286 = vld [vmem:[%s1 + $0x31c] sm:$0xf]
  %v287 = vld [vmem:[%s1 + $0x320] sm:$0xf]
  %v288 = vld [vmem:[%s1 + $0x324] sm:$0xf]
  %v289 = vld [vmem:[%s1 + $0x328] sm:$0xf]
  %v290 = vld [vmem:[%s1 + $0x32c] sm:$0xf]
  %v291 = vld [vmem:[%s1 + $0x330] sm:$0xf]
  %v292 = vld [vmem:[%s1 + $0x334] sm:$0xf]
  %v293 = vld [vmem:[%s1 + $0x338] sm:$0xf]
  %v294 = vld [vmem:[%s1 + $0x33c] sm:$0xf]
  %v295 = vld [vmem:[%s1 + $0x340] sm:$0xf]
  %v296 = vld [vmem:[%s1 + $0x344] sm:$0xf]
  %v297 = vld [vmem:[%s1 + $0x348] sm:$0xf]
  %v298 = vld [vmem:[%s1 + $0x34c] sm:$0xf]
  %v299 = vld [vmem:[%s1 + $0x350] sm:$0xf]
  %v300 = vld [vmem:[%s1 + $0x354] sm:$0xf]
  %v301 = vld [vmem:[%s1 + $0x358] sm:$0xf]
  %v302 = vld [vmem:[%s1 + $0x35c] sm:$0xf]
  %v303 = vld [vmem:[%s1 + $0x360] sm:$0xf]
  %v304 = vld [vmem:[%s1 + $0x364] sm:$0xf]
  %v305 = vld [vmem:[%s1 + $0x368] sm:$0xf]
  %v306 = vld [vmem:[%s1 + $0x36c] sm:$0xf]
  %v307 = vld [vmem:[%s1 + $0x370] sm:$0xf]
  %v308 = vld [vmem:[%s1 + $0x374] sm:$0xf]
  %v309 = vld [vmem:[%s1 + $0x378] sm:$0xf]
  %v310 = vld [vmem:[%s1 + $0x37c] sm:$0xf]
  %v311 = vld [vmem:[%s1 + $0x380] sm:$0xf]
  %v312 = vld [vmem:[%s1 + $0x384] sm:$0xf]
  %v313 = vld [vmem:[%s1 + $0x388] sm:$0xf]
  %v314 = vld [vmem:[%s1 + $0x38c] sm:$0xf]
  %v315 = vld [vmem:[%s1 + $0x390] sm:$0xf]
  %v316 = vld [vmem:[%s1 + $0x394] sm:$0xf]
  %v317 = vld [vmem:[%s1 + $0x398] sm:$0xf]
  %v318 = vld [vmem:[%s1 + $0x39c] sm:$0xf]
  %v319 = vld [vmem:[%s1 + $0x3a0] sm:$0xf]
  %v320 = vld [vmem:[%s1 + $0x3a4] sm:$0xf]
  %v321 = vld [vmem:[%s1 + $0x3a8] sm:$0xf]
  %v322 = vld [vmem:[%s1 + $0x3ac] sm:$0xf]
  %v323 = vld [vmem:[%s1 + $0x3b0] sm:$0xf]
  %v324 = vld [vmem:[%s1 + $0x3b4] sm:$0xf]
  %v325 = vld [vmem:[%s1 + $0x3b8] sm:$0xf]
  %v326 = vld [vmem:[%s1 + $0x3bc] sm:$0xf]
  %v327 = vld [vmem:[%s1 + $0x3c0] sm:$0xf]
  %v328 = vld [vmem:[%s1 + $0x3c4] sm:$0xf]
  %v329 = vld [vmem:[%s1 + $0x3c8] sm:$0xf]
  %v330 = vld [vmem:[%s1 + $0x3cc] sm:$0xf]
  %v331 = vld [vmem:[%s1 + $0x3d0] sm:$0xf]
  %v332 = vld [vmem:[%s1 + $0x3d4] sm:$0xf]
  %v333 = vld [vmem:[%s1 + $0x3d8] sm:$0xf]
  %v334 = vld [vmem:[%s1 + $0x3dc] sm:$0xf]
  %v335 = vld [vmem:[%s1 + $0x3e0] sm:$0xf]
  %v336 = vld [vmem:[%s1 + $0x3e4] sm:$0xf]
  %v337 = vld [vmem:[%s1 + $0x3e8] sm:$0xf]
  %v338 = vld [vmem:[%s1 + $0x3ec] sm:$0xf]
  %v339 = vld [vmem:[%s1 + $0x3f0] sm:$0xf]
  %v340 = vld [vmem:[%s1 + $0x3f4] sm:$0xf]
  %v341 = vld [vmem:[%s1 + $0x3f8] sm:$0xf]
  %v342 = vld [vmem:[%s1 + $0x3fc] sm:$0xf]
  %v343 = vld [vmem:[%s1 + $0x400] sm:$0xf]
  %v344 = vld [vmem:[%s1 + $0x404] sm:$0xf]
  %v345 = vld [vmem:[%s1 + $0x408] sm:$0xf]
  %v346 = vld [vmem:[%s1 + $0x40c] sm:$0xf]
  %v347 = vld [vmem:[%s1 + $0x410] sm:$0xf]
  %v348 = vld [vmem:[%s1 + $0x414] sm:$0xf]
  %v349 = vld [vmem:[%s1 + $0x418] sm:$0xf]
  %v350 = vld [vmem:[%s1 + $0x41c] sm:$0xf]
  %v351 = vld [vmem:[%s1 + $0x420] sm:$0xf]
  %v352 = vld [vmem:[%s1 + $0x424] sm:$0xf]
  %v353 = vld [vmem:[%s1 + $0x428] sm:$0xf]
  %v354 = vld [vmem:[%s1 + $0x42c] sm:$0xf]
  %v355 = vld [vmem:[%s1 + $0x430] sm:$0xf]
  %v356 = vld [vmem:[%s1 + $0x434] sm:$0xf]
  %v357 = vld [vmem:[%s1 + $0x438] sm:$0xf]
  %v358 = vld [vmem:[%s1 + $0x43c] sm:$0xf]
  %v359 = vld [vmem:[%s1 + $0x440] sm:$0xf]
  %v360 = vld [vmem:[%s1 + $0x444] sm:$0xf]
  %v361 = vld [vmem:[%s1 + $0x448] sm:$0xf]
  %v362 = vld [vmem:[%s1 + $0x44c] sm:$0xf]
  %v363 = vld [vmem:[%s1 + $0x450] sm:$0xf]
  %v364 = vld [vmem:[%s1 + $0x454] sm:$0xf]
  %v365 = vld [vmem:[%s1 + $0x458] sm:$0xf]
  %v366 = vld [vmem:[%s1 + $0x45c] sm:$0xf]
  %v367 = vld [vmem:[%s1 + $0x460] sm:$0xf]
  %v368 = vld [vmem:[%s1 + $0x464] sm:$0xf]
  %v369 = vld [vmem:[%s1 + $0x468] sm:$0xf]
  %v370 = vld [vmem:[%s1 + $0x46c] sm:$0xf]
  %v371 = vld [vmem:[%s1 + $0x470] sm:$0xf]
  %v372 = vld [vmem:[%s1 + $0x474] sm:$0xf]
  %v373 = vld [vmem:[%s1 + $0x478] sm:$0xf]
  %v374 = vld [vmem:[%s1 + $0x47c] sm:$0xf]
  %v375 = vld [vmem:[%s1 + $0x480] sm:$0xf]
  %v376 = vld [vmem:[%s1 + $0x484] sm:$0xf]
  %v377 = vld [vmem:[%s1 + $0x488] sm:$0xf]
  %v378 = vld [vmem:[%s1 + $0x48c] sm:$0xf]
  %v379 = vld [vmem:[%s1 + $0x490] sm:$0xf]
  %v380 = vld [vmem:[%s1 + $0x494] sm:$0xf]
  %v381 = vld [vmem:[%s1 + $0x498] sm:$0xf]
  %v382 = vld [vmem:[%s1 + $0x49c] sm:$0xf]
  %v383 = vld [vmem:[%s1 + $0x4a0] sm:$0xf]
  %v384 = vld [vmem:[%s1 + $0x4a4] sm:$0xf]
  %v385 = vld [vmem:[%s1 + $0x4a8] sm:$0xf]
  %v386 = vld [vmem:[%s1 + $0x4ac] sm:$0xf]
  %v387 = vld [vmem:[%s1 + $0x4b0] sm:$0xf]
  %v388 = vld [vmem:[%s1 + $0x4b4] sm:$0xf]
  %v389 = vld [vmem:[%s1 + $0x4b8] sm:$0xf]
  %v390 = vld [vmem:[%s1 + $0x4bc] sm:$0xf]
  %v391 = vld [vmem:[%s1 + $0x4c0] sm:$0xf]
  %v392 = vld [vmem:[%s1 + $0x4c4] sm:$0xf]
  %v393 = vld [vmem:[%s1 + $0x4c8] sm:$0xf]
  %v394 = vld [vmem:[%s1 + $0x4cc] sm:$0xf]
  %v395 = vld [vmem:[%s1 + $0x4d0] sm:$0xf]
  %v396 = vld [vmem:[%s1 + $0x4d4] sm:$0xf]
  %v397 = vld [vmem:[%s1 + $0x4d8] sm:$0xf]
  %v398 = vld [vmem:[%s1 + $0x4dc] sm:$0xf]
  %v399 = vld [vmem:[%s1 + $0x4e0] sm:$0xf]
  %v400 = vld [vmem:[%s1 + $0x4e4] sm:$0xf]
  %v401 = vld [vmem:[%s1 + $0x4e8] sm:$0xf]
  %v402 = vld [vmem:[%s1 + $0x4ec] sm:$0xf]
  %v403 = vld [vmem:[%s1 + $0x4f0] sm:$0xf]
  %v404 = vld [vmem:[%s1 + $0x4f4] sm:$0xf]
  %v405 = vld [vmem:[%s1 + $0x4f8] sm:$0xf]
  %v406 = vld [vmem:[%s1 + $0x4fc] sm:$0xf]
  %v407 = vld [vmem:[%s1 + $0x500] sm:$0xf]
  %v408 = vld [vmem:[%s1 + $0x504] sm:$0xf]
  %v409 = vld [vmem:[%s1 + $0x508] sm:$0xf]
  %v410 = vld [vmem:[%s1 + $0x50c] sm:$0xf]
  %v411 = vld [vmem:[%s1 + $0x510] sm:$0xf]
  %v412 = vld [vmem:[%s1 + $0x514] sm:$0xf]
  %v413 = vld [vmem:[%s1 + $0x518] sm:$0xf]
  %v414 = vld [vmem:[%s1 + $0x51c] sm:$0xf]
  %v415 = vld [vmem:[%s1 + $0x520] sm:$0xf]
  %v416 = vld [vmem:[%s1 + $0x524] sm:$0xf]
  %v417 = vld [vmem:[%s1 + $0x528] sm:$0xf]
  %v418 = vld [vmem:[%s1 + $0x52c] sm:$0xf]
  %v419 = vld [vmem:[%s1 + $0x530] sm:$0xf]
  %v420 = vld [vmem:[%s1 + $0x534] sm:$0xf]
  %v421 = vld [vmem:[%s1 + $0x538] sm:$0xf]
  %v422 = vld [vmem:[%s1 + $0x53c] sm:$0xf]
  %v423 = vld [vmem:[%s1 + $0x540] sm:$0xf]
  %v424 = vld [vmem:[%s1 + $0x544] sm:$0xf]
  %v425 = vld [vmem:[%s1 + $0x548] sm:$0xf]
  %v426 = vld [vmem:[%s1 + $0x54c] sm:$0xf]
  %v427 = vld [vmem:[%s1 + $0x550] sm:$0xf]
  %v428 = vld [vmem:[%s1 + $0x554] sm:$0xf]
  %v429 = vld [vmem:[%s1 + $0x558] sm:$0xf]
  %v430 = vld [vmem:[%s1 + $0x55c] sm:$0xf]
  %v431 = vld [vmem:[%s1 + $0x560] sm:$0xf]
  %v432 = vld [vmem:[%s1 + $0x564] sm:$0xf]
  %v433 = vld [vmem:[%s1 + $0x568] sm:$0xf]
  %v434 = vld [vmem:[%s1 + $0x56c] sm:$0xf]
  %v435 = vld [vmem:[%s1 + $0x570] sm:$0xf]
  %v436 = vld [vmem:[%s1 + $0x574] sm:$0xf]
  %v437 = vld [vmem:[%s1 + $0x578] sm:$0xf]
  %v438 = vld [vmem:[%s1 + $0x57c] sm:$0xf]
  %v439 = vld [vmem:[%s1 + $0x580] sm:$0xf]
  %v440 = vld [vmem:[%s1 + $0x584] sm:$0xf]
  %v441 = vld [vmem:[%s1 + $0x588] sm:$0xf]
  %v442 = vld [vmem:[%s1 + $0x58c] sm:$0xf]
  %v443 = vld [vmem:[%s1 + $0x590] sm:$0xf]
  %v444 = vld [vmem:[%s1 + $0x594] sm:$0xf]
  %v445 = vld [vmem:[%s1 + $0x598] sm:$0xf]
  %v446 = vld [vmem:[%s1 + $0x59c] sm:$0xf]
  %v447 = vld [vmem:[%s1 + $0x5a0] sm:$0xf]
  %v448 = vld [vmem:[%s1 + $0x5a4] sm:$0xf]
  %v449 = vld [vmem:[%s1 + $0x5a8] sm:$0xf]
  %v450 = vld [vmem:[%s1 + $0x5ac] sm:$0xf]
  %v451 = vld [vmem:[%s1 + $0x5b0] sm:$0xf]
  %v452 = vld [vmem:[%s1 + $0x5b4] sm:$0xf]
  %v453 = vld [vmem:[%s1 + $0x5b8] sm:$0xf]
  %v454 = vld [vmem:[%s1 + $0x5bc] sm:$0xf]
  %v455 = vld [vmem:[%s1 + $0x5c0] sm:$0xf]
  %v456 = vld [vmem:[%s1 + $0x5c4] sm:$0xf]
  %v457 = vld [vmem:[%s1 + $0x5c8] sm:$0xf]
  %v458 = vld [vmem:[%s1 + $0x5cc] sm:$0xf]
  %v459 = vld [vmem:[%s1 + $0x5d0] sm:$0xf]
  %v460 = vld [vmem:[%s1 + $0x5d4] sm:$0xf]
  %v461 = vld [vmem:[%s1 + $0x5d8] sm:$0xf]
  %v462 = vld [vmem:[%s2] sm:$0x1]
  %v464 = vlaneseq
  %v465 = vshrl.u32 %v464, 7
  %v466 = vsub.s32 0, %v465
  %v467 = vrot.slane %v462, %v466
  %v541 = vunpack.c.l.b16 %v15
  %v542 = vunpack.c.h.b16 %v15
  %v543 = vunpack.c.l.b16 %v16
  %v544 = vunpack.c.h.b16 %v16
  %v545 = vunpack.c.l.b16 %v17
  %v546 = vunpack.c.h.b16 %v17
  %v547 = vunpack.c.l.b16 %v18
  %v548 = vunpack.c.h.b16 %v18
  %v549 = vunpack.c.l.b16 %v19
  %v550 = vunpack.c.h.b16 %v19
  %v551 = vunpack.c.l.b16 %v20
  %v552 = vunpack.c.h.b16 %v20
  %v553 = vunpack.c.l.b16 %v21
  %v554 = vunpack.c.h.b16 %v21
  %v555 = vunpack.c.l.b16 %v22
  %v556 = vunpack.c.h.b16 %v22
  %v557 = vunpack.c.l.b16 %v23
  %v558 = vunpack.c.h.b16 %v23
  %v559 = vunpack.c.l.b16 %v24
  %v560 = vunpack.c.h.b16 %v24
  %v561 = vunpack.c.l.b16 %v25
  %v562 = vunpack.c.h.b16 %v25
  %v563 = vunpack.c.l.b16 %v26
  %v564 = vunpack.c.h.b16 %v26
  %v565 = vunpack.c.l.b16 %v27
  %v566 = vunpack.c.h.b16 %v27
  %v567 = vunpack.c.l.b16 %v28
  %v568 = vunpack.c.h.b16 %v28
  %v569 = vunpack.c.l.b16 %v29
  %v570 = vunpack.c.h.b16 %v29
  %v571 = vunpack.c.l.b16 %v30
  %v572 = vunpack.c.h.b16 %v30
  %v573 = vunpack.c.l.b16 %v31
  %v574 = vunpack.c.h.b16 %v31
  %v575 = vunpack.c.l.b16 %v32
  %v576 = vunpack.c.h.b16 %v32
  %v577 = vunpack.c.l.b16 %v33
  %v578 = vunpack.c.h.b16 %v33
  %v579 = vunpack.c.l.b16 %v34
  %v580 = vunpack.c.h.b16 %v34
  %v581 = vunpack.c.l.b16 %v35
  %v582 = vunpack.c.h.b16 %v35
  %v583 = vunpack.c.l.b16 %v36
  %v584 = vunpack.c.h.b16 %v36
  %v585 = vunpack.c.l.b16 %v37
  %v586 = vunpack.c.h.b16 %v37
  %v587 = vunpack.c.l.b16 %v38
  %v588 = vunpack.c.h.b16 %v38
  %v589 = vunpack.c.l.b16 %v39
  %v590 = vunpack.c.h.b16 %v39
  %v591 = vunpack.c.l.b16 %v40
  %v592 = vunpack.c.h.b16 %v40
  %v593 = vunpack.c.l.b16 %v41
  %v594 = vunpack.c.h.b16 %v41
  %v595 = vunpack.c.l.b16 %v42
  %v596 = vunpack.c.h.b16 %v42
  %v597 = vunpack.c.l.b16 %v43
  %v598 = vunpack.c.h.b16 %v43
  %v599 = vunpack.c.l.b16 %v44
  %v600 = vunpack.c.h.b16 %v44
  %v601 = vunpack.c.l.b16 %v45
  %v602 = vunpack.c.h.b16 %v45
  %v603 = vunpack.c.l.b16 %v46
  %v604 = vunpack.c.h.b16 %v46
  %v605 = vunpack.c.l.b16 %v47
  %v606 = vunpack.c.h.b16 %v47
  %v607 = vunpack.c.l.b16 %v48
  %v608 = vunpack.c.h.b16 %v48
  %v609 = vunpack.c.l.b16 %v49
  %v610 = vunpack.c.h.b16 %v49
  %v611 = vunpack.c.l.b16 %v50
  %v612 = vunpack.c.h.b16 %v50
  %v613 = vunpack.c.l.b16 %v51
  %v614 = vunpack.c.h.b16 %v51
  %v615 = vunpack.c.l.b16 %v52
  %v616 = vunpack.c.h.b16 %v52
  %v617 = vunpack.c.l.b16 %v53
  %v618 = vunpack.c.h.b16 %v53
  %v619 = vunpack.c.l.b16 %v54
  %v620 = vunpack.c.h.b16 %v54
  %v621 = vunpack.c.l.b16 %v55
  %v622 = vunpack.c.h.b16 %v55
  %v623 = vunpack.c.l.b16 %v56
  %v624 = vunpack.c.h.b16 %v56
  %v625 = vunpack.c.l.b16 %v57
  %v626 = vunpack.c.h.b16 %v57
  %v627 = vunpack.c.l.b16 %v58
  %v628 = vunpack.c.h.b16 %v58
  %v629 = vunpack.c.l.b16 %v59
  %v630 = vunpack.c.h.b16 %v59
  %v631 = vunpack.c.l.b16 %v60
  %v632 = vunpack.c.h.b16 %v60
  %v633 = vunpack.c.l.b16 %v61
  %v634 = vunpack.c.h.b16 %v61
  %v635 = vunpack.c.l.b16 %v62
  %v636 = vunpack.c.h.b16 %v62
  %v637 = vunpack.c.l.b16 %v63
  %v638 = vunpack.c.h.b16 %v63
  %v639 = vunpack.c.l.b16 %v64
  %v640 = vunpack.c.h.b16 %v64
  %v641 = vunpack.c.l.b16 %v65
  %v642 = vunpack.c.h.b16 %v65
  %v643 = vunpack.c.l.b16 %v66
  %v644 = vunpack.c.h.b16 %v66
  %v645 = vunpack.c.l.b16 %v67
  %v646 = vunpack.c.h.b16 %v67
  %v647 = vunpack.c.l.b16 %v68
  %v648 = vunpack.c.h.b16 %v68
  %v649 = vunpack.c.l.b16 %v69
  %v650 = vunpack.c.h.b16 %v69
  %v651 = vunpack.c.l.b16 %v70
  %v652 = vunpack.c.h.b16 %v70
  %v653 = vunpack.c.l.b16 %v71
  %v654 = vunpack.c.h.b16 %v71
  %v655 = vunpack.c.l.b16 %v72
  %v656 = vunpack.c.h.b16 %v72
  %v657 = vunpack.c.l.b16 %v73
  %v658 = vunpack.c.h.b16 %v73
  %v659 = vunpack.c.l.b16 %v74
  %v660 = vunpack.c.h.b16 %v74
  %v661 = vunpack.c.l.b16 %v75
  %v662 = vunpack.c.h.b16 %v75
  %v663 = vunpack.c.l.b16 %v76
  %v664 = vunpack.c.h.b16 %v76
  %v665 = vunpack.c.l.b16 %v77
  %v666 = vunpack.c.h.b16 %v77
  %v667 = vunpack.c.l.b16 %v78
  %v668 = vunpack.c.h.b16 %v78
  %v669 = vunpack.c.l.b16 %v79
  %v670 = vunpack.c.h.b16 %v79
  %v671 = vunpack.c.l.b16 %v80
  %v672 = vunpack.c.h.b16 %v80
  %v673 = vunpack.c.l.b16 %v81
  %v674 = vunpack.c.h.b16 %v81
  %v675 = vunpack.c.l.b16 %v82
  %v676 = vunpack.c.h.b16 %v82
  %v677 = vunpack.c.l.b16 %v83
  %v678 = vunpack.c.h.b16 %v83
  %v679 = vunpack.c.l.b16 %v84
  %v680 = vunpack.c.h.b16 %v84
  %v681 = vunpack.c.l.b16 %v85
  %v682 = vunpack.c.h.b16 %v85
  %v683 = vunpack.c.l.b16 %v86
  %v684 = vunpack.c.h.b16 %v86
  %v685 = vpack.c.b16 %v565, %v541
  %v686 = vpack.c.b16 %v566, %v542
  %v687 = vpack.c.b16 %v567, %v543
  %v688 = vpack.c.b16 %v568, %v544
  %v689 = vpack.c.b16 %v569, %v545
  %v690 = vpack.c.b16 %v570, %v546
  %v691 = vpack.c.b16 %v571, %v547
  %v692 = vpack.c.b16 %v572, %v548
  %v693 = vpack.c.b16 %v573, %v549
  %v694 = vpack.c.b16 %v574, %v550
  %v695 = vpack.c.b16 %v575, %v551
  %v696 = vpack.c.b16 %v576, %v552
  %v697 = vpack.c.b16 %v577, %v553
  %v698 = vpack.c.b16 %v578, %v554
  %v699 = vpack.c.b16 %v579, %v555
  %v700 = vpack.c.b16 %v580, %v556
  %v701 = vpack.c.b16 %v581, %v557
  %v702 = vpack.c.b16 %v582, %v558
  %v703 = vpack.c.b16 %v583, %v559
  %v704 = vpack.c.b16 %v584, %v560
  %v705 = vpack.c.b16 %v585, %v561
  %v706 = vpack.c.b16 %v586, %v562
  %v707 = vpack.c.b16 %v587, %v563
  %v708 = vpack.c.b16 %v588, %v564
  %v709 = vpack.c.b16 %v613, %v589
  %v710 = vpack.c.b16 %v614, %v590
  %v711 = vpack.c.b16 %v615, %v591
  %v712 = vpack.c.b16 %v616, %v592
  %v713 = vpack.c.b16 %v617, %v593
  %v714 = vpack.c.b16 %v618, %v594
  %v715 = vpack.c.b16 %v619, %v595
  %v716 = vpack.c.b16 %v620, %v596
  %v717 = vpack.c.b16 %v621, %v597
  %v718 = vpack.c.b16 %v622, %v598
  %v719 = vpack.c.b16 %v623, %v599
  %v720 = vpack.c.b16 %v624, %v600
  %v721 = vpack.c.b16 %v625, %v601
  %v722 = vpack.c.b16 %v626, %v602
  %v723 = vpack.c.b16 %v627, %v603
  %v724 = vpack.c.b16 %v628, %v604
  %v725 = vpack.c.b16 %v629, %v605
  %v726 = vpack.c.b16 %v630, %v606
  %v727 = vpack.c.b16 %v631, %v607
  %v728 = vpack.c.b16 %v632, %v608
  %v729 = vpack.c.b16 %v633, %v609
  %v730 = vpack.c.b16 %v634, %v610
  %v731 = vpack.c.b16 %v635, %v611
  %v732 = vpack.c.b16 %v636, %v612
  %v733 = vpack.c.b16 %v661, %v637
  %v734 = vpack.c.b16 %v662, %v638
  %v735 = vpack.c.b16 %v663, %v639
  %v736 = vpack.c.b16 %v664, %v640
  %v737 = vpack.c.b16 %v665, %v641
  %v738 = vpack.c.b16 %v666, %v642
  %v739 = vpack.c.b16 %v667, %v643
  %v740 = vpack.c.b16 %v668, %v644
  %v741 = vpack.c.b16 %v669, %v645
  %v742 = vpack.c.b16 %v670, %v646
  %v743 = vpack.c.b16 %v671, %v647
  %v744 = vpack.c.b16 %v672, %v648
  %v745 = vpack.c.b16 %v673, %v649
  %v746 = vpack.c.b16 %v674, %v650
  %v747 = vpack.c.b16 %v675, %v651
  %v748 = vpack.c.b16 %v676, %v652
  %v749 = vpack.c.b16 %v677, %v653
  %v750 = vpack.c.b16 %v678, %v654
  %v751 = vpack.c.b16 %v679, %v655
  %v752 = vpack.c.b16 %v680, %v656
  %v753 = vpack.c.b16 %v681, %v657
  %v754 = vpack.c.b16 %v682, %v658
  %v755 = vpack.c.b16 %v683, %v659
  %v756 = vpack.c.b16 %v684, %v660
  %v1201 = vunpack.c.l.b16 %v87
  %v1202 = vunpack.c.l.b16 %v88
  %v1203 = vunpack.c.l.b16 %v89
  %v1204 = vunpack.c.l.b16 %v90
  %v1205 = vunpack.c.l.b16 %v91
  %v1206 = vunpack.c.l.b16 %v92
  %v1207 = vunpack.c.l.b16 %v93
  %v1208 = vunpack.c.l.b16 %v94
  %v1209 = vunpack.c.l.b16 %v95
  %v1210 = vunpack.c.l.b16 %v96
  %v1211 = vunpack.c.l.b16 %v97
  %v1212 = vunpack.c.l.b16 %v98
  %v1213 = vunpack.c.l.b16 %v99
  %v1214 = vunpack.c.l.b16 %v100
  %v1215 = vunpack.c.l.b16 %v101
  %v1216 = vunpack.c.l.b16 %v102
  %v1217 = vunpack.c.l.b16 %v103
  %v1218 = vunpack.c.l.b16 %v104
  %v1219 = vunpack.c.l.b16 %v105
  %v1220 = vunpack.c.l.b16 %v106
  %v1221 = vunpack.c.l.b16 %v107
  %v1222 = vunpack.c.l.b16 %v108
  %v1223 = vunpack.c.l.b16 %v109
  %v1224 = vunpack.c.l.b16 %v110
  %v1225 = vunpack.c.l.b16 %v111
  %v1226 = vunpack.c.l.b16 %v112
  %v1227 = vunpack.c.l.b16 %v113
  %v1228 = vunpack.c.l.b16 %v114
  %v1229 = vunpack.c.l.b16 %v115
  %v1230 = vunpack.c.l.b16 %v116
  %v1231 = vunpack.c.l.b16 %v117
  %v1232 = vunpack.c.l.b16 %v118
  %v1233 = vunpack.c.l.b16 %v119
  %v1234 = vunpack.c.l.b16 %v120
  %v1235 = vunpack.c.l.b16 %v121
  %v1236 = vunpack.c.l.b16 %v122
  %v1237 = vunpack.c.l.b16 %v123
  %v1238 = vunpack.c.l.b16 %v124
  %v1239 = vunpack.c.l.b16 %v125
  %v1240 = vunpack.c.l.b16 %v126
  %v1241 = vunpack.c.l.b16 %v127
  %v1242 = vunpack.c.l.b16 %v128
  %v1243 = vunpack.c.l.b16 %v129
  %v1244 = vunpack.c.l.b16 %v130
  %v1245 = vunpack.c.l.b16 %v131
  %v1246 = vunpack.c.l.b16 %v132
  %v1247 = vunpack.c.l.b16 %v133
  %v1248 = vunpack.c.l.b16 %v134
  %v1249 = vunpack.c.l.b16 %v135
  %v1250 = vunpack.c.l.b16 %v136
  %v1251 = vunpack.c.l.b16 %v137
  %v1252 = vunpack.c.l.b16 %v138
  %v1253 = vunpack.c.l.b16 %v139
  %v1254 = vunpack.c.l.b16 %v140
  %v1255 = vunpack.c.l.b16 %v141
  %v1256 = vunpack.c.l.b16 %v142
  %v1257 = vunpack.c.l.b16 %v143
  %v1258 = vunpack.c.l.b16 %v144
  %v1259 = vunpack.c.l.b16 %v145
  %v1260 = vunpack.c.l.b16 %v146
  %v1261 = vunpack.c.l.b16 %v147
  %v1262 = vunpack.c.l.b16 %v148
  %v1263 = vunpack.c.l.b16 %v149
  %v1264 = vunpack.c.l.b16 %v150
  %v1265 = vunpack.c.l.b16 %v151
  %v1266 = vunpack.c.l.b16 %v152
  %v1267 = vunpack.c.l.b16 %v153
  %v1268 = vunpack.c.l.b16 %v154
  %v1269 = vunpack.c.l.b16 %v155
  %v1270 = vunpack.c.l.b16 %v156
  %v1271 = vunpack.c.l.b16 %v157
  %v1272 = vunpack.c.l.b16 %v158
  %v1273 = vunpack.c.l.b16 %v159
  %v1274 = vunpack.c.l.b16 %v160
  %v1275 = vunpack.c.l.b16 %v161
  %v1276 = vunpack.c.l.b16 %v162
  %v1277 = vunpack.c.l.b16 %v163
  %v1278 = vunpack.c.l.b16 %v164
  %v1279 = vunpack.c.l.b16 %v165
  %v1280 = vunpack.c.l.b16 %v166
  %v1281 = vunpack.c.l.b16 %v167
  %v1282 = vunpack.c.l.b16 %v168
  %v1283 = vunpack.c.l.b16 %v169
  %v1284 = vunpack.c.l.b16 %v170
  %v1285 = vunpack.c.l.b16 %v171
  %v1286 = vunpack.c.l.b16 %v172
  %v1287 = vunpack.c.l.b16 %v173
  %v1288 = vunpack.c.l.b16 %v174
  %v1289 = vunpack.c.l.b16 %v175
  %v1290 = vunpack.c.l.b16 %v176
  %v1291 = vunpack.c.l.b16 %v177
  %v1292 = vunpack.c.l.b16 %v178
  %v1293 = vunpack.c.l.b16 %v179
  %v1294 = vunpack.c.l.b16 %v180
  %v1295 = vunpack.c.l.b16 %v181
  %v1296 = vunpack.c.l.b16 %v182
  %v1297 = vunpack.c.l.b16 %v183
  %v1298 = vunpack.c.l.b16 %v184
  %v1299 = vunpack.c.l.b16 %v185
  %v1300 = vunpack.c.l.b16 %v186
  %v1301 = vunpack.c.l.b16 %v187
  %v1302 = vunpack.c.l.b16 %v188
  %v1303 = vunpack.c.l.b16 %v189
  %v1304 = vunpack.c.l.b16 %v190
  %v1305 = vunpack.c.l.b16 %v191
  %v1306 = vunpack.c.l.b16 %v192
  %v1307 = vunpack.c.l.b16 %v193
  %v1308 = vunpack.c.l.b16 %v194
  %v1309 = vunpack.c.l.b16 %v195
  %v1310 = vunpack.c.l.b16 %v196
  %v1311 = vunpack.c.l.b16 %v197
  %v1312 = vunpack.c.l.b16 %v198
  %v1313 = vunpack.c.l.b16 %v199
  %v1314 = vunpack.c.l.b16 %v200
  %v1315 = vunpack.c.l.b16 %v201
  %v1316 = vunpack.c.l.b16 %v202
  %v1317 = vunpack.c.l.b16 %v203
  %v1318 = vunpack.c.l.b16 %v204
  %v1319 = vunpack.c.l.b16 %v205
  %v1320 = vunpack.c.l.b16 %v206
  %v1321 = vunpack.c.l.b16 %v207
  %v1322 = vunpack.c.l.b16 %v208
  %v1323 = vunpack.c.l.b16 %v209
  %v1324 = vunpack.c.l.b16 %v210
  %v1325 = vunpack.c.l.b16 %v211
  %v1326 = vunpack.c.l.b16 %v212
  %v1327 = vunpack.c.l.b16 %v213
  %v1328 = vunpack.c.l.b16 %v214
  %v1329 = vunpack.c.l.b16 %v215
  %v1330 = vunpack.c.l.b16 %v216
  %v1331 = vunpack.c.l.b16 %v217
  %v1332 = vunpack.c.l.b16 %v218
  %v1333 = vunpack.c.l.b16 %v219
  %v1334 = vunpack.c.l.b16 %v220
  %v1335 = vunpack.c.l.b16 %v221
  %v1336 = vunpack.c.l.b16 %v222
  %v1337 = vunpack.c.l.b16 %v223
  %v1338 = vunpack.c.l.b16 %v224
  %v1339 = vunpack.c.l.b16 %v225
  %v1340 = vunpack.c.l.b16 %v226
  %v1341 = vunpack.c.l.b16 %v227
  %v1342 = vunpack.c.l.b16 %v228
  %v1343 = vunpack.c.l.b16 %v229
  %v1344 = vunpack.c.l.b16 %v230
  %v1345 = vunpack.c.l.b16 %v231
  %v1346 = vunpack.c.l.b16 %v232
  %v1347 = vunpack.c.l.b16 %v233
  %v1348 = vunpack.c.l.b16 %v234
  %v1349 = vunpack.c.l.b16 %v235
  %v1350 = vunpack.c.l.b16 %v236
  %v1351 = vunpack.c.l.b16 %v237
  %v1352 = vunpack.c.l.b16 %v238
  %v1353 = vunpack.c.l.b16 %v239
  %v1354 = vunpack.c.l.b16 %v240
  %v1355 = vunpack.c.l.b16 %v241
  %v1356 = vunpack.c.l.b16 %v242
  %v1357 = vunpack.c.l.b16 %v243
  %v1358 = vunpack.c.l.b16 %v244
  %v1359 = vunpack.c.l.b16 %v245
  %v1360 = vunpack.c.l.b16 %v246
  %v1361 = vunpack.c.l.b16 %v247
  %v1362 = vunpack.c.l.b16 %v248
  %v1363 = vunpack.c.l.b16 %v249
  %v1364 = vunpack.c.l.b16 %v250
  %v1365 = vunpack.c.l.b16 %v251
  %v1366 = vunpack.c.l.b16 %v252
  %v1367 = vunpack.c.l.b16 %v253
  %v1368 = vunpack.c.l.b16 %v254
  %v1369 = vunpack.c.l.b16 %v255
  %v1370 = vunpack.c.l.b16 %v256
  %v1371 = vunpack.c.l.b16 %v257
  %v1372 = vunpack.c.l.b16 %v258
  %v1373 = vunpack.c.l.b16 %v259
  %v1374 = vunpack.c.l.b16 %v260
  %v1375 = vunpack.c.l.b16 %v261
  %v1376 = vunpack.c.l.b16 %v262
  %v1377 = vunpack.c.l.b16 %v263
  %v1378 = vunpack.c.l.b16 %v264
  %v1379 = vunpack.c.l.b16 %v265
  %v1380 = vunpack.c.l.b16 %v266
  %v1381 = vunpack.c.l.b16 %v267
  %v1382 = vunpack.c.l.b16 %v268
  %v1383 = vunpack.c.l.b16 %v269
  %v1384 = vunpack.c.l.b16 %v270
  %v1385 = vunpack.c.l.b16 %v271
  %v1386 = vunpack.c.l.b16 %v272
  %v1387 = vunpack.c.l.b16 %v273
  %v1388 = vunpack.c.l.b16 %v274
  %v1389 = vunpack.c.l.b16 %v275
  %v1390 = vunpack.c.l.b16 %v276
  %v1391 = vunpack.c.l.b16 %v277
  %v1392 = vunpack.c.l.b16 %v278
  %v1393 = vunpack.c.l.b16 %v279
  %v1394 = vunpack.c.l.b16 %v280
  %v1395 = vunpack.c.l.b16 %v281
  %v1396 = vunpack.c.l.b16 %v282
  %v1397 = vunpack.c.l.b16 %v283
  %v1398 = vunpack.c.l.b16 %v284
  %v1399 = vunpack.c.l.b16 %v285
  %v1400 = vunpack.c.l.b16 %v286
  %v1401 = vunpack.c.l.b16 %v287
  %v1402 = vunpack.c.l.b16 %v288
  %v1403 = vunpack.c.l.b16 %v289
  %v1404 = vunpack.c.l.b16 %v290
  %v1405 = vunpack.c.l.b16 %v291
  %v1406 = vunpack.c.l.b16 %v292
  %v1407 = vunpack.c.l.b16 %v293
  %v1408 = vunpack.c.l.b16 %v294
  %v1409 = vunpack.c.l.b16 %v295
  %v1410 = vunpack.c.l.b16 %v296
  %v1411 = vunpack.c.l.b16 %v297
  %v1412 = vunpack.c.l.b16 %v298
  %v1413 = vunpack.c.l.b16 %v299
  %v1414 = vunpack.c.l.b16 %v300
  %v1415 = vunpack.c.l.b16 %v301
  %v1416 = vunpack.c.l.b16 %v302
  %v1417 = vunpack.c.l.b16 %v303
  %v1418 = vunpack.c.l.b16 %v304
  %v1419 = vunpack.c.l.b16 %v305
  %v1420 = vunpack.c.l.b16 %v306
  %v1421 = vunpack.c.l.b16 %v307
  %v1422 = vunpack.c.l.b16 %v308
  %v1423 = vunpack.c.l.b16 %v309
  %v1424 = vunpack.c.l.b16 %v310
  %v1425 = vunpack.c.l.b16 %v311
  %v1426 = vunpack.c.l.b16 %v312
  %v1427 = vunpack.c.l.b16 %v313
  %v1428 = vunpack.c.l.b16 %v314
  %v1429 = vunpack.c.l.b16 %v315
  %v1430 = vunpack.c.l.b16 %v316
  %v1431 = vunpack.c.l.b16 %v317
  %v1432 = vunpack.c.l.b16 %v318
  %v1433 = vunpack.c.l.b16 %v319
  %v1434 = vunpack.c.l.b16 %v320
  %v1435 = vunpack.c.l.b16 %v321
  %v1436 = vunpack.c.l.b16 %v322
  %v1437 = vunpack.c.l.b16 %v323
  %v1438 = vunpack.c.l.b16 %v324
  %v1439 = vunpack.c.l.b16 %v325
  %v1440 = vunpack.c.l.b16 %v326
  %v1441 = vunpack.c.l.b16 %v327
  %v1442 = vunpack.c.l.b16 %v328
  %v1443 = vunpack.c.l.b16 %v329
  %v1444 = vunpack.c.l.b16 %v330
  %v1445 = vunpack.c.l.b16 %v331
  %v1446 = vunpack.c.l.b16 %v332
  %v1447 = vunpack.c.l.b16 %v333
  %v1448 = vunpack.c.l.b16 %v334
  %v1449 = vunpack.c.l.b16 %v335
  %v1450 = vunpack.c.l.b16 %v336
  %v1451 = vunpack.c.l.b16 %v337
  %v1452 = vunpack.c.l.b16 %v338
  %v1453 = vunpack.c.l.b16 %v339
  %v1454 = vunpack.c.l.b16 %v340
  %v1455 = vunpack.c.l.b16 %v341
  %v1456 = vunpack.c.l.b16 %v342
  %v1457 = vunpack.c.l.b16 %v343
  %v1458 = vunpack.c.l.b16 %v344
  %v1459 = vunpack.c.l.b16 %v345
  %v1460 = vunpack.c.l.b16 %v346
  %v1461 = vunpack.c.l.b16 %v347
  %v1462 = vunpack.c.l.b16 %v348
  %v1463 = vunpack.c.l.b16 %v349
  %v1464 = vunpack.c.l.b16 %v350
  %v1465 = vunpack.c.l.b16 %v351
  %v1466 = vunpack.c.l.b16 %v352
  %v1467 = vunpack.c.l.b16 %v353
  %v1468 = vunpack.c.l.b16 %v354
  %v1469 = vunpack.c.l.b16 %v355
  %v1470 = vunpack.c.l.b16 %v356
  %v1471 = vunpack.c.l.b16 %v357
  %v1472 = vunpack.c.l.b16 %v358
  %v1473 = vunpack.c.l.b16 %v359
  %v1474 = vunpack.c.l.b16 %v360
  %v1475 = vunpack.c.l.b16 %v361
  %v1476 = vunpack.c.l.b16 %v362
  %v1477 = vunpack.c.l.b16 %v363
  %v1478 = vunpack.c.l.b16 %v364
  %v1479 = vunpack.c.l.b16 %v365
  %v1480 = vunpack.c.l.b16 %v366
  %v1481 = vunpack.c.l.b16 %v367
  %v1482 = vunpack.c.l.b16 %v368
  %v1483 = vunpack.c.l.b16 %v369
  %v1484 = vunpack.c.l.b16 %v370
  %v1485 = vunpack.c.l.b16 %v371
  %v1486 = vunpack.c.l.b16 %v372
  %v1487 = vunpack.c.l.b16 %v373
  %v1488 = vunpack.c.l.b16 %v374
  %v1489 = vunpack.c.l.b16 %v375
  %v1490 = vunpack.c.l.b16 %v376
  %v1491 = vunpack.c.l.b16 %v377
  %v1492 = vunpack.c.l.b16 %v378
  %v1493 = vunpack.c.l.b16 %v379
  %v1494 = vunpack.c.l.b16 %v380
  %v1495 = vunpack.c.l.b16 %v381
  %v1496 = vunpack.c.l.b16 %v382
  %v1497 = vunpack.c.l.b16 %v383
  %v1498 = vunpack.c.l.b16 %v384
  %v1499 = vunpack.c.l.b16 %v385
  %v1500 = vunpack.c.l.b16 %v386
  %v1501 = vunpack.c.l.b16 %v387
  %v1502 = vunpack.c.l.b16 %v388
  %v1503 = vunpack.c.l.b16 %v389
  %v1504 = vunpack.c.l.b16 %v390
  %v1505 = vunpack.c.l.b16 %v391
  %v1506 = vunpack.c.l.b16 %v392
  %v1507 = vunpack.c.l.b16 %v393
  %v1508 = vunpack.c.l.b16 %v394
  %v1509 = vunpack.c.l.b16 %v395
  %v1510 = vunpack.c.l.b16 %v396
  %v1511 = vunpack.c.l.b16 %v397
  %v1512 = vunpack.c.l.b16 %v398
  %v1513 = vunpack.c.l.b16 %v399
  %v1514 = vunpack.c.l.b16 %v400
  %v1515 = vunpack.c.l.b16 %v401
  %v1516 = vunpack.c.l.b16 %v402
  %v1517 = vunpack.c.l.b16 %v403
  %v1518 = vunpack.c.l.b16 %v404
  %v1519 = vunpack.c.l.b16 %v405
  %v1520 = vunpack.c.l.b16 %v406
  %v1521 = vunpack.c.l.b16 %v407
  %v1522 = vunpack.c.l.b16 %v408
  %v1523 = vunpack.c.l.b16 %v409
  %v1524 = vunpack.c.l.b16 %v410
  %v1525 = vunpack.c.l.b16 %v411
  %v1526 = vunpack.c.l.b16 %v412
  %v1527 = vunpack.c.l.b16 %v413
  %v1528 = vunpack.c.l.b16 %v414
  %v1529 = vunpack.c.l.b16 %v415
  %v1530 = vunpack.c.l.b16 %v416
  %v1531 = vunpack.c.l.b16 %v417
  %v1532 = vunpack.c.l.b16 %v418
  %v1533 = vunpack.c.l.b16 %v419
  %v1534 = vunpack.c.l.b16 %v420
  %v1535 = vunpack.c.l.b16 %v421
  %v1536 = vunpack.c.l.b16 %v422
  %v1537 = vunpack.c.l.b16 %v423
  %v1538 = vunpack.c.l.b16 %v424
  %v1539 = vunpack.c.l.b16 %v425
  %v1540 = vunpack.c.l.b16 %v426
  %v1541 = vunpack.c.l.b16 %v427
  %v1542 = vunpack.c.l.b16 %v428
  %v1543 = vunpack.c.l.b16 %v429
  %v1544 = vunpack.c.l.b16 %v430
  %v1545 = vunpack.c.l.b16 %v431
  %v1546 = vunpack.c.l.b16 %v432
  %v1547 = vunpack.c.l.b16 %v433
  %v1548 = vunpack.c.l.b16 %v434
  %v1549 = vunpack.c.l.b16 %v435
  %v1550 = vunpack.c.l.b16 %v436
  %v1551 = vunpack.c.l.b16 %v437
  %v1552 = vunpack.c.l.b16 %v438
  %v1553 = vunpack.c.l.b16 %v439
  %v1554 = vunpack.c.l.b16 %v440
  %v1555 = vunpack.c.l.b16 %v441
  %v1556 = vunpack.c.l.b16 %v442
  %v1557 = vunpack.c.l.b16 %v443
  %v1558 = vunpack.c.l.b16 %v444
  %v1559 = vunpack.c.l.b16 %v445
  %v1560 = vunpack.c.l.b16 %v446
  %v1561 = vunpack.c.l.b16 %v447
  %v1562 = vunpack.c.l.b16 %v448
  %v1563 = vunpack.c.l.b16 %v449
  %v1564 = vunpack.c.l.b16 %v450
  %v1565 = vunpack.c.l.b16 %v451
  %v1566 = vunpack.c.l.b16 %v452
  %v1567 = vunpack.c.l.b16 %v453
  %v1568 = vunpack.c.l.b16 %v454
  %v1569 = vunpack.c.l.b16 %v455
  %v1570 = vunpack.c.l.b16 %v456
  %v1571 = vunpack.c.l.b16 %v457
  %v1572 = vunpack.c.l.b16 %v458
  %v1573 = vunpack.c.l.b16 %v459
  %v1574 = vunpack.c.l.b16 %v460
  %v1575 = vunpack.c.l.b16 %v461
  %v1576 = vpack.c.b16 %v1202, %v1201
  %v1577 = vpack.c.b16 %v1204, %v1203
  %v1578 = vpack.c.b16 %v1206, %v1205
  %v1579 = vpack.c.b16 %v1208, %v1207
  %v1580 = vpack.c.b16 %v1210, %v1209
  %v1581 = vpack.c.b16 %v1212, %v1211
  %v1582 = vpack.c.b16 %v1214, %v1213
  %v1583 = vpack.c.b16 %v1216, %v1215
  %v1584 = vpack.c.b16 %v1218, %v1217
  %v1585 = vpack.c.b16 %v1220, %v1219
  %v1586 = vpack.c.b16 %v1222, %v1221
  %v1587 = vpack.c.b16 %v1224, %v1223
  %v1588 = vpack.c.b16 %v1226, %v1225
  %v1589 = vpack.c.b16 %v1228, %v1227
  %v1590 = vpack.c.b16 %v1230, %v1229
  %v1591 = vpack.c.b16 %v1232, %v1231
  %v1592 = vpack.c.b16 %v1234, %v1233
  %v1593 = vpack.c.b16 %v1236, %v1235
  %v1594 = vpack.c.b16 %v1238, %v1237
  %v1595 = vpack.c.b16 %v1240, %v1239
  %v1596 = vpack.c.b16 %v1242, %v1241
  %v1597 = vpack.c.b16 %v1244, %v1243
  %v1598 = vpack.c.b16 %v1246, %v1245
  %v1599 = vpack.c.b16 %v1248, %v1247
  %v1600 = vpack.c.b16 %v1250, %v1249
  %v1601 = vpack.c.b16 %v1252, %v1251
  %v1602 = vpack.c.b16 %v1254, %v1253
  %v1603 = vpack.c.b16 %v1256, %v1255
  %v1604 = vpack.c.b16 %v1258, %v1257
  %v1605 = vpack.c.b16 %v1260, %v1259
  %v1606 = vpack.c.b16 %v1262, %v1261
  %v1607 = vpack.c.b16 %v1264, %v1263
  %v1608 = vpack.c.b16 %v1266, %v1265
  %v1609 = vpack.c.b16 %v1268, %v1267
  %v1610 = vpack.c.b16 %v1270, %v1269
  %v1611 = vpack.c.b16 %v1272, %v1271
  %v1612 = vpack.c.b16 %v1274, %v1273
  %v1613 = vpack.c.b16 %v1276, %v1275
  %v1614 = vpack.c.b16 %v1278, %v1277
  %v1615 = vpack.c.b16 %v1280, %v1279
  %v1616 = vpack.c.b16 %v1282, %v1281
  %v1617 = vpack.c.b16 %v1284, %v1283
  %v1618 = vpack.c.b16 %v1286, %v1285
  %v1619 = vpack.c.b16 %v1288, %v1287
  %v1620 = vpack.c.b16 %v1290, %v1289
  %v1621 = vpack.c.b16 %v1292, %v1291
  %v1622 = vpack.c.b16 %v1294, %v1293
  %v1623 = vpack.c.b16 %v1296, %v1295
  %v1624 = vpack.c.b16 %v1298, %v1297
  %v1625 = vpack.c.b16 %v1300, %v1299
  %v1626 = vpack.c.b16 %v1302, %v1301
  %v1627 = vpack.c.b16 %v1304, %v1303
  %v1628 = vpack.c.b16 %v1306, %v1305
  %v1629 = vpack.c.b16 %v1308, %v1307
  %v1630 = vpack.c.b16 %v1310, %v1309
  %v1631 = vpack.c.b16 %v1312, %v1311
  %v1632 = vpack.c.b16 %v1314, %v1313
  %v1633 = vpack.c.b16 %v1316, %v1315
  %v1634 = vpack.c.b16 %v1318, %v1317
  %v1635 = vpack.c.b16 %v1320, %v1319
  %v1636 = vpack.c.b16 %v1322, %v1321
  %v1637 = vpack.c.b16 %v1324, %v1323
  %v1638 = vpack.c.b16 %v1326, %v1325
  %v1639 = vpack.c.b16 %v1328, %v1327
  %v1640 = vpack.c.b16 %v1330, %v1329
  %v1641 = vpack.c.b16 %v1332, %v1331
  %v1642 = vpack.c.b16 %v1334, %v1333
  %v1643 = vpack.c.b16 %v1336, %v1335
  %v1644 = vpack.c.b16 %v1338, %v1337
  %v1645 = vpack.c.b16 %v1340, %v1339
  %v1646 = vpack.c.b16 %v1342, %v1341
  %v1647 = vpack.c.b16 %v1344, %v1343
  %v1648 = vpack.c.b16 %v1346, %v1345
  %v1649 = vpack.c.b16 %v1348, %v1347
  %v1650 = vpack.c.b16 %v1350, %v1349
  %v1651 = vpack.c.b16 %v1352, %v1351
  %v1652 = vpack.c.b16 %v1354, %v1353
  %v1653 = vpack.c.b16 %v1356, %v1355
  %v1654 = vpack.c.b16 %v1358, %v1357
  %v1655 = vpack.c.b16 %v1360, %v1359
  %v1656 = vpack.c.b16 %v1362, %v1361
  %v1657 = vpack.c.b16 %v1364, %v1363
  %v1658 = vpack.c.b16 %v1366, %v1365
  %v1659 = vpack.c.b16 %v1368, %v1367
  %v1660 = vpack.c.b16 %v1370, %v1369
  %v1661 = vpack.c.b16 %v1372, %v1371
  %v1662 = vpack.c.b16 %v1374, %v1373
  %v1663 = vpack.c.b16 %v1376, %v1375
  %v1664 = vpack.c.b16 %v1378, %v1377
  %v1665 = vpack.c.b16 %v1380, %v1379
  %v1666 = vpack.c.b16 %v1382, %v1381
  %v1667 = vpack.c.b16 %v1384, %v1383
  %v1668 = vpack.c.b16 %v1386, %v1385
  %v1669 = vpack.c.b16 %v1388, %v1387
  %v1670 = vpack.c.b16 %v1390, %v1389
  %v1671 = vpack.c.b16 %v1392, %v1391
  %v1672 = vpack.c.b16 %v1394, %v1393
  %v1673 = vpack.c.b16 %v1396, %v1395
  %v1674 = vpack.c.b16 %v1398, %v1397
  %v1675 = vpack.c.b16 %v1400, %v1399
  %v1676 = vpack.c.b16 %v1402, %v1401
  %v1677 = vpack.c.b16 %v1404, %v1403
  %v1678 = vpack.c.b16 %v1406, %v1405
  %v1679 = vpack.c.b16 %v1408, %v1407
  %v1680 = vpack.c.b16 %v1410, %v1409
  %v1681 = vpack.c.b16 %v1412, %v1411
  %v1682 = vpack.c.b16 %v1414, %v1413
  %v1683 = vpack.c.b16 %v1416, %v1415
  %v1684 = vpack.c.b16 %v1418, %v1417
  %v1685 = vpack.c.b16 %v1420, %v1419
  %v1686 = vpack.c.b16 %v1422, %v1421
  %v1687 = vpack.c.b16 %v1424, %v1423
  %v1688 = vpack.c.b16 %v1426, %v1425
  %v1689 = vpack.c.b16 %v1428, %v1427
  %v1690 = vpack.c.b16 %v1430, %v1429
  %v1691 = vpack.c.b16 %v1432, %v1431
  %v1692 = vpack.c.b16 %v1434, %v1433
  %v1693 = vpack.c.b16 %v1436, %v1435
  %v1694 = vpack.c.b16 %v1438, %v1437
  %v1695 = vpack.c.b16 %v1440, %v1439
  %v1696 = vpack.c.b16 %v1442, %v1441
  %v1697 = vpack.c.b16 %v1444, %v1443
  %v1698 = vpack.c.b16 %v1446, %v1445
  %v1699 = vpack.c.b16 %v1448, %v1447
  %v1700 = vpack.c.b16 %v1450, %v1449
  %v1701 = vpack.c.b16 %v1452, %v1451
  %v1702 = vpack.c.b16 %v1454, %v1453
  %v1703 = vpack.c.b16 %v1456, %v1455
  %v1704 = vpack.c.b16 %v1458, %v1457
  %v1705 = vpack.c.b16 %v1460, %v1459
  %v1706 = vpack.c.b16 %v1462, %v1461
  %v1707 = vpack.c.b16 %v1464, %v1463
  %v1708 = vpack.c.b16 %v1466, %v1465
  %v1709 = vpack.c.b16 %v1468, %v1467
  %v1710 = vpack.c.b16 %v1470, %v1469
  %v1711 = vpack.c.b16 %v1472, %v1471
  %v1712 = vpack.c.b16 %v1474, %v1473
  %v1713 = vpack.c.b16 %v1476, %v1475
  %v1714 = vpack.c.b16 %v1478, %v1477
  %v1715 = vpack.c.b16 %v1480, %v1479
  %v1716 = vpack.c.b16 %v1482, %v1481
  %v1717 = vpack.c.b16 %v1484, %v1483
  %v1718 = vpack.c.b16 %v1486, %v1485
  %v1719 = vpack.c.b16 %v1488, %v1487
  %v1720 = vpack.c.b16 %v1490, %v1489
  %v1721 = vpack.c.b16 %v1492, %v1491
  %v1722 = vpack.c.b16 %v1494, %v1493
  %v1723 = vpack.c.b16 %v1496, %v1495
  %v1724 = vpack.c.b16 %v1498, %v1497
  %v1725 = vpack.c.b16 %v1500, %v1499
  %v1726 = vpack.c.b16 %v1502, %v1501
  %v1727 = vpack.c.b16 %v1504, %v1503
  %v1728 = vpack.c.b16 %v1506, %v1505
  %v1729 = vpack.c.b16 %v1508, %v1507
  %v1730 = vpack.c.b16 %v1510, %v1509
  %v1731 = vpack.c.b16 %v1512, %v1511
  %v1732 = vpack.c.b16 %v1514, %v1513
  %v1733 = vpack.c.b16 %v1516, %v1515
  %v1734 = vpack.c.b16 %v1518, %v1517
  %v1735 = vpack.c.b16 %v1520, %v1519
  %v1736 = vpack.c.b16 %v1522, %v1521
  %v1737 = vpack.c.b16 %v1524, %v1523
  %v1738 = vpack.c.b16 %v1526, %v1525
  %v1739 = vpack.c.b16 %v1528, %v1527
  %v1740 = vpack.c.b16 %v1530, %v1529
  %v1741 = vpack.c.b16 %v1532, %v1531
  %v1742 = vpack.c.b16 %v1534, %v1533
  %v1743 = vpack.c.b16 %v1536, %v1535
  %v1744 = vpack.c.b16 %v1538, %v1537
  %v1745 = vpack.c.b16 %v1540, %v1539
  %v1746 = vpack.c.b16 %v1542, %v1541
  %v1747 = vpack.c.b16 %v1544, %v1543
  %v1748 = vpack.c.b16 %v1546, %v1545
  %v1749 = vpack.c.b16 %v1548, %v1547
  %v1750 = vpack.c.b16 %v1550, %v1549
  %v1751 = vpack.c.b16 %v1552, %v1551
  %v1752 = vpack.c.b16 %v1554, %v1553
  %v1753 = vpack.c.b16 %v1556, %v1555
  %v1754 = vpack.c.b16 %v1558, %v1557
  %v1755 = vpack.c.b16 %v1560, %v1559
  %v1756 = vpack.c.b16 %v1562, %v1561
  %v1757 = vpack.c.b16 %v1564, %v1563
  %v1758 = vpack.c.b16 %v1566, %v1565
  %v1759 = vpack.c.b16 %v1568, %v1567
  %v1760 = vpack.c.b16 %v1570, %v1569
  %v1761 = vpack.c.b16 %v1572, %v1571
  %v1762 = vpack.c.b16 %v1574, %v1573
  %v1763 = vpack.c.b16 %v1575, %v1575
  %vm1951 = vcmask 457728
  %v1953 = vsel %vm1951, %v708, 0
  %v1956 = vsel %vm1951, %v732, 0
  %v1959 = vsel %vm1951, %v756, 0
  %vm1961 = vcmask 1043456
  %v1963 = vsel %vm1961, %v1763, 0
  %1965 = vmatprep.subr.bf16.mxu0 0
  %1966 = vmatpush1.bf16.msra.mxu0 %v1583
  %1967 = vmatprep.subr.bf16.mxu0 0
  %1968 = vmatpush1.bf16.msra.mxu0 %v1582
  %1969 = vmatprep.subr.bf16.mxu0 0
  %1970 = vmatpush1.bf16.msra.mxu0 %v1581
  %1971 = vmatprep.subr.bf16.mxu0 0
  %1972 = vmatpush1.bf16.msra.mxu0 %v1580
  %1973 = vmatprep.subr.bf16.mxu0 0
  %1974 = vmatpush1.bf16.msra.mxu0 %v1579
  %1975 = vmatprep.subr.bf16.mxu0 0
  %1976 = vmatpush1.bf16.msra.mxu0 %v1578
  %1977 = vmatprep.subr.bf16.mxu0 0
  %1978 = vmatpush1.bf16.msra.mxu0 %v1577
  %1979 = vmatprep.subr.bf16.mxu0 0
  %1980 = vmatpush1.bf16.msra.mxu0 %v1576
  %1981 = vmatprep.subr.bf16.mxu0 0
  %1982 = vmatpush2.bf16.msra.mxu0 %v1591
  %1983 = vmatprep.subr.bf16.mxu0 0
  %1984 = vmatpush2.bf16.msra.mxu0 %v1590
  %1985 = vmatprep.subr.bf16.mxu0 0
  %1986 = vmatpush2.bf16.msra.mxu0 %v1589
  %1987 = vmatprep.subr.bf16.mxu0 0
  %1988 = vmatpush2.bf16.msra.mxu0 %v1588
  %1989 = vmatprep.subr.bf16.mxu0 0
  %1990 = vmatpush2.bf16.msra.mxu0 %v1587
  %1991 = vmatprep.subr.bf16.mxu0 0
  %1992 = vmatpush2.bf16.msra.mxu0 %v1586
  %1993 = vmatprep.subr.bf16.mxu0 0
  %1994 = vmatpush2.bf16.msra.mxu0 %v1585
  %1995 = vmatprep.subr.bf16.mxu0 0
  %1996 = vmatpush2.bf16.msra.mxu0 %v1584
  %1997 = vmatprep.mubr.bf16.mxu0 %v686
  %1998 = vmatmul.mubr.bf16.gmra.mxu0 %v685
  %v1999 = vpop.f32.mrf.mxu0
  %v2000 = vadd.f32 %v467, %v1999
  %v2001 = vpop.f32.mrf.mxu0
  %v2002 = vpop.f32.mrf.mxu0
  %v2003 = vadd.f32 %v467, %v2002
  %v2004 = vpop.f32.mrf.mxu0
  %2005 = vmatprep.mubr.bf16.mxu0 %v710
  %2006 = vmatmul.mubr.bf16.gmra.mxu0 %v709
  %v2007 = vpop.f32.mrf.mxu0
  %v2008 = vadd.f32 %v467, %v2007
  %v2009 = vpop.f32.mrf.mxu0
  %v2010 = vpop.f32.mrf.mxu0
  %v2011 = vadd.f32 %v467, %v2010
  %v2012 = vpop.f32.mrf.mxu0
  %2013 = vmatprep.mubr.bf16.mxu0 %v734
  %2014 = vmatmul.mubr.bf16.gmra.mxu0 %v733
  %v2015 = vpop.f32.mrf.mxu0
  %v2016 = vadd.f32 %v467, %v2015
  %v2017 = vpop.f32.mrf.mxu0
  %v2018 = vpop.f32.mrf.mxu0
  %v2019 = vadd.f32 %v467, %v2018
  %v2020 = vpop.f32.mrf.mxu0
  %2021 = vdwg.mxu0
  %2022 = vmatprep.subr.bf16.mxu0 0
  %2023 = vmatpush1.bf16.msra.mxu0 %v1599
  %2024 = vmatprep.subr.bf16.mxu0 0
  %2025 = vmatpush1.bf16.msra.mxu0 %v1598
  %2026 = vmatprep.subr.bf16.mxu0 0
  %2027 = vmatpush1.bf16.msra.mxu0 %v1597
  %2028 = vmatprep.subr.bf16.mxu0 0
  %2029 = vmatpush1.bf16.msra.mxu0 %v1596
  %2030 = vmatprep.subr.bf16.mxu0 0
  %2031 = vmatpush1.bf16.msra.mxu0 %v1595
  %2032 = vmatprep.subr.bf16.mxu0 0
  %2033 = vmatpush1.bf16.msra.mxu0 %v1594
  %2034 = vmatprep.subr.bf16.mxu0 0
  %2035 = vmatpush1.bf16.msra.mxu0 %v1593
  %2036 = vmatprep.subr.bf16.mxu0 0
  %2037 = vmatpush1.bf16.msra.mxu0 %v1592
  %2038 = vmatprep.subr.bf16.mxu0 0
  %2039 = vmatpush2.bf16.msra.mxu0 %v1607
  %2040 = vmatprep.subr.bf16.mxu0 0
  %2041 = vmatpush2.bf16.msra.mxu0 %v1606
  %2042 = vmatprep.subr.bf16.mxu0 0
  %2043 = vmatpush2.bf16.msra.mxu0 %v1605
  %2044 = vmatprep.subr.bf16.mxu0 0
  %2045 = vmatpush2.bf16.msra.mxu0 %v1604
  %2046 = vmatprep.subr.bf16.mxu0 0
  %2047 = vmatpush2.bf16.msra.mxu0 %v1603
  %2048 = vmatprep.subr.bf16.mxu0 0
  %2049 = vmatpush2.bf16.msra.mxu0 %v1602
  %2050 = vmatprep.subr.bf16.mxu0 0
  %2051 = vmatpush2.bf16.msra.mxu0 %v1601
  %2052 = vmatprep.subr.bf16.mxu0 0
  %2053 = vmatpush2.bf16.msra.mxu0 %v1600
  %2054 = vmatprep.mubr.bf16.mxu0 %v688
  %2055 = vmatmul.mubr.bf16.gmra.mxu0 %v687
  %v2056 = vpop.f32.mrf.mxu0
  %v2057 = vadd.f32 %v2000, %v2056
  %v2058 = vpop.f32.mrf.mxu0
  %v2059 = vpop.f32.mrf.mxu0
  %v2060 = vadd.f32 %v2003, %v2059
  %v2061 = vpop.f32.mrf.mxu0
  %2062 = vmatprep.mubr.bf16.mxu0 %v712
  %2063 = vmatmul.mubr.bf16.gmra.mxu0 %v711
  %v2064 = vpop.f32.mrf.mxu0
  %v2065 = vadd.f32 %v2008, %v2064
  %v2066 = vpop.f32.mrf.mxu0
  %v2067 = vpop.f32.mrf.mxu0
  %v2068 = vadd.f32 %v2011, %v2067
  %v2069 = vpop.f32.mrf.mxu0
  %2070 = vmatprep.mubr.bf16.mxu0 %v736
  %2071 = vmatmul.mubr.bf16.gmra.mxu0 %v735
  %v2072 = vpop.f32.mrf.mxu0
  %v2073 = vadd.f32 %v2016, %v2072
  %v2074 = vpop.f32.mrf.mxu0
  %v2075 = vpop.f32.mrf.mxu0
  %v2076 = vadd.f32 %v2019, %v2075
  %v2077 = vpop.f32.mrf.mxu0
  %2078 = vdwg.mxu0
  %2079 = vmatprep.subr.bf16.mxu0 0
  %2080 = vmatpush1.bf16.msra.mxu0 %v1615
  %2081 = vmatprep.subr.bf16.mxu0 0
  %2082 = vmatpush1.bf16.msra.mxu0 %v1614
  %2083 = vmatprep.subr.bf16.mxu0 0
  %2084 = vmatpush1.bf16.msra.mxu0 %v1613
  %2085 = vmatprep.subr.bf16.mxu0 0
  %2086 = vmatpush1.bf16.msra.mxu0 %v1612
  %2087 = vmatprep.subr.bf16.mxu0 0
  %2088 = vmatpush1.bf16.msra.mxu0 %v1611
  %2089 = vmatprep.subr.bf16.mxu0 0
  %2090 = vmatpush1.bf16.msra.mxu0 %v1610
  %2091 = vmatprep.subr.bf16.mxu0 0
  %2092 = vmatpush1.bf16.msra.mxu0 %v1609
  %2093 = vmatprep.subr.bf16.mxu0 0
  %2094 = vmatpush1.bf16.msra.mxu0 %v1608
  %2095 = vmatprep.subr.bf16.mxu0 0
  %2096 = vmatpush2.bf16.msra.mxu0 %v1623
  %2097 = vmatprep.subr.bf16.mxu0 0
  %2098 = vmatpush2.bf16.msra.mxu0 %v1622
  %2099 = vmatprep.subr.bf16.mxu0 0
  %2100 = vmatpush2.bf16.msra.mxu0 %v1621
  %2101 = vmatprep.subr.bf16.mxu0 0
  %2102 = vmatpush2.bf16.msra.mxu0 %v1620
  %2103 = vmatprep.subr.bf16.mxu0 0
  %2104 = vmatpush2.bf16.msra.mxu0 %v1619
  %2105 = vmatprep.subr.bf16.mxu0 0
  %2106 = vmatpush2.bf16.msra.mxu0 %v1618
  %2107 = vmatprep.subr.bf16.mxu0 0
  %2108 = vmatpush2.bf16.msra.mxu0 %v1617
  %2109 = vmatprep.subr.bf16.mxu0 0
  %2110 = vmatpush2.bf16.msra.mxu0 %v1616
  %2111 = vmatprep.mubr.bf16.mxu0 %v690
  %2112 = vmatmul.mubr.bf16.gmra.mxu0 %v689
  %v2113 = vpop.f32.mrf.mxu0
  %v2114 = vadd.f32 %v2057, %v2113
  %v2115 = vpop.f32.mrf.mxu0
  %v2116 = vpop.f32.mrf.mxu0
  %v2117 = vadd.f32 %v2060, %v2116
  %v2118 = vpop.f32.mrf.mxu0
  %2119 = vmatprep.mubr.bf16.mxu0 %v714
  %2120 = vmatmul.mubr.bf16.gmra.mxu0 %v713
  %v2121 = vpop.f32.mrf.mxu0
  %v2122 = vadd.f32 %v2065, %v2121
  %v2123 = vpop.f32.mrf.mxu0
  %v2124 = vpop.f32.mrf.mxu0
  %v2125 = vadd.f32 %v2068, %v2124
  %v2126 = vpop.f32.mrf.mxu0
  %2127 = vmatprep.mubr.bf16.mxu0 %v738
  %2128 = vmatmul.mubr.bf16.gmra.mxu0 %v737
  %v2129 = vpop.f32.mrf.mxu0
  %v2130 = vadd.f32 %v2073, %v2129
  %v2131 = vpop.f32.mrf.mxu0
  %v2132 = vpop.f32.mrf.mxu0
  %v2133 = vadd.f32 %v2076, %v2132
  %v2134 = vpop.f32.mrf.mxu0
  %2135 = vdwg.mxu0
  %2136 = vmatprep.subr.bf16.mxu0 0
  %2137 = vmatpush1.bf16.msra.mxu0 %v1631
  %2138 = vmatprep.subr.bf16.mxu0 0
  %2139 = vmatpush1.bf16.msra.mxu0 %v1630
  %2140 = vmatprep.subr.bf16.mxu0 0
  %2141 = vmatpush1.bf16.msra.mxu0 %v1629
  %2142 = vmatprep.subr.bf16.mxu0 0
  %2143 = vmatpush1.bf16.msra.mxu0 %v1628
  %2144 = vmatprep.subr.bf16.mxu0 0
  %2145 = vmatpush1.bf16.msra.mxu0 %v1627
  %2146 = vmatprep.subr.bf16.mxu0 0
  %2147 = vmatpush1.bf16.msra.mxu0 %v1626
  %2148 = vmatprep.subr.bf16.mxu0 0
  %2149 = vmatpush1.bf16.msra.mxu0 %v1625
  %2150 = vmatprep.subr.bf16.mxu0 0
  %2151 = vmatpush1.bf16.msra.mxu0 %v1624
  %2152 = vmatprep.subr.bf16.mxu0 0
  %2153 = vmatpush2.bf16.msra.mxu0 %v1639
  %2154 = vmatprep.subr.bf16.mxu0 0
  %2155 = vmatpush2.bf16.msra.mxu0 %v1638
  %2156 = vmatprep.subr.bf16.mxu0 0
  %2157 = vmatpush2.bf16.msra.mxu0 %v1637
  %2158 = vmatprep.subr.bf16.mxu0 0
  %2159 = vmatpush2.bf16.msra.mxu0 %v1636
  %2160 = vmatprep.subr.bf16.mxu0 0
  %2161 = vmatpush2.bf16.msra.mxu0 %v1635
  %2162 = vmatprep.subr.bf16.mxu0 0
  %2163 = vmatpush2.bf16.msra.mxu0 %v1634
  %2164 = vmatprep.subr.bf16.mxu0 0
  %2165 = vmatpush2.bf16.msra.mxu0 %v1633
  %2166 = vmatprep.subr.bf16.mxu0 0
  %2167 = vmatpush2.bf16.msra.mxu0 %v1632
  %2168 = vmatprep.mubr.bf16.mxu0 %v692
  %2169 = vmatmul.mubr.bf16.gmra.mxu0 %v691
  %v2170 = vpop.f32.mrf.mxu0
  %v2171 = vadd.f32 %v2114, %v2170
  %v2172 = vpop.f32.mrf.mxu0
  %v2173 = vpop.f32.mrf.mxu0
  %v2174 = vadd.f32 %v2117, %v2173
  %v2175 = vpop.f32.mrf.mxu0
  %2176 = vmatprep.mubr.bf16.mxu0 %v716
  %2177 = vmatmul.mubr.bf16.gmra.mxu0 %v715
  %v2178 = vpop.f32.mrf.mxu0
  %v2179 = vadd.f32 %v2122, %v2178
  %v2180 = vpop.f32.mrf.mxu0
  %v2181 = vpop.f32.mrf.mxu0
  %v2182 = vadd.f32 %v2125, %v2181
  %v2183 = vpop.f32.mrf.mxu0
  %2184 = vmatprep.mubr.bf16.mxu0 %v740
  %2185 = vmatmul.mubr.bf16.gmra.mxu0 %v739
  %v2186 = vpop.f32.mrf.mxu0
  %v2187 = vadd.f32 %v2130, %v2186
  %v2188 = vpop.f32.mrf.mxu0
  %v2189 = vpop.f32.mrf.mxu0
  %v2190 = vadd.f32 %v2133, %v2189
  %v2191 = vpop.f32.mrf.mxu0
  %2192 = vdwg.mxu0
  %2193 = vmatprep.subr.bf16.mxu0 0
  %2194 = vmatpush1.bf16.msra.mxu0 %v1647
  %2195 = vmatprep.subr.bf16.mxu0 0
  %2196 = vmatpush1.bf16.msra.mxu0 %v1646
  %2197 = vmatprep.subr.bf16.mxu0 0
  %2198 = vmatpush1.bf16.msra.mxu0 %v1645
  %2199 = vmatprep.subr.bf16.mxu0 0
  %2200 = vmatpush1.bf16.msra.mxu0 %v1644
  %2201 = vmatprep.subr.bf16.mxu0 0
  %2202 = vmatpush1.bf16.msra.mxu0 %v1643
  %2203 = vmatprep.subr.bf16.mxu0 0
  %2204 = vmatpush1.bf16.msra.mxu0 %v1642
  %2205 = vmatprep.subr.bf16.mxu0 0
  %2206 = vmatpush1.bf16.msra.mxu0 %v1641
  %2207 = vmatprep.subr.bf16.mxu0 0
  %2208 = vmatpush1.bf16.msra.mxu0 %v1640
  %2209 = vmatprep.subr.bf16.mxu0 0
  %2210 = vmatpush2.bf16.msra.mxu0 %v1655
  %2211 = vmatprep.subr.bf16.mxu0 0
  %2212 = vmatpush2.bf16.msra.mxu0 %v1654
  %2213 = vmatprep.subr.bf16.mxu0 0
  %2214 = vmatpush2.bf16.msra.mxu0 %v1653
  %2215 = vmatprep.subr.bf16.mxu0 0
  %2216 = vmatpush2.bf16.msra.mxu0 %v1652
  %2217 = vmatprep.subr.bf16.mxu0 0
  %2218 = vmatpush2.bf16.msra.mxu0 %v1651
  %2219 = vmatprep.subr.bf16.mxu0 0
  %2220 = vmatpush2.bf16.msra.mxu0 %v1650
  %2221 = vmatprep.subr.bf16.mxu0 0
  %2222 = vmatpush2.bf16.msra.mxu0 %v1649
  %2223 = vmatprep.subr.bf16.mxu0 0
  %2224 = vmatpush2.bf16.msra.mxu0 %v1648
  %2225 = vmatprep.mubr.bf16.mxu0 %v694
  %2226 = vmatmul.mubr.bf16.gmra.mxu0 %v693
  %v2227 = vpop.f32.mrf.mxu0
  %v2228 = vadd.f32 %v2171, %v2227
  %v2229 = vpop.f32.mrf.mxu0
  %v2230 = vpop.f32.mrf.mxu0
  %v2231 = vadd.f32 %v2174, %v2230
  %v2232 = vpop.f32.mrf.mxu0
  %2233 = vmatprep.mubr.bf16.mxu0 %v718
  %2234 = vmatmul.mubr.bf16.gmra.mxu0 %v717
  %v2235 = vpop.f32.mrf.mxu0
  %v2236 = vadd.f32 %v2179, %v2235
  %v2237 = vpop.f32.mrf.mxu0
  %v2238 = vpop.f32.mrf.mxu0
  %v2239 = vadd.f32 %v2182, %v2238
  %v2240 = vpop.f32.mrf.mxu0
  %2241 = vmatprep.mubr.bf16.mxu0 %v742
  %2242 = vmatmul.mubr.bf16.gmra.mxu0 %v741
  %v2243 = vpop.f32.mrf.mxu0
  %v2244 = vadd.f32 %v2187, %v2243
  %v2245 = vpop.f32.mrf.mxu0
  %v2246 = vpop.f32.mrf.mxu0
  %v2247 = vadd.f32 %v2190, %v2246
  %v2248 = vpop.f32.mrf.mxu0
  %2249 = vdwg.mxu0
  %2250 = vmatprep.subr.bf16.mxu0 0
  %2251 = vmatpush1.bf16.msra.mxu0 %v1663
  %2252 = vmatprep.subr.bf16.mxu0 0
  %2253 = vmatpush1.bf16.msra.mxu0 %v1662
  %2254 = vmatprep.subr.bf16.mxu0 0
  %2255 = vmatpush1.bf16.msra.mxu0 %v1661
  %2256 = vmatprep.subr.bf16.mxu0 0
  %2257 = vmatpush1.bf16.msra.mxu0 %v1660
  %2258 = vmatprep.subr.bf16.mxu0 0
  %2259 = vmatpush1.bf16.msra.mxu0 %v1659
  %2260 = vmatprep.subr.bf16.mxu0 0
  %2261 = vmatpush1.bf16.msra.mxu0 %v1658
  %2262 = vmatprep.subr.bf16.mxu0 0
  %2263 = vmatpush1.bf16.msra.mxu0 %v1657
  %2264 = vmatprep.subr.bf16.mxu0 0
  %2265 = vmatpush1.bf16.msra.mxu0 %v1656
  %2266 = vmatprep.subr.bf16.mxu0 0
  %2267 = vmatpush2.bf16.msra.mxu0 %v1671
  %2268 = vmatprep.subr.bf16.mxu0 0
  %2269 = vmatpush2.bf16.msra.mxu0 %v1670
  %2270 = vmatprep.subr.bf16.mxu0 0
  %2271 = vmatpush2.bf16.msra.mxu0 %v1669
  %2272 = vmatprep.subr.bf16.mxu0 0
  %2273 = vmatpush2.bf16.msra.mxu0 %v1668
  %2274 = vmatprep.subr.bf16.mxu0 0
  %2275 = vmatpush2.bf16.msra.mxu0 %v1667
  %2276 = vmatprep.subr.bf16.mxu0 0
  %2277 = vmatpush2.bf16.msra.mxu0 %v1666
  %2278 = vmatprep.subr.bf16.mxu0 0
  %2279 = vmatpush2.bf16.msra.mxu0 %v1665
  %2280 = vmatprep.subr.bf16.mxu0 0
  %2281 = vmatpush2.bf16.msra.mxu0 %v1664
  %2282 = vmatprep.mubr.bf16.mxu0 %v696
  %2283 = vmatmul.mubr.bf16.gmra.mxu0 %v695
  %v2284 = vpop.f32.mrf.mxu0
  %v2285 = vadd.f32 %v2228, %v2284
  %v2286 = vpop.f32.mrf.mxu0
  %v2287 = vpop.f32.mrf.mxu0
  %v2288 = vadd.f32 %v2231, %v2287
  %v2289 = vpop.f32.mrf.mxu0
  %2290 = vmatprep.mubr.bf16.mxu0 %v720
  %2291 = vmatmul.mubr.bf16.gmra.mxu0 %v719
  %v2292 = vpop.f32.mrf.mxu0
  %v2293 = vadd.f32 %v2236, %v2292
  %v2294 = vpop.f32.mrf.mxu0
  %v2295 = vpop.f32.mrf.mxu0
  %v2296 = vadd.f32 %v2239, %v2295
  %v2297 = vpop.f32.mrf.mxu0
  %2298 = vmatprep.mubr.bf16.mxu0 %v744
  %2299 = vmatmul.mubr.bf16.gmra.mxu0 %v743
  %v2300 = vpop.f32.mrf.mxu0
  %v2301 = vadd.f32 %v2244, %v2300
  %v2302 = vpop.f32.mrf.mxu0
  %v2303 = vpop.f32.mrf.mxu0
  %v2304 = vadd.f32 %v2247, %v2303
  %v2305 = vpop.f32.mrf.mxu0
  %2306 = vdwg.mxu0
  %2307 = vmatprep.subr.bf16.mxu0 0
  %2308 = vmatpush1.bf16.msra.mxu0 %v1679
  %2309 = vmatprep.subr.bf16.mxu0 0
  %2310 = vmatpush1.bf16.msra.mxu0 %v1678
  %2311 = vmatprep.subr.bf16.mxu0 0
  %2312 = vmatpush1.bf16.msra.mxu0 %v1677
  %2313 = vmatprep.subr.bf16.mxu0 0
  %2314 = vmatpush1.bf16.msra.mxu0 %v1676
  %2315 = vmatprep.subr.bf16.mxu0 0
  %2316 = vmatpush1.bf16.msra.mxu0 %v1675
  %2317 = vmatprep.subr.bf16.mxu0 0
  %2318 = vmatpush1.bf16.msra.mxu0 %v1674
  %2319 = vmatprep.subr.bf16.mxu0 0
  %2320 = vmatpush1.bf16.msra.mxu0 %v1673
  %2321 = vmatprep.subr.bf16.mxu0 0
  %2322 = vmatpush1.bf16.msra.mxu0 %v1672
  %2323 = vmatprep.subr.bf16.mxu0 0
  %2324 = vmatpush2.bf16.msra.mxu0 %v1687
  %2325 = vmatprep.subr.bf16.mxu0 0
  %2326 = vmatpush2.bf16.msra.mxu0 %v1686
  %2327 = vmatprep.subr.bf16.mxu0 0
  %2328 = vmatpush2.bf16.msra.mxu0 %v1685
  %2329 = vmatprep.subr.bf16.mxu0 0
  %2330 = vmatpush2.bf16.msra.mxu0 %v1684
  %2331 = vmatprep.subr.bf16.mxu0 0
  %2332 = vmatpush2.bf16.msra.mxu0 %v1683
  %2333 = vmatprep.subr.bf16.mxu0 0
  %2334 = vmatpush2.bf16.msra.mxu0 %v1682
  %2335 = vmatprep.subr.bf16.mxu0 0
  %2336 = vmatpush2.bf16.msra.mxu0 %v1681
  %2337 = vmatprep.subr.bf16.mxu0 0
  %2338 = vmatpush2.bf16.msra.mxu0 %v1680
  %2339 = vmatprep.mubr.bf16.mxu0 %v698
  %2340 = vmatmul.mubr.bf16.gmra.mxu0 %v697
  %v2341 = vpop.f32.mrf.mxu0
  %v2342 = vadd.f32 %v2285, %v2341
  %v2343 = vpop.f32.mrf.mxu0
  %v2344 = vpop.f32.mrf.mxu0
  %v2345 = vadd.f32 %v2288, %v2344
  %v2346 = vpop.f32.mrf.mxu0
  %2347 = vmatprep.mubr.bf16.mxu0 %v722
  %2348 = vmatmul.mubr.bf16.gmra.mxu0 %v721
  %v2349 = vpop.f32.mrf.mxu0
  %v2350 = vadd.f32 %v2293, %v2349
  %v2351 = vpop.f32.mrf.mxu0
  %v2352 = vpop.f32.mrf.mxu0
  %v2353 = vadd.f32 %v2296, %v2352
  %v2354 = vpop.f32.mrf.mxu0
  %2355 = vmatprep.mubr.bf16.mxu0 %v746
  %2356 = vmatmul.mubr.bf16.gmra.mxu0 %v745
  %v2357 = vpop.f32.mrf.mxu0
  %v2358 = vadd.f32 %v2301, %v2357
  %v2359 = vpop.f32.mrf.mxu0
  %v2360 = vpop.f32.mrf.mxu0
  %v2361 = vadd.f32 %v2304, %v2360
  %v2362 = vpop.f32.mrf.mxu0
  %2363 = vdwg.mxu0
  %2364 = vmatprep.subr.bf16.mxu0 0
  %2365 = vmatpush1.bf16.msra.mxu0 %v1695
  %2366 = vmatprep.subr.bf16.mxu0 0
  %2367 = vmatpush1.bf16.msra.mxu0 %v1694
  %2368 = vmatprep.subr.bf16.mxu0 0
  %2369 = vmatpush1.bf16.msra.mxu0 %v1693
  %2370 = vmatprep.subr.bf16.mxu0 0
  %2371 = vmatpush1.bf16.msra.mxu0 %v1692
  %2372 = vmatprep.subr.bf16.mxu0 0
  %2373 = vmatpush1.bf16.msra.mxu0 %v1691
  %2374 = vmatprep.subr.bf16.mxu0 0
  %2375 = vmatpush1.bf16.msra.mxu0 %v1690
  %2376 = vmatprep.subr.bf16.mxu0 0
  %2377 = vmatpush1.bf16.msra.mxu0 %v1689
  %2378 = vmatprep.subr.bf16.mxu0 0
  %2379 = vmatpush1.bf16.msra.mxu0 %v1688
  %2380 = vmatprep.subr.bf16.mxu0 0
  %2381 = vmatpush2.bf16.msra.mxu0 %v1703
  %2382 = vmatprep.subr.bf16.mxu0 0
  %2383 = vmatpush2.bf16.msra.mxu0 %v1702
  %2384 = vmatprep.subr.bf16.mxu0 0
  %2385 = vmatpush2.bf16.msra.mxu0 %v1701
  %2386 = vmatprep.subr.bf16.mxu0 0
  %2387 = vmatpush2.bf16.msra.mxu0 %v1700
  %2388 = vmatprep.subr.bf16.mxu0 0
  %2389 = vmatpush2.bf16.msra.mxu0 %v1699
  %2390 = vmatprep.subr.bf16.mxu0 0
  %2391 = vmatpush2.bf16.msra.mxu0 %v1698
  %2392 = vmatprep.subr.bf16.mxu0 0
  %2393 = vmatpush2.bf16.msra.mxu0 %v1697
  %2394 = vmatprep.subr.bf16.mxu0 0
  %2395 = vmatpush2.bf16.msra.mxu0 %v1696
  %2396 = vmatprep.mubr.bf16.mxu0 %v700
  %2397 = vmatmul.mubr.bf16.gmra.mxu0 %v699
  %v2398 = vpop.f32.mrf.mxu0
  %v2399 = vadd.f32 %v2342, %v2398
  %v2400 = vpop.f32.mrf.mxu0
  %v2401 = vpop.f32.mrf.mxu0
  %v2402 = vadd.f32 %v2345, %v2401
  %v2403 = vpop.f32.mrf.mxu0
  %2404 = vmatprep.mubr.bf16.mxu0 %v724
  %2405 = vmatmul.mubr.bf16.gmra.mxu0 %v723
  %v2406 = vpop.f32.mrf.mxu0
  %v2407 = vadd.f32 %v2350, %v2406
  %v2408 = vpop.f32.mrf.mxu0
  %v2409 = vpop.f32.mrf.mxu0
  %v2410 = vadd.f32 %v2353, %v2409
  %v2411 = vpop.f32.mrf.mxu0
  %2412 = vmatprep.mubr.bf16.mxu0 %v748
  %2413 = vmatmul.mubr.bf16.gmra.mxu0 %v747
  %v2414 = vpop.f32.mrf.mxu0
  %v2415 = vadd.f32 %v2358, %v2414
  %v2416 = vpop.f32.mrf.mxu0
  %v2417 = vpop.f32.mrf.mxu0
  %v2418 = vadd.f32 %v2361, %v2417
  %v2419 = vpop.f32.mrf.mxu0
  %2420 = vdwg.mxu0
  %2421 = vmatprep.subr.bf16.mxu0 0
  %2422 = vmatpush1.bf16.msra.mxu0 %v1711
  %2423 = vmatprep.subr.bf16.mxu0 0
  %2424 = vmatpush1.bf16.msra.mxu0 %v1710
  %2425 = vmatprep.subr.bf16.mxu0 0
  %2426 = vmatpush1.bf16.msra.mxu0 %v1709
  %2427 = vmatprep.subr.bf16.mxu0 0
  %2428 = vmatpush1.bf16.msra.mxu0 %v1708
  %2429 = vmatprep.subr.bf16.mxu0 0
  %2430 = vmatpush1.bf16.msra.mxu0 %v1707
  %2431 = vmatprep.subr.bf16.mxu0 0
  %2432 = vmatpush1.bf16.msra.mxu0 %v1706
  %2433 = vmatprep.subr.bf16.mxu0 0
  %2434 = vmatpush1.bf16.msra.mxu0 %v1705
  %2435 = vmatprep.subr.bf16.mxu0 0
  %2436 = vmatpush1.bf16.msra.mxu0 %v1704
  %2437 = vmatprep.subr.bf16.mxu0 0
  %2438 = vmatpush2.bf16.msra.mxu0 %v1719
  %2439 = vmatprep.subr.bf16.mxu0 0
  %2440 = vmatpush2.bf16.msra.mxu0 %v1718
  %2441 = vmatprep.subr.bf16.mxu0 0
  %2442 = vmatpush2.bf16.msra.mxu0 %v1717
  %2443 = vmatprep.subr.bf16.mxu0 0
  %2444 = vmatpush2.bf16.msra.mxu0 %v1716
  %2445 = vmatprep.subr.bf16.mxu0 0
  %2446 = vmatpush2.bf16.msra.mxu0 %v1715
  %2447 = vmatprep.subr.bf16.mxu0 0
  %2448 = vmatpush2.bf16.msra.mxu0 %v1714
  %2449 = vmatprep.subr.bf16.mxu0 0
  %2450 = vmatpush2.bf16.msra.mxu0 %v1713
  %2451 = vmatprep.subr.bf16.mxu0 0
  %2452 = vmatpush2.bf16.msra.mxu0 %v1712
  %2453 = vmatprep.mubr.bf16.mxu0 %v702
  %2454 = vmatmul.mubr.bf16.gmra.mxu0 %v701
  %v2455 = vpop.f32.mrf.mxu0
  %v2456 = vadd.f32 %v2399, %v2455
  %v2457 = vpop.f32.mrf.mxu0
  %v2458 = vpop.f32.mrf.mxu0
  %v2459 = vadd.f32 %v2402, %v2458
  %v2460 = vpop.f32.mrf.mxu0
  %2461 = vmatprep.mubr.bf16.mxu0 %v726
  %2462 = vmatmul.mubr.bf16.gmra.mxu0 %v725
  %v2463 = vpop.f32.mrf.mxu0
  %v2464 = vadd.f32 %v2407, %v2463
  %v2465 = vpop.f32.mrf.mxu0
  %v2466 = vpop.f32.mrf.mxu0
  %v2467 = vadd.f32 %v2410, %v2466
  %v2468 = vpop.f32.mrf.mxu0
  %2469 = vmatprep.mubr.bf16.mxu0 %v750
  %2470 = vmatmul.mubr.bf16.gmra.mxu0 %v749
  %v2471 = vpop.f32.mrf.mxu0
  %v2472 = vadd.f32 %v2415, %v2471
  %v2473 = vpop.f32.mrf.mxu0
  %v2474 = vpop.f32.mrf.mxu0
  %v2475 = vadd.f32 %v2418, %v2474
  %v2476 = vpop.f32.mrf.mxu0
  %2477 = vdwg.mxu0
  %2478 = vmatprep.subr.bf16.mxu0 0
  %2479 = vmatpush1.bf16.msra.mxu0 %v1727
  %2480 = vmatprep.subr.bf16.mxu0 0
  %2481 = vmatpush1.bf16.msra.mxu0 %v1726
  %2482 = vmatprep.subr.bf16.mxu0 0
  %2483 = vmatpush1.bf16.msra.mxu0 %v1725
  %2484 = vmatprep.subr.bf16.mxu0 0
  %2485 = vmatpush1.bf16.msra.mxu0 %v1724
  %2486 = vmatprep.subr.bf16.mxu0 0
  %2487 = vmatpush1.bf16.msra.mxu0 %v1723
  %2488 = vmatprep.subr.bf16.mxu0 0
  %2489 = vmatpush1.bf16.msra.mxu0 %v1722
  %2490 = vmatprep.subr.bf16.mxu0 0
  %2491 = vmatpush1.bf16.msra.mxu0 %v1721
  %2492 = vmatprep.subr.bf16.mxu0 0
  %2493 = vmatpush1.bf16.msra.mxu0 %v1720
  %2494 = vmatprep.subr.bf16.mxu0 0
  %2495 = vmatpush2.bf16.msra.mxu0 %v1735
  %2496 = vmatprep.subr.bf16.mxu0 0
  %2497 = vmatpush2.bf16.msra.mxu0 %v1734
  %2498 = vmatprep.subr.bf16.mxu0 0
  %2499 = vmatpush2.bf16.msra.mxu0 %v1733
  %2500 = vmatprep.subr.bf16.mxu0 0
  %2501 = vmatpush2.bf16.msra.mxu0 %v1732
  %2502 = vmatprep.subr.bf16.mxu0 0
  %2503 = vmatpush2.bf16.msra.mxu0 %v1731
  %2504 = vmatprep.subr.bf16.mxu0 0
  %2505 = vmatpush2.bf16.msra.mxu0 %v1730
  %2506 = vmatprep.subr.bf16.mxu0 0
  %2507 = vmatpush2.bf16.msra.mxu0 %v1729
  %2508 = vmatprep.subr.bf16.mxu0 0
  %2509 = vmatpush2.bf16.msra.mxu0 %v1728
  %2510 = vmatprep.mubr.bf16.mxu0 %v704
  %2511 = vmatmul.mubr.bf16.gmra.mxu0 %v703
  %v2512 = vpop.f32.mrf.mxu0
  %v2513 = vadd.f32 %v2456, %v2512
  %v2514 = vpop.f32.mrf.mxu0
  %v2515 = vpop.f32.mrf.mxu0
  %v2516 = vadd.f32 %v2459, %v2515
  %v2517 = vpop.f32.mrf.mxu0
  %2518 = vmatprep.mubr.bf16.mxu0 %v728
  %2519 = vmatmul.mubr.bf16.gmra.mxu0 %v727
  %v2520 = vpop.f32.mrf.mxu0
  %v2521 = vadd.f32 %v2464, %v2520
  %v2522 = vpop.f32.mrf.mxu0
  %v2523 = vpop.f32.mrf.mxu0
  %v2524 = vadd.f32 %v2467, %v2523
  %v2525 = vpop.f32.mrf.mxu0
  %2526 = vmatprep.mubr.bf16.mxu0 %v752
  %2527 = vmatmul.mubr.bf16.gmra.mxu0 %v751
  %v2528 = vpop.f32.mrf.mxu0
  %v2529 = vadd.f32 %v2472, %v2528
  %v2530 = vpop.f32.mrf.mxu0
  %v2531 = vpop.f32.mrf.mxu0
  %v2532 = vadd.f32 %v2475, %v2531
  %v2533 = vpop.f32.mrf.mxu0
  %2534 = vdwg.mxu0
  %2535 = vmatprep.subr.bf16.mxu0 0
  %2536 = vmatpush1.bf16.msra.mxu0 %v1743
  %2537 = vmatprep.subr.bf16.mxu0 0
  %2538 = vmatpush1.bf16.msra.mxu0 %v1742
  %2539 = vmatprep.subr.bf16.mxu0 0
  %2540 = vmatpush1.bf16.msra.mxu0 %v1741
  %2541 = vmatprep.subr.bf16.mxu0 0
  %2542 = vmatpush1.bf16.msra.mxu0 %v1740
  %2543 = vmatprep.subr.bf16.mxu0 0
  %2544 = vmatpush1.bf16.msra.mxu0 %v1739
  %2545 = vmatprep.subr.bf16.mxu0 0
  %2546 = vmatpush1.bf16.msra.mxu0 %v1738
  %2547 = vmatprep.subr.bf16.mxu0 0
  %2548 = vmatpush1.bf16.msra.mxu0 %v1737
  %2549 = vmatprep.subr.bf16.mxu0 0
  %2550 = vmatpush1.bf16.msra.mxu0 %v1736
  %2551 = vmatprep.subr.bf16.mxu0 0
  %2552 = vmatpush2.bf16.msra.mxu0 %v1751
  %2553 = vmatprep.subr.bf16.mxu0 0
  %2554 = vmatpush2.bf16.msra.mxu0 %v1750
  %2555 = vmatprep.subr.bf16.mxu0 0
  %2556 = vmatpush2.bf16.msra.mxu0 %v1749
  %2557 = vmatprep.subr.bf16.mxu0 0
  %2558 = vmatpush2.bf16.msra.mxu0 %v1748
  %2559 = vmatprep.subr.bf16.mxu0 0
  %2560 = vmatpush2.bf16.msra.mxu0 %v1747
  %2561 = vmatprep.subr.bf16.mxu0 0
  %2562 = vmatpush2.bf16.msra.mxu0 %v1746
  %2563 = vmatprep.subr.bf16.mxu0 0
  %2564 = vmatpush2.bf16.msra.mxu0 %v1745
  %2565 = vmatprep.subr.bf16.mxu0 0
  %2566 = vmatpush2.bf16.msra.mxu0 %v1744
  %2567 = vmatprep.mubr.bf16.mxu0 %v706
  %2568 = vmatmul.mubr.bf16.gmra.mxu0 %v705
  %v2569 = vpop.f32.mrf.mxu0
  %v2570 = vadd.f32 %v2513, %v2569
  %v2571 = vpop.f32.mrf.mxu0
  %v2572 = vpop.f32.mrf.mxu0
  %v2573 = vadd.f32 %v2516, %v2572
  %v2574 = vpop.f32.mrf.mxu0
  %2575 = vmatprep.mubr.bf16.mxu0 %v730
  %2576 = vmatmul.mubr.bf16.gmra.mxu0 %v729
  %v2577 = vpop.f32.mrf.mxu0
  %v2578 = vadd.f32 %v2521, %v2577
  %v2579 = vpop.f32.mrf.mxu0
  %v2580 = vpop.f32.mrf.mxu0
  %v2581 = vadd.f32 %v2524, %v2580
  %v2582 = vpop.f32.mrf.mxu0
  %2583 = vmatprep.mubr.bf16.mxu0 %v754
  %2584 = vmatmul.mubr.bf16.gmra.mxu0 %v753
  %v2585 = vpop.f32.mrf.mxu0
  %v2586 = vadd.f32 %v2529, %v2585
  %v2587 = vpop.f32.mrf.mxu0
  %v2588 = vpop.f32.mrf.mxu0
  %v2589 = vadd.f32 %v2532, %v2588
  %v2590 = vpop.f32.mrf.mxu0
  %2591 = vdwg.mxu0
  %2592 = vmatprep.subr.bf16.mxu0 0
  %2593 = vmatpush1.bf16.msra.mxu0 %v1759
  %2594 = vmatprep.subr.bf16.mxu0 0
  %2595 = vmatpush1.bf16.msra.mxu0 %v1758
  %2596 = vmatprep.subr.bf16.mxu0 0
  %2597 = vmatpush1.bf16.msra.mxu0 %v1757
  %2598 = vmatprep.subr.bf16.mxu0 0
  %2599 = vmatpush1.bf16.msra.mxu0 %v1756
  %2600 = vmatprep.subr.bf16.mxu0 0
  %2601 = vmatpush1.bf16.msra.mxu0 %v1755
  %2602 = vmatprep.subr.bf16.mxu0 0
  %2603 = vmatpush1.bf16.msra.mxu0 %v1754
  %2604 = vmatprep.subr.bf16.mxu0 0
  %2605 = vmatpush1.bf16.msra.mxu0 %v1753
  %2606 = vmatprep.subr.bf16.mxu0 0
  %2607 = vmatpush1.bf16.msra.mxu0 %v1752
  %2608 = vmatprep.subr.bf16.mxu0 0
  %2609 = vmatpush2.bf16.msra.mxu0 0
  %2610 = vmatprep.subr.bf16.mxu0 0
  %2611 = vmatpush2.bf16.msra.mxu0 0
  %2612 = vmatprep.subr.bf16.mxu0 0
  %2613 = vmatpush2.bf16.msra.mxu0 0
  %2614 = vmatprep.subr.bf16.mxu0 0
  %2615 = vmatpush2.bf16.msra.mxu0 0
  %2616 = vmatprep.subr.bf16.mxu0 0
  %2617 = vmatpush2.bf16.msra.mxu0 %v1963
  %2618 = vmatprep.subr.bf16.mxu0 0
  %2619 = vmatpush2.bf16.msra.mxu0 %v1762
  %2620 = vmatprep.subr.bf16.mxu0 0
  %2621 = vmatpush2.bf16.msra.mxu0 %v1761
  %2622 = vmatprep.subr.bf16.mxu0 0
  %2623 = vmatpush2.bf16.msra.mxu0 %v1760
  %2624 = vmatprep.mubr.bf16.mxu0 %v1953
  %2625 = vmatmul.mubr.bf16.gmra.mxu0 %v707
  %v2626 = vpop.f32.mrf.mxu0
  %v2627 = vadd.f32 %v2570, %v2626
  %v2628 = vpop.f32.mrf.mxu0
  %v2629 = vpop.f32.mrf.mxu0
  %v2630 = vadd.f32 %v2573, %v2629
  %v2631 = vpop.f32.mrf.mxu0
  %2632 = vmatprep.mubr.bf16.mxu0 %v1956
  %2633 = vmatmul.mubr.bf16.gmra.mxu0 %v731
  %v2634 = vpop.f32.mrf.mxu0
  %v2635 = vadd.f32 %v2578, %v2634
  %v2636 = vpop.f32.mrf.mxu0
  %v2637 = vpop.f32.mrf.mxu0
  %v2638 = vadd.f32 %v2581, %v2637
  %v2639 = vpop.f32.mrf.mxu0
  %2640 = vmatprep.mubr.bf16.mxu0 %v1959
  %2641 = vmatmul.mubr.bf16.gmra.mxu0 %v755
  %v2642 = vpop.f32.mrf.mxu0
  %v2643 = vadd.f32 %v2586, %v2642
  %v2644 = vpop.f32.mrf.mxu0
  %v2645 = vpop.f32.mrf.mxu0
  %v2646 = vadd.f32 %v2589, %v2645
  %v2647 = vpop.f32.mrf.mxu0
  %2648 = vdwg.mxu0
  %vm2649 = vcmask 408576
  %2650 = vst.msk [vmem:[%s3] sm:$0xff] %vm2649, %v2627
  %2651 = vst.msk [vmem:[%s3 + $0x8] sm:$0xff] %vm2649, %v2630
  %2652 = vst.msk [vmem:[%s3 + $0x10] sm:$0xff] %vm2649, %v2635
  %2653 = vst.msk [vmem:[%s3 + $0x18] sm:$0xff] %vm2649, %v2638
  %2654 = vst.msk [vmem:[%s3 + $0x20] sm:$0xff] %vm2649, %v2643
  %2655 = vst.msk [vmem:[%s3 + $0x28] sm:$0xff] %vm2649, %v2646
  // Predicated region
  $region14: #{eeg_channelnet_encoder.18} parent=0 // pred_check
    _
  $region15: #{eeg_channelnet_encoder.18} parent=0 // pred_check_branch
    %2657 = sbr.rel (0) target = $region17
  $region16: #{eeg_channelnet_encoder.18} parent=0 // pred_region
    _
  $region17: #{eeg_channelnet_encoder.18} parent=0 // pred_fallthru
    _
  // Predicated region
  $region18: #{eeg_channelnet_encoder.18} parent=0 // pred_check
    _
  $region19: #{eeg_channelnet_encoder.18} parent=0 // pred_check_branch
    %2659 = sbr.rel (0) target = $region21
  $region20: #{eeg_channelnet_encoder.18} parent=0 // pred_region
    _
  $region21: #{eeg_channelnet_encoder.18} parent=0 // pred_fallthru
    _

// kernel: eeg_channelnet_encoder.19
$region0: #{eeg_channelnet_encoder.19}
  #allocation0 [shape = 'u32[]', space=smem, size = 0x4, offset = 0x4, fixed_abs, tag = 'smem constant byte address 0x4 - core index']
  #allocation1 [shape = 'u32[144,128]{1,0:T(1,128)}', space=vmem, size = 0x12000, scoped, tag = 'internal scratch']
  %s0 = inlined_call_operand.vmem [shape: bf16[8,1200], index: 0, kind: input, shape index: {}]
  %s1 = inlined_call_operand.vmem [shape: bf16[1200,32], index: 1, kind: input, shape index: {}]
  %s2 = inlined_call_operand.vmem [shape: f32[1,32], index: 2, kind: input, shape index: {}]
  %s3 = inlined_call_operand.vmem [shape: f32[8,32], index: 3, kind: output, shape index: {}]
  %s4 = sld [smem:[#allocation0]]
  $region22: #{eeg_channelnet_encoder.19} parent=0
    _
  %s6 = ssub.s32 1, %s4
  %s7 = scalar_select 0, %s6, %s4
  // Predicated region
  $region2: #{eeg_channelnet_encoder.19} parent=0 // pred_check
    _
  $region3: #{eeg_channelnet_encoder.19} parent=0 // pred_check_branch
    %9 = sbr.rel (0) target = $region5
  $region4: #{eeg_channelnet_encoder.19} parent=0 // pred_region
    _
  $region5: #{eeg_channelnet_encoder.19} parent=0 // pred_fallthru
    _
  // Predicated region
  $region6: #{eeg_channelnet_encoder.19} parent=0 // pred_check
    _
  $region7: #{eeg_channelnet_encoder.19} parent=0 // pred_check_branch
    %11 = sbr.rel (0) target = $region9
  $region8: #{eeg_channelnet_encoder.19} parent=0 // pred_region
    _
  $region9: #{eeg_channelnet_encoder.19} parent=0 // pred_fallthru
    _
  // Predicated region
  $region10: #{eeg_channelnet_encoder.19} parent=0 // pred_check
    _
  $region11: #{eeg_channelnet_encoder.19} parent=0 // pred_check_branch
    %13 = sbr.rel (0) target = $region13
  $region12: #{eeg_channelnet_encoder.19} parent=0 // pred_region
    _
  $region13: #{eeg_channelnet_encoder.19} parent=0 // pred_fallthru
    _
  %v15 = vld [vmem:[%s0] sm:$0xff]
  %v16 = vld [vmem:[%s0 + $0x8] sm:$0xff]
  %v17 = vld [vmem:[%s0 + $0x10] sm:$0xff]
  %v18 = vld [vmem:[%s0 + $0x18] sm:$0xff]
  %v19 = vld [vmem:[%s0 + $0x20] sm:$0xff]
  %v20 = vld [vmem:[%s1] sm:$0xf]
  %v21 = vld [vmem:[%s1 + $0x4] sm:$0xf]
  %v22 = vld [vmem:[%s1 + $0x8] sm:$0xf]
  %v23 = vld [vmem:[%s1 + $0xc] sm:$0xf]
  %v24 = vld [vmem:[%s1 + $0x10] sm:$0xf]
  %v25 = vld [vmem:[%s1 + $0x14] sm:$0xf]
  %v26 = vld [vmem:[%s1 + $0x18] sm:$0xf]
  %v27 = vld [vmem:[%s1 + $0x1c] sm:$0xf]
  %v28 = vld [vmem:[%s1 + $0x20] sm:$0xf]
  %v29 = vld [vmem:[%s1 + $0x24] sm:$0xf]
  %v30 = vld [vmem:[%s1 + $0x28] sm:$0xf]
  %v31 = vld [vmem:[%s1 + $0x2c] sm:$0xf]
  %v32 = vld [vmem:[%s1 + $0x30] sm:$0xf]
  %v33 = vld [vmem:[%s1 + $0x34] sm:$0xf]
  %v34 = vld [vmem:[%s1 + $0x38] sm:$0xf]
  %v35 = vld [vmem:[%s1 + $0x3c] sm:$0xf]
  %v36 = vld [vmem:[%s1 + $0x40] sm:$0xf]
  %v37 = vld [vmem:[%s1 + $0x44] sm:$0xf]
  %v38 = vld [vmem:[%s1 + $0x48] sm:$0xf]
  %v39 = vld [vmem:[%s1 + $0x4c] sm:$0xf]
  %v40 = vld [vmem:[%s1 + $0x50] sm:$0xf]
  %v41 = vld [vmem:[%s1 + $0x54] sm:$0xf]
  %v42 = vld [vmem:[%s1 + $0x58] sm:$0xf]
  %v43 = vld [vmem:[%s1 + $0x5c] sm:$0xf]
  %v44 = vld [vmem:[%s1 + $0x60] sm:$0xf]
  %v45 = vld [vmem:[%s1 + $0x64] sm:$0xf]
  %v46 = vld [vmem:[%s1 + $0x68] sm:$0xf]
  %v47 = vld [vmem:[%s1 + $0x6c] sm:$0xf]
  %v48 = vld [vmem:[%s1 + $0x70] sm:$0xf]
  %v49 = vld [vmem:[%s1 + $0x74] sm:$0xf]
  %v50 = vld [vmem:[%s1 + $0x78] sm:$0xf]
  %v51 = vld [vmem:[%s1 + $0x7c] sm:$0xf]
  %v52 = vld [vmem:[%s1 + $0x80] sm:$0xf]
  %v53 = vld [vmem:[%s1 + $0x84] sm:$0xf]
  %v54 = vld [vmem:[%s1 + $0x88] sm:$0xf]
  %v55 = vld [vmem:[%s1 + $0x8c] sm:$0xf]
  %v56 = vld [vmem:[%s1 + $0x90] sm:$0xf]
  %v57 = vld [vmem:[%s1 + $0x94] sm:$0xf]
  %v58 = vld [vmem:[%s1 + $0x98] sm:$0xf]
  %v59 = vld [vmem:[%s1 + $0x9c] sm:$0xf]
  %v60 = vld [vmem:[%s1 + $0xa0] sm:$0xf]
  %v61 = vld [vmem:[%s1 + $0xa4] sm:$0xf]
  %v62 = vld [vmem:[%s1 + $0xa8] sm:$0xf]
  %v63 = vld [vmem:[%s1 + $0xac] sm:$0xf]
  %v64 = vld [vmem:[%s1 + $0xb0] sm:$0xf]
  %v65 = vld [vmem:[%s1 + $0xb4] sm:$0xf]
  %v66 = vld [vmem:[%s1 + $0xb8] sm:$0xf]
  %v67 = vld [vmem:[%s1 + $0xbc] sm:$0xf]
  %v68 = vld [vmem:[%s1 + $0xc0] sm:$0xf]
  %v69 = vld [vmem:[%s1 + $0xc4] sm:$0xf]
  %v70 = vld [vmem:[%s1 + $0xc8] sm:$0xf]
  %v71 = vld [vmem:[%s1 + $0xcc] sm:$0xf]
  %v72 = vld [vmem:[%s1 + $0xd0] sm:$0xf]
  %v73 = vld [vmem:[%s1 + $0xd4] sm:$0xf]
  %v74 = vld [vmem:[%s1 + $0xd8] sm:$0xf]
  %v75 = vld [vmem:[%s1 + $0xdc] sm:$0xf]
  %v76 = vld [vmem:[%s1 + $0xe0] sm:$0xf]
  %v77 = vld [vmem:[%s1 + $0xe4] sm:$0xf]
  %v78 = vld [vmem:[%s1 + $0xe8] sm:$0xf]
  %v79 = vld [vmem:[%s1 + $0xec] sm:$0xf]
  %v80 = vld [vmem:[%s1 + $0xf0] sm:$0xf]
  %v81 = vld [vmem:[%s1 + $0xf4] sm:$0xf]
  %v82 = vld [vmem:[%s1 + $0xf8] sm:$0xf]
  %v83 = vld [vmem:[%s1 + $0xfc] sm:$0xf]
  %v84 = vld [vmem:[%s1 + $0x100] sm:$0xf]
  %v85 = vld [vmem:[%s1 + $0x104] sm:$0xf]
  %v86 = vld [vmem:[%s1 + $0x108] sm:$0xf]
  %v87 = vld [vmem:[%s1 + $0x10c] sm:$0xf]
  %v88 = vld [vmem:[%s1 + $0x110] sm:$0xf]
  %v89 = vld [vmem:[%s1 + $0x114] sm:$0xf]
  %v90 = vld [vmem:[%s1 + $0x118] sm:$0xf]
  %v91 = vld [vmem:[%s1 + $0x11c] sm:$0xf]
  %v92 = vld [vmem:[%s1 + $0x120] sm:$0xf]
  %v93 = vld [vmem:[%s1 + $0x124] sm:$0xf]
  %v94 = vld [vmem:[%s1 + $0x128] sm:$0xf]
  %v95 = vld [vmem:[%s1 + $0x12c] sm:$0xf]
  %v96 = vld [vmem:[%s1 + $0x130] sm:$0xf]
  %v97 = vld [vmem:[%s1 + $0x134] sm:$0xf]
  %v98 = vld [vmem:[%s1 + $0x138] sm:$0xf]
  %v99 = vld [vmem:[%s1 + $0x13c] sm:$0xf]
  %v100 = vld [vmem:[%s1 + $0x140] sm:$0xf]
  %v101 = vld [vmem:[%s1 + $0x144] sm:$0xf]
  %v102 = vld [vmem:[%s1 + $0x148] sm:$0xf]
  %v103 = vld [vmem:[%s1 + $0x14c] sm:$0xf]
  %v104 = vld [vmem:[%s1 + $0x150] sm:$0xf]
  %v105 = vld [vmem:[%s1 + $0x154] sm:$0xf]
  %v106 = vld [vmem:[%s1 + $0x158] sm:$0xf]
  %v107 = vld [vmem:[%s1 + $0x15c] sm:$0xf]
  %v108 = vld [vmem:[%s1 + $0x160] sm:$0xf]
  %v109 = vld [vmem:[%s1 + $0x164] sm:$0xf]
  %v110 = vld [vmem:[%s1 + $0x168] sm:$0xf]
  %v111 = vld [vmem:[%s1 + $0x16c] sm:$0xf]
  %v112 = vld [vmem:[%s1 + $0x170] sm:$0xf]
  %v113 = vld [vmem:[%s1 + $0x174] sm:$0xf]
  %v114 = vld [vmem:[%s1 + $0x178] sm:$0xf]
  %v115 = vld [vmem:[%s1 + $0x17c] sm:$0xf]
  %v116 = vld [vmem:[%s1 + $0x180] sm:$0xf]
  %v117 = vld [vmem:[%s1 + $0x184] sm:$0xf]
  %v118 = vld [vmem:[%s1 + $0x188] sm:$0xf]
  %v119 = vld [vmem:[%s1 + $0x18c] sm:$0xf]
  %v120 = vld [vmem:[%s1 + $0x190] sm:$0xf]
  %v121 = vld [vmem:[%s1 + $0x194] sm:$0xf]
  %v122 = vld [vmem:[%s1 + $0x198] sm:$0xf]
  %v123 = vld [vmem:[%s1 + $0x19c] sm:$0xf]
  %v124 = vld [vmem:[%s1 + $0x1a0] sm:$0xf]
  %v125 = vld [vmem:[%s1 + $0x1a4] sm:$0xf]
  %v126 = vld [vmem:[%s1 + $0x1a8] sm:$0xf]
  %v127 = vld [vmem:[%s1 + $0x1ac] sm:$0xf]
  %v128 = vld [vmem:[%s1 + $0x1b0] sm:$0xf]
  %v129 = vld [vmem:[%s1 + $0x1b4] sm:$0xf]
  %v130 = vld [vmem:[%s1 + $0x1b8] sm:$0xf]
  %v131 = vld [vmem:[%s1 + $0x1bc] sm:$0xf]
  %v132 = vld [vmem:[%s1 + $0x1c0] sm:$0xf]
  %v133 = vld [vmem:[%s1 + $0x1c4] sm:$0xf]
  %v134 = vld [vmem:[%s1 + $0x1c8] sm:$0xf]
  %v135 = vld [vmem:[%s1 + $0x1cc] sm:$0xf]
  %v136 = vld [vmem:[%s1 + $0x1d0] sm:$0xf]
  %v137 = vld [vmem:[%s1 + $0x1d4] sm:$0xf]
  %v138 = vld [vmem:[%s1 + $0x1d8] sm:$0xf]
  %v139 = vld [vmem:[%s1 + $0x1dc] sm:$0xf]
  %v140 = vld [vmem:[%s1 + $0x1e0] sm:$0xf]
  %v141 = vld [vmem:[%s1 + $0x1e4] sm:$0xf]
  %v142 = vld [vmem:[%s1 + $0x1e8] sm:$0xf]
  %v143 = vld [vmem:[%s1 + $0x1ec] sm:$0xf]
  %v144 = vld [vmem:[%s1 + $0x1f0] sm:$0xf]
  %v145 = vld [vmem:[%s1 + $0x1f4] sm:$0xf]
  %v146 = vld [vmem:[%s1 + $0x1f8] sm:$0xf]
  %v147 = vld [vmem:[%s1 + $0x1fc] sm:$0xf]
  %v148 = vld [vmem:[%s1 + $0x200] sm:$0xf]
  %v149 = vld [vmem:[%s1 + $0x204] sm:$0xf]
  %v150 = vld [vmem:[%s1 + $0x208] sm:$0xf]
  %v151 = vld [vmem:[%s1 + $0x20c] sm:$0xf]
  %v152 = vld [vmem:[%s1 + $0x210] sm:$0xf]
  %v153 = vld [vmem:[%s1 + $0x214] sm:$0xf]
  %v154 = vld [vmem:[%s1 + $0x218] sm:$0xf]
  %v155 = vld [vmem:[%s1 + $0x21c] sm:$0xf]
  %v156 = vld [vmem:[%s1 + $0x220] sm:$0xf]
  %v157 = vld [vmem:[%s1 + $0x224] sm:$0xf]
  %v158 = vld [vmem:[%s1 + $0x228] sm:$0xf]
  %v159 = vld [vmem:[%s1 + $0x22c] sm:$0xf]
  %v160 = vld [vmem:[%s1 + $0x230] sm:$0xf]
  %v161 = vld [vmem:[%s1 + $0x234] sm:$0xf]
  %v162 = vld [vmem:[%s1 + $0x238] sm:$0xf]
  %v163 = vld [vmem:[%s1 + $0x23c] sm:$0xf]
  %v164 = vld [vmem:[%s1 + $0x240] sm:$0xf]
  %v165 = vld [vmem:[%s1 + $0x244] sm:$0xf]
  %v166 = vld [vmem:[%s1 + $0x248] sm:$0xf]
  %v167 = vld [vmem:[%s1 + $0x24c] sm:$0xf]
  %v168 = vld [vmem:[%s1 + $0x250] sm:$0xf]
  %v169 = vld [vmem:[%s1 + $0x254] sm:$0xf]
  %v170 = vld [vmem:[%s2] sm:$0x1]
  %v172 = vlaneseq
  %v173 = vshrl.u32 %v172, 7
  %v174 = vsub.s32 0, %v173
  %v175 = vrot.slane %v170, %v174
  %v182 = vunpack.c.l.b16 %v15
  %v183 = vunpack.c.h.b16 %v15
  %v184 = vunpack.c.l.b16 %v16
  %v185 = vunpack.c.h.b16 %v16
  %v186 = vunpack.c.l.b16 %v17
  %v187 = vunpack.c.h.b16 %v17
  %v188 = vunpack.c.l.b16 %v18
  %v189 = vunpack.c.h.b16 %v18
  %v190 = vunpack.c.l.b16 %v19
  %v191 = vunpack.c.h.b16 %v19
  %v192 = vpack.c.b16 %v182, %v182
  %v193 = vpack.c.b16 %v183, %v183
  %v194 = vpack.c.b16 %v184, %v184
  %v195 = vpack.c.b16 %v185, %v185
  %v196 = vpack.c.b16 %v186, %v186
  %v197 = vpack.c.b16 %v187, %v187
  %v198 = vpack.c.b16 %v188, %v188
  %v199 = vpack.c.b16 %v189, %v189
  %v200 = vpack.c.b16 %v190, %v190
  %v201 = vpack.c.b16 %v191, %v191
  %v361 = vunpack.c.l.b16 %v20
  %v362 = vunpack.c.l.b16 %v21
  %v363 = vunpack.c.l.b16 %v22
  %v364 = vunpack.c.l.b16 %v23
  %v365 = vunpack.c.l.b16 %v24
  %v366 = vunpack.c.l.b16 %v25
  %v367 = vunpack.c.l.b16 %v26
  %v368 = vunpack.c.l.b16 %v27
  %v369 = vunpack.c.l.b16 %v28
  %v370 = vunpack.c.l.b16 %v29
  %v371 = vunpack.c.l.b16 %v30
  %v372 = vunpack.c.l.b16 %v31
  %v373 = vunpack.c.l.b16 %v32
  %v374 = vunpack.c.l.b16 %v33
  %v375 = vunpack.c.l.b16 %v34
  %v376 = vunpack.c.l.b16 %v35
  %v377 = vunpack.c.l.b16 %v36
  %v378 = vunpack.c.l.b16 %v37
  %v379 = vunpack.c.l.b16 %v38
  %v380 = vunpack.c.l.b16 %v39
  %v381 = vunpack.c.l.b16 %v40
  %v382 = vunpack.c.l.b16 %v41
  %v383 = vunpack.c.l.b16 %v42
  %v384 = vunpack.c.l.b16 %v43
  %v385 = vunpack.c.l.b16 %v44
  %v386 = vunpack.c.l.b16 %v45
  %v387 = vunpack.c.l.b16 %v46
  %v388 = vunpack.c.l.b16 %v47
  %v389 = vunpack.c.l.b16 %v48
  %v390 = vunpack.c.l.b16 %v49
  %v391 = vunpack.c.l.b16 %v50
  %v392 = vunpack.c.l.b16 %v51
  %v393 = vunpack.c.l.b16 %v52
  %v394 = vunpack.c.l.b16 %v53
  %v395 = vunpack.c.l.b16 %v54
  %v396 = vunpack.c.l.b16 %v55
  %v397 = vunpack.c.l.b16 %v56
  %v398 = vunpack.c.l.b16 %v57
  %v399 = vunpack.c.l.b16 %v58
  %v400 = vunpack.c.l.b16 %v59
  %v401 = vunpack.c.l.b16 %v60
  %v402 = vunpack.c.l.b16 %v61
  %v403 = vunpack.c.l.b16 %v62
  %v404 = vunpack.c.l.b16 %v63
  %v405 = vunpack.c.l.b16 %v64
  %v406 = vunpack.c.l.b16 %v65
  %v407 = vunpack.c.l.b16 %v66
  %v408 = vunpack.c.l.b16 %v67
  %v409 = vunpack.c.l.b16 %v68
  %v410 = vunpack.c.l.b16 %v69
  %v411 = vunpack.c.l.b16 %v70
  %v412 = vunpack.c.l.b16 %v71
  %v413 = vunpack.c.l.b16 %v72
  %v414 = vunpack.c.l.b16 %v73
  %v415 = vunpack.c.l.b16 %v74
  %v416 = vunpack.c.l.b16 %v75
  %v417 = vunpack.c.l.b16 %v76
  %v418 = vunpack.c.l.b16 %v77
  %v419 = vunpack.c.l.b16 %v78
  %v420 = vunpack.c.l.b16 %v79
  %v421 = vunpack.c.l.b16 %v80
  %v422 = vunpack.c.l.b16 %v81
  %v423 = vunpack.c.l.b16 %v82
  %v424 = vunpack.c.l.b16 %v83
  %v425 = vunpack.c.l.b16 %v84
  %v426 = vunpack.c.l.b16 %v85
  %v427 = vunpack.c.l.b16 %v86
  %v428 = vunpack.c.l.b16 %v87
  %v429 = vunpack.c.l.b16 %v88
  %v430 = vunpack.c.l.b16 %v89
  %v431 = vunpack.c.l.b16 %v90
  %v432 = vunpack.c.l.b16 %v91
  %v433 = vunpack.c.l.b16 %v92
  %v434 = vunpack.c.l.b16 %v93
  %v435 = vunpack.c.l.b16 %v94
  %v436 = vunpack.c.l.b16 %v95
  %v437 = vunpack.c.l.b16 %v96
  %v438 = vunpack.c.l.b16 %v97
  %v439 = vunpack.c.l.b16 %v98
  %v440 = vunpack.c.l.b16 %v99
  %v441 = vunpack.c.l.b16 %v100
  %v442 = vunpack.c.l.b16 %v101
  %v443 = vunpack.c.l.b16 %v102
  %v444 = vunpack.c.l.b16 %v103
  %v445 = vunpack.c.l.b16 %v104
  %v446 = vunpack.c.l.b16 %v105
  %v447 = vunpack.c.l.b16 %v106
  %v448 = vunpack.c.l.b16 %v107
  %v449 = vunpack.c.l.b16 %v108
  %v450 = vunpack.c.l.b16 %v109
  %v451 = vunpack.c.l.b16 %v110
  %v452 = vunpack.c.l.b16 %v111
  %v453 = vunpack.c.l.b16 %v112
  %v454 = vunpack.c.l.b16 %v113
  %v455 = vunpack.c.l.b16 %v114
  %v456 = vunpack.c.l.b16 %v115
  %v457 = vunpack.c.l.b16 %v116
  %v458 = vunpack.c.l.b16 %v117
  %v459 = vunpack.c.l.b16 %v118
  %v460 = vunpack.c.l.b16 %v119
  %v461 = vunpack.c.l.b16 %v120
  %v462 = vunpack.c.l.b16 %v121
  %v463 = vunpack.c.l.b16 %v122
  %v464 = vunpack.c.l.b16 %v123
  %v465 = vunpack.c.l.b16 %v124
  %v466 = vunpack.c.l.b16 %v125
  %v467 = vunpack.c.l.b16 %v126
  %v468 = vunpack.c.l.b16 %v127
  %v469 = vunpack.c.l.b16 %v128
  %v470 = vunpack.c.l.b16 %v129
  %v471 = vunpack.c.l.b16 %v130
  %v472 = vunpack.c.l.b16 %v131
  %v473 = vunpack.c.l.b16 %v132
  %v474 = vunpack.c.l.b16 %v133
  %v475 = vunpack.c.l.b16 %v134
  %v476 = vunpack.c.l.b16 %v135
  %v477 = vunpack.c.l.b16 %v136
  %v478 = vunpack.c.l.b16 %v137
  %v479 = vunpack.c.l.b16 %v138
  %v480 = vunpack.c.l.b16 %v139
  %v481 = vunpack.c.l.b16 %v140
  %v482 = vunpack.c.l.b16 %v141
  %v483 = vunpack.c.l.b16 %v142
  %v484 = vunpack.c.l.b16 %v143
  %v485 = vunpack.c.l.b16 %v144
  %v486 = vunpack.c.l.b16 %v145
  %v487 = vunpack.c.l.b16 %v146
  %v488 = vunpack.c.l.b16 %v147
  %v489 = vunpack.c.l.b16 %v148
  %v490 = vunpack.c.l.b16 %v149
  %v491 = vunpack.c.l.b16 %v150
  %v492 = vunpack.c.l.b16 %v151
  %v493 = vunpack.c.l.b16 %v152
  %v494 = vunpack.c.l.b16 %v153
  %v495 = vunpack.c.l.b16 %v154
  %v496 = vunpack.c.l.b16 %v155
  %v497 = vunpack.c.l.b16 %v156
  %v498 = vunpack.c.l.b16 %v157
  %v499 = vunpack.c.l.b16 %v158
  %v500 = vunpack.c.l.b16 %v159
  %v501 = vunpack.c.l.b16 %v160
  %v502 = vunpack.c.l.b16 %v161
  %v503 = vunpack.c.l.b16 %v162
  %v504 = vunpack.c.l.b16 %v163
  %v505 = vunpack.c.l.b16 %v164
  %v506 = vunpack.c.l.b16 %v165
  %v507 = vunpack.c.l.b16 %v166
  %v508 = vunpack.c.l.b16 %v167
  %v509 = vunpack.c.l.b16 %v168
  %v510 = vunpack.c.l.b16 %v169
  %v511 = vpack.c.b16 %v362, %v361
  %v512 = vpack.c.b16 %v364, %v363
  %v513 = vpack.c.b16 %v366, %v365
  %v514 = vpack.c.b16 %v368, %v367
  %v515 = vpack.c.b16 %v370, %v369
  %v516 = vpack.c.b16 %v372, %v371
  %v517 = vpack.c.b16 %v374, %v373
  %v518 = vpack.c.b16 %v376, %v375
  %v519 = vpack.c.b16 %v378, %v377
  %v520 = vpack.c.b16 %v380, %v379
  %v521 = vpack.c.b16 %v382, %v381
  %v522 = vpack.c.b16 %v384, %v383
  %v523 = vpack.c.b16 %v386, %v385
  %v524 = vpack.c.b16 %v388, %v387
  %v525 = vpack.c.b16 %v390, %v389
  %v526 = vpack.c.b16 %v392, %v391
  %v527 = vpack.c.b16 %v394, %v393
  %v528 = vpack.c.b16 %v396, %v395
  %v529 = vpack.c.b16 %v398, %v397
  %v530 = vpack.c.b16 %v400, %v399
  %v531 = vpack.c.b16 %v402, %v401
  %v532 = vpack.c.b16 %v404, %v403
  %v533 = vpack.c.b16 %v406, %v405
  %v534 = vpack.c.b16 %v408, %v407
  %v535 = vpack.c.b16 %v410, %v409
  %v536 = vpack.c.b16 %v412, %v411
  %v537 = vpack.c.b16 %v414, %v413
  %v538 = vpack.c.b16 %v416, %v415
  %v539 = vpack.c.b16 %v418, %v417
  %v540 = vpack.c.b16 %v420, %v419
  %v541 = vpack.c.b16 %v422, %v421
  %v542 = vpack.c.b16 %v424, %v423
  %v543 = vpack.c.b16 %v426, %v425
  %v544 = vpack.c.b16 %v428, %v427
  %v545 = vpack.c.b16 %v430, %v429
  %v546 = vpack.c.b16 %v432, %v431
  %v547 = vpack.c.b16 %v434, %v433
  %v548 = vpack.c.b16 %v436, %v435
  %v549 = vpack.c.b16 %v438, %v437
  %v550 = vpack.c.b16 %v440, %v439
  %v551 = vpack.c.b16 %v442, %v441
  %v552 = vpack.c.b16 %v444, %v443
  %v553 = vpack.c.b16 %v446, %v445
  %v554 = vpack.c.b16 %v448, %v447
  %v555 = vpack.c.b16 %v450, %v449
  %v556 = vpack.c.b16 %v452, %v451
  %v557 = vpack.c.b16 %v454, %v453
  %v558 = vpack.c.b16 %v456, %v455
  %v559 = vpack.c.b16 %v458, %v457
  %v560 = vpack.c.b16 %v460, %v459
  %v561 = vpack.c.b16 %v462, %v461
  %v562 = vpack.c.b16 %v464, %v463
  %v563 = vpack.c.b16 %v466, %v465
  %v564 = vpack.c.b16 %v468, %v467
  %v565 = vpack.c.b16 %v470, %v469
  %v566 = vpack.c.b16 %v472, %v471
  %v567 = vpack.c.b16 %v474, %v473
  %v568 = vpack.c.b16 %v476, %v475
  %v569 = vpack.c.b16 %v478, %v477
  %v570 = vpack.c.b16 %v480, %v479
  %v571 = vpack.c.b16 %v482, %v481
  %v572 = vpack.c.b16 %v484, %v483
  %v573 = vpack.c.b16 %v486, %v485
  %v574 = vpack.c.b16 %v488, %v487
  %v575 = vpack.c.b16 %v490, %v489
  %v576 = vpack.c.b16 %v492, %v491
  %v577 = vpack.c.b16 %v494, %v493
  %v578 = vpack.c.b16 %v496, %v495
  %v579 = vpack.c.b16 %v498, %v497
  %v580 = vpack.c.b16 %v500, %v499
  %v581 = vpack.c.b16 %v502, %v501
  %v582 = vpack.c.b16 %v504, %v503
  %v583 = vpack.c.b16 %v506, %v505
  %v584 = vpack.c.b16 %v508, %v507
  %v585 = vpack.c.b16 %v510, %v509
  %vm661 = vcmask 392192
  %v663 = vsel %vm661, %v201, 0
  %665 = vmatprep.subr.bf16.mxu0 0
  %666 = vmatpush1.bf16.msra.mxu0 %v518
  %667 = vmatprep.subr.bf16.mxu0 0
  %668 = vmatpush1.bf16.msra.mxu0 %v517
  %669 = vmatprep.subr.bf16.mxu0 0
  %670 = vmatpush1.bf16.msra.mxu0 %v516
  %671 = vmatprep.subr.bf16.mxu0 0
  %672 = vmatpush1.bf16.msra.mxu0 %v515
  %673 = vmatprep.subr.bf16.mxu0 0
  %674 = vmatpush1.bf16.msra.mxu0 %v514
  %675 = vmatprep.subr.bf16.mxu0 0
  %676 = vmatpush1.bf16.msra.mxu0 %v513
  %677 = vmatprep.subr.bf16.mxu0 0
  %678 = vmatpush1.bf16.msra.mxu0 %v512
  %679 = vmatprep.subr.bf16.mxu0 0
  %680 = vmatpush1.bf16.msra.mxu0 %v511
  %681 = vmatprep.subr.bf16.mxu0 0
  %682 = vmatpush2.bf16.msra.mxu0 %v526
  %683 = vmatprep.subr.bf16.mxu0 0
  %684 = vmatpush2.bf16.msra.mxu0 %v525
  %685 = vmatprep.subr.bf16.mxu0 0
  %686 = vmatpush2.bf16.msra.mxu0 %v524
  %687 = vmatprep.subr.bf16.mxu0 0
  %688 = vmatpush2.bf16.msra.mxu0 %v523
  %689 = vmatprep.subr.bf16.mxu0 0
  %690 = vmatpush2.bf16.msra.mxu0 %v522
  %691 = vmatprep.subr.bf16.mxu0 0
  %692 = vmatpush2.bf16.msra.mxu0 %v521
  %693 = vmatprep.subr.bf16.mxu0 0
  %694 = vmatpush2.bf16.msra.mxu0 %v520
  %695 = vmatprep.subr.bf16.mxu0 0
  %696 = vmatpush2.bf16.msra.mxu0 %v519
  %697 = vmatprep.mubr.bf16.mxu0 %v193
  %698 = vmatmul.mubr.bf16.gmra.mxu0 %v192
  %v699 = vpop.f32.mrf.mxu0
  %v700 = vadd.f32 %v175, %v699
  %v701 = vpop.f32.mrf.mxu0
  %v702 = vpop.f32.mrf.mxu0
  %v703 = vpop.f32.mrf.mxu0
  %704 = vdwg.mxu0
  %705 = vmatprep.subr.bf16.mxu0 0
  %706 = vmatpush1.bf16.msra.mxu0 %v534
  %707 = vmatprep.subr.bf16.mxu0 0
  %708 = vmatpush1.bf16.msra.mxu0 %v533
  %709 = vmatprep.subr.bf16.mxu0 0
  %710 = vmatpush1.bf16.msra.mxu0 %v532
  %711 = vmatprep.subr.bf16.mxu0 0
  %712 = vmatpush1.bf16.msra.mxu0 %v531
  %713 = vmatprep.subr.bf16.mxu0 0
  %714 = vmatpush1.bf16.msra.mxu0 %v530
  %715 = vmatprep.subr.bf16.mxu0 0
  %716 = vmatpush1.bf16.msra.mxu0 %v529
  %717 = vmatprep.subr.bf16.mxu0 0
  %718 = vmatpush1.bf16.msra.mxu0 %v528
  %719 = vmatprep.subr.bf16.mxu0 0
  %720 = vmatpush1.bf16.msra.mxu0 %v527
  %721 = vmatprep.subr.bf16.mxu0 0
  %722 = vmatpush2.bf16.msra.mxu0 %v542
  %723 = vmatprep.subr.bf16.mxu0 0
  %724 = vmatpush2.bf16.msra.mxu0 %v541
  %725 = vmatprep.subr.bf16.mxu0 0
  %726 = vmatpush2.bf16.msra.mxu0 %v540
  %727 = vmatprep.subr.bf16.mxu0 0
  %728 = vmatpush2.bf16.msra.mxu0 %v539
  %729 = vmatprep.subr.bf16.mxu0 0
  %730 = vmatpush2.bf16.msra.mxu0 %v538
  %731 = vmatprep.subr.bf16.mxu0 0
  %732 = vmatpush2.bf16.msra.mxu0 %v537
  %733 = vmatprep.subr.bf16.mxu0 0
  %734 = vmatpush2.bf16.msra.mxu0 %v536
  %735 = vmatprep.subr.bf16.mxu0 0
  %736 = vmatpush2.bf16.msra.mxu0 %v535
  %737 = vmatprep.mubr.bf16.mxu0 %v195
  %738 = vmatmul.mubr.bf16.gmra.mxu0 %v194
  %v739 = vpop.f32.mrf.mxu0
  %v740 = vadd.f32 %v700, %v739
  %v741 = vpop.f32.mrf.mxu0
  %v742 = vpop.f32.mrf.mxu0
  %v743 = vpop.f32.mrf.mxu0
  %744 = vdwg.mxu0
  %745 = vmatprep.subr.bf16.mxu0 0
  %746 = vmatpush1.bf16.msra.mxu0 %v550
  %747 = vmatprep.subr.bf16.mxu0 0
  %748 = vmatpush1.bf16.msra.mxu0 %v549
  %749 = vmatprep.subr.bf16.mxu0 0
  %750 = vmatpush1.bf16.msra.mxu0 %v548
  %751 = vmatprep.subr.bf16.mxu0 0
  %752 = vmatpush1.bf16.msra.mxu0 %v547
  %753 = vmatprep.subr.bf16.mxu0 0
  %754 = vmatpush1.bf16.msra.mxu0 %v546
  %755 = vmatprep.subr.bf16.mxu0 0
  %756 = vmatpush1.bf16.msra.mxu0 %v545
  %757 = vmatprep.subr.bf16.mxu0 0
  %758 = vmatpush1.bf16.msra.mxu0 %v544
  %759 = vmatprep.subr.bf16.mxu0 0
  %760 = vmatpush1.bf16.msra.mxu0 %v543
  %761 = vmatprep.subr.bf16.mxu0 0
  %762 = vmatpush2.bf16.msra.mxu0 %v558
  %763 = vmatprep.subr.bf16.mxu0 0
  %764 = vmatpush2.bf16.msra.mxu0 %v557
  %765 = vmatprep.subr.bf16.mxu0 0
  %766 = vmatpush2.bf16.msra.mxu0 %v556
  %767 = vmatprep.subr.bf16.mxu0 0
  %768 = vmatpush2.bf16.msra.mxu0 %v555
  %769 = vmatprep.subr.bf16.mxu0 0
  %770 = vmatpush2.bf16.msra.mxu0 %v554
  %771 = vmatprep.subr.bf16.mxu0 0
  %772 = vmatpush2.bf16.msra.mxu0 %v553
  %773 = vmatprep.subr.bf16.mxu0 0
  %774 = vmatpush2.bf16.msra.mxu0 %v552
  %775 = vmatprep.subr.bf16.mxu0 0
  %776 = vmatpush2.bf16.msra.mxu0 %v551
  %777 = vmatprep.mubr.bf16.mxu0 %v197
  %778 = vmatmul.mubr.bf16.gmra.mxu0 %v196
  %v779 = vpop.f32.mrf.mxu0
  %v780 = vadd.f32 %v740, %v779
  %v781 = vpop.f32.mrf.mxu0
  %v782 = vpop.f32.mrf.mxu0
  %v783 = vpop.f32.mrf.mxu0
  %784 = vdwg.mxu0
  %785 = vmatprep.subr.bf16.mxu0 0
  %786 = vmatpush1.bf16.msra.mxu0 %v566
  %787 = vmatprep.subr.bf16.mxu0 0
  %788 = vmatpush1.bf16.msra.mxu0 %v565
  %789 = vmatprep.subr.bf16.mxu0 0
  %790 = vmatpush1.bf16.msra.mxu0 %v564
  %791 = vmatprep.subr.bf16.mxu0 0
  %792 = vmatpush1.bf16.msra.mxu0 %v563
  %793 = vmatprep.subr.bf16.mxu0 0
  %794 = vmatpush1.bf16.msra.mxu0 %v562
  %795 = vmatprep.subr.bf16.mxu0 0
  %796 = vmatpush1.bf16.msra.mxu0 %v561
  %797 = vmatprep.subr.bf16.mxu0 0
  %798 = vmatpush1.bf16.msra.mxu0 %v560
  %799 = vmatprep.subr.bf16.mxu0 0
  %800 = vmatpush1.bf16.msra.mxu0 %v559
  %801 = vmatprep.subr.bf16.mxu0 0
  %802 = vmatpush2.bf16.msra.mxu0 %v574
  %803 = vmatprep.subr.bf16.mxu0 0
  %804 = vmatpush2.bf16.msra.mxu0 %v573
  %805 = vmatprep.subr.bf16.mxu0 0
  %806 = vmatpush2.bf16.msra.mxu0 %v572
  %807 = vmatprep.subr.bf16.mxu0 0
  %808 = vmatpush2.bf16.msra.mxu0 %v571
  %809 = vmatprep.subr.bf16.mxu0 0
  %810 = vmatpush2.bf16.msra.mxu0 %v570
  %811 = vmatprep.subr.bf16.mxu0 0
  %812 = vmatpush2.bf16.msra.mxu0 %v569
  %813 = vmatprep.subr.bf16.mxu0 0
  %814 = vmatpush2.bf16.msra.mxu0 %v568
  %815 = vmatprep.subr.bf16.mxu0 0
  %816 = vmatpush2.bf16.msra.mxu0 %v567
  %817 = vmatprep.mubr.bf16.mxu0 %v199
  %818 = vmatmul.mubr.bf16.gmra.mxu0 %v198
  %v819 = vpop.f32.mrf.mxu0
  %v820 = vadd.f32 %v780, %v819
  %v821 = vpop.f32.mrf.mxu0
  %v822 = vpop.f32.mrf.mxu0
  %v823 = vpop.f32.mrf.mxu0
  %824 = vdwg.mxu0
  %825 = vmatprep.subr.bf16.mxu0 0
  %826 = vmatpush1.bf16.msra.mxu0 %v582
  %827 = vmatprep.subr.bf16.mxu0 0
  %828 = vmatpush1.bf16.msra.mxu0 %v581
  %829 = vmatprep.subr.bf16.mxu0 0
  %830 = vmatpush1.bf16.msra.mxu0 %v580
  %831 = vmatprep.subr.bf16.mxu0 0
  %832 = vmatpush1.bf16.msra.mxu0 %v579
  %833 = vmatprep.subr.bf16.mxu0 0
  %834 = vmatpush1.bf16.msra.mxu0 %v578
  %835 = vmatprep.subr.bf16.mxu0 0
  %836 = vmatpush1.bf16.msra.mxu0 %v577
  %837 = vmatprep.subr.bf16.mxu0 0
  %838 = vmatpush1.bf16.msra.mxu0 %v576
  %839 = vmatprep.subr.bf16.mxu0 0
  %840 = vmatpush1.bf16.msra.mxu0 %v575
  %841 = vmatprep.subr.bf16.mxu0 0
  %842 = vmatpush2.bf16.msra.mxu0 0
  %843 = vmatprep.subr.bf16.mxu0 0
  %844 = vmatpush2.bf16.msra.mxu0 0
  %845 = vmatprep.subr.bf16.mxu0 0
  %846 = vmatpush2.bf16.msra.mxu0 0
  %847 = vmatprep.subr.bf16.mxu0 0
  %848 = vmatpush2.bf16.msra.mxu0 0
  %849 = vmatprep.subr.bf16.mxu0 0
  %850 = vmatpush2.bf16.msra.mxu0 0
  %851 = vmatprep.subr.bf16.mxu0 0
  %852 = vmatpush2.bf16.msra.mxu0 %v585
  %853 = vmatprep.subr.bf16.mxu0 0
  %854 = vmatpush2.bf16.msra.mxu0 %v584
  %855 = vmatprep.subr.bf16.mxu0 0
  %856 = vmatpush2.bf16.msra.mxu0 %v583
  %857 = vmatprep.mubr.bf16.mxu0 %v663
  %858 = vmatmul.mubr.bf16.gmra.mxu0 %v200
  %v859 = vpop.f32.mrf.mxu0
  %v860 = vadd.f32 %v820, %v859
  %v861 = vpop.f32.mrf.mxu0
  %v862 = vpop.f32.mrf.mxu0
  %v863 = vpop.f32.mrf.mxu0
  %864 = vdwg.mxu0
  %vm865 = vcmask 261120
  %866 = vst.msk [vmem:[%s3] sm:$0xff] %vm865, %v860
  // Predicated region
  $region14: #{eeg_channelnet_encoder.19} parent=0 // pred_check
    _
  $region15: #{eeg_channelnet_encoder.19} parent=0 // pred_check_branch
    %868 = sbr.rel (0) target = $region17
  $region16: #{eeg_channelnet_encoder.19} parent=0 // pred_region
    _
  $region17: #{eeg_channelnet_encoder.19} parent=0 // pred_fallthru
    _
  // Predicated region
  $region18: #{eeg_channelnet_encoder.19} parent=0 // pred_check
    _
  $region19: #{eeg_channelnet_encoder.19} parent=0 // pred_check_branch
    %870 = sbr.rel (0) target = $region21
  $region20: #{eeg_channelnet_encoder.19} parent=0 // pred_region
    _
  $region21: #{eeg_channelnet_encoder.19} parent=0 // pred_fallthru
    _

</llo_original>
